<compile_context>
chip_gen: v6e
topology: v6e:2x2x1
jax: 0.10.0
libtpu: 0.0.40
codegen_flags: <defaults>
</compile_context>

<pallas_src>
import jax
import jax.numpy as jnp
from jax.experimental import pallas as pl
from jax.experimental.pallas import tpu as pltpu

# Original (PyTorch) dims.
IN_DIM = 845
H1, H2, H3 = 1500, 700, 200
NEG_SLOPE = 0.01  # F.leaky_relu default negative_slope


def _round_up(x, m):
    return (x + m - 1) // m * m


# 128-padded (lane-aligned) dims.
IN_P = _round_up(IN_DIM, 128)   # 896
H1_P = _round_up(H1, 128)       # 1536
H2_P = _round_up(H2, 128)       # 768
H3_P = _round_up(H3, 128)       # 256


def _leaky_relu(x):
    return jnp.where(x > 0, x, NEG_SLOPE * x)


def qnetwork_kernel(x_ref,
                    w1_ref, b1_ref,
                    w2_ref, b2_ref,
                    w3_ref, b3_ref,
                    w4_ref, b4_ref,
                    out_ref):
    # One batch tile per grid step; all four layers fused.  bf16 MXU inputs,
    # f32 accumulation, bias add + LeakyReLU in f32, re-cast to bf16 between
    # layers.  Zero-padded weight rows/cols keep padded lanes exactly zero.
    x = x_ref[...]                                                   # bf16 [TB, IN_P]

    h = jnp.dot(x, w1_ref[...], preferred_element_type=jnp.float32) + b1_ref[...]
    h = _leaky_relu(h).astype(jnp.bfloat16)

    h = jnp.dot(h, w2_ref[...], preferred_element_type=jnp.float32) + b2_ref[...]
    h = _leaky_relu(h).astype(jnp.bfloat16)

    h = jnp.dot(h, w3_ref[...], preferred_element_type=jnp.float32) + b3_ref[...]
    h = _leaky_relu(h).astype(jnp.bfloat16)

    out = jnp.dot(h, w4_ref[...], preferred_element_type=jnp.float32) + b4_ref[...]
    out_ref[...] = out.astype(out_ref.dtype)


def qnetwork_forward(x, params, action_dim):
    """x: [B, 845] float32.  params: padded bf16 weights [in_p, out_p], f32 biases [1, out_p]."""
    B = x.shape[0]
    a_p = params["w4"].shape[1]   # padded action dim (multiple of 128)

    # Batch tile: at least 8 rows (sublane width), capped so everything fits
    # comfortably in v7x's 64 MiB VMEM alongside the resident bf16 weights.
    TB = min(256, _round_up(max(B, 8), 8))
    B_pad = _round_up(B, TB)

    # Zero-pad batch + feature axis, cast input to bf16.
    x_p = jnp.zeros((B_pad, IN_P), jnp.bfloat16)
    x_p = x_p.at[:B, :IN_DIM].set(x.astype(jnp.bfloat16))

    grid = (B_pad // TB,)

    # Weights/biases: constant block index -> DMA'd once, resident across
    # batch tiles.  x / out blocked over the batch axis.
    def wspec(shape):
        return pl.BlockSpec(shape, lambda i: (0, 0))

    weight_bytes = sum(int(params[k].size) * params[k].dtype.itemsize for k in params)
    flops = 2 * B_pad * (IN_P * H1_P + H1_P * H2_P + H2_P * H3_P + H3_P * a_p)
    cost = pl.CostEstimate(
        flops=flops,
        transcendentals=0,
        bytes_accessed=weight_bytes + x_p.size * 2 + B_pad * a_p * 4,
    )

    out_p = pl.pallas_call(
        qnetwork_kernel,
        out_shape=jax.ShapeDtypeStruct((B_pad, a_p), jnp.float32),
        grid=grid,
        in_specs=[
            pl.BlockSpec((TB, IN_P), lambda i: (i, 0)),
            wspec((IN_P, H1_P)), wspec((1, H1_P)),
            wspec((H1_P, H2_P)), wspec((1, H2_P)),
            wspec((H2_P, H3_P)), wspec((1, H3_P)),
            wspec((H3_P, a_p)), wspec((1, a_p)),
        ],
        out_specs=pl.BlockSpec((TB, a_p), lambda i: (i, 0)),
        compiler_params=pltpu.CompilerParams(
            dimension_semantics=("parallel",),
            vmem_limit_bytes=32 << 20,   # <= v7x's 64 MiB physical VMEM
        ),
        cost_estimate=cost,
    )(
        x_p,
        params["w1"], params["b1"],
        params["w2"], params["b2"],
        params["w3"], params["b3"],
        params["w4"], params["b4"],
    )
    # Slice padding back off (lane-dense store inside the kernel, cheap slice here).
    return out_p[:B, :action_dim]


def init_params(key, action_dim):
    """PyTorch-like nn.Linear init (uniform +/- 1/sqrt(fan_in)), stored as
    [in, out], zero-padded to 128-multiples, weights cast to bf16."""
    a_p = _round_up(max(action_dim, 1), 128)
    dims = [(IN_DIM, H1, IN_P, H1_P),
            (H1, H2, H1_P, H2_P),
            (H2, H3, H2_P, H3_P),
            (H3, action_dim, H3_P, a_p)]
    params = {}
    for i, (fi, fo, fi_p, fo_p) in enumerate(dims, start=1):
        key, kw, kb = jax.random.split(key, 3)
        bound = 1.0 / jnp.sqrt(float(fi))
        w = jax.random.uniform(kw, (fi, fo), jnp.float32, minval=-bound, maxval=bound)
        b = jax.random.uniform(kb, (1, fo), jnp.float32, minval=-bound, maxval=bound)
        w_p = jnp.zeros((fi_p, fo_p), jnp.float32).at[:fi, :fo].set(w)
        b_p = jnp.zeros((1, fo_p), jnp.float32).at[:, :fo].set(b)
        params[f"w{i}"] = w_p.astype(jnp.bfloat16)
        params[f"b{i}"] = b_p
    return params


def reference_forward(x, params, action_dim):
    """Pure-JAX reference with identical (padded, bf16) parameters and casts."""
    B = x.shape[0]
    h = jnp.zeros((B, IN_P), jnp.bfloat16).at[:, :IN_DIM].set(x.astype(jnp.bfloat16))
    for i in (1, 2, 3):
        y = jnp.dot(h, params[f"w{i}"], preferred_element_type=jnp.float32) + params[f"b{i}"]
        h = _leaky_relu(y).astype(jnp.bfloat16)
    out = jnp.dot(h, params["w4"], preferred_element_type=jnp.float32) + params["b4"]
    return out[:, :action_dim]


if __name__ == "__main__":
    ACTION_DIM = 32   # "32r" in the source filename
    BATCH = 4

    key = jax.random.PRNGKey(0)
    key, kx = jax.random.split(key)
    params = init_params(key, ACTION_DIM)
    x = jax.random.normal(kx, (BATCH, IN_DIM), jnp.float32)

    out = qnetwork_forward(x, params, ACTION_DIM)
    out = jax.block_until_ready(out)

    ref = reference_forward(x, params, ACTION_DIM)
    assert out.shape == (BATCH, ACTION_DIM), out.shape
    assert jnp.allclose(out, ref, atol=2e-2, rtol=2e-2), "mismatch vs JAX reference"

    print("KERNEL_OK")
</pallas_src>

<mosaic_0001>
module attributes {stable_mosaic.version = 11 : i64} {
  func.func @qnetwork_kernel(%arg0: i32, %arg1: memref<8x896xbf16, #tpu.memory_space<vmem>>, %arg2: memref<896x1536xbf16, #tpu.memory_space<vmem>>, %arg3: memref<1x1536xf32, #tpu.memory_space<vmem>>, %arg4: memref<1536x768xbf16, #tpu.memory_space<vmem>>, %arg5: memref<1x768xf32, #tpu.memory_space<vmem>>, %arg6: memref<768x256xbf16, #tpu.memory_space<vmem>>, %arg7: memref<1x256xf32, #tpu.memory_space<vmem>>, %arg8: memref<256x128xbf16, #tpu.memory_space<vmem>>, %arg9: memref<1x128xf32, #tpu.memory_space<vmem>>, %arg10: memref<8x128xf32, #tpu.memory_space<vmem>>) attributes {dimension_semantics = [#tpu.dimension_semantics<parallel>], iteration_bounds = array<i64: 1>, scalar_prefetch = 0 : i64, scratch_operands = 0 : i64, tpu.core_type = #tpu.core_type<tc>, window_params = [{transform_indices = @transform_0, window_bounds = array<i64: 8, 896>}, {pipeline_mode = #tpu.pipeline_mode<synchronous>, transform_indices = @transform_1, window_bounds = array<i64: 896, 1536>}, {pipeline_mode = #tpu.pipeline_mode<synchronous>, transform_indices = @transform_2, window_bounds = array<i64: 1, 1536>}, {pipeline_mode = #tpu.pipeline_mode<synchronous>, transform_indices = @transform_3, window_bounds = array<i64: 1536, 768>}, {pipeline_mode = #tpu.pipeline_mode<synchronous>, transform_indices = @transform_4, window_bounds = array<i64: 1, 768>}, {pipeline_mode = #tpu.pipeline_mode<synchronous>, transform_indices = @transform_5, window_bounds = array<i64: 768, 256>}, {pipeline_mode = #tpu.pipeline_mode<synchronous>, transform_indices = @transform_6, window_bounds = array<i64: 1, 256>}, {pipeline_mode = #tpu.pipeline_mode<synchronous>, transform_indices = @transform_7, window_bounds = array<i64: 256, 128>}, {pipeline_mode = #tpu.pipeline_mode<synchronous>, transform_indices = @transform_8, window_bounds = array<i64: 1, 128>}, {transform_indices = @transform_9, window_bounds = array<i64: 8, 128>}]} {
    %c0 = arith.constant 0 : index
    %c0_0 = arith.constant 0 : index
    %0 = vector.load %arg1[%c0, %c0_0] : memref<8x896xbf16, #tpu.memory_space<vmem>>, vector<8x896xbf16>
    %c0_1 = arith.constant 0 : index
    %c0_2 = arith.constant 0 : index
    %1 = vector.load %arg2[%c0_1, %c0_2] : memref<896x1536xbf16, #tpu.memory_space<vmem>>, vector<896x1536xbf16>
    %cst = arith.constant dense<0.000000e+00> : vector<8x1536xf32>
    %2 = tpu.matmul %0, %1, %cst {dimension_numbers = #tpu.dot_dimension_numbers<[1], [0], [0], [1], [0, 0, 1, 1], [], []>} : vector<8x896xbf16>, vector<896x1536xbf16>, vector<8x1536xf32> -> vector<8x1536xf32>
    %c0_3 = arith.constant 0 : index
    %c0_4 = arith.constant 0 : index
    %3 = vector.load %arg3[%c0_3, %c0_4] : memref<1x1536xf32, #tpu.memory_space<vmem>>, vector<1x1536xf32>
    %4 = vector.broadcast %3 : vector<1x1536xf32> to vector<8x1536xf32>
    %5 = arith.addf %2, %4 : vector<8x1536xf32>
    %cst_5 = arith.constant 0.000000e+00 : f32
    %6 = vector.broadcast %cst_5 : f32 to vector<8x1536xf32>
    %7 = arith.cmpf ogt, %5, %6 : vector<8x1536xf32>
    %cst_6 = arith.constant 0.00999999977 : f32
    %8 = vector.broadcast %cst_6 : f32 to vector<8x1536xf32>
    %9 = arith.mulf %8, %5 : vector<8x1536xf32>
    %10 = arith.select %7, %5, %9 : vector<8x1536xi1>, vector<8x1536xf32>
    %11 = arith.truncf %10 : vector<8x1536xf32> to vector<8x1536xbf16>
    %c0_7 = arith.constant 0 : index
    %c0_8 = arith.constant 0 : index
    %12 = vector.load %arg4[%c0_7, %c0_8] : memref<1536x768xbf16, #tpu.memory_space<vmem>>, vector<1536x768xbf16>
    %cst_9 = arith.constant dense<0.000000e+00> : vector<8x768xf32>
    %13 = tpu.matmul %11, %12, %cst_9 {dimension_numbers = #tpu.dot_dimension_numbers<[1], [0], [0], [1], [0, 0, 1, 1], [], []>} : vector<8x1536xbf16>, vector<1536x768xbf16>, vector<8x768xf32> -> vector<8x768xf32>
    %c0_10 = arith.constant 0 : index
    %c0_11 = arith.constant 0 : index
    %14 = vector.load %arg5[%c0_10, %c0_11] : memref<1x768xf32, #tpu.memory_space<vmem>>, vector<1x768xf32>
    %15 = vector.broadcast %14 : vector<1x768xf32> to vector<8x768xf32>
    %16 = arith.addf %13, %15 : vector<8x768xf32>
    %cst_12 = arith.constant 0.000000e+00 : f32
    %17 = vector.broadcast %cst_12 : f32 to vector<8x768xf32>
    %18 = arith.cmpf ogt, %16, %17 : vector<8x768xf32>
    %cst_13 = arith.constant 0.00999999977 : f32
    %19 = vector.broadcast %cst_13 : f32 to vector<8x768xf32>
    %20 = arith.mulf %19, %16 : vector<8x768xf32>
    %21 = arith.select %18, %16, %20 : vector<8x768xi1>, vector<8x768xf32>
    %22 = arith.truncf %21 : vector<8x768xf32> to vector<8x768xbf16>
    %c0_14 = arith.constant 0 : index
    %c0_15 = arith.constant 0 : index
    %23 = vector.load %arg6[%c0_14, %c0_15] : memref<768x256xbf16, #tpu.memory_space<vmem>>, vector<768x256xbf16>
    %cst_16 = arith.constant dense<0.000000e+00> : vector<8x256xf32>
    %24 = tpu.matmul %22, %23, %cst_16 {dimension_numbers = #tpu.dot_dimension_numbers<[1], [0], [0], [1], [0, 0, 1, 1], [], []>} : vector<8x768xbf16>, vector<768x256xbf16>, vector<8x256xf32> -> vector<8x256xf32>
    %c0_17 = arith.constant 0 : index
    %c0_18 = arith.constant 0 : index
    %25 = vector.load %arg7[%c0_17, %c0_18] : memref<1x256xf32, #tpu.memory_space<vmem>>, vector<1x256xf32>
    %26 = vector.broadcast %25 : vector<1x256xf32> to vector<8x256xf32>
    %27 = arith.addf %24, %26 : vector<8x256xf32>
    %cst_19 = arith.constant 0.000000e+00 : f32
    %28 = vector.broadcast %cst_19 : f32 to vector<8x256xf32>
    %29 = arith.cmpf ogt, %27, %28 : vector<8x256xf32>
    %cst_20 = arith.constant 0.00999999977 : f32
    %30 = vector.broadcast %cst_20 : f32 to vector<8x256xf32>
    %31 = arith.mulf %30, %27 : vector<8x256xf32>
    %32 = arith.select %29, %27, %31 : vector<8x256xi1>, vector<8x256xf32>
    %33 = arith.truncf %32 : vector<8x256xf32> to vector<8x256xbf16>
    %c0_21 = arith.constant 0 : index
    %c0_22 = arith.constant 0 : index
    %34 = vector.load %arg8[%c0_21, %c0_22] : memref<256x128xbf16, #tpu.memory_space<vmem>>, vector<256x128xbf16>
    %cst_23 = arith.constant dense<0.000000e+00> : vector<8x128xf32>
    %35 = tpu.matmul %33, %34, %cst_23 {dimension_numbers = #tpu.dot_dimension_numbers<[1], [0], [0], [1], [0, 0, 1, 1], [], []>} : vector<8x256xbf16>, vector<256x128xbf16>, vector<8x128xf32> -> vector<8x128xf32>
    %c0_24 = arith.constant 0 : index
    %c0_25 = arith.constant 0 : index
    %36 = vector.load %arg9[%c0_24, %c0_25] : memref<1x128xf32, #tpu.memory_space<vmem>>, vector<1x128xf32>
    %37 = vector.broadcast %36 : vector<1x128xf32> to vector<8x128xf32>
    %38 = arith.addf %35, %37 : vector<8x128xf32>
    %c0_26 = arith.constant 0 : index
    %c0_27 = arith.constant 0 : index
    %39 = vector.load %arg10[%c0_26, %c0_27] : memref<8x128xf32, #tpu.memory_space<vmem>>, vector<8x128xf32>
    tpu.vector_store %arg10[%c0_26, %c0_27], %38 {strides = array<i32>} : memref<8x128xf32, #tpu.memory_space<vmem>>, vector<8x128xf32>,
    return
  }
  func.func @transform_0(%arg0: i32) -> (i32, i32) {
    %c0_i32 = arith.constant 0 : i32
    %c0_i32_0 = arith.constant 0 : i32
    return %arg0, %c0_i32 : i32, i32
  }
  func.func @transform_1(%arg0: i32) -> (i32, i32) {
    %c0_i32 = arith.constant 0 : i32
    %c0_i32_0 = arith.constant 0 : i32
    %c0_i32_1 = arith.constant 0 : i32
    return %c0_i32, %c0_i32_0 : i32, i32
  }
  func.func @transform_2(%arg0: i32) -> (i32, i32) {
    %c0_i32 = arith.constant 0 : i32
    %c0_i32_0 = arith.constant 0 : i32
    %c0_i32_1 = arith.constant 0 : i32
    return %c0_i32, %c0_i32_0 : i32, i32
  }
  func.func @transform_3(%arg0: i32) -> (i32, i32) {
    %c0_i32 = arith.constant 0 : i32
    %c0_i32_0 = arith.constant 0 : i32
    %c0_i32_1 = arith.constant 0 : i32
    return %c0_i32, %c0_i32_0 : i32, i32
  }
  func.func @transform_4(%arg0: i32) -> (i32, i32) {
    %c0_i32 = arith.constant 0 : i32
    %c0_i32_0 = arith.constant 0 : i32
    %c0_i32_1 = arith.constant 0 : i32
    return %c0_i32, %c0_i32_0 : i32, i32
  }
  func.func @transform_5(%arg0: i32) -> (i32, i32) {
    %c0_i32 = arith.constant 0 : i32
    %c0_i32_0 = arith.constant 0 : i32
    %c0_i32_1 = arith.constant 0 : i32
    return %c0_i32, %c0_i32_0 : i32, i32
  }
  func.func @transform_6(%arg0: i32) -> (i32, i32) {
    %c0_i32 = arith.constant 0 : i32
    %c0_i32_0 = arith.constant 0 : i32
    %c0_i32_1 = arith.constant 0 : i32
    return %c0_i32, %c0_i32_0 : i32, i32
  }
  func.func @transform_7(%arg0: i32) -> (i32, i32) {
    %c0_i32 = arith.constant 0 : i32
    %c0_i32_0 = arith.constant 0 : i32
    %c0_i32_1 = arith.constant 0 : i32
    return %c0_i32, %c0_i32_0 : i32, i32
  }
  func.func @transform_8(%arg0: i32) -> (i32, i32) {
    %c0_i32 = arith.constant 0 : i32
    %c0_i32_0 = arith.constant 0 : i32
    %c0_i32_1 = arith.constant 0 : i32
    return %c0_i32, %c0_i32_0 : i32, i32
  }
  func.func @transform_9(%arg0: i32) -> (i32, i32) {
    %c0_i32 = arith.constant 0 : i32
    %c0_i32_0 = arith.constant 0 : i32
    return %arg0, %c0_i32 : i32, i32
  }
}

</mosaic_0001>

<llo_original>
// kernel: tpu_custom_call.1
$region0: #{tpu_custom_call.1}
  #allocation0 [shape = 'u32[]', space=smem, size = 0x4, offset = 0x4, fixed_abs, tag = 'smem constant byte address 0x4 - core index']
  #allocation1 [shape = 'u32[144,128]{1,0:T(1,128)}', space=vmem, size = 0x12000, scoped, tag = 'internal scratch']
  %s0 = inlined_call_operand.hbm [shape: bf16[8,896], index: 0, kind: input, shape index: {}]
  %s1 = inlined_call_operand.hbm [shape: bf16[896,1536], index: 1, kind: input, shape index: {}]
  %s2 = inlined_call_operand.hbm [shape: f32[1,1536], index: 2, kind: input, shape index: {}]
  %s3 = inlined_call_operand.hbm [shape: bf16[1536,768], index: 3, kind: input, shape index: {}]
  %s4 = inlined_call_operand.hbm [shape: f32[1,768], index: 4, kind: input, shape index: {}]
  %s5 = inlined_call_operand.hbm [shape: bf16[768,256], index: 5, kind: input, shape index: {}]
  %s6 = inlined_call_operand.hbm [shape: f32[1,256], index: 6, kind: input, shape index: {}]
  %s7 = inlined_call_operand.hbm [shape: bf16[256,128], index: 7, kind: input, shape index: {}]
  %s8 = inlined_call_operand.hbm [shape: f32[1,128], index: 8, kind: input, shape index: {}]
  %s9 = inlined_call_operand.hbm [shape: f32[8,128], index: 9, kind: output, shape index: {}]
  %s10 = sld [smem:[#allocation0]]
  $region82: #{tpu_custom_call.1} parent=0
    _
  %s12 = ssub.s32 1, %s10
  %s13 = scalar_select 0, %s12, %s10
  $region1: #{tpu_custom_call.1} parent=0
    #allocation2 [shape = 'u8[14336]{0}', space=vmem, size = 0x3800, scoped, tag = 'input window, operand 0, single buffered']
    #allocation3 [shape = 's32[1]{0}', space=sflag, size = 0x4, scoped, tag = 'scoped memory for tpu_custom_call.1']
    #allocation4 [shape = 's32[1]{0}', space=sflag, size = 0x4, scoped, tag = 'scoped memory for tpu_custom_call.1']
    #allocation5 [shape = 'u8[2752512]{0}', space=vmem, size = 0x2a0000, scoped, tag = 'input window, operand 1, single buffered']
    #allocation6 [shape = 's32[1]{0}', space=sflag, size = 0x4, scoped, tag = 'scoped memory for tpu_custom_call.1']
    #allocation7 [shape = 'u8[6144]{0}', space=vmem, size = 0x1800, scoped, tag = 'input window, operand 2, single buffered']
    #allocation8 [shape = 'u8[2359296]{0}', space=vmem, size = 0x240000, scoped, tag = 'input window, operand 3, single buffered']
    #allocation9 [shape = 's32[1]{0}', space=sflag, size = 0x4, scoped, tag = 'scoped memory for tpu_custom_call.1']
    #allocation10 [shape = 'u8[3072]{0}', space=vmem, size = 0xc00, scoped, tag = 'input window, operand 4, single buffered']
    #allocation11 [shape = 'u8[393216]{0}', space=vmem, size = 0x60000, scoped, tag = 'input window, operand 5, single buffered']
    #allocation12 [shape = 's32[1]{0}', space=sflag, size = 0x4, scoped, tag = 'scoped memory for tpu_custom_call.1']
    #allocation13 [shape = 'u8[1024]{0}', space=vmem, size = 0x400, scoped, tag = 'input window, operand 6, single buffered']
    #allocation14 [shape = 'u8[65536]{0}', space=vmem, size = 0x10000, scoped, tag = 'input window, operand 7, single buffered']
    #allocation15 [shape = 's32[1]{0}', space=sflag, size = 0x4, scoped, tag = 'scoped memory for tpu_custom_call.1']
    #allocation16 [shape = 'u8[512]{0}', space=vmem, size = 0x400, scoped, tag = 'input window, operand 8, single buffered']
    #allocation17 [shape = 'u8[4096]{0}', space=vmem, size = 0x1000, scoped, tag = 'output window, operand 0, single buffered']
    %14 = vsyncpa [#allocation3], 0
    %15 = vsyncpa [#allocation6], 0
    %16 = vsyncpa [#allocation9], 0
    %17 = vsyncpa [#allocation12], 0
    %18 = vsyncpa [#allocation15], 0
    %19 = vsyncpa [#allocation4], 0
    // Predicated region
    $region2: #{tpu_custom_call.1} parent=1 // pred_check
      _
    $region3: #{tpu_custom_call.1} parent=1 // pred_check_branch
      %21 = sbr.rel (0) target = $region5
    $region4: #{tpu_custom_call.1} parent=1 // pred_region
      %s23 = ssub.s32 448, 448
      %24 = vsyncadd [#allocation3], %s23
      %s26 = sshll.u32 [#allocation2], 4
      %s27 = int_to_ptr.vmem [resolvable:$true] %s26
      %29 = dma.hbm_to_vmem [thread:$0]  %s0, 448, %s27, [#allocation3]
    $region5: #{tpu_custom_call.1} parent=1 // pred_fallthru
      _
    // Predicated region
    $region6: #{tpu_custom_call.1} parent=1 // pred_check
      _
    $region7: #{tpu_custom_call.1} parent=1 // pred_check_branch
      %31 = sbr.rel (0) target = $region9
    $region8: #{tpu_custom_call.1} parent=1 // pred_region
      %s33 = ssub.s32 86016, 86016
      %34 = vsyncadd [#allocation6], %s33
      %s35 = sshll.u32 [#allocation5], 4
      %s36 = int_to_ptr.vmem [resolvable:$true] %s35
      %41 = dma.hbm_to_vmem [thread:$0]  %s1, 86016, %s36, [#allocation6], 768, 768, 48
    $region9: #{tpu_custom_call.1} parent=1 // pred_fallthru
      _
    // Predicated region
    $region10: #{tpu_custom_call.1} parent=1 // pred_check
      _
    $region11: #{tpu_custom_call.1} parent=1 // pred_check_branch
      %43 = sbr.rel (0) target = $region13
    $region12: #{tpu_custom_call.1} parent=1 // pred_region
      %s45 = ssub.s32 192, 192
      %46 = vsyncadd [#allocation6], %s45
      %s48 = sshll.u32 [#allocation7], 4
      %s49 = int_to_ptr.vmem [resolvable:$true] %s48
      %51 = dma.hbm_to_vmem [thread:$0]  %s2, 192, %s49, [#allocation6]
    $region13: #{tpu_custom_call.1} parent=1 // pred_fallthru
      _
    // Predicated region
    $region14: #{tpu_custom_call.1} parent=1 // pred_check
      _
    $region15: #{tpu_custom_call.1} parent=1 // pred_check_branch
      %53 = sbr.rel (0) target = $region17
    $region16: #{tpu_custom_call.1} parent=1 // pred_region
      %s55 = ssub.s32 73728, 73728
      %56 = vsyncadd [#allocation9], %s55
      %s57 = sshll.u32 [#allocation8], 4
      %s58 = int_to_ptr.vmem [resolvable:$true] %s57
      %63 = dma.hbm_to_vmem [thread:$0]  %s3, 73728, %s58, [#allocation9], 384, 384, 24
    $region17: #{tpu_custom_call.1} parent=1 // pred_fallthru
      _
    // Predicated region
    $region18: #{tpu_custom_call.1} parent=1 // pred_check
      _
    $region19: #{tpu_custom_call.1} parent=1 // pred_check_branch
      %65 = sbr.rel (0) target = $region21
    $region20: #{tpu_custom_call.1} parent=1 // pred_region
      %s67 = ssub.s32 96, 96
      %68 = vsyncadd [#allocation9], %s67
      %s70 = sshll.u32 [#allocation10], 4
      %s71 = int_to_ptr.vmem [resolvable:$true] %s70
      %73 = dma.hbm_to_vmem [thread:$0]  %s4, 96, %s71, [#allocation9]
    $region21: #{tpu_custom_call.1} parent=1 // pred_fallthru
      _
    // Predicated region
    $region22: #{tpu_custom_call.1} parent=1 // pred_check
      _
    $region23: #{tpu_custom_call.1} parent=1 // pred_check_branch
      %75 = sbr.rel (0) target = $region25
    $region24: #{tpu_custom_call.1} parent=1 // pred_region
      %s77 = ssub.s32 12288, 12288
      %78 = vsyncadd [#allocation12], %s77
      %s79 = sshll.u32 [#allocation11], 4
      %s80 = int_to_ptr.vmem [resolvable:$true] %s79
      %85 = dma.hbm_to_vmem [thread:$0]  %s5, 12288, %s80, [#allocation12], 128, 128, 8
    $region25: #{tpu_custom_call.1} parent=1 // pred_fallthru
      _
    // Predicated region
    $region26: #{tpu_custom_call.1} parent=1 // pred_check
      _
    $region27: #{tpu_custom_call.1} parent=1 // pred_check_branch
      %87 = sbr.rel (0) target = $region29
    $region28: #{tpu_custom_call.1} parent=1 // pred_region
      %s89 = ssub.s32 32, 32
      %90 = vsyncadd [#allocation12], %s89
      %s92 = sshll.u32 [#allocation13], 4
      %s93 = int_to_ptr.vmem [resolvable:$true] %s92
      %95 = dma.hbm_to_vmem [thread:$0]  %s6, 32, %s93, [#allocation12]
    $region29: #{tpu_custom_call.1} parent=1 // pred_fallthru
      _
    // Predicated region
    $region30: #{tpu_custom_call.1} parent=1 // pred_check
      _
    $region31: #{tpu_custom_call.1} parent=1 // pred_check_branch
      %97 = sbr.rel (0) target = $region33
    $region32: #{tpu_custom_call.1} parent=1 // pred_region
      %s99 = ssub.s32 2048, 2048
      %100 = vsyncadd [#allocation15], %s99
      %s101 = sshll.u32 [#allocation14], 4
      %s102 = int_to_ptr.vmem [resolvable:$true] %s101
      %107 = dma.hbm_to_vmem [thread:$0]  %s7, 2048, %s102, [#allocation15], 64, 64, 4
    $region33: #{tpu_custom_call.1} parent=1 // pred_fallthru
      _
    // Predicated region
    $region34: #{tpu_custom_call.1} parent=1 // pred_check
      _
    $region35: #{tpu_custom_call.1} parent=1 // pred_check_branch
      %109 = sbr.rel (0) target = $region37
    $region36: #{tpu_custom_call.1} parent=1 // pred_region
      %s111 = ssub.s32 16, 16
      %112 = vsyncadd [#allocation15], %s111
      %s114 = sshll.u32 [#allocation16], 4
      %s115 = int_to_ptr.vmem [resolvable:$true] %s114
      %117 = dma.hbm_to_vmem [thread:$0]  %s8, 16, %s115, [#allocation15]
    $region37: #{tpu_custom_call.1} parent=1 // pred_fallthru
      _
    // Predicated region
    $region38: #{tpu_custom_call.1} parent=1 // pred_check
      _
    $region39: #{tpu_custom_call.1} parent=1 // pred_check_branch
      %119 = sbr.rel (0) target = $region41
    $region40: #{tpu_custom_call.1} parent=1 // pred_region
      %120 = dma.done [#allocation3], 448
    $region41: #{tpu_custom_call.1} parent=1 // pred_fallthru
      _
    // Predicated region
    $region42: #{tpu_custom_call.1} parent=1 // pred_check
      _
    $region43: #{tpu_custom_call.1} parent=1 // pred_check_branch
      %122 = sbr.rel (0) target = $region45
    $region44: #{tpu_custom_call.1} parent=1 // pred_region
      %123 = dma.done [#allocation6], 86016
    $region45: #{tpu_custom_call.1} parent=1 // pred_fallthru
      _
    // Predicated region
    $region46: #{tpu_custom_call.1} parent=1 // pred_check
      _
    $region47: #{tpu_custom_call.1} parent=1 // pred_check_branch
      %125 = sbr.rel (0) target = $region49
    $region48: #{tpu_custom_call.1} parent=1 // pred_region
      %126 = dma.done [#allocation6], 192
    $region49: #{tpu_custom_call.1} parent=1 // pred_fallthru
      _
    // Predicated region
    $region50: #{tpu_custom_call.1} parent=1 // pred_check
      _
    $region51: #{tpu_custom_call.1} parent=1 // pred_check_branch
      %128 = sbr.rel (0) target = $region53
    $region52: #{tpu_custom_call.1} parent=1 // pred_region
      %129 = dma.done [#allocation9], 73728
    $region53: #{tpu_custom_call.1} parent=1 // pred_fallthru
      _
    // Predicated region
    $region54: #{tpu_custom_call.1} parent=1 // pred_check
      _
    $region55: #{tpu_custom_call.1} parent=1 // pred_check_branch
      %131 = sbr.rel (0) target = $region57
    $region56: #{tpu_custom_call.1} parent=1 // pred_region
      %132 = dma.done [#allocation9], 96
    $region57: #{tpu_custom_call.1} parent=1 // pred_fallthru
      _
    // Predicated region
    $region58: #{tpu_custom_call.1} parent=1 // pred_check
      _
    $region59: #{tpu_custom_call.1} parent=1 // pred_check_branch
      %134 = sbr.rel (0) target = $region61
    $region60: #{tpu_custom_call.1} parent=1 // pred_region
      %135 = dma.done [#allocation12], 12288
    $region61: #{tpu_custom_call.1} parent=1 // pred_fallthru
      _
    // Predicated region
    $region62: #{tpu_custom_call.1} parent=1 // pred_check
      _
    $region63: #{tpu_custom_call.1} parent=1 // pred_check_branch
      %137 = sbr.rel (0) target = $region65
    $region64: #{tpu_custom_call.1} parent=1 // pred_region
      %138 = dma.done [#allocation12], 32
    $region65: #{tpu_custom_call.1} parent=1 // pred_fallthru
      _
    // Predicated region
    $region66: #{tpu_custom_call.1} parent=1 // pred_check
      _
    $region67: #{tpu_custom_call.1} parent=1 // pred_check_branch
      %140 = sbr.rel (0) target = $region69
    $region68: #{tpu_custom_call.1} parent=1 // pred_region
      %141 = dma.done [#allocation15], 2048
    $region69: #{tpu_custom_call.1} parent=1 // pred_fallthru
      _
    // Predicated region
    $region70: #{tpu_custom_call.1} parent=1 // pred_check
      _
    $region71: #{tpu_custom_call.1} parent=1 // pred_check_branch
      %143 = sbr.rel (0) target = $region73
    $region72: #{tpu_custom_call.1} parent=1 // pred_region
      %144 = dma.done [#allocation15], 16
    $region73: #{tpu_custom_call.1} parent=1 // pred_fallthru
      _
    %v146 = vld [vmem:[#allocation2] sm:$0xff]
    %v147 = vld [vmem:[#allocation2 + $0x8] sm:$0xff]
    %v148 = vld [vmem:[#allocation2 + $0x10] sm:$0xff]
    %v149 = vld [vmem:[#allocation2 + $0x18] sm:$0xf]
    %v150 = vld [vmem:[#allocation5] sm:$0xff]
    %v151 = vld [vmem:[#allocation5 + $0x8] sm:$0xff]
    %v152 = vld [vmem:[#allocation5 + $0x10] sm:$0xff]
    %v153 = vld [vmem:[#allocation5 + $0x18] sm:$0xff]
    %v154 = vld [vmem:[#allocation5 + $0x20] sm:$0xff]
    %v155 = vld [vmem:[#allocation5 + $0x28] sm:$0xff]
    %v156 = vld [vmem:[#allocation5 + $0x30] sm:$0xff]
    %v157 = vld [vmem:[#allocation5 + $0x38] sm:$0xff]
    %v158 = vld [vmem:[#allocation5 + $0x40] sm:$0xff]
    %v159 = vld [vmem:[#allocation5 + $0x48] sm:$0xff]
    %v160 = vld [vmem:[#allocation5 + $0x50] sm:$0xff]
    %v161 = vld [vmem:[#allocation5 + $0x58] sm:$0xff]
    %v162 = vld [vmem:[#allocation5 + $0x60] sm:$0xff]
    %v163 = vld [vmem:[#allocation5 + $0x68] sm:$0xff]
    %v164 = vld [vmem:[#allocation5 + $0x70] sm:$0xff]
    %v165 = vld [vmem:[#allocation5 + $0x78] sm:$0xff]
    %v166 = vld [vmem:[#allocation5 + $0x80] sm:$0xff]
    %v167 = vld [vmem:[#allocation5 + $0x88] sm:$0xff]
    %v168 = vld [vmem:[#allocation5 + $0x90] sm:$0xff]
    %v169 = vld [vmem:[#allocation5 + $0x98] sm:$0xff]
    %v170 = vld [vmem:[#allocation5 + $0xa0] sm:$0xff]
    %v171 = vld [vmem:[#allocation5 + $0xa8] sm:$0xff]
    %v172 = vld [vmem:[#allocation5 + $0xb0] sm:$0xff]
    %v173 = vld [vmem:[#allocation5 + $0xb8] sm:$0xff]
    %v174 = vld [vmem:[#allocation5 + $0xc0] sm:$0xff]
    %v175 = vld [vmem:[#allocation5 + $0xc8] sm:$0xff]
    %v176 = vld [vmem:[#allocation5 + $0xd0] sm:$0xff]
    %v177 = vld [vmem:[#allocation5 + $0xd8] sm:$0xff]
    %v178 = vld [vmem:[#allocation5 + $0xe0] sm:$0xff]
    %v179 = vld [vmem:[#allocation5 + $0xe8] sm:$0xff]
    %v180 = vld [vmem:[#allocation5 + $0xf0] sm:$0xff]
    %v181 = vld [vmem:[#allocation5 + $0xf8] sm:$0xff]
    %v182 = vld [vmem:[#allocation5 + $0x100] sm:$0xff]
    %v183 = vld [vmem:[#allocation5 + $0x108] sm:$0xff]
    %v184 = vld [vmem:[#allocation5 + $0x110] sm:$0xff]
    %v185 = vld [vmem:[#allocation5 + $0x118] sm:$0xff]
    %v186 = vld [vmem:[#allocation5 + $0x120] sm:$0xff]
    %v187 = vld [vmem:[#allocation5 + $0x128] sm:$0xff]
    %v188 = vld [vmem:[#allocation5 + $0x130] sm:$0xff]
    %v189 = vld [vmem:[#allocation5 + $0x138] sm:$0xff]
    %v190 = vld [vmem:[#allocation5 + $0x140] sm:$0xff]
    %v191 = vld [vmem:[#allocation5 + $0x148] sm:$0xff]
    %v192 = vld [vmem:[#allocation5 + $0x150] sm:$0xff]
    %v193 = vld [vmem:[#allocation5 + $0x158] sm:$0xff]
    %v194 = vld [vmem:[#allocation5 + $0x160] sm:$0xff]
    %v195 = vld [vmem:[#allocation5 + $0x168] sm:$0xff]
    %v196 = vld [vmem:[#allocation5 + $0x170] sm:$0xff]
    %v197 = vld [vmem:[#allocation5 + $0x178] sm:$0xff]
    %v198 = vld [vmem:[#allocation5 + $0x180] sm:$0xff]
    %v199 = vld [vmem:[#allocation5 + $0x188] sm:$0xff]
    %v200 = vld [vmem:[#allocation5 + $0x190] sm:$0xff]
    %v201 = vld [vmem:[#allocation5 + $0x198] sm:$0xff]
    %v202 = vld [vmem:[#allocation5 + $0x1a0] sm:$0xff]
    %v203 = vld [vmem:[#allocation5 + $0x1a8] sm:$0xff]
    %v204 = vld [vmem:[#allocation5 + $0x1b0] sm:$0xff]
    %v205 = vld [vmem:[#allocation5 + $0x1b8] sm:$0xff]
    %v206 = vld [vmem:[#allocation5 + $0x1c0] sm:$0xff]
    %v207 = vld [vmem:[#allocation5 + $0x1c8] sm:$0xff]
    %v208 = vld [vmem:[#allocation5 + $0x1d0] sm:$0xff]
    %v209 = vld [vmem:[#allocation5 + $0x1d8] sm:$0xff]
    %v210 = vld [vmem:[#allocation5 + $0x1e0] sm:$0xff]
    %v211 = vld [vmem:[#allocation5 + $0x1e8] sm:$0xff]
    %v212 = vld [vmem:[#allocation5 + $0x1f0] sm:$0xff]
    %v213 = vld [vmem:[#allocation5 + $0x1f8] sm:$0xff]
    %v214 = vld [vmem:[#allocation5 + $0x200] sm:$0xff]
    %v215 = vld [vmem:[#allocation5 + $0x208] sm:$0xff]
    %v216 = vld [vmem:[#allocation5 + $0x210] sm:$0xff]
    %v217 = vld [vmem:[#allocation5 + $0x218] sm:$0xff]
    %v218 = vld [vmem:[#allocation5 + $0x220] sm:$0xff]
    %v219 = vld [vmem:[#allocation5 + $0x228] sm:$0xff]
    %v220 = vld [vmem:[#allocation5 + $0x230] sm:$0xff]
    %v221 = vld [vmem:[#allocation5 + $0x238] sm:$0xff]
    %v222 = vld [vmem:[#allocation5 + $0x240] sm:$0xff]
    %v223 = vld [vmem:[#allocation5 + $0x248] sm:$0xff]
    %v224 = vld [vmem:[#allocation5 + $0x250] sm:$0xff]
    %v225 = vld [vmem:[#allocation5 + $0x258] sm:$0xff]
    %v226 = vld [vmem:[#allocation5 + $0x260] sm:$0xff]
    %v227 = vld [vmem:[#allocation5 + $0x268] sm:$0xff]
    %v228 = vld [vmem:[#allocation5 + $0x270] sm:$0xff]
    %v229 = vld [vmem:[#allocation5 + $0x278] sm:$0xff]
    %v230 = vld [vmem:[#allocation5 + $0x280] sm:$0xff]
    %v231 = vld [vmem:[#allocation5 + $0x288] sm:$0xff]
    %v232 = vld [vmem:[#allocation5 + $0x290] sm:$0xff]
    %v233 = vld [vmem:[#allocation5 + $0x298] sm:$0xff]
    %v234 = vld [vmem:[#allocation5 + $0x2a0] sm:$0xff]
    %v235 = vld [vmem:[#allocation5 + $0x2a8] sm:$0xff]
    %v236 = vld [vmem:[#allocation5 + $0x2b0] sm:$0xff]
    %v237 = vld [vmem:[#allocation5 + $0x2b8] sm:$0xff]
    %v238 = vld [vmem:[#allocation5 + $0x2c0] sm:$0xff]
    %v239 = vld [vmem:[#allocation5 + $0x2c8] sm:$0xff]
    %v240 = vld [vmem:[#allocation5 + $0x2d0] sm:$0xff]
    %v241 = vld [vmem:[#allocation5 + $0x2d8] sm:$0xff]
    %v242 = vld [vmem:[#allocation5 + $0x2e0] sm:$0xff]
    %v243 = vld [vmem:[#allocation5 + $0x2e8] sm:$0xff]
    %v244 = vld [vmem:[#allocation5 + $0x2f0] sm:$0xff]
    %v245 = vld [vmem:[#allocation5 + $0x2f8] sm:$0xff]
    %v246 = vld [vmem:[#allocation5 + $0x300] sm:$0xff]
    %v247 = vld [vmem:[#allocation5 + $0x308] sm:$0xff]
    %v248 = vld [vmem:[#allocation5 + $0x310] sm:$0xff]
    %v249 = vld [vmem:[#allocation5 + $0x318] sm:$0xff]
    %v250 = vld [vmem:[#allocation5 + $0x320] sm:$0xff]
    %v251 = vld [vmem:[#allocation5 + $0x328] sm:$0xff]
    %v252 = vld [vmem:[#allocation5 + $0x330] sm:$0xff]
    %v253 = vld [vmem:[#allocation5 + $0x338] sm:$0xff]
    %v254 = vld [vmem:[#allocation5 + $0x340] sm:$0xff]
    %v255 = vld [vmem:[#allocation5 + $0x348] sm:$0xff]
    %v256 = vld [vmem:[#allocation5 + $0x350] sm:$0xff]
    %v257 = vld [vmem:[#allocation5 + $0x358] sm:$0xff]
    %v258 = vld [vmem:[#allocation5 + $0x360] sm:$0xff]
    %v259 = vld [vmem:[#allocation5 + $0x368] sm:$0xff]
    %v260 = vld [vmem:[#allocation5 + $0x370] sm:$0xff]
    %v261 = vld [vmem:[#allocation5 + $0x378] sm:$0xff]
    %v262 = vld [vmem:[#allocation5 + $0x380] sm:$0xff]
    %v263 = vld [vmem:[#allocation5 + $0x388] sm:$0xff]
    %v264 = vld [vmem:[#allocation5 + $0x390] sm:$0xff]
    %v265 = vld [vmem:[#allocation5 + $0x398] sm:$0xff]
    %v266 = vld [vmem:[#allocation5 + $0x3a0] sm:$0xff]
    %v267 = vld [vmem:[#allocation5 + $0x3a8] sm:$0xff]
    %v268 = vld [vmem:[#allocation5 + $0x3b0] sm:$0xff]
    %v269 = vld [vmem:[#allocation5 + $0x3b8] sm:$0xff]
    %v270 = vld [vmem:[#allocation5 + $0x3c0] sm:$0xff]
    %v271 = vld [vmem:[#allocation5 + $0x3c8] sm:$0xff]
    %v272 = vld [vmem:[#allocation5 + $0x3d0] sm:$0xff]
    %v273 = vld [vmem:[#allocation5 + $0x3d8] sm:$0xff]
    %v274 = vld [vmem:[#allocation5 + $0x3e0] sm:$0xff]
    %v275 = vld [vmem:[#allocation5 + $0x3e8] sm:$0xff]
    %v276 = vld [vmem:[#allocation5 + $0x3f0] sm:$0xff]
    %v277 = vld [vmem:[#allocation5 + $0x3f8] sm:$0xff]
    %v278 = vld [vmem:[#allocation5 + $0x400] sm:$0xff]
    %v279 = vld [vmem:[#allocation5 + $0x408] sm:$0xff]
    %v280 = vld [vmem:[#allocation5 + $0x410] sm:$0xff]
    %v281 = vld [vmem:[#allocation5 + $0x418] sm:$0xff]
    %v282 = vld [vmem:[#allocation5 + $0x420] sm:$0xff]
    %v283 = vld [vmem:[#allocation5 + $0x428] sm:$0xff]
    %v284 = vld [vmem:[#allocation5 + $0x430] sm:$0xff]
    %v285 = vld [vmem:[#allocation5 + $0x438] sm:$0xff]
    %v286 = vld [vmem:[#allocation5 + $0x440] sm:$0xff]
    %v287 = vld [vmem:[#allocation5 + $0x448] sm:$0xff]
    %v288 = vld [vmem:[#allocation5 + $0x450] sm:$0xff]
    %v289 = vld [vmem:[#allocation5 + $0x458] sm:$0xff]
    %v290 = vld [vmem:[#allocation5 + $0x460] sm:$0xff]
    %v291 = vld [vmem:[#allocation5 + $0x468] sm:$0xff]
    %v292 = vld [vmem:[#allocation5 + $0x470] sm:$0xff]
    %v293 = vld [vmem:[#allocation5 + $0x478] sm:$0xff]
    %v294 = vld [vmem:[#allocation5 + $0x480] sm:$0xff]
    %v295 = vld [vmem:[#allocation5 + $0x488] sm:$0xff]
    %v296 = vld [vmem:[#allocation5 + $0x490] sm:$0xff]
    %v297 = vld [vmem:[#allocation5 + $0x498] sm:$0xff]
    %v298 = vld [vmem:[#allocation5 + $0x4a0] sm:$0xff]
    %v299 = vld [vmem:[#allocation5 + $0x4a8] sm:$0xff]
    %v300 = vld [vmem:[#allocation5 + $0x4b0] sm:$0xff]
    %v301 = vld [vmem:[#allocation5 + $0x4b8] sm:$0xff]
    %v302 = vld [vmem:[#allocation5 + $0x4c0] sm:$0xff]
    %v303 = vld [vmem:[#allocation5 + $0x4c8] sm:$0xff]
    %v304 = vld [vmem:[#allocation5 + $0x4d0] sm:$0xff]
    %v305 = vld [vmem:[#allocation5 + $0x4d8] sm:$0xff]
    %v306 = vld [vmem:[#allocation5 + $0x4e0] sm:$0xff]
    %v307 = vld [vmem:[#allocation5 + $0x4e8] sm:$0xff]
    %v308 = vld [vmem:[#allocation5 + $0x4f0] sm:$0xff]
    %v309 = vld [vmem:[#allocation5 + $0x4f8] sm:$0xff]
    %v310 = vld [vmem:[#allocation5 + $0x500] sm:$0xff]
    %v311 = vld [vmem:[#allocation5 + $0x508] sm:$0xff]
    %v312 = vld [vmem:[#allocation5 + $0x510] sm:$0xff]
    %v313 = vld [vmem:[#allocation5 + $0x518] sm:$0xff]
    %v314 = vld [vmem:[#allocation5 + $0x520] sm:$0xff]
    %v315 = vld [vmem:[#allocation5 + $0x528] sm:$0xff]
    %v316 = vld [vmem:[#allocation5 + $0x530] sm:$0xff]
    %v317 = vld [vmem:[#allocation5 + $0x538] sm:$0xff]
    %v318 = vld [vmem:[#allocation5 + $0x540] sm:$0xff]
    %v319 = vld [vmem:[#allocation5 + $0x548] sm:$0xff]
    %v320 = vld [vmem:[#allocation5 + $0x550] sm:$0xff]
    %v321 = vld [vmem:[#allocation5 + $0x558] sm:$0xff]
    %v322 = vld [vmem:[#allocation5 + $0x560] sm:$0xff]
    %v323 = vld [vmem:[#allocation5 + $0x568] sm:$0xff]
    %v324 = vld [vmem:[#allocation5 + $0x570] sm:$0xff]
    %v325 = vld [vmem:[#allocation5 + $0x578] sm:$0xff]
    %v326 = vld [vmem:[#allocation5 + $0x580] sm:$0xff]
    %v327 = vld [vmem:[#allocation5 + $0x588] sm:$0xff]
    %v328 = vld [vmem:[#allocation5 + $0x590] sm:$0xff]
    %v329 = vld [vmem:[#allocation5 + $0x598] sm:$0xff]
    %v330 = vld [vmem:[#allocation5 + $0x5a0] sm:$0xff]
    %v331 = vld [vmem:[#allocation5 + $0x5a8] sm:$0xff]
    %v332 = vld [vmem:[#allocation5 + $0x5b0] sm:$0xff]
    %v333 = vld [vmem:[#allocation5 + $0x5b8] sm:$0xff]
    %v334 = vld [vmem:[#allocation5 + $0x5c0] sm:$0xff]
    %v335 = vld [vmem:[#allocation5 + $0x5c8] sm:$0xff]
    %v336 = vld [vmem:[#allocation5 + $0x5d0] sm:$0xff]
    %v337 = vld [vmem:[#allocation5 + $0x5d8] sm:$0xff]
    %v338 = vld [vmem:[#allocation5 + $0x5e0] sm:$0xff]
    %v339 = vld [vmem:[#allocation5 + $0x5e8] sm:$0xff]
    %v340 = vld [vmem:[#allocation5 + $0x5f0] sm:$0xff]
    %v341 = vld [vmem:[#allocation5 + $0x5f8] sm:$0xff]
    %v342 = vld [vmem:[#allocation5 + $0x600] sm:$0xff]
    %v343 = vld [vmem:[#allocation5 + $0x608] sm:$0xff]
    %v344 = vld [vmem:[#allocation5 + $0x610] sm:$0xff]
    %v345 = vld [vmem:[#allocation5 + $0x618] sm:$0xff]
    %v346 = vld [vmem:[#allocation5 + $0x620] sm:$0xff]
    %v347 = vld [vmem:[#allocation5 + $0x628] sm:$0xff]
    %v348 = vld [vmem:[#allocation5 + $0x630] sm:$0xff]
    %v349 = vld [vmem:[#allocation5 + $0x638] sm:$0xff]
    %v350 = vld [vmem:[#allocation5 + $0x640] sm:$0xff]
    %v351 = vld [vmem:[#allocation5 + $0x648] sm:$0xff]
    %v352 = vld [vmem:[#allocation5 + $0x650] sm:$0xff]
    %v353 = vld [vmem:[#allocation5 + $0x658] sm:$0xff]
    %v354 = vld [vmem:[#allocation5 + $0x660] sm:$0xff]
    %v355 = vld [vmem:[#allocation5 + $0x668] sm:$0xff]
    %v356 = vld [vmem:[#allocation5 + $0x670] sm:$0xff]
    %v357 = vld [vmem:[#allocation5 + $0x678] sm:$0xff]
    %v358 = vld [vmem:[#allocation5 + $0x680] sm:$0xff]
    %v359 = vld [vmem:[#allocation5 + $0x688] sm:$0xff]
    %v360 = vld [vmem:[#allocation5 + $0x690] sm:$0xff]
    %v361 = vld [vmem:[#allocation5 + $0x698] sm:$0xff]
    %v362 = vld [vmem:[#allocation5 + $0x6a0] sm:$0xff]
    %v363 = vld [vmem:[#allocation5 + $0x6a8] sm:$0xff]
    %v364 = vld [vmem:[#allocation5 + $0x6b0] sm:$0xff]
    %v365 = vld [vmem:[#allocation5 + $0x6b8] sm:$0xff]
    %v366 = vld [vmem:[#allocation5 + $0x6c0] sm:$0xff]
    %v367 = vld [vmem:[#allocation5 + $0x6c8] sm:$0xff]
    %v368 = vld [vmem:[#allocation5 + $0x6d0] sm:$0xff]
    %v369 = vld [vmem:[#allocation5 + $0x6d8] sm:$0xff]
    %v370 = vld [vmem:[#allocation5 + $0x6e0] sm:$0xff]
    %v371 = vld [vmem:[#allocation5 + $0x6e8] sm:$0xff]
    %v372 = vld [vmem:[#allocation5 + $0x6f0] sm:$0xff]
    %v373 = vld [vmem:[#allocation5 + $0x6f8] sm:$0xff]
    %v374 = vld [vmem:[#allocation5 + $0x700] sm:$0xff]
    %v375 = vld [vmem:[#allocation5 + $0x708] sm:$0xff]
    %v376 = vld [vmem:[#allocation5 + $0x710] sm:$0xff]
    %v377 = vld [vmem:[#allocation5 + $0x718] sm:$0xff]
    %v378 = vld [vmem:[#allocation5 + $0x720] sm:$0xff]
    %v379 = vld [vmem:[#allocation5 + $0x728] sm:$0xff]
    %v380 = vld [vmem:[#allocation5 + $0x730] sm:$0xff]
    %v381 = vld [vmem:[#allocation5 + $0x738] sm:$0xff]
    %v382 = vld [vmem:[#allocation5 + $0x740] sm:$0xff]
    %v383 = vld [vmem:[#allocation5 + $0x748] sm:$0xff]
    %v384 = vld [vmem:[#allocation5 + $0x750] sm:$0xff]
    %v385 = vld [vmem:[#allocation5 + $0x758] sm:$0xff]
    %v386 = vld [vmem:[#allocation5 + $0x760] sm:$0xff]
    %v387 = vld [vmem:[#allocation5 + $0x768] sm:$0xff]
    %v388 = vld [vmem:[#allocation5 + $0x770] sm:$0xff]
    %v389 = vld [vmem:[#allocation5 + $0x778] sm:$0xff]
    %v390 = vld [vmem:[#allocation5 + $0x780] sm:$0xff]
    %v391 = vld [vmem:[#allocation5 + $0x788] sm:$0xff]
    %v392 = vld [vmem:[#allocation5 + $0x790] sm:$0xff]
    %v393 = vld [vmem:[#allocation5 + $0x798] sm:$0xff]
    %v394 = vld [vmem:[#allocation5 + $0x7a0] sm:$0xff]
    %v395 = vld [vmem:[#allocation5 + $0x7a8] sm:$0xff]
    %v396 = vld [vmem:[#allocation5 + $0x7b0] sm:$0xff]
    %v397 = vld [vmem:[#allocation5 + $0x7b8] sm:$0xff]
    %v398 = vld [vmem:[#allocation5 + $0x7c0] sm:$0xff]
    %v399 = vld [vmem:[#allocation5 + $0x7c8] sm:$0xff]
    %v400 = vld [vmem:[#allocation5 + $0x7d0] sm:$0xff]
    %v401 = vld [vmem:[#allocation5 + $0x7d8] sm:$0xff]
    %v402 = vld [vmem:[#allocation5 + $0x7e0] sm:$0xff]
    %v403 = vld [vmem:[#allocation5 + $0x7e8] sm:$0xff]
    %v404 = vld [vmem:[#allocation5 + $0x7f0] sm:$0xff]
    %v405 = vld [vmem:[#allocation5 + $0x7f8] sm:$0xff]
    %v406 = vld [vmem:[#allocation5 + $0x800] sm:$0xff]
    %v407 = vld [vmem:[#allocation5 + $0x808] sm:$0xff]
    %v408 = vld [vmem:[#allocation5 + $0x810] sm:$0xff]
    %v409 = vld [vmem:[#allocation5 + $0x818] sm:$0xff]
    %v410 = vld [vmem:[#allocation5 + $0x820] sm:$0xff]
    %v411 = vld [vmem:[#allocation5 + $0x828] sm:$0xff]
    %v412 = vld [vmem:[#allocation5 + $0x830] sm:$0xff]
    %v413 = vld [vmem:[#allocation5 + $0x838] sm:$0xff]
    %v414 = vld [vmem:[#allocation5 + $0x840] sm:$0xff]
    %v415 = vld [vmem:[#allocation5 + $0x848] sm:$0xff]
    %v416 = vld [vmem:[#allocation5 + $0x850] sm:$0xff]
    %v417 = vld [vmem:[#allocation5 + $0x858] sm:$0xff]
    %v418 = vld [vmem:[#allocation5 + $0x860] sm:$0xff]
    %v419 = vld [vmem:[#allocation5 + $0x868] sm:$0xff]
    %v420 = vld [vmem:[#allocation5 + $0x870] sm:$0xff]
    %v421 = vld [vmem:[#allocation5 + $0x878] sm:$0xff]
    %v422 = vld [vmem:[#allocation5 + $0x880] sm:$0xff]
    %v423 = vld [vmem:[#allocation5 + $0x888] sm:$0xff]
    %v424 = vld [vmem:[#allocation5 + $0x890] sm:$0xff]
    %v425 = vld [vmem:[#allocation5 + $0x898] sm:$0xff]
    %v426 = vld [vmem:[#allocation5 + $0x8a0] sm:$0xff]
    %v427 = vld [vmem:[#allocation5 + $0x8a8] sm:$0xff]
    %v428 = vld [vmem:[#allocation5 + $0x8b0] sm:$0xff]
    %v429 = vld [vmem:[#allocation5 + $0x8b8] sm:$0xff]
    %v430 = vld [vmem:[#allocation5 + $0x8c0] sm:$0xff]
    %v431 = vld [vmem:[#allocation5 + $0x8c8] sm:$0xff]
    %v432 = vld [vmem:[#allocation5 + $0x8d0] sm:$0xff]
    %v433 = vld [vmem:[#allocation5 + $0x8d8] sm:$0xff]
    %v434 = vld [vmem:[#allocation5 + $0x8e0] sm:$0xff]
    %v435 = vld [vmem:[#allocation5 + $0x8e8] sm:$0xff]
    %v436 = vld [vmem:[#allocation5 + $0x8f0] sm:$0xff]
    %v437 = vld [vmem:[#allocation5 + $0x8f8] sm:$0xff]
    %v438 = vld [vmem:[#allocation5 + $0x900] sm:$0xff]
    %v439 = vld [vmem:[#allocation5 + $0x908] sm:$0xff]
    %v440 = vld [vmem:[#allocation5 + $0x910] sm:$0xff]
    %v441 = vld [vmem:[#allocation5 + $0x918] sm:$0xff]
    %v442 = vld [vmem:[#allocation5 + $0x920] sm:$0xff]
    %v443 = vld [vmem:[#allocation5 + $0x928] sm:$0xff]
    %v444 = vld [vmem:[#allocation5 + $0x930] sm:$0xff]
    %v445 = vld [vmem:[#allocation5 + $0x938] sm:$0xff]
    %v446 = vld [vmem:[#allocation5 + $0x940] sm:$0xff]
    %v447 = vld [vmem:[#allocation5 + $0x948] sm:$0xff]
    %v448 = vld [vmem:[#allocation5 + $0x950] sm:$0xff]
    %v449 = vld [vmem:[#allocation5 + $0x958] sm:$0xff]
    %v450 = vld [vmem:[#allocation5 + $0x960] sm:$0xff]
    %v451 = vld [vmem:[#allocation5 + $0x968] sm:$0xff]
    %v452 = vld [vmem:[#allocation5 + $0x970] sm:$0xff]
    %v453 = vld [vmem:[#allocation5 + $0x978] sm:$0xff]
    %v454 = vld [vmem:[#allocation5 + $0x980] sm:$0xff]
    %v455 = vld [vmem:[#allocation5 + $0x988] sm:$0xff]
    %v456 = vld [vmem:[#allocation5 + $0x990] sm:$0xff]
    %v457 = vld [vmem:[#allocation5 + $0x998] sm:$0xff]
    %v458 = vld [vmem:[#allocation5 + $0x9a0] sm:$0xff]
    %v459 = vld [vmem:[#allocation5 + $0x9a8] sm:$0xff]
    %v460 = vld [vmem:[#allocation5 + $0x9b0] sm:$0xff]
    %v461 = vld [vmem:[#allocation5 + $0x9b8] sm:$0xff]
    %v462 = vld [vmem:[#allocation5 + $0x9c0] sm:$0xff]
    %v463 = vld [vmem:[#allocation5 + $0x9c8] sm:$0xff]
    %v464 = vld [vmem:[#allocation5 + $0x9d0] sm:$0xff]
    %v465 = vld [vmem:[#allocation5 + $0x9d8] sm:$0xff]
    %v466 = vld [vmem:[#allocation5 + $0x9e0] sm:$0xff]
    %v467 = vld [vmem:[#allocation5 + $0x9e8] sm:$0xff]
    %v468 = vld [vmem:[#allocation5 + $0x9f0] sm:$0xff]
    %v469 = vld [vmem:[#allocation5 + $0x9f8] sm:$0xff]
    %v470 = vld [vmem:[#allocation5 + $0xa00] sm:$0xff]
    %v471 = vld [vmem:[#allocation5 + $0xa08] sm:$0xff]
    %v472 = vld [vmem:[#allocation5 + $0xa10] sm:$0xff]
    %v473 = vld [vmem:[#allocation5 + $0xa18] sm:$0xff]
    %v474 = vld [vmem:[#allocation5 + $0xa20] sm:$0xff]
    %v475 = vld [vmem:[#allocation5 + $0xa28] sm:$0xff]
    %v476 = vld [vmem:[#allocation5 + $0xa30] sm:$0xff]
    %v477 = vld [vmem:[#allocation5 + $0xa38] sm:$0xff]
    %v478 = vld [vmem:[#allocation5 + $0xa40] sm:$0xff]
    %v479 = vld [vmem:[#allocation5 + $0xa48] sm:$0xff]
    %v480 = vld [vmem:[#allocation5 + $0xa50] sm:$0xff]
    %v481 = vld [vmem:[#allocation5 + $0xa58] sm:$0xff]
    %v482 = vld [vmem:[#allocation5 + $0xa60] sm:$0xff]
    %v483 = vld [vmem:[#allocation5 + $0xa68] sm:$0xff]
    %v484 = vld [vmem:[#allocation5 + $0xa70] sm:$0xff]
    %v485 = vld [vmem:[#allocation5 + $0xa78] sm:$0xff]
    %v486 = vld [vmem:[#allocation5 + $0xa80] sm:$0xff]
    %v487 = vld [vmem:[#allocation5 + $0xa88] sm:$0xff]
    %v488 = vld [vmem:[#allocation5 + $0xa90] sm:$0xff]
    %v489 = vld [vmem:[#allocation5 + $0xa98] sm:$0xff]
    %v490 = vld [vmem:[#allocation5 + $0xaa0] sm:$0xff]
    %v491 = vld [vmem:[#allocation5 + $0xaa8] sm:$0xff]
    %v492 = vld [vmem:[#allocation5 + $0xab0] sm:$0xff]
    %v493 = vld [vmem:[#allocation5 + $0xab8] sm:$0xff]
    %v494 = vld [vmem:[#allocation5 + $0xac0] sm:$0xff]
    %v495 = vld [vmem:[#allocation5 + $0xac8] sm:$0xff]
    %v496 = vld [vmem:[#allocation5 + $0xad0] sm:$0xff]
    %v497 = vld [vmem:[#allocation5 + $0xad8] sm:$0xff]
    %v498 = vld [vmem:[#allocation5 + $0xae0] sm:$0xff]
    %v499 = vld [vmem:[#allocation5 + $0xae8] sm:$0xff]
    %v500 = vld [vmem:[#allocation5 + $0xaf0] sm:$0xff]
    %v501 = vld [vmem:[#allocation5 + $0xaf8] sm:$0xff]
    %v502 = vld [vmem:[#allocation5 + $0xb00] sm:$0xff]
    %v503 = vld [vmem:[#allocation5 + $0xb08] sm:$0xff]
    %v504 = vld [vmem:[#allocation5 + $0xb10] sm:$0xff]
    %v505 = vld [vmem:[#allocation5 + $0xb18] sm:$0xff]
    %v506 = vld [vmem:[#allocation5 + $0xb20] sm:$0xff]
    %v507 = vld [vmem:[#allocation5 + $0xb28] sm:$0xff]
    %v508 = vld [vmem:[#allocation5 + $0xb30] sm:$0xff]
    %v509 = vld [vmem:[#allocation5 + $0xb38] sm:$0xff]
    %v510 = vld [vmem:[#allocation5 + $0xb40] sm:$0xff]
    %v511 = vld [vmem:[#allocation5 + $0xb48] sm:$0xff]
    %v512 = vld [vmem:[#allocation5 + $0xb50] sm:$0xff]
    %v513 = vld [vmem:[#allocation5 + $0xb58] sm:$0xff]
    %v514 = vld [vmem:[#allocation5 + $0xb60] sm:$0xff]
    %v515 = vld [vmem:[#allocation5 + $0xb68] sm:$0xff]
    %v516 = vld [vmem:[#allocation5 + $0xb70] sm:$0xff]
    %v517 = vld [vmem:[#allocation5 + $0xb78] sm:$0xff]
    %v518 = vld [vmem:[#allocation5 + $0xb80] sm:$0xff]
    %v519 = vld [vmem:[#allocation5 + $0xb88] sm:$0xff]
    %v520 = vld [vmem:[#allocation5 + $0xb90] sm:$0xff]
    %v521 = vld [vmem:[#allocation5 + $0xb98] sm:$0xff]
    %v522 = vld [vmem:[#allocation5 + $0xba0] sm:$0xff]
    %v523 = vld [vmem:[#allocation5 + $0xba8] sm:$0xff]
    %v524 = vld [vmem:[#allocation5 + $0xbb0] sm:$0xff]
    %v525 = vld [vmem:[#allocation5 + $0xbb8] sm:$0xff]
    %v526 = vld [vmem:[#allocation5 + $0xbc0] sm:$0xff]
    %v527 = vld [vmem:[#allocation5 + $0xbc8] sm:$0xff]
    %v528 = vld [vmem:[#allocation5 + $0xbd0] sm:$0xff]
    %v529 = vld [vmem:[#allocation5 + $0xbd8] sm:$0xff]
    %v530 = vld [vmem:[#allocation5 + $0xbe0] sm:$0xff]
    %v531 = vld [vmem:[#allocation5 + $0xbe8] sm:$0xff]
    %v532 = vld [vmem:[#allocation5 + $0xbf0] sm:$0xff]
    %v533 = vld [vmem:[#allocation5 + $0xbf8] sm:$0xff]
    %v534 = vld [vmem:[#allocation5 + $0xc00] sm:$0xff]
    %v535 = vld [vmem:[#allocation5 + $0xc08] sm:$0xff]
    %v536 = vld [vmem:[#allocation5 + $0xc10] sm:$0xff]
    %v537 = vld [vmem:[#allocation5 + $0xc18] sm:$0xff]
    %v538 = vld [vmem:[#allocation5 + $0xc20] sm:$0xff]
    %v539 = vld [vmem:[#allocation5 + $0xc28] sm:$0xff]
    %v540 = vld [vmem:[#allocation5 + $0xc30] sm:$0xff]
    %v541 = vld [vmem:[#allocation5 + $0xc38] sm:$0xff]
    %v542 = vld [vmem:[#allocation5 + $0xc40] sm:$0xff]
    %v543 = vld [vmem:[#allocation5 + $0xc48] sm:$0xff]
    %v544 = vld [vmem:[#allocation5 + $0xc50] sm:$0xff]
    %v545 = vld [vmem:[#allocation5 + $0xc58] sm:$0xff]
    %v546 = vld [vmem:[#allocation5 + $0xc60] sm:$0xff]
    %v547 = vld [vmem:[#allocation5 + $0xc68] sm:$0xff]
    %v548 = vld [vmem:[#allocation5 + $0xc70] sm:$0xff]
    %v549 = vld [vmem:[#allocation5 + $0xc78] sm:$0xff]
    %v550 = vld [vmem:[#allocation5 + $0xc80] sm:$0xff]
    %v551 = vld [vmem:[#allocation5 + $0xc88] sm:$0xff]
    %v552 = vld [vmem:[#allocation5 + $0xc90] sm:$0xff]
    %v553 = vld [vmem:[#allocation5 + $0xc98] sm:$0xff]
    %v554 = vld [vmem:[#allocation5 + $0xca0] sm:$0xff]
    %v555 = vld [vmem:[#allocation5 + $0xca8] sm:$0xff]
    %v556 = vld [vmem:[#allocation5 + $0xcb0] sm:$0xff]
    %v557 = vld [vmem:[#allocation5 + $0xcb8] sm:$0xff]
    %v558 = vld [vmem:[#allocation5 + $0xcc0] sm:$0xff]
    %v559 = vld [vmem:[#allocation5 + $0xcc8] sm:$0xff]
    %v560 = vld [vmem:[#allocation5 + $0xcd0] sm:$0xff]
    %v561 = vld [vmem:[#allocation5 + $0xcd8] sm:$0xff]
    %v562 = vld [vmem:[#allocation5 + $0xce0] sm:$0xff]
    %v563 = vld [vmem:[#allocation5 + $0xce8] sm:$0xff]
    %v564 = vld [vmem:[#allocation5 + $0xcf0] sm:$0xff]
    %v565 = vld [vmem:[#allocation5 + $0xcf8] sm:$0xff]
    %v566 = vld [vmem:[#allocation5 + $0xd00] sm:$0xff]
    %v567 = vld [vmem:[#allocation5 + $0xd08] sm:$0xff]
    %v568 = vld [vmem:[#allocation5 + $0xd10] sm:$0xff]
    %v569 = vld [vmem:[#allocation5 + $0xd18] sm:$0xff]
    %v570 = vld [vmem:[#allocation5 + $0xd20] sm:$0xff]
    %v571 = vld [vmem:[#allocation5 + $0xd28] sm:$0xff]
    %v572 = vld [vmem:[#allocation5 + $0xd30] sm:$0xff]
    %v573 = vld [vmem:[#allocation5 + $0xd38] sm:$0xff]
    %v574 = vld [vmem:[#allocation5 + $0xd40] sm:$0xff]
    %v575 = vld [vmem:[#allocation5 + $0xd48] sm:$0xff]
    %v576 = vld [vmem:[#allocation5 + $0xd50] sm:$0xff]
    %v577 = vld [vmem:[#allocation5 + $0xd58] sm:$0xff]
    %v578 = vld [vmem:[#allocation5 + $0xd60] sm:$0xff]
    %v579 = vld [vmem:[#allocation5 + $0xd68] sm:$0xff]
    %v580 = vld [vmem:[#allocation5 + $0xd70] sm:$0xff]
    %v581 = vld [vmem:[#allocation5 + $0xd78] sm:$0xff]
    %v582 = vld [vmem:[#allocation5 + $0xd80] sm:$0xff]
    %v583 = vld [vmem:[#allocation5 + $0xd88] sm:$0xff]
    %v584 = vld [vmem:[#allocation5 + $0xd90] sm:$0xff]
    %v585 = vld [vmem:[#allocation5 + $0xd98] sm:$0xff]
    %v586 = vld [vmem:[#allocation5 + $0xda0] sm:$0xff]
    %v587 = vld [vmem:[#allocation5 + $0xda8] sm:$0xff]
    %v588 = vld [vmem:[#allocation5 + $0xdb0] sm:$0xff]
    %v589 = vld [vmem:[#allocation5 + $0xdb8] sm:$0xff]
    %v590 = vld [vmem:[#allocation5 + $0xdc0] sm:$0xff]
    %v591 = vld [vmem:[#allocation5 + $0xdc8] sm:$0xff]
    %v592 = vld [vmem:[#allocation5 + $0xdd0] sm:$0xff]
    %v593 = vld [vmem:[#allocation5 + $0xdd8] sm:$0xff]
    %v594 = vld [vmem:[#allocation5 + $0xde0] sm:$0xff]
    %v595 = vld [vmem:[#allocation5 + $0xde8] sm:$0xff]
    %v596 = vld [vmem:[#allocation5 + $0xdf0] sm:$0xff]
    %v597 = vld [vmem:[#allocation5 + $0xdf8] sm:$0xff]
    %v598 = vld [vmem:[#allocation5 + $0xe00] sm:$0xff]
    %v599 = vld [vmem:[#allocation5 + $0xe08] sm:$0xff]
    %v600 = vld [vmem:[#allocation5 + $0xe10] sm:$0xff]
    %v601 = vld [vmem:[#allocation5 + $0xe18] sm:$0xff]
    %v602 = vld [vmem:[#allocation5 + $0xe20] sm:$0xff]
    %v603 = vld [vmem:[#allocation5 + $0xe28] sm:$0xff]
    %v604 = vld [vmem:[#allocation5 + $0xe30] sm:$0xff]
    %v605 = vld [vmem:[#allocation5 + $0xe38] sm:$0xff]
    %v606 = vld [vmem:[#allocation5 + $0xe40] sm:$0xff]
    %v607 = vld [vmem:[#allocation5 + $0xe48] sm:$0xff]
    %v608 = vld [vmem:[#allocation5 + $0xe50] sm:$0xff]
    %v609 = vld [vmem:[#allocation5 + $0xe58] sm:$0xff]
    %v610 = vld [vmem:[#allocation5 + $0xe60] sm:$0xff]
    %v611 = vld [vmem:[#allocation5 + $0xe68] sm:$0xff]
    %v612 = vld [vmem:[#allocation5 + $0xe70] sm:$0xff]
    %v613 = vld [vmem:[#allocation5 + $0xe78] sm:$0xff]
    %v614 = vld [vmem:[#allocation5 + $0xe80] sm:$0xff]
    %v615 = vld [vmem:[#allocation5 + $0xe88] sm:$0xff]
    %v616 = vld [vmem:[#allocation5 + $0xe90] sm:$0xff]
    %v617 = vld [vmem:[#allocation5 + $0xe98] sm:$0xff]
    %v618 = vld [vmem:[#allocation5 + $0xea0] sm:$0xff]
    %v619 = vld [vmem:[#allocation5 + $0xea8] sm:$0xff]
    %v620 = vld [vmem:[#allocation5 + $0xeb0] sm:$0xff]
    %v621 = vld [vmem:[#allocation5 + $0xeb8] sm:$0xff]
    %v622 = vld [vmem:[#allocation5 + $0xec0] sm:$0xff]
    %v623 = vld [vmem:[#allocation5 + $0xec8] sm:$0xff]
    %v624 = vld [vmem:[#allocation5 + $0xed0] sm:$0xff]
    %v625 = vld [vmem:[#allocation5 + $0xed8] sm:$0xff]
    %v626 = vld [vmem:[#allocation5 + $0xee0] sm:$0xff]
    %v627 = vld [vmem:[#allocation5 + $0xee8] sm:$0xff]
    %v628 = vld [vmem:[#allocation5 + $0xef0] sm:$0xff]
    %v629 = vld [vmem:[#allocation5 + $0xef8] sm:$0xff]
    %v630 = vld [vmem:[#allocation5 + $0xf00] sm:$0xff]
    %v631 = vld [vmem:[#allocation5 + $0xf08] sm:$0xff]
    %v632 = vld [vmem:[#allocation5 + $0xf10] sm:$0xff]
    %v633 = vld [vmem:[#allocation5 + $0xf18] sm:$0xff]
    %v634 = vld [vmem:[#allocation5 + $0xf20] sm:$0xff]
    %v635 = vld [vmem:[#allocation5 + $0xf28] sm:$0xff]
    %v636 = vld [vmem:[#allocation5 + $0xf30] sm:$0xff]
    %v637 = vld [vmem:[#allocation5 + $0xf38] sm:$0xff]
    %v638 = vld [vmem:[#allocation5 + $0xf40] sm:$0xff]
    %v639 = vld [vmem:[#allocation5 + $0xf48] sm:$0xff]
    %v640 = vld [vmem:[#allocation5 + $0xf50] sm:$0xff]
    %v641 = vld [vmem:[#allocation5 + $0xf58] sm:$0xff]
    %v642 = vld [vmem:[#allocation5 + $0xf60] sm:$0xff]
    %v643 = vld [vmem:[#allocation5 + $0xf68] sm:$0xff]
    %v644 = vld [vmem:[#allocation5 + $0xf70] sm:$0xff]
    %v645 = vld [vmem:[#allocation5 + $0xf78] sm:$0xff]
    %v646 = vld [vmem:[#allocation5 + $0xf80] sm:$0xff]
    %v647 = vld [vmem:[#allocation5 + $0xf88] sm:$0xff]
    %v648 = vld [vmem:[#allocation5 + $0xf90] sm:$0xff]
    %v649 = vld [vmem:[#allocation5 + $0xf98] sm:$0xff]
    %v650 = vld [vmem:[#allocation5 + $0xfa0] sm:$0xff]
    %v651 = vld [vmem:[#allocation5 + $0xfa8] sm:$0xff]
    %v652 = vld [vmem:[#allocation5 + $0xfb0] sm:$0xff]
    %v653 = vld [vmem:[#allocation5 + $0xfb8] sm:$0xff]
    %v654 = vld [vmem:[#allocation5 + $0xfc0] sm:$0xff]
    %v655 = vld [vmem:[#allocation5 + $0xfc8] sm:$0xff]
    %v656 = vld [vmem:[#allocation5 + $0xfd0] sm:$0xff]
    %v657 = vld [vmem:[#allocation5 + $0xfd8] sm:$0xff]
    %v658 = vld [vmem:[#allocation5 + $0xfe0] sm:$0xff]
    %v659 = vld [vmem:[#allocation5 + $0xfe8] sm:$0xff]
    %v660 = vld [vmem:[#allocation5 + $0xff0] sm:$0xff]
    %v661 = vld [vmem:[#allocation5 + $0xff8] sm:$0xff]
    %v662 = vld [vmem:[#allocation5 + $0x1000] sm:$0xff]
    %v663 = vld [vmem:[#allocation5 + $0x1008] sm:$0xff]
    %v664 = vld [vmem:[#allocation5 + $0x1010] sm:$0xff]
    %v665 = vld [vmem:[#allocation5 + $0x1018] sm:$0xff]
    %v666 = vld [vmem:[#allocation5 + $0x1020] sm:$0xff]
    %v667 = vld [vmem:[#allocation5 + $0x1028] sm:$0xff]
    %v668 = vld [vmem:[#allocation5 + $0x1030] sm:$0xff]
    %v669 = vld [vmem:[#allocation5 + $0x1038] sm:$0xff]
    %v670 = vld [vmem:[#allocation5 + $0x1040] sm:$0xff]
    %v671 = vld [vmem:[#allocation5 + $0x1048] sm:$0xff]
    %v672 = vld [vmem:[#allocation5 + $0x1050] sm:$0xff]
    %v673 = vld [vmem:[#allocation5 + $0x1058] sm:$0xff]
    %v674 = vld [vmem:[#allocation5 + $0x1060] sm:$0xff]
    %v675 = vld [vmem:[#allocation5 + $0x1068] sm:$0xff]
    %v676 = vld [vmem:[#allocation5 + $0x1070] sm:$0xff]
    %v677 = vld [vmem:[#allocation5 + $0x1078] sm:$0xff]
    %v678 = vld [vmem:[#allocation5 + $0x1080] sm:$0xff]
    %v679 = vld [vmem:[#allocation5 + $0x1088] sm:$0xff]
    %v680 = vld [vmem:[#allocation5 + $0x1090] sm:$0xff]
    %v681 = vld [vmem:[#allocation5 + $0x1098] sm:$0xff]
    %v682 = vld [vmem:[#allocation5 + $0x10a0] sm:$0xff]
    %v683 = vld [vmem:[#allocation5 + $0x10a8] sm:$0xff]
    %v684 = vld [vmem:[#allocation5 + $0x10b0] sm:$0xff]
    %v685 = vld [vmem:[#allocation5 + $0x10b8] sm:$0xff]
    %v686 = vld [vmem:[#allocation5 + $0x10c0] sm:$0xff]
    %v687 = vld [vmem:[#allocation5 + $0x10c8] sm:$0xff]
    %v688 = vld [vmem:[#allocation5 + $0x10d0] sm:$0xff]
    %v689 = vld [vmem:[#allocation5 + $0x10d8] sm:$0xff]
    %v690 = vld [vmem:[#allocation5 + $0x10e0] sm:$0xff]
    %v691 = vld [vmem:[#allocation5 + $0x10e8] sm:$0xff]
    %v692 = vld [vmem:[#allocation5 + $0x10f0] sm:$0xff]
    %v693 = vld [vmem:[#allocation5 + $0x10f8] sm:$0xff]
    %v694 = vld [vmem:[#allocation5 + $0x1100] sm:$0xff]
    %v695 = vld [vmem:[#allocation5 + $0x1108] sm:$0xff]
    %v696 = vld [vmem:[#allocation5 + $0x1110] sm:$0xff]
    %v697 = vld [vmem:[#allocation5 + $0x1118] sm:$0xff]
    %v698 = vld [vmem:[#allocation5 + $0x1120] sm:$0xff]
    %v699 = vld [vmem:[#allocation5 + $0x1128] sm:$0xff]
    %v700 = vld [vmem:[#allocation5 + $0x1130] sm:$0xff]
    %v701 = vld [vmem:[#allocation5 + $0x1138] sm:$0xff]
    %v702 = vld [vmem:[#allocation5 + $0x1140] sm:$0xff]
    %v703 = vld [vmem:[#allocation5 + $0x1148] sm:$0xff]
    %v704 = vld [vmem:[#allocation5 + $0x1150] sm:$0xff]
    %v705 = vld [vmem:[#allocation5 + $0x1158] sm:$0xff]
    %v706 = vld [vmem:[#allocation5 + $0x1160] sm:$0xff]
    %v707 = vld [vmem:[#allocation5 + $0x1168] sm:$0xff]
    %v708 = vld [vmem:[#allocation5 + $0x1170] sm:$0xff]
    %v709 = vld [vmem:[#allocation5 + $0x1178] sm:$0xff]
    %v710 = vld [vmem:[#allocation5 + $0x1180] sm:$0xff]
    %v711 = vld [vmem:[#allocation5 + $0x1188] sm:$0xff]
    %v712 = vld [vmem:[#allocation5 + $0x1190] sm:$0xff]
    %v713 = vld [vmem:[#allocation5 + $0x1198] sm:$0xff]
    %v714 = vld [vmem:[#allocation5 + $0x11a0] sm:$0xff]
    %v715 = vld [vmem:[#allocation5 + $0x11a8] sm:$0xff]
    %v716 = vld [vmem:[#allocation5 + $0x11b0] sm:$0xff]
    %v717 = vld [vmem:[#allocation5 + $0x11b8] sm:$0xff]
    %v718 = vld [vmem:[#allocation5 + $0x11c0] sm:$0xff]
    %v719 = vld [vmem:[#allocation5 + $0x11c8] sm:$0xff]
    %v720 = vld [vmem:[#allocation5 + $0x11d0] sm:$0xff]
    %v721 = vld [vmem:[#allocation5 + $0x11d8] sm:$0xff]
    %v722 = vld [vmem:[#allocation5 + $0x11e0] sm:$0xff]
    %v723 = vld [vmem:[#allocation5 + $0x11e8] sm:$0xff]
    %v724 = vld [vmem:[#allocation5 + $0x11f0] sm:$0xff]
    %v725 = vld [vmem:[#allocation5 + $0x11f8] sm:$0xff]
    %v726 = vld [vmem:[#allocation5 + $0x1200] sm:$0xff]
    %v727 = vld [vmem:[#allocation5 + $0x1208] sm:$0xff]
    %v728 = vld [vmem:[#allocation5 + $0x1210] sm:$0xff]
    %v729 = vld [vmem:[#allocation5 + $0x1218] sm:$0xff]
    %v730 = vld [vmem:[#allocation5 + $0x1220] sm:$0xff]
    %v731 = vld [vmem:[#allocation5 + $0x1228] sm:$0xff]
    %v732 = vld [vmem:[#allocation5 + $0x1230] sm:$0xff]
    %v733 = vld [vmem:[#allocation5 + $0x1238] sm:$0xff]
    %v734 = vld [vmem:[#allocation5 + $0x1240] sm:$0xff]
    %v735 = vld [vmem:[#allocation5 + $0x1248] sm:$0xff]
    %v736 = vld [vmem:[#allocation5 + $0x1250] sm:$0xff]
    %v737 = vld [vmem:[#allocation5 + $0x1258] sm:$0xff]
    %v738 = vld [vmem:[#allocation5 + $0x1260] sm:$0xff]
    %v739 = vld [vmem:[#allocation5 + $0x1268] sm:$0xff]
    %v740 = vld [vmem:[#allocation5 + $0x1270] sm:$0xff]
    %v741 = vld [vmem:[#allocation5 + $0x1278] sm:$0xff]
    %v742 = vld [vmem:[#allocation5 + $0x1280] sm:$0xff]
    %v743 = vld [vmem:[#allocation5 + $0x1288] sm:$0xff]
    %v744 = vld [vmem:[#allocation5 + $0x1290] sm:$0xff]
    %v745 = vld [vmem:[#allocation5 + $0x1298] sm:$0xff]
    %v746 = vld [vmem:[#allocation5 + $0x12a0] sm:$0xff]
    %v747 = vld [vmem:[#allocation5 + $0x12a8] sm:$0xff]
    %v748 = vld [vmem:[#allocation5 + $0x12b0] sm:$0xff]
    %v749 = vld [vmem:[#allocation5 + $0x12b8] sm:$0xff]
    %v750 = vld [vmem:[#allocation5 + $0x12c0] sm:$0xff]
    %v751 = vld [vmem:[#allocation5 + $0x12c8] sm:$0xff]
    %v752 = vld [vmem:[#allocation5 + $0x12d0] sm:$0xff]
    %v753 = vld [vmem:[#allocation5 + $0x12d8] sm:$0xff]
    %v754 = vld [vmem:[#allocation5 + $0x12e0] sm:$0xff]
    %v755 = vld [vmem:[#allocation5 + $0x12e8] sm:$0xff]
    %v756 = vld [vmem:[#allocation5 + $0x12f0] sm:$0xff]
    %v757 = vld [vmem:[#allocation5 + $0x12f8] sm:$0xff]
    %v758 = vld [vmem:[#allocation5 + $0x1300] sm:$0xff]
    %v759 = vld [vmem:[#allocation5 + $0x1308] sm:$0xff]
    %v760 = vld [vmem:[#allocation5 + $0x1310] sm:$0xff]
    %v761 = vld [vmem:[#allocation5 + $0x1318] sm:$0xff]
    %v762 = vld [vmem:[#allocation5 + $0x1320] sm:$0xff]
    %v763 = vld [vmem:[#allocation5 + $0x1328] sm:$0xff]
    %v764 = vld [vmem:[#allocation5 + $0x1330] sm:$0xff]
    %v765 = vld [vmem:[#allocation5 + $0x1338] sm:$0xff]
    %v766 = vld [vmem:[#allocation5 + $0x1340] sm:$0xff]
    %v767 = vld [vmem:[#allocation5 + $0x1348] sm:$0xff]
    %v768 = vld [vmem:[#allocation5 + $0x1350] sm:$0xff]
    %v769 = vld [vmem:[#allocation5 + $0x1358] sm:$0xff]
    %v770 = vld [vmem:[#allocation5 + $0x1360] sm:$0xff]
    %v771 = vld [vmem:[#allocation5 + $0x1368] sm:$0xff]
    %v772 = vld [vmem:[#allocation5 + $0x1370] sm:$0xff]
    %v773 = vld [vmem:[#allocation5 + $0x1378] sm:$0xff]
    %v774 = vld [vmem:[#allocation5 + $0x1380] sm:$0xff]
    %v775 = vld [vmem:[#allocation5 + $0x1388] sm:$0xff]
    %v776 = vld [vmem:[#allocation5 + $0x1390] sm:$0xff]
    %v777 = vld [vmem:[#allocation5 + $0x1398] sm:$0xff]
    %v778 = vld [vmem:[#allocation5 + $0x13a0] sm:$0xff]
    %v779 = vld [vmem:[#allocation5 + $0x13a8] sm:$0xff]
    %v780 = vld [vmem:[#allocation5 + $0x13b0] sm:$0xff]
    %v781 = vld [vmem:[#allocation5 + $0x13b8] sm:$0xff]
    %v782 = vld [vmem:[#allocation5 + $0x13c0] sm:$0xff]
    %v783 = vld [vmem:[#allocation5 + $0x13c8] sm:$0xff]
    %v784 = vld [vmem:[#allocation5 + $0x13d0] sm:$0xff]
    %v785 = vld [vmem:[#allocation5 + $0x13d8] sm:$0xff]
    %v786 = vld [vmem:[#allocation5 + $0x13e0] sm:$0xff]
    %v787 = vld [vmem:[#allocation5 + $0x13e8] sm:$0xff]
    %v788 = vld [vmem:[#allocation5 + $0x13f0] sm:$0xff]
    %v789 = vld [vmem:[#allocation5 + $0x13f8] sm:$0xff]
    %v790 = vld [vmem:[#allocation5 + $0x1400] sm:$0xff]
    %v791 = vld [vmem:[#allocation5 + $0x1408] sm:$0xff]
    %v792 = vld [vmem:[#allocation5 + $0x1410] sm:$0xff]
    %v793 = vld [vmem:[#allocation5 + $0x1418] sm:$0xff]
    %v794 = vld [vmem:[#allocation5 + $0x1420] sm:$0xff]
    %v795 = vld [vmem:[#allocation5 + $0x1428] sm:$0xff]
    %v796 = vld [vmem:[#allocation5 + $0x1430] sm:$0xff]
    %v797 = vld [vmem:[#allocation5 + $0x1438] sm:$0xff]
    %v798 = vld [vmem:[#allocation5 + $0x1440] sm:$0xff]
    %v799 = vld [vmem:[#allocation5 + $0x1448] sm:$0xff]
    %v800 = vld [vmem:[#allocation5 + $0x1450] sm:$0xff]
    %v801 = vld [vmem:[#allocation5 + $0x1458] sm:$0xff]
    %v802 = vld [vmem:[#allocation5 + $0x1460] sm:$0xff]
    %v803 = vld [vmem:[#allocation5 + $0x1468] sm:$0xff]
    %v804 = vld [vmem:[#allocation5 + $0x1470] sm:$0xff]
    %v805 = vld [vmem:[#allocation5 + $0x1478] sm:$0xff]
    %v806 = vld [vmem:[#allocation5 + $0x1480] sm:$0xff]
    %v807 = vld [vmem:[#allocation5 + $0x1488] sm:$0xff]
    %v808 = vld [vmem:[#allocation5 + $0x1490] sm:$0xff]
    %v809 = vld [vmem:[#allocation5 + $0x1498] sm:$0xff]
    %v810 = vld [vmem:[#allocation5 + $0x14a0] sm:$0xff]
    %v811 = vld [vmem:[#allocation5 + $0x14a8] sm:$0xff]
    %v812 = vld [vmem:[#allocation5 + $0x14b0] sm:$0xff]
    %v813 = vld [vmem:[#allocation5 + $0x14b8] sm:$0xff]
    %v814 = vld [vmem:[#allocation5 + $0x14c0] sm:$0xff]
    %v815 = vld [vmem:[#allocation5 + $0x14c8] sm:$0xff]
    %v816 = vld [vmem:[#allocation5 + $0x14d0] sm:$0xff]
    %v817 = vld [vmem:[#allocation5 + $0x14d8] sm:$0xff]
    %v818 = vld [vmem:[#allocation5 + $0x14e0] sm:$0xff]
    %v819 = vld [vmem:[#allocation5 + $0x14e8] sm:$0xff]
    %v820 = vld [vmem:[#allocation5 + $0x14f0] sm:$0xff]
    %v821 = vld [vmem:[#allocation5 + $0x14f8] sm:$0xff]
    %v822 = vld [vmem:[#allocation7] sm:$0xff]
    %v823 = vld [vmem:[#allocation7 + $0x8] sm:$0xf]
    %v826 = vlaneseq
    %v827 = vshrl.u32 %v826, 7
    %v828 = vsub.s32 0, %v827
    %v829 = vrot.slane %v822, %v828
    %v830 = vlaneseq
    %v831 = vshrl.u32 %v830, 7
    %v832 = vsub.s32 1, %v831
    %v833 = vrot.slane %v822, %v832
    %v834 = vlaneseq
    %v835 = vshrl.u32 %v834, 7
    %v836 = vsub.s32 2, %v835
    %v837 = vrot.slane %v822, %v836
    %v838 = vlaneseq
    %v839 = vshrl.u32 %v838, 7
    %v840 = vsub.s32 3, %v839
    %v841 = vrot.slane %v822, %v840
    %v842 = vlaneseq
    %v843 = vshrl.u32 %v842, 7
    %v844 = vsub.s32 4, %v843
    %v845 = vrot.slane %v822, %v844
    %v846 = vlaneseq
    %v847 = vshrl.u32 %v846, 7
    %v848 = vsub.s32 5, %v847
    %v849 = vrot.slane %v822, %v848
    %v850 = vlaneseq
    %v851 = vshrl.u32 %v850, 7
    %v852 = vsub.s32 6, %v851
    %v853 = vrot.slane %v822, %v852
    %v854 = vlaneseq
    %v855 = vshrl.u32 %v854, 7
    %v856 = vsub.s32 7, %v855
    %v857 = vrot.slane %v822, %v856
    %v858 = vlaneseq
    %v859 = vshrl.u32 %v858, 7
    %v860 = vsub.s32 0, %v859
    %v861 = vrot.slane %v823, %v860
    %v862 = vlaneseq
    %v863 = vshrl.u32 %v862, 7
    %v864 = vsub.s32 1, %v863
    %v865 = vrot.slane %v823, %v864
    %v866 = vlaneseq
    %v867 = vshrl.u32 %v866, 7
    %v868 = vsub.s32 2, %v867
    %v869 = vrot.slane %v823, %v868
    %v870 = vlaneseq
    %v871 = vshrl.u32 %v870, 7
    %v872 = vsub.s32 3, %v871
    %v873 = vrot.slane %v823, %v872
    %v890 = vunpack.c.l.b16 %v146
    %v891 = vunpack.c.h.b16 %v146
    %v892 = vunpack.c.l.b16 %v147
    %v893 = vunpack.c.h.b16 %v147
    %v894 = vunpack.c.l.b16 %v148
    %v895 = vunpack.c.h.b16 %v148
    %v896 = vunpack.c.l.b16 %v149
    %v897 = vpack.c.b16 %v890, %v890
    %v898 = vpack.c.b16 %v891, %v891
    %v899 = vpack.c.b16 %v892, %v892
    %v900 = vpack.c.b16 %v893, %v893
    %v901 = vpack.c.b16 %v894, %v894
    %v902 = vpack.c.b16 %v895, %v895
    %v903 = vpack.c.b16 %v896, %v896
    %v1583 = vunpack.c.l.b16 %v150
    %v1584 = vunpack.c.h.b16 %v150
    %v1585 = vunpack.c.l.b16 %v151
    %v1586 = vunpack.c.h.b16 %v151
    %v1587 = vunpack.c.l.b16 %v152
    %v1588 = vunpack.c.h.b16 %v152
    %v1589 = vunpack.c.l.b16 %v153
    %v1590 = vunpack.c.h.b16 %v153
    %v1591 = vunpack.c.l.b16 %v154
    %v1592 = vunpack.c.h.b16 %v154
    %v1593 = vunpack.c.l.b16 %v155
    %v1594 = vunpack.c.h.b16 %v155
    %v1595 = vunpack.c.l.b16 %v156
    %v1596 = vunpack.c.h.b16 %v156
    %v1597 = vunpack.c.l.b16 %v157
    %v1598 = vunpack.c.h.b16 %v157
    %v1599 = vunpack.c.l.b16 %v158
    %v1600 = vunpack.c.h.b16 %v158
    %v1601 = vunpack.c.l.b16 %v159
    %v1602 = vunpack.c.h.b16 %v159
    %v1603 = vunpack.c.l.b16 %v160
    %v1604 = vunpack.c.h.b16 %v160
    %v1605 = vunpack.c.l.b16 %v161
    %v1606 = vunpack.c.h.b16 %v161
    %v1607 = vunpack.c.l.b16 %v162
    %v1608 = vunpack.c.h.b16 %v162
    %v1609 = vunpack.c.l.b16 %v163
    %v1610 = vunpack.c.h.b16 %v163
    %v1611 = vunpack.c.l.b16 %v164
    %v1612 = vunpack.c.h.b16 %v164
    %v1613 = vunpack.c.l.b16 %v165
    %v1614 = vunpack.c.h.b16 %v165
    %v1615 = vunpack.c.l.b16 %v166
    %v1616 = vunpack.c.h.b16 %v166
    %v1617 = vunpack.c.l.b16 %v167
    %v1618 = vunpack.c.h.b16 %v167
    %v1619 = vunpack.c.l.b16 %v168
    %v1620 = vunpack.c.h.b16 %v168
    %v1621 = vunpack.c.l.b16 %v169
    %v1622 = vunpack.c.h.b16 %v169
    %v1623 = vunpack.c.l.b16 %v170
    %v1624 = vunpack.c.h.b16 %v170
    %v1625 = vunpack.c.l.b16 %v171
    %v1626 = vunpack.c.h.b16 %v171
    %v1627 = vunpack.c.l.b16 %v172
    %v1628 = vunpack.c.h.b16 %v172
    %v1629 = vunpack.c.l.b16 %v173
    %v1630 = vunpack.c.h.b16 %v173
    %v1631 = vunpack.c.l.b16 %v174
    %v1632 = vunpack.c.h.b16 %v174
    %v1633 = vunpack.c.l.b16 %v175
    %v1634 = vunpack.c.h.b16 %v175
    %v1635 = vunpack.c.l.b16 %v176
    %v1636 = vunpack.c.h.b16 %v176
    %v1637 = vunpack.c.l.b16 %v177
    %v1638 = vunpack.c.h.b16 %v177
    %v1639 = vunpack.c.l.b16 %v178
    %v1640 = vunpack.c.h.b16 %v178
    %v1641 = vunpack.c.l.b16 %v179
    %v1642 = vunpack.c.h.b16 %v179
    %v1643 = vunpack.c.l.b16 %v180
    %v1644 = vunpack.c.h.b16 %v180
    %v1645 = vunpack.c.l.b16 %v181
    %v1646 = vunpack.c.h.b16 %v181
    %v1647 = vunpack.c.l.b16 %v182
    %v1648 = vunpack.c.h.b16 %v182
    %v1649 = vunpack.c.l.b16 %v183
    %v1650 = vunpack.c.h.b16 %v183
    %v1651 = vunpack.c.l.b16 %v184
    %v1652 = vunpack.c.h.b16 %v184
    %v1653 = vunpack.c.l.b16 %v185
    %v1654 = vunpack.c.h.b16 %v185
    %v1655 = vunpack.c.l.b16 %v186
    %v1656 = vunpack.c.h.b16 %v186
    %v1657 = vunpack.c.l.b16 %v187
    %v1658 = vunpack.c.h.b16 %v187
    %v1659 = vunpack.c.l.b16 %v188
    %v1660 = vunpack.c.h.b16 %v188
    %v1661 = vunpack.c.l.b16 %v189
    %v1662 = vunpack.c.h.b16 %v189
    %v1663 = vunpack.c.l.b16 %v190
    %v1664 = vunpack.c.h.b16 %v190
    %v1665 = vunpack.c.l.b16 %v191
    %v1666 = vunpack.c.h.b16 %v191
    %v1667 = vunpack.c.l.b16 %v192
    %v1668 = vunpack.c.h.b16 %v192
    %v1669 = vunpack.c.l.b16 %v193
    %v1670 = vunpack.c.h.b16 %v193
    %v1671 = vunpack.c.l.b16 %v194
    %v1672 = vunpack.c.h.b16 %v194
    %v1673 = vunpack.c.l.b16 %v195
    %v1674 = vunpack.c.h.b16 %v195
    %v1675 = vunpack.c.l.b16 %v196
    %v1676 = vunpack.c.h.b16 %v196
    %v1677 = vunpack.c.l.b16 %v197
    %v1678 = vunpack.c.h.b16 %v197
    %v1679 = vunpack.c.l.b16 %v198
    %v1680 = vunpack.c.h.b16 %v198
    %v1681 = vunpack.c.l.b16 %v199
    %v1682 = vunpack.c.h.b16 %v199
    %v1683 = vunpack.c.l.b16 %v200
    %v1684 = vunpack.c.h.b16 %v200
    %v1685 = vunpack.c.l.b16 %v201
    %v1686 = vunpack.c.h.b16 %v201
    %v1687 = vunpack.c.l.b16 %v202
    %v1688 = vunpack.c.h.b16 %v202
    %v1689 = vunpack.c.l.b16 %v203
    %v1690 = vunpack.c.h.b16 %v203
    %v1691 = vunpack.c.l.b16 %v204
    %v1692 = vunpack.c.h.b16 %v204
    %v1693 = vunpack.c.l.b16 %v205
    %v1694 = vunpack.c.h.b16 %v205
    %v1695 = vunpack.c.l.b16 %v206
    %v1696 = vunpack.c.h.b16 %v206
    %v1697 = vunpack.c.l.b16 %v207
    %v1698 = vunpack.c.h.b16 %v207
    %v1699 = vunpack.c.l.b16 %v208
    %v1700 = vunpack.c.h.b16 %v208
    %v1701 = vunpack.c.l.b16 %v209
    %v1702 = vunpack.c.h.b16 %v209
    %v1703 = vunpack.c.l.b16 %v210
    %v1704 = vunpack.c.h.b16 %v210
    %v1705 = vunpack.c.l.b16 %v211
    %v1706 = vunpack.c.h.b16 %v211
    %v1707 = vunpack.c.l.b16 %v212
    %v1708 = vunpack.c.h.b16 %v212
    %v1709 = vunpack.c.l.b16 %v213
    %v1710 = vunpack.c.h.b16 %v213
    %v1711 = vunpack.c.l.b16 %v214
    %v1712 = vunpack.c.h.b16 %v214
    %v1713 = vunpack.c.l.b16 %v215
    %v1714 = vunpack.c.h.b16 %v215
    %v1715 = vunpack.c.l.b16 %v216
    %v1716 = vunpack.c.h.b16 %v216
    %v1717 = vunpack.c.l.b16 %v217
    %v1718 = vunpack.c.h.b16 %v217
    %v1719 = vunpack.c.l.b16 %v218
    %v1720 = vunpack.c.h.b16 %v218
    %v1721 = vunpack.c.l.b16 %v219
    %v1722 = vunpack.c.h.b16 %v219
    %v1723 = vunpack.c.l.b16 %v220
    %v1724 = vunpack.c.h.b16 %v220
    %v1725 = vunpack.c.l.b16 %v221
    %v1726 = vunpack.c.h.b16 %v221
    %v1727 = vunpack.c.l.b16 %v222
    %v1728 = vunpack.c.h.b16 %v222
    %v1729 = vunpack.c.l.b16 %v223
    %v1730 = vunpack.c.h.b16 %v223
    %v1731 = vunpack.c.l.b16 %v224
    %v1732 = vunpack.c.h.b16 %v224
    %v1733 = vunpack.c.l.b16 %v225
    %v1734 = vunpack.c.h.b16 %v225
    %v1735 = vunpack.c.l.b16 %v226
    %v1736 = vunpack.c.h.b16 %v226
    %v1737 = vunpack.c.l.b16 %v227
    %v1738 = vunpack.c.h.b16 %v227
    %v1739 = vunpack.c.l.b16 %v228
    %v1740 = vunpack.c.h.b16 %v228
    %v1741 = vunpack.c.l.b16 %v229
    %v1742 = vunpack.c.h.b16 %v229
    %v1743 = vunpack.c.l.b16 %v230
    %v1744 = vunpack.c.h.b16 %v230
    %v1745 = vunpack.c.l.b16 %v231
    %v1746 = vunpack.c.h.b16 %v231
    %v1747 = vunpack.c.l.b16 %v232
    %v1748 = vunpack.c.h.b16 %v232
    %v1749 = vunpack.c.l.b16 %v233
    %v1750 = vunpack.c.h.b16 %v233
    %v1751 = vunpack.c.l.b16 %v234
    %v1752 = vunpack.c.h.b16 %v234
    %v1753 = vunpack.c.l.b16 %v235
    %v1754 = vunpack.c.h.b16 %v235
    %v1755 = vunpack.c.l.b16 %v236
    %v1756 = vunpack.c.h.b16 %v236
    %v1757 = vunpack.c.l.b16 %v237
    %v1758 = vunpack.c.h.b16 %v237
    %v1759 = vunpack.c.l.b16 %v238
    %v1760 = vunpack.c.h.b16 %v238
    %v1761 = vunpack.c.l.b16 %v239
    %v1762 = vunpack.c.h.b16 %v239
    %v1763 = vunpack.c.l.b16 %v240
    %v1764 = vunpack.c.h.b16 %v240
    %v1765 = vunpack.c.l.b16 %v241
    %v1766 = vunpack.c.h.b16 %v241
    %v1767 = vunpack.c.l.b16 %v242
    %v1768 = vunpack.c.h.b16 %v242
    %v1769 = vunpack.c.l.b16 %v243
    %v1770 = vunpack.c.h.b16 %v243
    %v1771 = vunpack.c.l.b16 %v244
    %v1772 = vunpack.c.h.b16 %v244
    %v1773 = vunpack.c.l.b16 %v245
    %v1774 = vunpack.c.h.b16 %v245
    %v1775 = vunpack.c.l.b16 %v246
    %v1776 = vunpack.c.h.b16 %v246
    %v1777 = vunpack.c.l.b16 %v247
    %v1778 = vunpack.c.h.b16 %v247
    %v1779 = vunpack.c.l.b16 %v248
    %v1780 = vunpack.c.h.b16 %v248
    %v1781 = vunpack.c.l.b16 %v249
    %v1782 = vunpack.c.h.b16 %v249
    %v1783 = vunpack.c.l.b16 %v250
    %v1784 = vunpack.c.h.b16 %v250
    %v1785 = vunpack.c.l.b16 %v251
    %v1786 = vunpack.c.h.b16 %v251
    %v1787 = vunpack.c.l.b16 %v252
    %v1788 = vunpack.c.h.b16 %v252
    %v1789 = vunpack.c.l.b16 %v253
    %v1790 = vunpack.c.h.b16 %v253
    %v1791 = vunpack.c.l.b16 %v254
    %v1792 = vunpack.c.h.b16 %v254
    %v1793 = vunpack.c.l.b16 %v255
    %v1794 = vunpack.c.h.b16 %v255
    %v1795 = vunpack.c.l.b16 %v256
    %v1796 = vunpack.c.h.b16 %v256
    %v1797 = vunpack.c.l.b16 %v257
    %v1798 = vunpack.c.h.b16 %v257
    %v1799 = vunpack.c.l.b16 %v258
    %v1800 = vunpack.c.h.b16 %v258
    %v1801 = vunpack.c.l.b16 %v259
    %v1802 = vunpack.c.h.b16 %v259
    %v1803 = vunpack.c.l.b16 %v260
    %v1804 = vunpack.c.h.b16 %v260
    %v1805 = vunpack.c.l.b16 %v261
    %v1806 = vunpack.c.h.b16 %v261
    %v1807 = vunpack.c.l.b16 %v262
    %v1808 = vunpack.c.h.b16 %v262
    %v1809 = vunpack.c.l.b16 %v263
    %v1810 = vunpack.c.h.b16 %v263
    %v1811 = vunpack.c.l.b16 %v264
    %v1812 = vunpack.c.h.b16 %v264
    %v1813 = vunpack.c.l.b16 %v265
    %v1814 = vunpack.c.h.b16 %v265
    %v1815 = vunpack.c.l.b16 %v266
    %v1816 = vunpack.c.h.b16 %v266
    %v1817 = vunpack.c.l.b16 %v267
    %v1818 = vunpack.c.h.b16 %v267
    %v1819 = vunpack.c.l.b16 %v268
    %v1820 = vunpack.c.h.b16 %v268
    %v1821 = vunpack.c.l.b16 %v269
    %v1822 = vunpack.c.h.b16 %v269
    %v1823 = vunpack.c.l.b16 %v270
    %v1824 = vunpack.c.h.b16 %v270
    %v1825 = vunpack.c.l.b16 %v271
    %v1826 = vunpack.c.h.b16 %v271
    %v1827 = vunpack.c.l.b16 %v272
    %v1828 = vunpack.c.h.b16 %v272
    %v1829 = vunpack.c.l.b16 %v273
    %v1830 = vunpack.c.h.b16 %v273
    %v1831 = vunpack.c.l.b16 %v274
    %v1832 = vunpack.c.h.b16 %v274
    %v1833 = vunpack.c.l.b16 %v275
    %v1834 = vunpack.c.h.b16 %v275
    %v1835 = vunpack.c.l.b16 %v276
    %v1836 = vunpack.c.h.b16 %v276
    %v1837 = vunpack.c.l.b16 %v277
    %v1838 = vunpack.c.h.b16 %v277
    %v1839 = vunpack.c.l.b16 %v278
    %v1840 = vunpack.c.h.b16 %v278
    %v1841 = vunpack.c.l.b16 %v279
    %v1842 = vunpack.c.h.b16 %v279
    %v1843 = vunpack.c.l.b16 %v280
    %v1844 = vunpack.c.h.b16 %v280
    %v1845 = vunpack.c.l.b16 %v281
    %v1846 = vunpack.c.h.b16 %v281
    %v1847 = vunpack.c.l.b16 %v282
    %v1848 = vunpack.c.h.b16 %v282
    %v1849 = vunpack.c.l.b16 %v283
    %v1850 = vunpack.c.h.b16 %v283
    %v1851 = vunpack.c.l.b16 %v284
    %v1852 = vunpack.c.h.b16 %v284
    %v1853 = vunpack.c.l.b16 %v285
    %v1854 = vunpack.c.h.b16 %v285
    %v1855 = vunpack.c.l.b16 %v286
    %v1856 = vunpack.c.h.b16 %v286
    %v1857 = vunpack.c.l.b16 %v287
    %v1858 = vunpack.c.h.b16 %v287
    %v1859 = vunpack.c.l.b16 %v288
    %v1860 = vunpack.c.h.b16 %v288
    %v1861 = vunpack.c.l.b16 %v289
    %v1862 = vunpack.c.h.b16 %v289
    %v1863 = vunpack.c.l.b16 %v290
    %v1864 = vunpack.c.h.b16 %v290
    %v1865 = vunpack.c.l.b16 %v291
    %v1866 = vunpack.c.h.b16 %v291
    %v1867 = vunpack.c.l.b16 %v292
    %v1868 = vunpack.c.h.b16 %v292
    %v1869 = vunpack.c.l.b16 %v293
    %v1870 = vunpack.c.h.b16 %v293
    %v1871 = vunpack.c.l.b16 %v294
    %v1872 = vunpack.c.h.b16 %v294
    %v1873 = vunpack.c.l.b16 %v295
    %v1874 = vunpack.c.h.b16 %v295
    %v1875 = vunpack.c.l.b16 %v296
    %v1876 = vunpack.c.h.b16 %v296
    %v1877 = vunpack.c.l.b16 %v297
    %v1878 = vunpack.c.h.b16 %v297
    %v1879 = vunpack.c.l.b16 %v298
    %v1880 = vunpack.c.h.b16 %v298
    %v1881 = vunpack.c.l.b16 %v299
    %v1882 = vunpack.c.h.b16 %v299
    %v1883 = vunpack.c.l.b16 %v300
    %v1884 = vunpack.c.h.b16 %v300
    %v1885 = vunpack.c.l.b16 %v301
    %v1886 = vunpack.c.h.b16 %v301
    %v1887 = vunpack.c.l.b16 %v302
    %v1888 = vunpack.c.h.b16 %v302
    %v1889 = vunpack.c.l.b16 %v303
    %v1890 = vunpack.c.h.b16 %v303
    %v1891 = vunpack.c.l.b16 %v304
    %v1892 = vunpack.c.h.b16 %v304
    %v1893 = vunpack.c.l.b16 %v305
    %v1894 = vunpack.c.h.b16 %v305
    %v1895 = vunpack.c.l.b16 %v306
    %v1896 = vunpack.c.h.b16 %v306
    %v1897 = vunpack.c.l.b16 %v307
    %v1898 = vunpack.c.h.b16 %v307
    %v1899 = vunpack.c.l.b16 %v308
    %v1900 = vunpack.c.h.b16 %v308
    %v1901 = vunpack.c.l.b16 %v309
    %v1902 = vunpack.c.h.b16 %v309
    %v1903 = vunpack.c.l.b16 %v310
    %v1904 = vunpack.c.h.b16 %v310
    %v1905 = vunpack.c.l.b16 %v311
    %v1906 = vunpack.c.h.b16 %v311
    %v1907 = vunpack.c.l.b16 %v312
    %v1908 = vunpack.c.h.b16 %v312
    %v1909 = vunpack.c.l.b16 %v313
    %v1910 = vunpack.c.h.b16 %v313
    %v1911 = vunpack.c.l.b16 %v314
    %v1912 = vunpack.c.h.b16 %v314
    %v1913 = vunpack.c.l.b16 %v315
    %v1914 = vunpack.c.h.b16 %v315
    %v1915 = vunpack.c.l.b16 %v316
    %v1916 = vunpack.c.h.b16 %v316
    %v1917 = vunpack.c.l.b16 %v317
    %v1918 = vunpack.c.h.b16 %v317
    %v1919 = vunpack.c.l.b16 %v318
    %v1920 = vunpack.c.h.b16 %v318
    %v1921 = vunpack.c.l.b16 %v319
    %v1922 = vunpack.c.h.b16 %v319
    %v1923 = vunpack.c.l.b16 %v320
    %v1924 = vunpack.c.h.b16 %v320
    %v1925 = vunpack.c.l.b16 %v321
    %v1926 = vunpack.c.h.b16 %v321
    %v1927 = vunpack.c.l.b16 %v322
    %v1928 = vunpack.c.h.b16 %v322
    %v1929 = vunpack.c.l.b16 %v323
    %v1930 = vunpack.c.h.b16 %v323
    %v1931 = vunpack.c.l.b16 %v324
    %v1932 = vunpack.c.h.b16 %v324
    %v1933 = vunpack.c.l.b16 %v325
    %v1934 = vunpack.c.h.b16 %v325
    %v1935 = vunpack.c.l.b16 %v326
    %v1936 = vunpack.c.h.b16 %v326
    %v1937 = vunpack.c.l.b16 %v327
    %v1938 = vunpack.c.h.b16 %v327
    %v1939 = vunpack.c.l.b16 %v328
    %v1940 = vunpack.c.h.b16 %v328
    %v1941 = vunpack.c.l.b16 %v329
    %v1942 = vunpack.c.h.b16 %v329
    %v1943 = vunpack.c.l.b16 %v330
    %v1944 = vunpack.c.h.b16 %v330
    %v1945 = vunpack.c.l.b16 %v331
    %v1946 = vunpack.c.h.b16 %v331
    %v1947 = vunpack.c.l.b16 %v332
    %v1948 = vunpack.c.h.b16 %v332
    %v1949 = vunpack.c.l.b16 %v333
    %v1950 = vunpack.c.h.b16 %v333
    %v1951 = vunpack.c.l.b16 %v334
    %v1952 = vunpack.c.h.b16 %v334
    %v1953 = vunpack.c.l.b16 %v335
    %v1954 = vunpack.c.h.b16 %v335
    %v1955 = vunpack.c.l.b16 %v336
    %v1956 = vunpack.c.h.b16 %v336
    %v1957 = vunpack.c.l.b16 %v337
    %v1958 = vunpack.c.h.b16 %v337
    %v1959 = vunpack.c.l.b16 %v338
    %v1960 = vunpack.c.h.b16 %v338
    %v1961 = vunpack.c.l.b16 %v339
    %v1962 = vunpack.c.h.b16 %v339
    %v1963 = vunpack.c.l.b16 %v340
    %v1964 = vunpack.c.h.b16 %v340
    %v1965 = vunpack.c.l.b16 %v341
    %v1966 = vunpack.c.h.b16 %v341
    %v1967 = vunpack.c.l.b16 %v342
    %v1968 = vunpack.c.h.b16 %v342
    %v1969 = vunpack.c.l.b16 %v343
    %v1970 = vunpack.c.h.b16 %v343
    %v1971 = vunpack.c.l.b16 %v344
    %v1972 = vunpack.c.h.b16 %v344
    %v1973 = vunpack.c.l.b16 %v345
    %v1974 = vunpack.c.h.b16 %v345
    %v1975 = vunpack.c.l.b16 %v346
    %v1976 = vunpack.c.h.b16 %v346
    %v1977 = vunpack.c.l.b16 %v347
    %v1978 = vunpack.c.h.b16 %v347
    %v1979 = vunpack.c.l.b16 %v348
    %v1980 = vunpack.c.h.b16 %v348
    %v1981 = vunpack.c.l.b16 %v349
    %v1982 = vunpack.c.h.b16 %v349
    %v1983 = vunpack.c.l.b16 %v350
    %v1984 = vunpack.c.h.b16 %v350
    %v1985 = vunpack.c.l.b16 %v351
    %v1986 = vunpack.c.h.b16 %v351
    %v1987 = vunpack.c.l.b16 %v352
    %v1988 = vunpack.c.h.b16 %v352
    %v1989 = vunpack.c.l.b16 %v353
    %v1990 = vunpack.c.h.b16 %v353
    %v1991 = vunpack.c.l.b16 %v354
    %v1992 = vunpack.c.h.b16 %v354
    %v1993 = vunpack.c.l.b16 %v355
    %v1994 = vunpack.c.h.b16 %v355
    %v1995 = vunpack.c.l.b16 %v356
    %v1996 = vunpack.c.h.b16 %v356
    %v1997 = vunpack.c.l.b16 %v357
    %v1998 = vunpack.c.h.b16 %v357
    %v1999 = vunpack.c.l.b16 %v358
    %v2000 = vunpack.c.h.b16 %v358
    %v2001 = vunpack.c.l.b16 %v359
    %v2002 = vunpack.c.h.b16 %v359
    %v2003 = vunpack.c.l.b16 %v360
    %v2004 = vunpack.c.h.b16 %v360
    %v2005 = vunpack.c.l.b16 %v361
    %v2006 = vunpack.c.h.b16 %v361
    %v2007 = vunpack.c.l.b16 %v362
    %v2008 = vunpack.c.h.b16 %v362
    %v2009 = vunpack.c.l.b16 %v363
    %v2010 = vunpack.c.h.b16 %v363
    %v2011 = vunpack.c.l.b16 %v364
    %v2012 = vunpack.c.h.b16 %v364
    %v2013 = vunpack.c.l.b16 %v365
    %v2014 = vunpack.c.h.b16 %v365
    %v2015 = vunpack.c.l.b16 %v366
    %v2016 = vunpack.c.h.b16 %v366
    %v2017 = vunpack.c.l.b16 %v367
    %v2018 = vunpack.c.h.b16 %v367
    %v2019 = vunpack.c.l.b16 %v368
    %v2020 = vunpack.c.h.b16 %v368
    %v2021 = vunpack.c.l.b16 %v369
    %v2022 = vunpack.c.h.b16 %v369
    %v2023 = vunpack.c.l.b16 %v370
    %v2024 = vunpack.c.h.b16 %v370
    %v2025 = vunpack.c.l.b16 %v371
    %v2026 = vunpack.c.h.b16 %v371
    %v2027 = vunpack.c.l.b16 %v372
    %v2028 = vunpack.c.h.b16 %v372
    %v2029 = vunpack.c.l.b16 %v373
    %v2030 = vunpack.c.h.b16 %v373
    %v2031 = vunpack.c.l.b16 %v374
    %v2032 = vunpack.c.h.b16 %v374
    %v2033 = vunpack.c.l.b16 %v375
    %v2034 = vunpack.c.h.b16 %v375
    %v2035 = vunpack.c.l.b16 %v376
    %v2036 = vunpack.c.h.b16 %v376
    %v2037 = vunpack.c.l.b16 %v377
    %v2038 = vunpack.c.h.b16 %v377
    %v2039 = vunpack.c.l.b16 %v378
    %v2040 = vunpack.c.h.b16 %v378
    %v2041 = vunpack.c.l.b16 %v379
    %v2042 = vunpack.c.h.b16 %v379
    %v2043 = vunpack.c.l.b16 %v380
    %v2044 = vunpack.c.h.b16 %v380
    %v2045 = vunpack.c.l.b16 %v381
    %v2046 = vunpack.c.h.b16 %v381
    %v2047 = vunpack.c.l.b16 %v382
    %v2048 = vunpack.c.h.b16 %v382
    %v2049 = vunpack.c.l.b16 %v383
    %v2050 = vunpack.c.h.b16 %v383
    %v2051 = vunpack.c.l.b16 %v384
    %v2052 = vunpack.c.h.b16 %v384
    %v2053 = vunpack.c.l.b16 %v385
    %v2054 = vunpack.c.h.b16 %v385
    %v2055 = vunpack.c.l.b16 %v386
    %v2056 = vunpack.c.h.b16 %v386
    %v2057 = vunpack.c.l.b16 %v387
    %v2058 = vunpack.c.h.b16 %v387
    %v2059 = vunpack.c.l.b16 %v388
    %v2060 = vunpack.c.h.b16 %v388
    %v2061 = vunpack.c.l.b16 %v389
    %v2062 = vunpack.c.h.b16 %v389
    %v2063 = vunpack.c.l.b16 %v390
    %v2064 = vunpack.c.h.b16 %v390
    %v2065 = vunpack.c.l.b16 %v391
    %v2066 = vunpack.c.h.b16 %v391
    %v2067 = vunpack.c.l.b16 %v392
    %v2068 = vunpack.c.h.b16 %v392
    %v2069 = vunpack.c.l.b16 %v393
    %v2070 = vunpack.c.h.b16 %v393
    %v2071 = vunpack.c.l.b16 %v394
    %v2072 = vunpack.c.h.b16 %v394
    %v2073 = vunpack.c.l.b16 %v395
    %v2074 = vunpack.c.h.b16 %v395
    %v2075 = vunpack.c.l.b16 %v396
    %v2076 = vunpack.c.h.b16 %v396
    %v2077 = vunpack.c.l.b16 %v397
    %v2078 = vunpack.c.h.b16 %v397
    %v2079 = vunpack.c.l.b16 %v398
    %v2080 = vunpack.c.h.b16 %v398
    %v2081 = vunpack.c.l.b16 %v399
    %v2082 = vunpack.c.h.b16 %v399
    %v2083 = vunpack.c.l.b16 %v400
    %v2084 = vunpack.c.h.b16 %v400
    %v2085 = vunpack.c.l.b16 %v401
    %v2086 = vunpack.c.h.b16 %v401
    %v2087 = vunpack.c.l.b16 %v402
    %v2088 = vunpack.c.h.b16 %v402
    %v2089 = vunpack.c.l.b16 %v403
    %v2090 = vunpack.c.h.b16 %v403
    %v2091 = vunpack.c.l.b16 %v404
    %v2092 = vunpack.c.h.b16 %v404
    %v2093 = vunpack.c.l.b16 %v405
    %v2094 = vunpack.c.h.b16 %v405
    %v2095 = vunpack.c.l.b16 %v406
    %v2096 = vunpack.c.h.b16 %v406
    %v2097 = vunpack.c.l.b16 %v407
    %v2098 = vunpack.c.h.b16 %v407
    %v2099 = vunpack.c.l.b16 %v408
    %v2100 = vunpack.c.h.b16 %v408
    %v2101 = vunpack.c.l.b16 %v409
    %v2102 = vunpack.c.h.b16 %v409
    %v2103 = vunpack.c.l.b16 %v410
    %v2104 = vunpack.c.h.b16 %v410
    %v2105 = vunpack.c.l.b16 %v411
    %v2106 = vunpack.c.h.b16 %v411
    %v2107 = vunpack.c.l.b16 %v412
    %v2108 = vunpack.c.h.b16 %v412
    %v2109 = vunpack.c.l.b16 %v413
    %v2110 = vunpack.c.h.b16 %v413
    %v2111 = vunpack.c.l.b16 %v414
    %v2112 = vunpack.c.h.b16 %v414
    %v2113 = vunpack.c.l.b16 %v415
    %v2114 = vunpack.c.h.b16 %v415
    %v2115 = vunpack.c.l.b16 %v416
    %v2116 = vunpack.c.h.b16 %v416
    %v2117 = vunpack.c.l.b16 %v417
    %v2118 = vunpack.c.h.b16 %v417
    %v2119 = vunpack.c.l.b16 %v418
    %v2120 = vunpack.c.h.b16 %v418
    %v2121 = vunpack.c.l.b16 %v419
    %v2122 = vunpack.c.h.b16 %v419
    %v2123 = vunpack.c.l.b16 %v420
    %v2124 = vunpack.c.h.b16 %v420
    %v2125 = vunpack.c.l.b16 %v421
    %v2126 = vunpack.c.h.b16 %v421
    %v2127 = vunpack.c.l.b16 %v422
    %v2128 = vunpack.c.h.b16 %v422
    %v2129 = vunpack.c.l.b16 %v423
    %v2130 = vunpack.c.h.b16 %v423
    %v2131 = vunpack.c.l.b16 %v424
    %v2132 = vunpack.c.h.b16 %v424
    %v2133 = vunpack.c.l.b16 %v425
    %v2134 = vunpack.c.h.b16 %v425
    %v2135 = vunpack.c.l.b16 %v426
    %v2136 = vunpack.c.h.b16 %v426
    %v2137 = vunpack.c.l.b16 %v427
    %v2138 = vunpack.c.h.b16 %v427
    %v2139 = vunpack.c.l.b16 %v428
    %v2140 = vunpack.c.h.b16 %v428
    %v2141 = vunpack.c.l.b16 %v429
    %v2142 = vunpack.c.h.b16 %v429
    %v2143 = vunpack.c.l.b16 %v430
    %v2144 = vunpack.c.h.b16 %v430
    %v2145 = vunpack.c.l.b16 %v431
    %v2146 = vunpack.c.h.b16 %v431
    %v2147 = vunpack.c.l.b16 %v432
    %v2148 = vunpack.c.h.b16 %v432
    %v2149 = vunpack.c.l.b16 %v433
    %v2150 = vunpack.c.h.b16 %v433
    %v2151 = vunpack.c.l.b16 %v434
    %v2152 = vunpack.c.h.b16 %v434
    %v2153 = vunpack.c.l.b16 %v435
    %v2154 = vunpack.c.h.b16 %v435
    %v2155 = vunpack.c.l.b16 %v436
    %v2156 = vunpack.c.h.b16 %v436
    %v2157 = vunpack.c.l.b16 %v437
    %v2158 = vunpack.c.h.b16 %v437
    %v2159 = vunpack.c.l.b16 %v438
    %v2160 = vunpack.c.h.b16 %v438
    %v2161 = vunpack.c.l.b16 %v439
    %v2162 = vunpack.c.h.b16 %v439
    %v2163 = vunpack.c.l.b16 %v440
    %v2164 = vunpack.c.h.b16 %v440
    %v2165 = vunpack.c.l.b16 %v441
    %v2166 = vunpack.c.h.b16 %v441
    %v2167 = vunpack.c.l.b16 %v442
    %v2168 = vunpack.c.h.b16 %v442
    %v2169 = vunpack.c.l.b16 %v443
    %v2170 = vunpack.c.h.b16 %v443
    %v2171 = vunpack.c.l.b16 %v444
    %v2172 = vunpack.c.h.b16 %v444
    %v2173 = vunpack.c.l.b16 %v445
    %v2174 = vunpack.c.h.b16 %v445
    %v2175 = vunpack.c.l.b16 %v446
    %v2176 = vunpack.c.h.b16 %v446
    %v2177 = vunpack.c.l.b16 %v447
    %v2178 = vunpack.c.h.b16 %v447
    %v2179 = vunpack.c.l.b16 %v448
    %v2180 = vunpack.c.h.b16 %v448
    %v2181 = vunpack.c.l.b16 %v449
    %v2182 = vunpack.c.h.b16 %v449
    %v2183 = vunpack.c.l.b16 %v450
    %v2184 = vunpack.c.h.b16 %v450
    %v2185 = vunpack.c.l.b16 %v451
    %v2186 = vunpack.c.h.b16 %v451
    %v2187 = vunpack.c.l.b16 %v452
    %v2188 = vunpack.c.h.b16 %v452
    %v2189 = vunpack.c.l.b16 %v453
    %v2190 = vunpack.c.h.b16 %v453
    %v2191 = vunpack.c.l.b16 %v454
    %v2192 = vunpack.c.h.b16 %v454
    %v2193 = vunpack.c.l.b16 %v455
    %v2194 = vunpack.c.h.b16 %v455
    %v2195 = vunpack.c.l.b16 %v456
    %v2196 = vunpack.c.h.b16 %v456
    %v2197 = vunpack.c.l.b16 %v457
    %v2198 = vunpack.c.h.b16 %v457
    %v2199 = vunpack.c.l.b16 %v458
    %v2200 = vunpack.c.h.b16 %v458
    %v2201 = vunpack.c.l.b16 %v459
    %v2202 = vunpack.c.h.b16 %v459
    %v2203 = vunpack.c.l.b16 %v460
    %v2204 = vunpack.c.h.b16 %v460
    %v2205 = vunpack.c.l.b16 %v461
    %v2206 = vunpack.c.h.b16 %v461
    %v2207 = vunpack.c.l.b16 %v462
    %v2208 = vunpack.c.h.b16 %v462
    %v2209 = vunpack.c.l.b16 %v463
    %v2210 = vunpack.c.h.b16 %v463
    %v2211 = vunpack.c.l.b16 %v464
    %v2212 = vunpack.c.h.b16 %v464
    %v2213 = vunpack.c.l.b16 %v465
    %v2214 = vunpack.c.h.b16 %v465
    %v2215 = vunpack.c.l.b16 %v466
    %v2216 = vunpack.c.h.b16 %v466
    %v2217 = vunpack.c.l.b16 %v467
    %v2218 = vunpack.c.h.b16 %v467
    %v2219 = vunpack.c.l.b16 %v468
    %v2220 = vunpack.c.h.b16 %v468
    %v2221 = vunpack.c.l.b16 %v469
    %v2222 = vunpack.c.h.b16 %v469
    %v2223 = vunpack.c.l.b16 %v470
    %v2224 = vunpack.c.h.b16 %v470
    %v2225 = vunpack.c.l.b16 %v471
    %v2226 = vunpack.c.h.b16 %v471
    %v2227 = vunpack.c.l.b16 %v472
    %v2228 = vunpack.c.h.b16 %v472
    %v2229 = vunpack.c.l.b16 %v473
    %v2230 = vunpack.c.h.b16 %v473
    %v2231 = vunpack.c.l.b16 %v474
    %v2232 = vunpack.c.h.b16 %v474
    %v2233 = vunpack.c.l.b16 %v475
    %v2234 = vunpack.c.h.b16 %v475
    %v2235 = vunpack.c.l.b16 %v476
    %v2236 = vunpack.c.h.b16 %v476
    %v2237 = vunpack.c.l.b16 %v477
    %v2238 = vunpack.c.h.b16 %v477
    %v2239 = vunpack.c.l.b16 %v478
    %v2240 = vunpack.c.h.b16 %v478
    %v2241 = vunpack.c.l.b16 %v479
    %v2242 = vunpack.c.h.b16 %v479
    %v2243 = vunpack.c.l.b16 %v480
    %v2244 = vunpack.c.h.b16 %v480
    %v2245 = vunpack.c.l.b16 %v481
    %v2246 = vunpack.c.h.b16 %v481
    %v2247 = vunpack.c.l.b16 %v482
    %v2248 = vunpack.c.h.b16 %v482
    %v2249 = vunpack.c.l.b16 %v483
    %v2250 = vunpack.c.h.b16 %v483
    %v2251 = vunpack.c.l.b16 %v484
    %v2252 = vunpack.c.h.b16 %v484
    %v2253 = vunpack.c.l.b16 %v485
    %v2254 = vunpack.c.h.b16 %v485
    %v2255 = vunpack.c.l.b16 %v486
    %v2256 = vunpack.c.h.b16 %v486
    %v2257 = vunpack.c.l.b16 %v487
    %v2258 = vunpack.c.h.b16 %v487
    %v2259 = vunpack.c.l.b16 %v488
    %v2260 = vunpack.c.h.b16 %v488
    %v2261 = vunpack.c.l.b16 %v489
    %v2262 = vunpack.c.h.b16 %v489
    %v2263 = vunpack.c.l.b16 %v490
    %v2264 = vunpack.c.h.b16 %v490
    %v2265 = vunpack.c.l.b16 %v491
    %v2266 = vunpack.c.h.b16 %v491
    %v2267 = vunpack.c.l.b16 %v492
    %v2268 = vunpack.c.h.b16 %v492
    %v2269 = vunpack.c.l.b16 %v493
    %v2270 = vunpack.c.h.b16 %v493
    %v2271 = vunpack.c.l.b16 %v494
    %v2272 = vunpack.c.h.b16 %v494
    %v2273 = vunpack.c.l.b16 %v495
    %v2274 = vunpack.c.h.b16 %v495
    %v2275 = vunpack.c.l.b16 %v496
    %v2276 = vunpack.c.h.b16 %v496
    %v2277 = vunpack.c.l.b16 %v497
    %v2278 = vunpack.c.h.b16 %v497
    %v2279 = vunpack.c.l.b16 %v498
    %v2280 = vunpack.c.h.b16 %v498
    %v2281 = vunpack.c.l.b16 %v499
    %v2282 = vunpack.c.h.b16 %v499
    %v2283 = vunpack.c.l.b16 %v500
    %v2284 = vunpack.c.h.b16 %v500
    %v2285 = vunpack.c.l.b16 %v501
    %v2286 = vunpack.c.h.b16 %v501
    %v2287 = vunpack.c.l.b16 %v502
    %v2288 = vunpack.c.h.b16 %v502
    %v2289 = vunpack.c.l.b16 %v503
    %v2290 = vunpack.c.h.b16 %v503
    %v2291 = vunpack.c.l.b16 %v504
    %v2292 = vunpack.c.h.b16 %v504
    %v2293 = vunpack.c.l.b16 %v505
    %v2294 = vunpack.c.h.b16 %v505
    %v2295 = vunpack.c.l.b16 %v506
    %v2296 = vunpack.c.h.b16 %v506
    %v2297 = vunpack.c.l.b16 %v507
    %v2298 = vunpack.c.h.b16 %v507
    %v2299 = vunpack.c.l.b16 %v508
    %v2300 = vunpack.c.h.b16 %v508
    %v2301 = vunpack.c.l.b16 %v509
    %v2302 = vunpack.c.h.b16 %v509
    %v2303 = vunpack.c.l.b16 %v510
    %v2304 = vunpack.c.h.b16 %v510
    %v2305 = vunpack.c.l.b16 %v511
    %v2306 = vunpack.c.h.b16 %v511
    %v2307 = vunpack.c.l.b16 %v512
    %v2308 = vunpack.c.h.b16 %v512
    %v2309 = vunpack.c.l.b16 %v513
    %v2310 = vunpack.c.h.b16 %v513
    %v2311 = vunpack.c.l.b16 %v514
    %v2312 = vunpack.c.h.b16 %v514
    %v2313 = vunpack.c.l.b16 %v515
    %v2314 = vunpack.c.h.b16 %v515
    %v2315 = vunpack.c.l.b16 %v516
    %v2316 = vunpack.c.h.b16 %v516
    %v2317 = vunpack.c.l.b16 %v517
    %v2318 = vunpack.c.h.b16 %v517
    %v2319 = vunpack.c.l.b16 %v518
    %v2320 = vunpack.c.h.b16 %v518
    %v2321 = vunpack.c.l.b16 %v519
    %v2322 = vunpack.c.h.b16 %v519
    %v2323 = vunpack.c.l.b16 %v520
    %v2324 = vunpack.c.h.b16 %v520
    %v2325 = vunpack.c.l.b16 %v521
    %v2326 = vunpack.c.h.b16 %v521
    %v2327 = vunpack.c.l.b16 %v522
    %v2328 = vunpack.c.h.b16 %v522
    %v2329 = vunpack.c.l.b16 %v523
    %v2330 = vunpack.c.h.b16 %v523
    %v2331 = vunpack.c.l.b16 %v524
    %v2332 = vunpack.c.h.b16 %v524
    %v2333 = vunpack.c.l.b16 %v525
    %v2334 = vunpack.c.h.b16 %v525
    %v2335 = vunpack.c.l.b16 %v526
    %v2336 = vunpack.c.h.b16 %v526
    %v2337 = vunpack.c.l.b16 %v527
    %v2338 = vunpack.c.h.b16 %v527
    %v2339 = vunpack.c.l.b16 %v528
    %v2340 = vunpack.c.h.b16 %v528
    %v2341 = vunpack.c.l.b16 %v529
    %v2342 = vunpack.c.h.b16 %v529
    %v2343 = vunpack.c.l.b16 %v530
    %v2344 = vunpack.c.h.b16 %v530
    %v2345 = vunpack.c.l.b16 %v531
    %v2346 = vunpack.c.h.b16 %v531
    %v2347 = vunpack.c.l.b16 %v532
    %v2348 = vunpack.c.h.b16 %v532
    %v2349 = vunpack.c.l.b16 %v533
    %v2350 = vunpack.c.h.b16 %v533
    %v2351 = vunpack.c.l.b16 %v534
    %v2352 = vunpack.c.h.b16 %v534
    %v2353 = vunpack.c.l.b16 %v535
    %v2354 = vunpack.c.h.b16 %v535
    %v2355 = vunpack.c.l.b16 %v536
    %v2356 = vunpack.c.h.b16 %v536
    %v2357 = vunpack.c.l.b16 %v537
    %v2358 = vunpack.c.h.b16 %v537
    %v2359 = vunpack.c.l.b16 %v538
    %v2360 = vunpack.c.h.b16 %v538
    %v2361 = vunpack.c.l.b16 %v539
    %v2362 = vunpack.c.h.b16 %v539
    %v2363 = vunpack.c.l.b16 %v540
    %v2364 = vunpack.c.h.b16 %v540
    %v2365 = vunpack.c.l.b16 %v541
    %v2366 = vunpack.c.h.b16 %v541
    %v2367 = vunpack.c.l.b16 %v542
    %v2368 = vunpack.c.h.b16 %v542
    %v2369 = vunpack.c.l.b16 %v543
    %v2370 = vunpack.c.h.b16 %v543
    %v2371 = vunpack.c.l.b16 %v544
    %v2372 = vunpack.c.h.b16 %v544
    %v2373 = vunpack.c.l.b16 %v545
    %v2374 = vunpack.c.h.b16 %v545
    %v2375 = vunpack.c.l.b16 %v546
    %v2376 = vunpack.c.h.b16 %v546
    %v2377 = vunpack.c.l.b16 %v547
    %v2378 = vunpack.c.h.b16 %v547
    %v2379 = vunpack.c.l.b16 %v548
    %v2380 = vunpack.c.h.b16 %v548
    %v2381 = vunpack.c.l.b16 %v549
    %v2382 = vunpack.c.h.b16 %v549
    %v2383 = vunpack.c.l.b16 %v550
    %v2384 = vunpack.c.h.b16 %v550
    %v2385 = vunpack.c.l.b16 %v551
    %v2386 = vunpack.c.h.b16 %v551
    %v2387 = vunpack.c.l.b16 %v552
    %v2388 = vunpack.c.h.b16 %v552
    %v2389 = vunpack.c.l.b16 %v553
    %v2390 = vunpack.c.h.b16 %v553
    %v2391 = vunpack.c.l.b16 %v554
    %v2392 = vunpack.c.h.b16 %v554
    %v2393 = vunpack.c.l.b16 %v555
    %v2394 = vunpack.c.h.b16 %v555
    %v2395 = vunpack.c.l.b16 %v556
    %v2396 = vunpack.c.h.b16 %v556
    %v2397 = vunpack.c.l.b16 %v557
    %v2398 = vunpack.c.h.b16 %v557
    %v2399 = vunpack.c.l.b16 %v558
    %v2400 = vunpack.c.h.b16 %v558
    %v2401 = vunpack.c.l.b16 %v559
    %v2402 = vunpack.c.h.b16 %v559
    %v2403 = vunpack.c.l.b16 %v560
    %v2404 = vunpack.c.h.b16 %v560
    %v2405 = vunpack.c.l.b16 %v561
    %v2406 = vunpack.c.h.b16 %v561
    %v2407 = vunpack.c.l.b16 %v562
    %v2408 = vunpack.c.h.b16 %v562
    %v2409 = vunpack.c.l.b16 %v563
    %v2410 = vunpack.c.h.b16 %v563
    %v2411 = vunpack.c.l.b16 %v564
    %v2412 = vunpack.c.h.b16 %v564
    %v2413 = vunpack.c.l.b16 %v565
    %v2414 = vunpack.c.h.b16 %v565
    %v2415 = vunpack.c.l.b16 %v566
    %v2416 = vunpack.c.h.b16 %v566
    %v2417 = vunpack.c.l.b16 %v567
    %v2418 = vunpack.c.h.b16 %v567
    %v2419 = vunpack.c.l.b16 %v568
    %v2420 = vunpack.c.h.b16 %v568
    %v2421 = vunpack.c.l.b16 %v569
    %v2422 = vunpack.c.h.b16 %v569
    %v2423 = vunpack.c.l.b16 %v570
    %v2424 = vunpack.c.h.b16 %v570
    %v2425 = vunpack.c.l.b16 %v571
    %v2426 = vunpack.c.h.b16 %v571
    %v2427 = vunpack.c.l.b16 %v572
    %v2428 = vunpack.c.h.b16 %v572
    %v2429 = vunpack.c.l.b16 %v573
    %v2430 = vunpack.c.h.b16 %v573
    %v2431 = vunpack.c.l.b16 %v574
    %v2432 = vunpack.c.h.b16 %v574
    %v2433 = vunpack.c.l.b16 %v575
    %v2434 = vunpack.c.h.b16 %v575
    %v2435 = vunpack.c.l.b16 %v576
    %v2436 = vunpack.c.h.b16 %v576
    %v2437 = vunpack.c.l.b16 %v577
    %v2438 = vunpack.c.h.b16 %v577
    %v2439 = vunpack.c.l.b16 %v578
    %v2440 = vunpack.c.h.b16 %v578
    %v2441 = vunpack.c.l.b16 %v579
    %v2442 = vunpack.c.h.b16 %v579
    %v2443 = vunpack.c.l.b16 %v580
    %v2444 = vunpack.c.h.b16 %v580
    %v2445 = vunpack.c.l.b16 %v581
    %v2446 = vunpack.c.h.b16 %v581
    %v2447 = vunpack.c.l.b16 %v582
    %v2448 = vunpack.c.h.b16 %v582
    %v2449 = vunpack.c.l.b16 %v583
    %v2450 = vunpack.c.h.b16 %v583
    %v2451 = vunpack.c.l.b16 %v584
    %v2452 = vunpack.c.h.b16 %v584
    %v2453 = vunpack.c.l.b16 %v585
    %v2454 = vunpack.c.h.b16 %v585
    %v2455 = vunpack.c.l.b16 %v586
    %v2456 = vunpack.c.h.b16 %v586
    %v2457 = vunpack.c.l.b16 %v587
    %v2458 = vunpack.c.h.b16 %v587
    %v2459 = vunpack.c.l.b16 %v588
    %v2460 = vunpack.c.h.b16 %v588
    %v2461 = vunpack.c.l.b16 %v589
    %v2462 = vunpack.c.h.b16 %v589
    %v2463 = vunpack.c.l.b16 %v590
    %v2464 = vunpack.c.h.b16 %v590
    %v2465 = vunpack.c.l.b16 %v591
    %v2466 = vunpack.c.h.b16 %v591
    %v2467 = vunpack.c.l.b16 %v592
    %v2468 = vunpack.c.h.b16 %v592
    %v2469 = vunpack.c.l.b16 %v593
    %v2470 = vunpack.c.h.b16 %v593
    %v2471 = vunpack.c.l.b16 %v594
    %v2472 = vunpack.c.h.b16 %v594
    %v2473 = vunpack.c.l.b16 %v595
    %v2474 = vunpack.c.h.b16 %v595
    %v2475 = vunpack.c.l.b16 %v596
    %v2476 = vunpack.c.h.b16 %v596
    %v2477 = vunpack.c.l.b16 %v597
    %v2478 = vunpack.c.h.b16 %v597
    %v2479 = vunpack.c.l.b16 %v598
    %v2480 = vunpack.c.h.b16 %v598
    %v2481 = vunpack.c.l.b16 %v599
    %v2482 = vunpack.c.h.b16 %v599
    %v2483 = vunpack.c.l.b16 %v600
    %v2484 = vunpack.c.h.b16 %v600
    %v2485 = vunpack.c.l.b16 %v601
    %v2486 = vunpack.c.h.b16 %v601
    %v2487 = vunpack.c.l.b16 %v602
    %v2488 = vunpack.c.h.b16 %v602
    %v2489 = vunpack.c.l.b16 %v603
    %v2490 = vunpack.c.h.b16 %v603
    %v2491 = vunpack.c.l.b16 %v604
    %v2492 = vunpack.c.h.b16 %v604
    %v2493 = vunpack.c.l.b16 %v605
    %v2494 = vunpack.c.h.b16 %v605
    %v2495 = vunpack.c.l.b16 %v606
    %v2496 = vunpack.c.h.b16 %v606
    %v2497 = vunpack.c.l.b16 %v607
    %v2498 = vunpack.c.h.b16 %v607
    %v2499 = vunpack.c.l.b16 %v608
    %v2500 = vunpack.c.h.b16 %v608
    %v2501 = vunpack.c.l.b16 %v609
    %v2502 = vunpack.c.h.b16 %v609
    %v2503 = vunpack.c.l.b16 %v610
    %v2504 = vunpack.c.h.b16 %v610
    %v2505 = vunpack.c.l.b16 %v611
    %v2506 = vunpack.c.h.b16 %v611
    %v2507 = vunpack.c.l.b16 %v612
    %v2508 = vunpack.c.h.b16 %v612
    %v2509 = vunpack.c.l.b16 %v613
    %v2510 = vunpack.c.h.b16 %v613
    %v2511 = vunpack.c.l.b16 %v614
    %v2512 = vunpack.c.h.b16 %v614
    %v2513 = vunpack.c.l.b16 %v615
    %v2514 = vunpack.c.h.b16 %v615
    %v2515 = vunpack.c.l.b16 %v616
    %v2516 = vunpack.c.h.b16 %v616
    %v2517 = vunpack.c.l.b16 %v617
    %v2518 = vunpack.c.h.b16 %v617
    %v2519 = vunpack.c.l.b16 %v618
    %v2520 = vunpack.c.h.b16 %v618
    %v2521 = vunpack.c.l.b16 %v619
    %v2522 = vunpack.c.h.b16 %v619
    %v2523 = vunpack.c.l.b16 %v620
    %v2524 = vunpack.c.h.b16 %v620
    %v2525 = vunpack.c.l.b16 %v621
    %v2526 = vunpack.c.h.b16 %v621
    %v2527 = vunpack.c.l.b16 %v622
    %v2528 = vunpack.c.h.b16 %v622
    %v2529 = vunpack.c.l.b16 %v623
    %v2530 = vunpack.c.h.b16 %v623
    %v2531 = vunpack.c.l.b16 %v624
    %v2532 = vunpack.c.h.b16 %v624
    %v2533 = vunpack.c.l.b16 %v625
    %v2534 = vunpack.c.h.b16 %v625
    %v2535 = vunpack.c.l.b16 %v626
    %v2536 = vunpack.c.h.b16 %v626
    %v2537 = vunpack.c.l.b16 %v627
    %v2538 = vunpack.c.h.b16 %v627
    %v2539 = vunpack.c.l.b16 %v628
    %v2540 = vunpack.c.h.b16 %v628
    %v2541 = vunpack.c.l.b16 %v629
    %v2542 = vunpack.c.h.b16 %v629
    %v2543 = vunpack.c.l.b16 %v630
    %v2544 = vunpack.c.h.b16 %v630
    %v2545 = vunpack.c.l.b16 %v631
    %v2546 = vunpack.c.h.b16 %v631
    %v2547 = vunpack.c.l.b16 %v632
    %v2548 = vunpack.c.h.b16 %v632
    %v2549 = vunpack.c.l.b16 %v633
    %v2550 = vunpack.c.h.b16 %v633
    %v2551 = vunpack.c.l.b16 %v634
    %v2552 = vunpack.c.h.b16 %v634
    %v2553 = vunpack.c.l.b16 %v635
    %v2554 = vunpack.c.h.b16 %v635
    %v2555 = vunpack.c.l.b16 %v636
    %v2556 = vunpack.c.h.b16 %v636
    %v2557 = vunpack.c.l.b16 %v637
    %v2558 = vunpack.c.h.b16 %v637
    %v2559 = vunpack.c.l.b16 %v638
    %v2560 = vunpack.c.h.b16 %v638
    %v2561 = vunpack.c.l.b16 %v639
    %v2562 = vunpack.c.h.b16 %v639
    %v2563 = vunpack.c.l.b16 %v640
    %v2564 = vunpack.c.h.b16 %v640
    %v2565 = vunpack.c.l.b16 %v641
    %v2566 = vunpack.c.h.b16 %v641
    %v2567 = vunpack.c.l.b16 %v642
    %v2568 = vunpack.c.h.b16 %v642
    %v2569 = vunpack.c.l.b16 %v643
    %v2570 = vunpack.c.h.b16 %v643
    %v2571 = vunpack.c.l.b16 %v644
    %v2572 = vunpack.c.h.b16 %v644
    %v2573 = vunpack.c.l.b16 %v645
    %v2574 = vunpack.c.h.b16 %v645
    %v2575 = vunpack.c.l.b16 %v646
    %v2576 = vunpack.c.h.b16 %v646
    %v2577 = vunpack.c.l.b16 %v647
    %v2578 = vunpack.c.h.b16 %v647
    %v2579 = vunpack.c.l.b16 %v648
    %v2580 = vunpack.c.h.b16 %v648
    %v2581 = vunpack.c.l.b16 %v649
    %v2582 = vunpack.c.h.b16 %v649
    %v2583 = vunpack.c.l.b16 %v650
    %v2584 = vunpack.c.h.b16 %v650
    %v2585 = vunpack.c.l.b16 %v651
    %v2586 = vunpack.c.h.b16 %v651
    %v2587 = vunpack.c.l.b16 %v652
    %v2588 = vunpack.c.h.b16 %v652
    %v2589 = vunpack.c.l.b16 %v653
    %v2590 = vunpack.c.h.b16 %v653
    %v2591 = vunpack.c.l.b16 %v654
    %v2592 = vunpack.c.h.b16 %v654
    %v2593 = vunpack.c.l.b16 %v655
    %v2594 = vunpack.c.h.b16 %v655
    %v2595 = vunpack.c.l.b16 %v656
    %v2596 = vunpack.c.h.b16 %v656
    %v2597 = vunpack.c.l.b16 %v657
    %v2598 = vunpack.c.h.b16 %v657
    %v2599 = vunpack.c.l.b16 %v658
    %v2600 = vunpack.c.h.b16 %v658
    %v2601 = vunpack.c.l.b16 %v659
    %v2602 = vunpack.c.h.b16 %v659
    %v2603 = vunpack.c.l.b16 %v660
    %v2604 = vunpack.c.h.b16 %v660
    %v2605 = vunpack.c.l.b16 %v661
    %v2606 = vunpack.c.h.b16 %v661
    %v2607 = vunpack.c.l.b16 %v662
    %v2608 = vunpack.c.h.b16 %v662
    %v2609 = vunpack.c.l.b16 %v663
    %v2610 = vunpack.c.h.b16 %v663
    %v2611 = vunpack.c.l.b16 %v664
    %v2612 = vunpack.c.h.b16 %v664
    %v2613 = vunpack.c.l.b16 %v665
    %v2614 = vunpack.c.h.b16 %v665
    %v2615 = vunpack.c.l.b16 %v666
    %v2616 = vunpack.c.h.b16 %v666
    %v2617 = vunpack.c.l.b16 %v667
    %v2618 = vunpack.c.h.b16 %v667
    %v2619 = vunpack.c.l.b16 %v668
    %v2620 = vunpack.c.h.b16 %v668
    %v2621 = vunpack.c.l.b16 %v669
    %v2622 = vunpack.c.h.b16 %v669
    %v2623 = vunpack.c.l.b16 %v670
    %v2624 = vunpack.c.h.b16 %v670
    %v2625 = vunpack.c.l.b16 %v671
    %v2626 = vunpack.c.h.b16 %v671
    %v2627 = vunpack.c.l.b16 %v672
    %v2628 = vunpack.c.h.b16 %v672
    %v2629 = vunpack.c.l.b16 %v673
    %v2630 = vunpack.c.h.b16 %v673
    %v2631 = vunpack.c.l.b16 %v674
    %v2632 = vunpack.c.h.b16 %v674
    %v2633 = vunpack.c.l.b16 %v675
    %v2634 = vunpack.c.h.b16 %v675
    %v2635 = vunpack.c.l.b16 %v676
    %v2636 = vunpack.c.h.b16 %v676
    %v2637 = vunpack.c.l.b16 %v677
    %v2638 = vunpack.c.h.b16 %v677
    %v2639 = vunpack.c.l.b16 %v678
    %v2640 = vunpack.c.h.b16 %v678
    %v2641 = vunpack.c.l.b16 %v679
    %v2642 = vunpack.c.h.b16 %v679
    %v2643 = vunpack.c.l.b16 %v680
    %v2644 = vunpack.c.h.b16 %v680
    %v2645 = vunpack.c.l.b16 %v681
    %v2646 = vunpack.c.h.b16 %v681
    %v2647 = vunpack.c.l.b16 %v682
    %v2648 = vunpack.c.h.b16 %v682
    %v2649 = vunpack.c.l.b16 %v683
    %v2650 = vunpack.c.h.b16 %v683
    %v2651 = vunpack.c.l.b16 %v684
    %v2652 = vunpack.c.h.b16 %v684
    %v2653 = vunpack.c.l.b16 %v685
    %v2654 = vunpack.c.h.b16 %v685
    %v2655 = vunpack.c.l.b16 %v686
    %v2656 = vunpack.c.h.b16 %v686
    %v2657 = vunpack.c.l.b16 %v687
    %v2658 = vunpack.c.h.b16 %v687
    %v2659 = vunpack.c.l.b16 %v688
    %v2660 = vunpack.c.h.b16 %v688
    %v2661 = vunpack.c.l.b16 %v689
    %v2662 = vunpack.c.h.b16 %v689
    %v2663 = vunpack.c.l.b16 %v690
    %v2664 = vunpack.c.h.b16 %v690
    %v2665 = vunpack.c.l.b16 %v691
    %v2666 = vunpack.c.h.b16 %v691
    %v2667 = vunpack.c.l.b16 %v692
    %v2668 = vunpack.c.h.b16 %v692
    %v2669 = vunpack.c.l.b16 %v693
    %v2670 = vunpack.c.h.b16 %v693
    %v2671 = vunpack.c.l.b16 %v694
    %v2672 = vunpack.c.h.b16 %v694
    %v2673 = vunpack.c.l.b16 %v695
    %v2674 = vunpack.c.h.b16 %v695
    %v2675 = vunpack.c.l.b16 %v696
    %v2676 = vunpack.c.h.b16 %v696
    %v2677 = vunpack.c.l.b16 %v697
    %v2678 = vunpack.c.h.b16 %v697
    %v2679 = vunpack.c.l.b16 %v698
    %v2680 = vunpack.c.h.b16 %v698
    %v2681 = vunpack.c.l.b16 %v699
    %v2682 = vunpack.c.h.b16 %v699
    %v2683 = vunpack.c.l.b16 %v700
    %v2684 = vunpack.c.h.b16 %v700
    %v2685 = vunpack.c.l.b16 %v701
    %v2686 = vunpack.c.h.b16 %v701
    %v2687 = vunpack.c.l.b16 %v702
    %v2688 = vunpack.c.h.b16 %v702
    %v2689 = vunpack.c.l.b16 %v703
    %v2690 = vunpack.c.h.b16 %v703
    %v2691 = vunpack.c.l.b16 %v704
    %v2692 = vunpack.c.h.b16 %v704
    %v2693 = vunpack.c.l.b16 %v705
    %v2694 = vunpack.c.h.b16 %v705
    %v2695 = vunpack.c.l.b16 %v706
    %v2696 = vunpack.c.h.b16 %v706
    %v2697 = vunpack.c.l.b16 %v707
    %v2698 = vunpack.c.h.b16 %v707
    %v2699 = vunpack.c.l.b16 %v708
    %v2700 = vunpack.c.h.b16 %v708
    %v2701 = vunpack.c.l.b16 %v709
    %v2702 = vunpack.c.h.b16 %v709
    %v2703 = vunpack.c.l.b16 %v710
    %v2704 = vunpack.c.h.b16 %v710
    %v2705 = vunpack.c.l.b16 %v711
    %v2706 = vunpack.c.h.b16 %v711
    %v2707 = vunpack.c.l.b16 %v712
    %v2708 = vunpack.c.h.b16 %v712
    %v2709 = vunpack.c.l.b16 %v713
    %v2710 = vunpack.c.h.b16 %v713
    %v2711 = vunpack.c.l.b16 %v714
    %v2712 = vunpack.c.h.b16 %v714
    %v2713 = vunpack.c.l.b16 %v715
    %v2714 = vunpack.c.h.b16 %v715
    %v2715 = vunpack.c.l.b16 %v716
    %v2716 = vunpack.c.h.b16 %v716
    %v2717 = vunpack.c.l.b16 %v717
    %v2718 = vunpack.c.h.b16 %v717
    %v2719 = vunpack.c.l.b16 %v718
    %v2720 = vunpack.c.h.b16 %v718
    %v2721 = vunpack.c.l.b16 %v719
    %v2722 = vunpack.c.h.b16 %v719
    %v2723 = vunpack.c.l.b16 %v720
    %v2724 = vunpack.c.h.b16 %v720
    %v2725 = vunpack.c.l.b16 %v721
    %v2726 = vunpack.c.h.b16 %v721
    %v2727 = vunpack.c.l.b16 %v722
    %v2728 = vunpack.c.h.b16 %v722
    %v2729 = vunpack.c.l.b16 %v723
    %v2730 = vunpack.c.h.b16 %v723
    %v2731 = vunpack.c.l.b16 %v724
    %v2732 = vunpack.c.h.b16 %v724
    %v2733 = vunpack.c.l.b16 %v725
    %v2734 = vunpack.c.h.b16 %v725
    %v2735 = vunpack.c.l.b16 %v726
    %v2736 = vunpack.c.h.b16 %v726
    %v2737 = vunpack.c.l.b16 %v727
    %v2738 = vunpack.c.h.b16 %v727
    %v2739 = vunpack.c.l.b16 %v728
    %v2740 = vunpack.c.h.b16 %v728
    %v2741 = vunpack.c.l.b16 %v729
    %v2742 = vunpack.c.h.b16 %v729
    %v2743 = vunpack.c.l.b16 %v730
    %v2744 = vunpack.c.h.b16 %v730
    %v2745 = vunpack.c.l.b16 %v731
    %v2746 = vunpack.c.h.b16 %v731
    %v2747 = vunpack.c.l.b16 %v732
    %v2748 = vunpack.c.h.b16 %v732
    %v2749 = vunpack.c.l.b16 %v733
    %v2750 = vunpack.c.h.b16 %v733
    %v2751 = vunpack.c.l.b16 %v734
    %v2752 = vunpack.c.h.b16 %v734
    %v2753 = vunpack.c.l.b16 %v735
    %v2754 = vunpack.c.h.b16 %v735
    %v2755 = vunpack.c.l.b16 %v736
    %v2756 = vunpack.c.h.b16 %v736
    %v2757 = vunpack.c.l.b16 %v737
    %v2758 = vunpack.c.h.b16 %v737
    %v2759 = vunpack.c.l.b16 %v738
    %v2760 = vunpack.c.h.b16 %v738
    %v2761 = vunpack.c.l.b16 %v739
    %v2762 = vunpack.c.h.b16 %v739
    %v2763 = vunpack.c.l.b16 %v740
    %v2764 = vunpack.c.h.b16 %v740
    %v2765 = vunpack.c.l.b16 %v741
    %v2766 = vunpack.c.h.b16 %v741
    %v2767 = vunpack.c.l.b16 %v742
    %v2768 = vunpack.c.h.b16 %v742
    %v2769 = vunpack.c.l.b16 %v743
    %v2770 = vunpack.c.h.b16 %v743
    %v2771 = vunpack.c.l.b16 %v744
    %v2772 = vunpack.c.h.b16 %v744
    %v2773 = vunpack.c.l.b16 %v745
    %v2774 = vunpack.c.h.b16 %v745
    %v2775 = vunpack.c.l.b16 %v746
    %v2776 = vunpack.c.h.b16 %v746
    %v2777 = vunpack.c.l.b16 %v747
    %v2778 = vunpack.c.h.b16 %v747
    %v2779 = vunpack.c.l.b16 %v748
    %v2780 = vunpack.c.h.b16 %v748
    %v2781 = vunpack.c.l.b16 %v749
    %v2782 = vunpack.c.h.b16 %v749
    %v2783 = vunpack.c.l.b16 %v750
    %v2784 = vunpack.c.h.b16 %v750
    %v2785 = vunpack.c.l.b16 %v751
    %v2786 = vunpack.c.h.b16 %v751
    %v2787 = vunpack.c.l.b16 %v752
    %v2788 = vunpack.c.h.b16 %v752
    %v2789 = vunpack.c.l.b16 %v753
    %v2790 = vunpack.c.h.b16 %v753
    %v2791 = vunpack.c.l.b16 %v754
    %v2792 = vunpack.c.h.b16 %v754
    %v2793 = vunpack.c.l.b16 %v755
    %v2794 = vunpack.c.h.b16 %v755
    %v2795 = vunpack.c.l.b16 %v756
    %v2796 = vunpack.c.h.b16 %v756
    %v2797 = vunpack.c.l.b16 %v757
    %v2798 = vunpack.c.h.b16 %v757
    %v2799 = vunpack.c.l.b16 %v758
    %v2800 = vunpack.c.h.b16 %v758
    %v2801 = vunpack.c.l.b16 %v759
    %v2802 = vunpack.c.h.b16 %v759
    %v2803 = vunpack.c.l.b16 %v760
    %v2804 = vunpack.c.h.b16 %v760
    %v2805 = vunpack.c.l.b16 %v761
    %v2806 = vunpack.c.h.b16 %v761
    %v2807 = vunpack.c.l.b16 %v762
    %v2808 = vunpack.c.h.b16 %v762
    %v2809 = vunpack.c.l.b16 %v763
    %v2810 = vunpack.c.h.b16 %v763
    %v2811 = vunpack.c.l.b16 %v764
    %v2812 = vunpack.c.h.b16 %v764
    %v2813 = vunpack.c.l.b16 %v765
    %v2814 = vunpack.c.h.b16 %v765
    %v2815 = vunpack.c.l.b16 %v766
    %v2816 = vunpack.c.h.b16 %v766
    %v2817 = vunpack.c.l.b16 %v767
    %v2818 = vunpack.c.h.b16 %v767
    %v2819 = vunpack.c.l.b16 %v768
    %v2820 = vunpack.c.h.b16 %v768
    %v2821 = vunpack.c.l.b16 %v769
    %v2822 = vunpack.c.h.b16 %v769
    %v2823 = vunpack.c.l.b16 %v770
    %v2824 = vunpack.c.h.b16 %v770
    %v2825 = vunpack.c.l.b16 %v771
    %v2826 = vunpack.c.h.b16 %v771
    %v2827 = vunpack.c.l.b16 %v772
    %v2828 = vunpack.c.h.b16 %v772
    %v2829 = vunpack.c.l.b16 %v773
    %v2830 = vunpack.c.h.b16 %v773
    %v2831 = vunpack.c.l.b16 %v774
    %v2832 = vunpack.c.h.b16 %v774
    %v2833 = vunpack.c.l.b16 %v775
    %v2834 = vunpack.c.h.b16 %v775
    %v2835 = vunpack.c.l.b16 %v776
    %v2836 = vunpack.c.h.b16 %v776
    %v2837 = vunpack.c.l.b16 %v777
    %v2838 = vunpack.c.h.b16 %v777
    %v2839 = vunpack.c.l.b16 %v778
    %v2840 = vunpack.c.h.b16 %v778
    %v2841 = vunpack.c.l.b16 %v779
    %v2842 = vunpack.c.h.b16 %v779
    %v2843 = vunpack.c.l.b16 %v780
    %v2844 = vunpack.c.h.b16 %v780
    %v2845 = vunpack.c.l.b16 %v781
    %v2846 = vunpack.c.h.b16 %v781
    %v2847 = vunpack.c.l.b16 %v782
    %v2848 = vunpack.c.h.b16 %v782
    %v2849 = vunpack.c.l.b16 %v783
    %v2850 = vunpack.c.h.b16 %v783
    %v2851 = vunpack.c.l.b16 %v784
    %v2852 = vunpack.c.h.b16 %v784
    %v2853 = vunpack.c.l.b16 %v785
    %v2854 = vunpack.c.h.b16 %v785
    %v2855 = vunpack.c.l.b16 %v786
    %v2856 = vunpack.c.h.b16 %v786
    %v2857 = vunpack.c.l.b16 %v787
    %v2858 = vunpack.c.h.b16 %v787
    %v2859 = vunpack.c.l.b16 %v788
    %v2860 = vunpack.c.h.b16 %v788
    %v2861 = vunpack.c.l.b16 %v789
    %v2862 = vunpack.c.h.b16 %v789
    %v2863 = vunpack.c.l.b16 %v790
    %v2864 = vunpack.c.h.b16 %v790
    %v2865 = vunpack.c.l.b16 %v791
    %v2866 = vunpack.c.h.b16 %v791
    %v2867 = vunpack.c.l.b16 %v792
    %v2868 = vunpack.c.h.b16 %v792
    %v2869 = vunpack.c.l.b16 %v793
    %v2870 = vunpack.c.h.b16 %v793
    %v2871 = vunpack.c.l.b16 %v794
    %v2872 = vunpack.c.h.b16 %v794
    %v2873 = vunpack.c.l.b16 %v795
    %v2874 = vunpack.c.h.b16 %v795
    %v2875 = vunpack.c.l.b16 %v796
    %v2876 = vunpack.c.h.b16 %v796
    %v2877 = vunpack.c.l.b16 %v797
    %v2878 = vunpack.c.h.b16 %v797
    %v2879 = vunpack.c.l.b16 %v798
    %v2880 = vunpack.c.h.b16 %v798
    %v2881 = vunpack.c.l.b16 %v799
    %v2882 = vunpack.c.h.b16 %v799
    %v2883 = vunpack.c.l.b16 %v800
    %v2884 = vunpack.c.h.b16 %v800
    %v2885 = vunpack.c.l.b16 %v801
    %v2886 = vunpack.c.h.b16 %v801
    %v2887 = vunpack.c.l.b16 %v802
    %v2888 = vunpack.c.h.b16 %v802
    %v2889 = vunpack.c.l.b16 %v803
    %v2890 = vunpack.c.h.b16 %v803
    %v2891 = vunpack.c.l.b16 %v804
    %v2892 = vunpack.c.h.b16 %v804
    %v2893 = vunpack.c.l.b16 %v805
    %v2894 = vunpack.c.h.b16 %v805
    %v2895 = vunpack.c.l.b16 %v806
    %v2896 = vunpack.c.h.b16 %v806
    %v2897 = vunpack.c.l.b16 %v807
    %v2898 = vunpack.c.h.b16 %v807
    %v2899 = vunpack.c.l.b16 %v808
    %v2900 = vunpack.c.h.b16 %v808
    %v2901 = vunpack.c.l.b16 %v809
    %v2902 = vunpack.c.h.b16 %v809
    %v2903 = vunpack.c.l.b16 %v810
    %v2904 = vunpack.c.h.b16 %v810
    %v2905 = vunpack.c.l.b16 %v811
    %v2906 = vunpack.c.h.b16 %v811
    %v2907 = vunpack.c.l.b16 %v812
    %v2908 = vunpack.c.h.b16 %v812
    %v2909 = vunpack.c.l.b16 %v813
    %v2910 = vunpack.c.h.b16 %v813
    %v2911 = vunpack.c.l.b16 %v814
    %v2912 = vunpack.c.h.b16 %v814
    %v2913 = vunpack.c.l.b16 %v815
    %v2914 = vunpack.c.h.b16 %v815
    %v2915 = vunpack.c.l.b16 %v816
    %v2916 = vunpack.c.h.b16 %v816
    %v2917 = vunpack.c.l.b16 %v817
    %v2918 = vunpack.c.h.b16 %v817
    %v2919 = vunpack.c.l.b16 %v818
    %v2920 = vunpack.c.h.b16 %v818
    %v2921 = vunpack.c.l.b16 %v819
    %v2922 = vunpack.c.h.b16 %v819
    %v2923 = vunpack.c.l.b16 %v820
    %v2924 = vunpack.c.h.b16 %v820
    %v2925 = vunpack.c.l.b16 %v821
    %v2926 = vunpack.c.h.b16 %v821
    %v2927 = vpack.c.b16 %v1595, %v1583
    %v2928 = vpack.c.b16 %v1596, %v1584
    %v2929 = vpack.c.b16 %v1597, %v1585
    %v2930 = vpack.c.b16 %v1598, %v1586
    %v2931 = vpack.c.b16 %v1599, %v1587
    %v2932 = vpack.c.b16 %v1600, %v1588
    %v2933 = vpack.c.b16 %v1601, %v1589
    %v2934 = vpack.c.b16 %v1602, %v1590
    %v2935 = vpack.c.b16 %v1603, %v1591
    %v2936 = vpack.c.b16 %v1604, %v1592
    %v2937 = vpack.c.b16 %v1605, %v1593
    %v2938 = vpack.c.b16 %v1606, %v1594
    %v2939 = vpack.c.b16 %v1619, %v1607
    %v2940 = vpack.c.b16 %v1620, %v1608
    %v2941 = vpack.c.b16 %v1621, %v1609
    %v2942 = vpack.c.b16 %v1622, %v1610
    %v2943 = vpack.c.b16 %v1623, %v1611
    %v2944 = vpack.c.b16 %v1624, %v1612
    %v2945 = vpack.c.b16 %v1625, %v1613
    %v2946 = vpack.c.b16 %v1626, %v1614
    %v2947 = vpack.c.b16 %v1627, %v1615
    %v2948 = vpack.c.b16 %v1628, %v1616
    %v2949 = vpack.c.b16 %v1629, %v1617
    %v2950 = vpack.c.b16 %v1630, %v1618
    %v2951 = vpack.c.b16 %v1643, %v1631
    %v2952 = vpack.c.b16 %v1644, %v1632
    %v2953 = vpack.c.b16 %v1645, %v1633
    %v2954 = vpack.c.b16 %v1646, %v1634
    %v2955 = vpack.c.b16 %v1647, %v1635
    %v2956 = vpack.c.b16 %v1648, %v1636
    %v2957 = vpack.c.b16 %v1649, %v1637
    %v2958 = vpack.c.b16 %v1650, %v1638
    %v2959 = vpack.c.b16 %v1651, %v1639
    %v2960 = vpack.c.b16 %v1652, %v1640
    %v2961 = vpack.c.b16 %v1653, %v1641
    %v2962 = vpack.c.b16 %v1654, %v1642
    %v2963 = vpack.c.b16 %v1667, %v1655
    %v2964 = vpack.c.b16 %v1668, %v1656
    %v2965 = vpack.c.b16 %v1669, %v1657
    %v2966 = vpack.c.b16 %v1670, %v1658
    %v2967 = vpack.c.b16 %v1671, %v1659
    %v2968 = vpack.c.b16 %v1672, %v1660
    %v2969 = vpack.c.b16 %v1673, %v1661
    %v2970 = vpack.c.b16 %v1674, %v1662
    %v2971 = vpack.c.b16 %v1675, %v1663
    %v2972 = vpack.c.b16 %v1676, %v1664
    %v2973 = vpack.c.b16 %v1677, %v1665
    %v2974 = vpack.c.b16 %v1678, %v1666
    %v2975 = vpack.c.b16 %v1691, %v1679
    %v2976 = vpack.c.b16 %v1692, %v1680
    %v2977 = vpack.c.b16 %v1693, %v1681
    %v2978 = vpack.c.b16 %v1694, %v1682
    %v2979 = vpack.c.b16 %v1695, %v1683
    %v2980 = vpack.c.b16 %v1696, %v1684
    %v2981 = vpack.c.b16 %v1697, %v1685
    %v2982 = vpack.c.b16 %v1698, %v1686
    %v2983 = vpack.c.b16 %v1699, %v1687
    %v2984 = vpack.c.b16 %v1700, %v1688
    %v2985 = vpack.c.b16 %v1701, %v1689
    %v2986 = vpack.c.b16 %v1702, %v1690
    %v2987 = vpack.c.b16 %v1715, %v1703
    %v2988 = vpack.c.b16 %v1716, %v1704
    %v2989 = vpack.c.b16 %v1717, %v1705
    %v2990 = vpack.c.b16 %v1718, %v1706
    %v2991 = vpack.c.b16 %v1719, %v1707
    %v2992 = vpack.c.b16 %v1720, %v1708
    %v2993 = vpack.c.b16 %v1721, %v1709
    %v2994 = vpack.c.b16 %v1722, %v1710
    %v2995 = vpack.c.b16 %v1723, %v1711
    %v2996 = vpack.c.b16 %v1724, %v1712
    %v2997 = vpack.c.b16 %v1725, %v1713
    %v2998 = vpack.c.b16 %v1726, %v1714
    %v2999 = vpack.c.b16 %v1739, %v1727
    %v3000 = vpack.c.b16 %v1740, %v1728
    %v3001 = vpack.c.b16 %v1741, %v1729
    %v3002 = vpack.c.b16 %v1742, %v1730
    %v3003 = vpack.c.b16 %v1743, %v1731
    %v3004 = vpack.c.b16 %v1744, %v1732
    %v3005 = vpack.c.b16 %v1745, %v1733
    %v3006 = vpack.c.b16 %v1746, %v1734
    %v3007 = vpack.c.b16 %v1747, %v1735
    %v3008 = vpack.c.b16 %v1748, %v1736
    %v3009 = vpack.c.b16 %v1749, %v1737
    %v3010 = vpack.c.b16 %v1750, %v1738
    %v3011 = vpack.c.b16 %v1763, %v1751
    %v3012 = vpack.c.b16 %v1764, %v1752
    %v3013 = vpack.c.b16 %v1765, %v1753
    %v3014 = vpack.c.b16 %v1766, %v1754
    %v3015 = vpack.c.b16 %v1767, %v1755
    %v3016 = vpack.c.b16 %v1768, %v1756
    %v3017 = vpack.c.b16 %v1769, %v1757
    %v3018 = vpack.c.b16 %v1770, %v1758
    %v3019 = vpack.c.b16 %v1771, %v1759
    %v3020 = vpack.c.b16 %v1772, %v1760
    %v3021 = vpack.c.b16 %v1773, %v1761
    %v3022 = vpack.c.b16 %v1774, %v1762
    %v3023 = vpack.c.b16 %v1787, %v1775
    %v3024 = vpack.c.b16 %v1788, %v1776
    %v3025 = vpack.c.b16 %v1789, %v1777
    %v3026 = vpack.c.b16 %v1790, %v1778
    %v3027 = vpack.c.b16 %v1791, %v1779
    %v3028 = vpack.c.b16 %v1792, %v1780
    %v3029 = vpack.c.b16 %v1793, %v1781
    %v3030 = vpack.c.b16 %v1794, %v1782
    %v3031 = vpack.c.b16 %v1795, %v1783
    %v3032 = vpack.c.b16 %v1796, %v1784
    %v3033 = vpack.c.b16 %v1797, %v1785
    %v3034 = vpack.c.b16 %v1798, %v1786
    %v3035 = vpack.c.b16 %v1811, %v1799
    %v3036 = vpack.c.b16 %v1812, %v1800
    %v3037 = vpack.c.b16 %v1813, %v1801
    %v3038 = vpack.c.b16 %v1814, %v1802
    %v3039 = vpack.c.b16 %v1815, %v1803
    %v3040 = vpack.c.b16 %v1816, %v1804
    %v3041 = vpack.c.b16 %v1817, %v1805
    %v3042 = vpack.c.b16 %v1818, %v1806
    %v3043 = vpack.c.b16 %v1819, %v1807
    %v3044 = vpack.c.b16 %v1820, %v1808
    %v3045 = vpack.c.b16 %v1821, %v1809
    %v3046 = vpack.c.b16 %v1822, %v1810
    %v3047 = vpack.c.b16 %v1835, %v1823
    %v3048 = vpack.c.b16 %v1836, %v1824
    %v3049 = vpack.c.b16 %v1837, %v1825
    %v3050 = vpack.c.b16 %v1838, %v1826
    %v3051 = vpack.c.b16 %v1839, %v1827
    %v3052 = vpack.c.b16 %v1840, %v1828
    %v3053 = vpack.c.b16 %v1841, %v1829
    %v3054 = vpack.c.b16 %v1842, %v1830
    %v3055 = vpack.c.b16 %v1843, %v1831
    %v3056 = vpack.c.b16 %v1844, %v1832
    %v3057 = vpack.c.b16 %v1845, %v1833
    %v3058 = vpack.c.b16 %v1846, %v1834
    %v3059 = vpack.c.b16 %v1859, %v1847
    %v3060 = vpack.c.b16 %v1860, %v1848
    %v3061 = vpack.c.b16 %v1861, %v1849
    %v3062 = vpack.c.b16 %v1862, %v1850
    %v3063 = vpack.c.b16 %v1863, %v1851
    %v3064 = vpack.c.b16 %v1864, %v1852
    %v3065 = vpack.c.b16 %v1865, %v1853
    %v3066 = vpack.c.b16 %v1866, %v1854
    %v3067 = vpack.c.b16 %v1867, %v1855
    %v3068 = vpack.c.b16 %v1868, %v1856
    %v3069 = vpack.c.b16 %v1869, %v1857
    %v3070 = vpack.c.b16 %v1870, %v1858
    %v3071 = vpack.c.b16 %v1883, %v1871
    %v3072 = vpack.c.b16 %v1884, %v1872
    %v3073 = vpack.c.b16 %v1885, %v1873
    %v3074 = vpack.c.b16 %v1886, %v1874
    %v3075 = vpack.c.b16 %v1887, %v1875
    %v3076 = vpack.c.b16 %v1888, %v1876
    %v3077 = vpack.c.b16 %v1889, %v1877
    %v3078 = vpack.c.b16 %v1890, %v1878
    %v3079 = vpack.c.b16 %v1891, %v1879
    %v3080 = vpack.c.b16 %v1892, %v1880
    %v3081 = vpack.c.b16 %v1893, %v1881
    %v3082 = vpack.c.b16 %v1894, %v1882
    %v3083 = vpack.c.b16 %v1907, %v1895
    %v3084 = vpack.c.b16 %v1908, %v1896
    %v3085 = vpack.c.b16 %v1909, %v1897
    %v3086 = vpack.c.b16 %v1910, %v1898
    %v3087 = vpack.c.b16 %v1911, %v1899
    %v3088 = vpack.c.b16 %v1912, %v1900
    %v3089 = vpack.c.b16 %v1913, %v1901
    %v3090 = vpack.c.b16 %v1914, %v1902
    %v3091 = vpack.c.b16 %v1915, %v1903
    %v3092 = vpack.c.b16 %v1916, %v1904
    %v3093 = vpack.c.b16 %v1917, %v1905
    %v3094 = vpack.c.b16 %v1918, %v1906
    %v3095 = vpack.c.b16 %v1931, %v1919
    %v3096 = vpack.c.b16 %v1932, %v1920
    %v3097 = vpack.c.b16 %v1933, %v1921
    %v3098 = vpack.c.b16 %v1934, %v1922
    %v3099 = vpack.c.b16 %v1935, %v1923
    %v3100 = vpack.c.b16 %v1936, %v1924
    %v3101 = vpack.c.b16 %v1937, %v1925
    %v3102 = vpack.c.b16 %v1938, %v1926
    %v3103 = vpack.c.b16 %v1939, %v1927
    %v3104 = vpack.c.b16 %v1940, %v1928
    %v3105 = vpack.c.b16 %v1941, %v1929
    %v3106 = vpack.c.b16 %v1942, %v1930
    %v3107 = vpack.c.b16 %v1955, %v1943
    %v3108 = vpack.c.b16 %v1956, %v1944
    %v3109 = vpack.c.b16 %v1957, %v1945
    %v3110 = vpack.c.b16 %v1958, %v1946
    %v3111 = vpack.c.b16 %v1959, %v1947
    %v3112 = vpack.c.b16 %v1960, %v1948
    %v3113 = vpack.c.b16 %v1961, %v1949
    %v3114 = vpack.c.b16 %v1962, %v1950
    %v3115 = vpack.c.b16 %v1963, %v1951
    %v3116 = vpack.c.b16 %v1964, %v1952
    %v3117 = vpack.c.b16 %v1965, %v1953
    %v3118 = vpack.c.b16 %v1966, %v1954
    %v3119 = vpack.c.b16 %v1979, %v1967
    %v3120 = vpack.c.b16 %v1980, %v1968
    %v3121 = vpack.c.b16 %v1981, %v1969
    %v3122 = vpack.c.b16 %v1982, %v1970
    %v3123 = vpack.c.b16 %v1983, %v1971
    %v3124 = vpack.c.b16 %v1984, %v1972
    %v3125 = vpack.c.b16 %v1985, %v1973
    %v3126 = vpack.c.b16 %v1986, %v1974
    %v3127 = vpack.c.b16 %v1987, %v1975
    %v3128 = vpack.c.b16 %v1988, %v1976
    %v3129 = vpack.c.b16 %v1989, %v1977
    %v3130 = vpack.c.b16 %v1990, %v1978
    %v3131 = vpack.c.b16 %v2003, %v1991
    %v3132 = vpack.c.b16 %v2004, %v1992
    %v3133 = vpack.c.b16 %v2005, %v1993
    %v3134 = vpack.c.b16 %v2006, %v1994
    %v3135 = vpack.c.b16 %v2007, %v1995
    %v3136 = vpack.c.b16 %v2008, %v1996
    %v3137 = vpack.c.b16 %v2009, %v1997
    %v3138 = vpack.c.b16 %v2010, %v1998
    %v3139 = vpack.c.b16 %v2011, %v1999
    %v3140 = vpack.c.b16 %v2012, %v2000
    %v3141 = vpack.c.b16 %v2013, %v2001
    %v3142 = vpack.c.b16 %v2014, %v2002
    %v3143 = vpack.c.b16 %v2027, %v2015
    %v3144 = vpack.c.b16 %v2028, %v2016
    %v3145 = vpack.c.b16 %v2029, %v2017
    %v3146 = vpack.c.b16 %v2030, %v2018
    %v3147 = vpack.c.b16 %v2031, %v2019
    %v3148 = vpack.c.b16 %v2032, %v2020
    %v3149 = vpack.c.b16 %v2033, %v2021
    %v3150 = vpack.c.b16 %v2034, %v2022
    %v3151 = vpack.c.b16 %v2035, %v2023
    %v3152 = vpack.c.b16 %v2036, %v2024
    %v3153 = vpack.c.b16 %v2037, %v2025
    %v3154 = vpack.c.b16 %v2038, %v2026
    %v3155 = vpack.c.b16 %v2051, %v2039
    %v3156 = vpack.c.b16 %v2052, %v2040
    %v3157 = vpack.c.b16 %v2053, %v2041
    %v3158 = vpack.c.b16 %v2054, %v2042
    %v3159 = vpack.c.b16 %v2055, %v2043
    %v3160 = vpack.c.b16 %v2056, %v2044
    %v3161 = vpack.c.b16 %v2057, %v2045
    %v3162 = vpack.c.b16 %v2058, %v2046
    %v3163 = vpack.c.b16 %v2059, %v2047
    %v3164 = vpack.c.b16 %v2060, %v2048
    %v3165 = vpack.c.b16 %v2061, %v2049
    %v3166 = vpack.c.b16 %v2062, %v2050
    %v3167 = vpack.c.b16 %v2075, %v2063
    %v3168 = vpack.c.b16 %v2076, %v2064
    %v3169 = vpack.c.b16 %v2077, %v2065
    %v3170 = vpack.c.b16 %v2078, %v2066
    %v3171 = vpack.c.b16 %v2079, %v2067
    %v3172 = vpack.c.b16 %v2080, %v2068
    %v3173 = vpack.c.b16 %v2081, %v2069
    %v3174 = vpack.c.b16 %v2082, %v2070
    %v3175 = vpack.c.b16 %v2083, %v2071
    %v3176 = vpack.c.b16 %v2084, %v2072
    %v3177 = vpack.c.b16 %v2085, %v2073
    %v3178 = vpack.c.b16 %v2086, %v2074
    %v3179 = vpack.c.b16 %v2099, %v2087
    %v3180 = vpack.c.b16 %v2100, %v2088
    %v3181 = vpack.c.b16 %v2101, %v2089
    %v3182 = vpack.c.b16 %v2102, %v2090
    %v3183 = vpack.c.b16 %v2103, %v2091
    %v3184 = vpack.c.b16 %v2104, %v2092
    %v3185 = vpack.c.b16 %v2105, %v2093
    %v3186 = vpack.c.b16 %v2106, %v2094
    %v3187 = vpack.c.b16 %v2107, %v2095
    %v3188 = vpack.c.b16 %v2108, %v2096
    %v3189 = vpack.c.b16 %v2109, %v2097
    %v3190 = vpack.c.b16 %v2110, %v2098
    %v3191 = vpack.c.b16 %v2123, %v2111
    %v3192 = vpack.c.b16 %v2124, %v2112
    %v3193 = vpack.c.b16 %v2125, %v2113
    %v3194 = vpack.c.b16 %v2126, %v2114
    %v3195 = vpack.c.b16 %v2127, %v2115
    %v3196 = vpack.c.b16 %v2128, %v2116
    %v3197 = vpack.c.b16 %v2129, %v2117
    %v3198 = vpack.c.b16 %v2130, %v2118
    %v3199 = vpack.c.b16 %v2131, %v2119
    %v3200 = vpack.c.b16 %v2132, %v2120
    %v3201 = vpack.c.b16 %v2133, %v2121
    %v3202 = vpack.c.b16 %v2134, %v2122
    %v3203 = vpack.c.b16 %v2147, %v2135
    %v3204 = vpack.c.b16 %v2148, %v2136
    %v3205 = vpack.c.b16 %v2149, %v2137
    %v3206 = vpack.c.b16 %v2150, %v2138
    %v3207 = vpack.c.b16 %v2151, %v2139
    %v3208 = vpack.c.b16 %v2152, %v2140
    %v3209 = vpack.c.b16 %v2153, %v2141
    %v3210 = vpack.c.b16 %v2154, %v2142
    %v3211 = vpack.c.b16 %v2155, %v2143
    %v3212 = vpack.c.b16 %v2156, %v2144
    %v3213 = vpack.c.b16 %v2157, %v2145
    %v3214 = vpack.c.b16 %v2158, %v2146
    %v3215 = vpack.c.b16 %v2171, %v2159
    %v3216 = vpack.c.b16 %v2172, %v2160
    %v3217 = vpack.c.b16 %v2173, %v2161
    %v3218 = vpack.c.b16 %v2174, %v2162
    %v3219 = vpack.c.b16 %v2175, %v2163
    %v3220 = vpack.c.b16 %v2176, %v2164
    %v3221 = vpack.c.b16 %v2177, %v2165
    %v3222 = vpack.c.b16 %v2178, %v2166
    %v3223 = vpack.c.b16 %v2179, %v2167
    %v3224 = vpack.c.b16 %v2180, %v2168
    %v3225 = vpack.c.b16 %v2181, %v2169
    %v3226 = vpack.c.b16 %v2182, %v2170
    %v3227 = vpack.c.b16 %v2195, %v2183
    %v3228 = vpack.c.b16 %v2196, %v2184
    %v3229 = vpack.c.b16 %v2197, %v2185
    %v3230 = vpack.c.b16 %v2198, %v2186
    %v3231 = vpack.c.b16 %v2199, %v2187
    %v3232 = vpack.c.b16 %v2200, %v2188
    %v3233 = vpack.c.b16 %v2201, %v2189
    %v3234 = vpack.c.b16 %v2202, %v2190
    %v3235 = vpack.c.b16 %v2203, %v2191
    %v3236 = vpack.c.b16 %v2204, %v2192
    %v3237 = vpack.c.b16 %v2205, %v2193
    %v3238 = vpack.c.b16 %v2206, %v2194
    %v3239 = vpack.c.b16 %v2219, %v2207
    %v3240 = vpack.c.b16 %v2220, %v2208
    %v3241 = vpack.c.b16 %v2221, %v2209
    %v3242 = vpack.c.b16 %v2222, %v2210
    %v3243 = vpack.c.b16 %v2223, %v2211
    %v3244 = vpack.c.b16 %v2224, %v2212
    %v3245 = vpack.c.b16 %v2225, %v2213
    %v3246 = vpack.c.b16 %v2226, %v2214
    %v3247 = vpack.c.b16 %v2227, %v2215
    %v3248 = vpack.c.b16 %v2228, %v2216
    %v3249 = vpack.c.b16 %v2229, %v2217
    %v3250 = vpack.c.b16 %v2230, %v2218
    %v3251 = vpack.c.b16 %v2243, %v2231
    %v3252 = vpack.c.b16 %v2244, %v2232
    %v3253 = vpack.c.b16 %v2245, %v2233
    %v3254 = vpack.c.b16 %v2246, %v2234
    %v3255 = vpack.c.b16 %v2247, %v2235
    %v3256 = vpack.c.b16 %v2248, %v2236
    %v3257 = vpack.c.b16 %v2249, %v2237
    %v3258 = vpack.c.b16 %v2250, %v2238
    %v3259 = vpack.c.b16 %v2251, %v2239
    %v3260 = vpack.c.b16 %v2252, %v2240
    %v3261 = vpack.c.b16 %v2253, %v2241
    %v3262 = vpack.c.b16 %v2254, %v2242
    %v3263 = vpack.c.b16 %v2267, %v2255
    %v3264 = vpack.c.b16 %v2268, %v2256
    %v3265 = vpack.c.b16 %v2269, %v2257
    %v3266 = vpack.c.b16 %v2270, %v2258
    %v3267 = vpack.c.b16 %v2271, %v2259
    %v3268 = vpack.c.b16 %v2272, %v2260
    %v3269 = vpack.c.b16 %v2273, %v2261
    %v3270 = vpack.c.b16 %v2274, %v2262
    %v3271 = vpack.c.b16 %v2275, %v2263
    %v3272 = vpack.c.b16 %v2276, %v2264
    %v3273 = vpack.c.b16 %v2277, %v2265
    %v3274 = vpack.c.b16 %v2278, %v2266
    %v3275 = vpack.c.b16 %v2291, %v2279
    %v3276 = vpack.c.b16 %v2292, %v2280
    %v3277 = vpack.c.b16 %v2293, %v2281
    %v3278 = vpack.c.b16 %v2294, %v2282
    %v3279 = vpack.c.b16 %v2295, %v2283
    %v3280 = vpack.c.b16 %v2296, %v2284
    %v3281 = vpack.c.b16 %v2297, %v2285
    %v3282 = vpack.c.b16 %v2298, %v2286
    %v3283 = vpack.c.b16 %v2299, %v2287
    %v3284 = vpack.c.b16 %v2300, %v2288
    %v3285 = vpack.c.b16 %v2301, %v2289
    %v3286 = vpack.c.b16 %v2302, %v2290
    %v3287 = vpack.c.b16 %v2315, %v2303
    %v3288 = vpack.c.b16 %v2316, %v2304
    %v3289 = vpack.c.b16 %v2317, %v2305
    %v3290 = vpack.c.b16 %v2318, %v2306
    %v3291 = vpack.c.b16 %v2319, %v2307
    %v3292 = vpack.c.b16 %v2320, %v2308
    %v3293 = vpack.c.b16 %v2321, %v2309
    %v3294 = vpack.c.b16 %v2322, %v2310
    %v3295 = vpack.c.b16 %v2323, %v2311
    %v3296 = vpack.c.b16 %v2324, %v2312
    %v3297 = vpack.c.b16 %v2325, %v2313
    %v3298 = vpack.c.b16 %v2326, %v2314
    %v3299 = vpack.c.b16 %v2339, %v2327
    %v3300 = vpack.c.b16 %v2340, %v2328
    %v3301 = vpack.c.b16 %v2341, %v2329
    %v3302 = vpack.c.b16 %v2342, %v2330
    %v3303 = vpack.c.b16 %v2343, %v2331
    %v3304 = vpack.c.b16 %v2344, %v2332
    %v3305 = vpack.c.b16 %v2345, %v2333
    %v3306 = vpack.c.b16 %v2346, %v2334
    %v3307 = vpack.c.b16 %v2347, %v2335
    %v3308 = vpack.c.b16 %v2348, %v2336
    %v3309 = vpack.c.b16 %v2349, %v2337
    %v3310 = vpack.c.b16 %v2350, %v2338
    %v3311 = vpack.c.b16 %v2363, %v2351
    %v3312 = vpack.c.b16 %v2364, %v2352
    %v3313 = vpack.c.b16 %v2365, %v2353
    %v3314 = vpack.c.b16 %v2366, %v2354
    %v3315 = vpack.c.b16 %v2367, %v2355
    %v3316 = vpack.c.b16 %v2368, %v2356
    %v3317 = vpack.c.b16 %v2369, %v2357
    %v3318 = vpack.c.b16 %v2370, %v2358
    %v3319 = vpack.c.b16 %v2371, %v2359
    %v3320 = vpack.c.b16 %v2372, %v2360
    %v3321 = vpack.c.b16 %v2373, %v2361
    %v3322 = vpack.c.b16 %v2374, %v2362
    %v3323 = vpack.c.b16 %v2387, %v2375
    %v3324 = vpack.c.b16 %v2388, %v2376
    %v3325 = vpack.c.b16 %v2389, %v2377
    %v3326 = vpack.c.b16 %v2390, %v2378
    %v3327 = vpack.c.b16 %v2391, %v2379
    %v3328 = vpack.c.b16 %v2392, %v2380
    %v3329 = vpack.c.b16 %v2393, %v2381
    %v3330 = vpack.c.b16 %v2394, %v2382
    %v3331 = vpack.c.b16 %v2395, %v2383
    %v3332 = vpack.c.b16 %v2396, %v2384
    %v3333 = vpack.c.b16 %v2397, %v2385
    %v3334 = vpack.c.b16 %v2398, %v2386
    %v3335 = vpack.c.b16 %v2411, %v2399
    %v3336 = vpack.c.b16 %v2412, %v2400
    %v3337 = vpack.c.b16 %v2413, %v2401
    %v3338 = vpack.c.b16 %v2414, %v2402
    %v3339 = vpack.c.b16 %v2415, %v2403
    %v3340 = vpack.c.b16 %v2416, %v2404
    %v3341 = vpack.c.b16 %v2417, %v2405
    %v3342 = vpack.c.b16 %v2418, %v2406
    %v3343 = vpack.c.b16 %v2419, %v2407
    %v3344 = vpack.c.b16 %v2420, %v2408
    %v3345 = vpack.c.b16 %v2421, %v2409
    %v3346 = vpack.c.b16 %v2422, %v2410
    %v3347 = vpack.c.b16 %v2435, %v2423
    %v3348 = vpack.c.b16 %v2436, %v2424
    %v3349 = vpack.c.b16 %v2437, %v2425
    %v3350 = vpack.c.b16 %v2438, %v2426
    %v3351 = vpack.c.b16 %v2439, %v2427
    %v3352 = vpack.c.b16 %v2440, %v2428
    %v3353 = vpack.c.b16 %v2441, %v2429
    %v3354 = vpack.c.b16 %v2442, %v2430
    %v3355 = vpack.c.b16 %v2443, %v2431
    %v3356 = vpack.c.b16 %v2444, %v2432
    %v3357 = vpack.c.b16 %v2445, %v2433
    %v3358 = vpack.c.b16 %v2446, %v2434
    %v3359 = vpack.c.b16 %v2459, %v2447
    %v3360 = vpack.c.b16 %v2460, %v2448
    %v3361 = vpack.c.b16 %v2461, %v2449
    %v3362 = vpack.c.b16 %v2462, %v2450
    %v3363 = vpack.c.b16 %v2463, %v2451
    %v3364 = vpack.c.b16 %v2464, %v2452
    %v3365 = vpack.c.b16 %v2465, %v2453
    %v3366 = vpack.c.b16 %v2466, %v2454
    %v3367 = vpack.c.b16 %v2467, %v2455
    %v3368 = vpack.c.b16 %v2468, %v2456
    %v3369 = vpack.c.b16 %v2469, %v2457
    %v3370 = vpack.c.b16 %v2470, %v2458
    %v3371 = vpack.c.b16 %v2483, %v2471
    %v3372 = vpack.c.b16 %v2484, %v2472
    %v3373 = vpack.c.b16 %v2485, %v2473
    %v3374 = vpack.c.b16 %v2486, %v2474
    %v3375 = vpack.c.b16 %v2487, %v2475
    %v3376 = vpack.c.b16 %v2488, %v2476
    %v3377 = vpack.c.b16 %v2489, %v2477
    %v3378 = vpack.c.b16 %v2490, %v2478
    %v3379 = vpack.c.b16 %v2491, %v2479
    %v3380 = vpack.c.b16 %v2492, %v2480
    %v3381 = vpack.c.b16 %v2493, %v2481
    %v3382 = vpack.c.b16 %v2494, %v2482
    %v3383 = vpack.c.b16 %v2507, %v2495
    %v3384 = vpack.c.b16 %v2508, %v2496
    %v3385 = vpack.c.b16 %v2509, %v2497
    %v3386 = vpack.c.b16 %v2510, %v2498
    %v3387 = vpack.c.b16 %v2511, %v2499
    %v3388 = vpack.c.b16 %v2512, %v2500
    %v3389 = vpack.c.b16 %v2513, %v2501
    %v3390 = vpack.c.b16 %v2514, %v2502
    %v3391 = vpack.c.b16 %v2515, %v2503
    %v3392 = vpack.c.b16 %v2516, %v2504
    %v3393 = vpack.c.b16 %v2517, %v2505
    %v3394 = vpack.c.b16 %v2518, %v2506
    %v3395 = vpack.c.b16 %v2531, %v2519
    %v3396 = vpack.c.b16 %v2532, %v2520
    %v3397 = vpack.c.b16 %v2533, %v2521
    %v3398 = vpack.c.b16 %v2534, %v2522
    %v3399 = vpack.c.b16 %v2535, %v2523
    %v3400 = vpack.c.b16 %v2536, %v2524
    %v3401 = vpack.c.b16 %v2537, %v2525
    %v3402 = vpack.c.b16 %v2538, %v2526
    %v3403 = vpack.c.b16 %v2539, %v2527
    %v3404 = vpack.c.b16 %v2540, %v2528
    %v3405 = vpack.c.b16 %v2541, %v2529
    %v3406 = vpack.c.b16 %v2542, %v2530
    %v3407 = vpack.c.b16 %v2555, %v2543
    %v3408 = vpack.c.b16 %v2556, %v2544
    %v3409 = vpack.c.b16 %v2557, %v2545
    %v3410 = vpack.c.b16 %v2558, %v2546
    %v3411 = vpack.c.b16 %v2559, %v2547
    %v3412 = vpack.c.b16 %v2560, %v2548
    %v3413 = vpack.c.b16 %v2561, %v2549
    %v3414 = vpack.c.b16 %v2562, %v2550
    %v3415 = vpack.c.b16 %v2563, %v2551
    %v3416 = vpack.c.b16 %v2564, %v2552
    %v3417 = vpack.c.b16 %v2565, %v2553
    %v3418 = vpack.c.b16 %v2566, %v2554
    %v3419 = vpack.c.b16 %v2579, %v2567
    %v3420 = vpack.c.b16 %v2580, %v2568
    %v3421 = vpack.c.b16 %v2581, %v2569
    %v3422 = vpack.c.b16 %v2582, %v2570
    %v3423 = vpack.c.b16 %v2583, %v2571
    %v3424 = vpack.c.b16 %v2584, %v2572
    %v3425 = vpack.c.b16 %v2585, %v2573
    %v3426 = vpack.c.b16 %v2586, %v2574
    %v3427 = vpack.c.b16 %v2587, %v2575
    %v3428 = vpack.c.b16 %v2588, %v2576
    %v3429 = vpack.c.b16 %v2589, %v2577
    %v3430 = vpack.c.b16 %v2590, %v2578
    %v3431 = vpack.c.b16 %v2603, %v2591
    %v3432 = vpack.c.b16 %v2604, %v2592
    %v3433 = vpack.c.b16 %v2605, %v2593
    %v3434 = vpack.c.b16 %v2606, %v2594
    %v3435 = vpack.c.b16 %v2607, %v2595
    %v3436 = vpack.c.b16 %v2608, %v2596
    %v3437 = vpack.c.b16 %v2609, %v2597
    %v3438 = vpack.c.b16 %v2610, %v2598
    %v3439 = vpack.c.b16 %v2611, %v2599
    %v3440 = vpack.c.b16 %v2612, %v2600
    %v3441 = vpack.c.b16 %v2613, %v2601
    %v3442 = vpack.c.b16 %v2614, %v2602
    %v3443 = vpack.c.b16 %v2627, %v2615
    %v3444 = vpack.c.b16 %v2628, %v2616
    %v3445 = vpack.c.b16 %v2629, %v2617
    %v3446 = vpack.c.b16 %v2630, %v2618
    %v3447 = vpack.c.b16 %v2631, %v2619
    %v3448 = vpack.c.b16 %v2632, %v2620
    %v3449 = vpack.c.b16 %v2633, %v2621
    %v3450 = vpack.c.b16 %v2634, %v2622
    %v3451 = vpack.c.b16 %v2635, %v2623
    %v3452 = vpack.c.b16 %v2636, %v2624
    %v3453 = vpack.c.b16 %v2637, %v2625
    %v3454 = vpack.c.b16 %v2638, %v2626
    %v3455 = vpack.c.b16 %v2651, %v2639
    %v3456 = vpack.c.b16 %v2652, %v2640
    %v3457 = vpack.c.b16 %v2653, %v2641
    %v3458 = vpack.c.b16 %v2654, %v2642
    %v3459 = vpack.c.b16 %v2655, %v2643
    %v3460 = vpack.c.b16 %v2656, %v2644
    %v3461 = vpack.c.b16 %v2657, %v2645
    %v3462 = vpack.c.b16 %v2658, %v2646
    %v3463 = vpack.c.b16 %v2659, %v2647
    %v3464 = vpack.c.b16 %v2660, %v2648
    %v3465 = vpack.c.b16 %v2661, %v2649
    %v3466 = vpack.c.b16 %v2662, %v2650
    %v3467 = vpack.c.b16 %v2675, %v2663
    %v3468 = vpack.c.b16 %v2676, %v2664
    %v3469 = vpack.c.b16 %v2677, %v2665
    %v3470 = vpack.c.b16 %v2678, %v2666
    %v3471 = vpack.c.b16 %v2679, %v2667
    %v3472 = vpack.c.b16 %v2680, %v2668
    %v3473 = vpack.c.b16 %v2681, %v2669
    %v3474 = vpack.c.b16 %v2682, %v2670
    %v3475 = vpack.c.b16 %v2683, %v2671
    %v3476 = vpack.c.b16 %v2684, %v2672
    %v3477 = vpack.c.b16 %v2685, %v2673
    %v3478 = vpack.c.b16 %v2686, %v2674
    %v3479 = vpack.c.b16 %v2699, %v2687
    %v3480 = vpack.c.b16 %v2700, %v2688
    %v3481 = vpack.c.b16 %v2701, %v2689
    %v3482 = vpack.c.b16 %v2702, %v2690
    %v3483 = vpack.c.b16 %v2703, %v2691
    %v3484 = vpack.c.b16 %v2704, %v2692
    %v3485 = vpack.c.b16 %v2705, %v2693
    %v3486 = vpack.c.b16 %v2706, %v2694
    %v3487 = vpack.c.b16 %v2707, %v2695
    %v3488 = vpack.c.b16 %v2708, %v2696
    %v3489 = vpack.c.b16 %v2709, %v2697
    %v3490 = vpack.c.b16 %v2710, %v2698
    %v3491 = vpack.c.b16 %v2723, %v2711
    %v3492 = vpack.c.b16 %v2724, %v2712
    %v3493 = vpack.c.b16 %v2725, %v2713
    %v3494 = vpack.c.b16 %v2726, %v2714
    %v3495 = vpack.c.b16 %v2727, %v2715
    %v3496 = vpack.c.b16 %v2728, %v2716
    %v3497 = vpack.c.b16 %v2729, %v2717
    %v3498 = vpack.c.b16 %v2730, %v2718
    %v3499 = vpack.c.b16 %v2731, %v2719
    %v3500 = vpack.c.b16 %v2732, %v2720
    %v3501 = vpack.c.b16 %v2733, %v2721
    %v3502 = vpack.c.b16 %v2734, %v2722
    %v3503 = vpack.c.b16 %v2747, %v2735
    %v3504 = vpack.c.b16 %v2748, %v2736
    %v3505 = vpack.c.b16 %v2749, %v2737
    %v3506 = vpack.c.b16 %v2750, %v2738
    %v3507 = vpack.c.b16 %v2751, %v2739
    %v3508 = vpack.c.b16 %v2752, %v2740
    %v3509 = vpack.c.b16 %v2753, %v2741
    %v3510 = vpack.c.b16 %v2754, %v2742
    %v3511 = vpack.c.b16 %v2755, %v2743
    %v3512 = vpack.c.b16 %v2756, %v2744
    %v3513 = vpack.c.b16 %v2757, %v2745
    %v3514 = vpack.c.b16 %v2758, %v2746
    %v3515 = vpack.c.b16 %v2771, %v2759
    %v3516 = vpack.c.b16 %v2772, %v2760
    %v3517 = vpack.c.b16 %v2773, %v2761
    %v3518 = vpack.c.b16 %v2774, %v2762
    %v3519 = vpack.c.b16 %v2775, %v2763
    %v3520 = vpack.c.b16 %v2776, %v2764
    %v3521 = vpack.c.b16 %v2777, %v2765
    %v3522 = vpack.c.b16 %v2778, %v2766
    %v3523 = vpack.c.b16 %v2779, %v2767
    %v3524 = vpack.c.b16 %v2780, %v2768
    %v3525 = vpack.c.b16 %v2781, %v2769
    %v3526 = vpack.c.b16 %v2782, %v2770
    %v3527 = vpack.c.b16 %v2795, %v2783
    %v3528 = vpack.c.b16 %v2796, %v2784
    %v3529 = vpack.c.b16 %v2797, %v2785
    %v3530 = vpack.c.b16 %v2798, %v2786
    %v3531 = vpack.c.b16 %v2799, %v2787
    %v3532 = vpack.c.b16 %v2800, %v2788
    %v3533 = vpack.c.b16 %v2801, %v2789
    %v3534 = vpack.c.b16 %v2802, %v2790
    %v3535 = vpack.c.b16 %v2803, %v2791
    %v3536 = vpack.c.b16 %v2804, %v2792
    %v3537 = vpack.c.b16 %v2805, %v2793
    %v3538 = vpack.c.b16 %v2806, %v2794
    %v3539 = vpack.c.b16 %v2819, %v2807
    %v3540 = vpack.c.b16 %v2820, %v2808
    %v3541 = vpack.c.b16 %v2821, %v2809
    %v3542 = vpack.c.b16 %v2822, %v2810
    %v3543 = vpack.c.b16 %v2823, %v2811
    %v3544 = vpack.c.b16 %v2824, %v2812
    %v3545 = vpack.c.b16 %v2825, %v2813
    %v3546 = vpack.c.b16 %v2826, %v2814
    %v3547 = vpack.c.b16 %v2827, %v2815
    %v3548 = vpack.c.b16 %v2828, %v2816
    %v3549 = vpack.c.b16 %v2829, %v2817
    %v3550 = vpack.c.b16 %v2830, %v2818
    %v3551 = vpack.c.b16 %v2843, %v2831
    %v3552 = vpack.c.b16 %v2844, %v2832
    %v3553 = vpack.c.b16 %v2845, %v2833
    %v3554 = vpack.c.b16 %v2846, %v2834
    %v3555 = vpack.c.b16 %v2847, %v2835
    %v3556 = vpack.c.b16 %v2848, %v2836
    %v3557 = vpack.c.b16 %v2849, %v2837
    %v3558 = vpack.c.b16 %v2850, %v2838
    %v3559 = vpack.c.b16 %v2851, %v2839
    %v3560 = vpack.c.b16 %v2852, %v2840
    %v3561 = vpack.c.b16 %v2853, %v2841
    %v3562 = vpack.c.b16 %v2854, %v2842
    %v3563 = vpack.c.b16 %v2867, %v2855
    %v3564 = vpack.c.b16 %v2868, %v2856
    %v3565 = vpack.c.b16 %v2869, %v2857
    %v3566 = vpack.c.b16 %v2870, %v2858
    %v3567 = vpack.c.b16 %v2871, %v2859
    %v3568 = vpack.c.b16 %v2872, %v2860
    %v3569 = vpack.c.b16 %v2873, %v2861
    %v3570 = vpack.c.b16 %v2874, %v2862
    %v3571 = vpack.c.b16 %v2875, %v2863
    %v3572 = vpack.c.b16 %v2876, %v2864
    %v3573 = vpack.c.b16 %v2877, %v2865
    %v3574 = vpack.c.b16 %v2878, %v2866
    %v3575 = vpack.c.b16 %v2891, %v2879
    %v3576 = vpack.c.b16 %v2892, %v2880
    %v3577 = vpack.c.b16 %v2893, %v2881
    %v3578 = vpack.c.b16 %v2894, %v2882
    %v3579 = vpack.c.b16 %v2895, %v2883
    %v3580 = vpack.c.b16 %v2896, %v2884
    %v3581 = vpack.c.b16 %v2897, %v2885
    %v3582 = vpack.c.b16 %v2898, %v2886
    %v3583 = vpack.c.b16 %v2899, %v2887
    %v3584 = vpack.c.b16 %v2900, %v2888
    %v3585 = vpack.c.b16 %v2901, %v2889
    %v3586 = vpack.c.b16 %v2902, %v2890
    %v3587 = vpack.c.b16 %v2915, %v2903
    %v3588 = vpack.c.b16 %v2916, %v2904
    %v3589 = vpack.c.b16 %v2917, %v2905
    %v3590 = vpack.c.b16 %v2918, %v2906
    %v3591 = vpack.c.b16 %v2919, %v2907
    %v3592 = vpack.c.b16 %v2920, %v2908
    %v3593 = vpack.c.b16 %v2921, %v2909
    %v3594 = vpack.c.b16 %v2922, %v2910
    %v3595 = vpack.c.b16 %v2923, %v2911
    %v3596 = vpack.c.b16 %v2924, %v2912
    %v3597 = vpack.c.b16 %v2925, %v2913
    %v3598 = vpack.c.b16 %v2926, %v2914
    %4271 = vmatprep.subr.bf16.mxu0 %v3012
    %4272 = vmatpush1.bf16.msra.mxu0 %v3011
    %4273 = vmatprep.subr.bf16.mxu0 %v3000
    %4274 = vmatpush1.bf16.msra.mxu0 %v2999
    %4275 = vmatprep.subr.bf16.mxu0 %v2988
    %4276 = vmatpush1.bf16.msra.mxu0 %v2987
    %4277 = vmatprep.subr.bf16.mxu0 %v2976
    %4278 = vmatpush1.bf16.msra.mxu0 %v2975
    %4279 = vmatprep.subr.bf16.mxu0 %v2964
    %4280 = vmatpush1.bf16.msra.mxu0 %v2963
    %4281 = vmatprep.subr.bf16.mxu0 %v2952
    %4282 = vmatpush1.bf16.msra.mxu0 %v2951
    %4283 = vmatprep.subr.bf16.mxu0 %v2940
    %4284 = vmatpush1.bf16.msra.mxu0 %v2939
    %4285 = vmatprep.subr.bf16.mxu0 %v2928
    %4286 = vmatpush1.bf16.msra.mxu0 %v2927
    %4287 = vmatprep.subr.bf16.mxu0 %v3108
    %4288 = vmatpush2.bf16.msra.mxu0 %v3107
    %4289 = vmatprep.subr.bf16.mxu0 %v3096
    %4290 = vmatpush2.bf16.msra.mxu0 %v3095
    %4291 = vmatprep.subr.bf16.mxu0 %v3084
    %4292 = vmatpush2.bf16.msra.mxu0 %v3083
    %4293 = vmatprep.subr.bf16.mxu0 %v3072
    %4294 = vmatpush2.bf16.msra.mxu0 %v3071
    %4295 = vmatprep.subr.bf16.mxu0 %v3060
    %4296 = vmatpush2.bf16.msra.mxu0 %v3059
    %4297 = vmatprep.subr.bf16.mxu0 %v3048
    %4298 = vmatpush2.bf16.msra.mxu0 %v3047
    %4299 = vmatprep.subr.bf16.mxu0 %v3036
    %4300 = vmatpush2.bf16.msra.mxu0 %v3035
    %4301 = vmatprep.subr.bf16.mxu0 %v3024
    %4302 = vmatpush2.bf16.msra.mxu0 %v3023
    %4303 = vmatprep.mubr.bf16.mxu0 %v898
    %4304 = vmatmul.mubr.bf16.gmra.mxu0 %v897
    %v4305 = vpop.f32.mrf.mxu0
    %v4306 = vadd.f32 %v829, %v4305
    %v4307 = vpop.f32.mrf.mxu0
    %v4308 = vadd.f32 %v833, %v4307
    %v4309 = vpop.f32.mrf.mxu0
    %v4310 = vpop.f32.mrf.mxu0
    %4311 = vdwg.mxu0
    %4312 = vmatprep.subr.bf16.mxu0 %v3204
    %4313 = vmatpush1.bf16.msra.mxu0 %v3203
    %4314 = vmatprep.subr.bf16.mxu0 %v3192
    %4315 = vmatpush1.bf16.msra.mxu0 %v3191
    %4316 = vmatprep.subr.bf16.mxu0 %v3180
    %4317 = vmatpush1.bf16.msra.mxu0 %v3179
    %4318 = vmatprep.subr.bf16.mxu0 %v3168
    %4319 = vmatpush1.bf16.msra.mxu0 %v3167
    %4320 = vmatprep.subr.bf16.mxu0 %v3156
    %4321 = vmatpush1.bf16.msra.mxu0 %v3155
    %4322 = vmatprep.subr.bf16.mxu0 %v3144
    %4323 = vmatpush1.bf16.msra.mxu0 %v3143
    %4324 = vmatprep.subr.bf16.mxu0 %v3132
    %4325 = vmatpush1.bf16.msra.mxu0 %v3131
    %4326 = vmatprep.subr.bf16.mxu0 %v3120
    %4327 = vmatpush1.bf16.msra.mxu0 %v3119
    %4328 = vmatprep.subr.bf16.mxu0 %v3300
    %4329 = vmatpush2.bf16.msra.mxu0 %v3299
    %4330 = vmatprep.subr.bf16.mxu0 %v3288
    %4331 = vmatpush2.bf16.msra.mxu0 %v3287
    %4332 = vmatprep.subr.bf16.mxu0 %v3276
    %4333 = vmatpush2.bf16.msra.mxu0 %v3275
    %4334 = vmatprep.subr.bf16.mxu0 %v3264
    %4335 = vmatpush2.bf16.msra.mxu0 %v3263
    %4336 = vmatprep.subr.bf16.mxu0 %v3252
    %4337 = vmatpush2.bf16.msra.mxu0 %v3251
    %4338 = vmatprep.subr.bf16.mxu0 %v3240
    %4339 = vmatpush2.bf16.msra.mxu0 %v3239
    %4340 = vmatprep.subr.bf16.mxu0 %v3228
    %4341 = vmatpush2.bf16.msra.mxu0 %v3227
    %4342 = vmatprep.subr.bf16.mxu0 %v3216
    %4343 = vmatpush2.bf16.msra.mxu0 %v3215
    %4344 = vmatprep.mubr.bf16.mxu0 %v900
    %4345 = vmatmul.mubr.bf16.gmra.mxu0 %v899
    %v4346 = vpop.f32.mrf.mxu0
    %v4347 = vadd.f32 %v4306, %v4346
    %v4348 = vpop.f32.mrf.mxu0
    %v4349 = vadd.f32 %v4308, %v4348
    %v4350 = vpop.f32.mrf.mxu0
    %v4351 = vpop.f32.mrf.mxu0
    %4352 = vdwg.mxu0
    %4353 = vmatprep.subr.bf16.mxu0 %v3396
    %4354 = vmatpush1.bf16.msra.mxu0 %v3395
    %4355 = vmatprep.subr.bf16.mxu0 %v3384
    %4356 = vmatpush1.bf16.msra.mxu0 %v3383
    %4357 = vmatprep.subr.bf16.mxu0 %v3372
    %4358 = vmatpush1.bf16.msra.mxu0 %v3371
    %4359 = vmatprep.subr.bf16.mxu0 %v3360
    %4360 = vmatpush1.bf16.msra.mxu0 %v3359
    %4361 = vmatprep.subr.bf16.mxu0 %v3348
    %4362 = vmatpush1.bf16.msra.mxu0 %v3347
    %4363 = vmatprep.subr.bf16.mxu0 %v3336
    %4364 = vmatpush1.bf16.msra.mxu0 %v3335
    %4365 = vmatprep.subr.bf16.mxu0 %v3324
    %4366 = vmatpush1.bf16.msra.mxu0 %v3323
    %4367 = vmatprep.subr.bf16.mxu0 %v3312
    %4368 = vmatpush1.bf16.msra.mxu0 %v3311
    %4369 = vmatprep.subr.bf16.mxu0 %v3492
    %4370 = vmatpush2.bf16.msra.mxu0 %v3491
    %4371 = vmatprep.subr.bf16.mxu0 %v3480
    %4372 = vmatpush2.bf16.msra.mxu0 %v3479
    %4373 = vmatprep.subr.bf16.mxu0 %v3468
    %4374 = vmatpush2.bf16.msra.mxu0 %v3467
    %4375 = vmatprep.subr.bf16.mxu0 %v3456
    %4376 = vmatpush2.bf16.msra.mxu0 %v3455
    %4377 = vmatprep.subr.bf16.mxu0 %v3444
    %4378 = vmatpush2.bf16.msra.mxu0 %v3443
    %4379 = vmatprep.subr.bf16.mxu0 %v3432
    %4380 = vmatpush2.bf16.msra.mxu0 %v3431
    %4381 = vmatprep.subr.bf16.mxu0 %v3420
    %4382 = vmatpush2.bf16.msra.mxu0 %v3419
    %4383 = vmatprep.subr.bf16.mxu0 %v3408
    %4384 = vmatpush2.bf16.msra.mxu0 %v3407
    %4385 = vmatprep.mubr.bf16.mxu0 %v902
    %4386 = vmatmul.mubr.bf16.gmra.mxu0 %v901
    %v4387 = vpop.f32.mrf.mxu0
    %v4388 = vadd.f32 %v4347, %v4387
    %v4389 = vpop.f32.mrf.mxu0
    %v4390 = vadd.f32 %v4349, %v4389
    %v4391 = vpop.f32.mrf.mxu0
    %v4392 = vpop.f32.mrf.mxu0
    %4393 = vdwg.mxu0
    %4394 = vmatprep.subr.bf16.mxu0 %v3588
    %4395 = vmatpush1.bf16.msra.mxu0 %v3587
    %4396 = vmatprep.subr.bf16.mxu0 %v3576
    %4397 = vmatpush1.bf16.msra.mxu0 %v3575
    %4398 = vmatprep.subr.bf16.mxu0 %v3564
    %4399 = vmatpush1.bf16.msra.mxu0 %v3563
    %4400 = vmatprep.subr.bf16.mxu0 %v3552
    %4401 = vmatpush1.bf16.msra.mxu0 %v3551
    %4402 = vmatprep.subr.bf16.mxu0 %v3540
    %4403 = vmatpush1.bf16.msra.mxu0 %v3539
    %4404 = vmatprep.subr.bf16.mxu0 %v3528
    %4405 = vmatpush1.bf16.msra.mxu0 %v3527
    %4406 = vmatprep.subr.bf16.mxu0 %v3516
    %4407 = vmatpush1.bf16.msra.mxu0 %v3515
    %4408 = vmatprep.subr.bf16.mxu0 %v3504
    %4409 = vmatpush1.bf16.msra.mxu0 %v3503
    %4410 = vmatprep.subr.bf16.mxu0 0
    %4411 = vmatpush2.bf16.msra.mxu0 0
    %4412 = vmatprep.subr.bf16.mxu0 0
    %4413 = vmatpush2.bf16.msra.mxu0 0
    %4414 = vmatprep.subr.bf16.mxu0 0
    %4415 = vmatpush2.bf16.msra.mxu0 0
    %4416 = vmatprep.subr.bf16.mxu0 0
    %4417 = vmatpush2.bf16.msra.mxu0 0
    %4418 = vmatprep.subr.bf16.mxu0 0
    %4419 = vmatpush2.bf16.msra.mxu0 0
    %4420 = vmatprep.subr.bf16.mxu0 0
    %4421 = vmatpush2.bf16.msra.mxu0 0
    %4422 = vmatprep.subr.bf16.mxu0 0
    %4423 = vmatpush2.bf16.msra.mxu0 0
    %4424 = vmatprep.subr.bf16.mxu0 0
    %4425 = vmatpush2.bf16.msra.mxu0 0
    %4426 = vmatprep.mubr.bf16.mxu0 0
    %4427 = vmatmul.mubr.bf16.gmra.mxu0 %v903
    %v4428 = vpop.f32.mrf.mxu0
    %v4429 = vadd.f32 %v4388, %v4428
    %v4430 = vpop.f32.mrf.mxu0
    %v4431 = vadd.f32 %v4390, %v4430
    %v4432 = vpop.f32.mrf.mxu0
    %v4433 = vpop.f32.mrf.mxu0
    %4434 = vdwg.mxu0
    %4435 = vmatprep.subr.bf16.mxu0 %v3014
    %4436 = vmatpush1.bf16.msra.mxu0 %v3013
    %4437 = vmatprep.subr.bf16.mxu0 %v3002
    %4438 = vmatpush1.bf16.msra.mxu0 %v3001
    %4439 = vmatprep.subr.bf16.mxu0 %v2990
    %4440 = vmatpush1.bf16.msra.mxu0 %v2989
    %4441 = vmatprep.subr.bf16.mxu0 %v2978
    %4442 = vmatpush1.bf16.msra.mxu0 %v2977
    %4443 = vmatprep.subr.bf16.mxu0 %v2966
    %4444 = vmatpush1.bf16.msra.mxu0 %v2965
    %4445 = vmatprep.subr.bf16.mxu0 %v2954
    %4446 = vmatpush1.bf16.msra.mxu0 %v2953
    %4447 = vmatprep.subr.bf16.mxu0 %v2942
    %4448 = vmatpush1.bf16.msra.mxu0 %v2941
    %4449 = vmatprep.subr.bf16.mxu0 %v2930
    %4450 = vmatpush1.bf16.msra.mxu0 %v2929
    %4451 = vmatprep.subr.bf16.mxu0 %v3110
    %4452 = vmatpush2.bf16.msra.mxu0 %v3109
    %4453 = vmatprep.subr.bf16.mxu0 %v3098
    %4454 = vmatpush2.bf16.msra.mxu0 %v3097
    %4455 = vmatprep.subr.bf16.mxu0 %v3086
    %4456 = vmatpush2.bf16.msra.mxu0 %v3085
    %4457 = vmatprep.subr.bf16.mxu0 %v3074
    %4458 = vmatpush2.bf16.msra.mxu0 %v3073
    %4459 = vmatprep.subr.bf16.mxu0 %v3062
    %4460 = vmatpush2.bf16.msra.mxu0 %v3061
    %4461 = vmatprep.subr.bf16.mxu0 %v3050
    %4462 = vmatpush2.bf16.msra.mxu0 %v3049
    %4463 = vmatprep.subr.bf16.mxu0 %v3038
    %4464 = vmatpush2.bf16.msra.mxu0 %v3037
    %4465 = vmatprep.subr.bf16.mxu0 %v3026
    %4466 = vmatpush2.bf16.msra.mxu0 %v3025
    %4467 = vmatprep.mubr.bf16.mxu0 %v898
    %4468 = vmatmul.mubr.bf16.gmra.mxu0 %v897
    %v4469 = vpop.f32.mrf.mxu0
    %v4470 = vadd.f32 %v837, %v4469
    %v4471 = vpop.f32.mrf.mxu0
    %v4472 = vadd.f32 %v841, %v4471
    %v4473 = vpop.f32.mrf.mxu0
    %v4474 = vpop.f32.mrf.mxu0
    %4475 = vdwg.mxu0
    %4476 = vmatprep.subr.bf16.mxu0 %v3206
    %4477 = vmatpush1.bf16.msra.mxu0 %v3205
    %4478 = vmatprep.subr.bf16.mxu0 %v3194
    %4479 = vmatpush1.bf16.msra.mxu0 %v3193
    %4480 = vmatprep.subr.bf16.mxu0 %v3182
    %4481 = vmatpush1.bf16.msra.mxu0 %v3181
    %4482 = vmatprep.subr.bf16.mxu0 %v3170
    %4483 = vmatpush1.bf16.msra.mxu0 %v3169
    %4484 = vmatprep.subr.bf16.mxu0 %v3158
    %4485 = vmatpush1.bf16.msra.mxu0 %v3157
    %4486 = vmatprep.subr.bf16.mxu0 %v3146
    %4487 = vmatpush1.bf16.msra.mxu0 %v3145
    %4488 = vmatprep.subr.bf16.mxu0 %v3134
    %4489 = vmatpush1.bf16.msra.mxu0 %v3133
    %4490 = vmatprep.subr.bf16.mxu0 %v3122
    %4491 = vmatpush1.bf16.msra.mxu0 %v3121
    %4492 = vmatprep.subr.bf16.mxu0 %v3302
    %4493 = vmatpush2.bf16.msra.mxu0 %v3301
    %4494 = vmatprep.subr.bf16.mxu0 %v3290
    %4495 = vmatpush2.bf16.msra.mxu0 %v3289
    %4496 = vmatprep.subr.bf16.mxu0 %v3278
    %4497 = vmatpush2.bf16.msra.mxu0 %v3277
    %4498 = vmatprep.subr.bf16.mxu0 %v3266
    %4499 = vmatpush2.bf16.msra.mxu0 %v3265
    %4500 = vmatprep.subr.bf16.mxu0 %v3254
    %4501 = vmatpush2.bf16.msra.mxu0 %v3253
    %4502 = vmatprep.subr.bf16.mxu0 %v3242
    %4503 = vmatpush2.bf16.msra.mxu0 %v3241
    %4504 = vmatprep.subr.bf16.mxu0 %v3230
    %4505 = vmatpush2.bf16.msra.mxu0 %v3229
    %4506 = vmatprep.subr.bf16.mxu0 %v3218
    %4507 = vmatpush2.bf16.msra.mxu0 %v3217
    %4508 = vmatprep.mubr.bf16.mxu0 %v900
    %4509 = vmatmul.mubr.bf16.gmra.mxu0 %v899
    %v4510 = vpop.f32.mrf.mxu0
    %v4511 = vadd.f32 %v4470, %v4510
    %v4512 = vpop.f32.mrf.mxu0
    %v4513 = vadd.f32 %v4472, %v4512
    %v4514 = vpop.f32.mrf.mxu0
    %v4515 = vpop.f32.mrf.mxu0
    %4516 = vdwg.mxu0
    %4517 = vmatprep.subr.bf16.mxu0 %v3398
    %4518 = vmatpush1.bf16.msra.mxu0 %v3397
    %4519 = vmatprep.subr.bf16.mxu0 %v3386
    %4520 = vmatpush1.bf16.msra.mxu0 %v3385
    %4521 = vmatprep.subr.bf16.mxu0 %v3374
    %4522 = vmatpush1.bf16.msra.mxu0 %v3373
    %4523 = vmatprep.subr.bf16.mxu0 %v3362
    %4524 = vmatpush1.bf16.msra.mxu0 %v3361
    %4525 = vmatprep.subr.bf16.mxu0 %v3350
    %4526 = vmatpush1.bf16.msra.mxu0 %v3349
    %4527 = vmatprep.subr.bf16.mxu0 %v3338
    %4528 = vmatpush1.bf16.msra.mxu0 %v3337
    %4529 = vmatprep.subr.bf16.mxu0 %v3326
    %4530 = vmatpush1.bf16.msra.mxu0 %v3325
    %4531 = vmatprep.subr.bf16.mxu0 %v3314
    %4532 = vmatpush1.bf16.msra.mxu0 %v3313
    %4533 = vmatprep.subr.bf16.mxu0 %v3494
    %4534 = vmatpush2.bf16.msra.mxu0 %v3493
    %4535 = vmatprep.subr.bf16.mxu0 %v3482
    %4536 = vmatpush2.bf16.msra.mxu0 %v3481
    %4537 = vmatprep.subr.bf16.mxu0 %v3470
    %4538 = vmatpush2.bf16.msra.mxu0 %v3469
    %4539 = vmatprep.subr.bf16.mxu0 %v3458
    %4540 = vmatpush2.bf16.msra.mxu0 %v3457
    %4541 = vmatprep.subr.bf16.mxu0 %v3446
    %4542 = vmatpush2.bf16.msra.mxu0 %v3445
    %4543 = vmatprep.subr.bf16.mxu0 %v3434
    %4544 = vmatpush2.bf16.msra.mxu0 %v3433
    %4545 = vmatprep.subr.bf16.mxu0 %v3422
    %4546 = vmatpush2.bf16.msra.mxu0 %v3421
    %4547 = vmatprep.subr.bf16.mxu0 %v3410
    %4548 = vmatpush2.bf16.msra.mxu0 %v3409
    %4549 = vmatprep.mubr.bf16.mxu0 %v902
    %4550 = vmatmul.mubr.bf16.gmra.mxu0 %v901
    %v4551 = vpop.f32.mrf.mxu0
    %v4552 = vadd.f32 %v4511, %v4551
    %v4553 = vpop.f32.mrf.mxu0
    %v4554 = vadd.f32 %v4513, %v4553
    %v4555 = vpop.f32.mrf.mxu0
    %v4556 = vpop.f32.mrf.mxu0
    %4557 = vdwg.mxu0
    %4558 = vmatprep.subr.bf16.mxu0 %v3590
    %4559 = vmatpush1.bf16.msra.mxu0 %v3589
    %4560 = vmatprep.subr.bf16.mxu0 %v3578
    %4561 = vmatpush1.bf16.msra.mxu0 %v3577
    %4562 = vmatprep.subr.bf16.mxu0 %v3566
    %4563 = vmatpush1.bf16.msra.mxu0 %v3565
    %4564 = vmatprep.subr.bf16.mxu0 %v3554
    %4565 = vmatpush1.bf16.msra.mxu0 %v3553
    %4566 = vmatprep.subr.bf16.mxu0 %v3542
    %4567 = vmatpush1.bf16.msra.mxu0 %v3541
    %4568 = vmatprep.subr.bf16.mxu0 %v3530
    %4569 = vmatpush1.bf16.msra.mxu0 %v3529
    %4570 = vmatprep.subr.bf16.mxu0 %v3518
    %4571 = vmatpush1.bf16.msra.mxu0 %v3517
    %4572 = vmatprep.subr.bf16.mxu0 %v3506
    %4573 = vmatpush1.bf16.msra.mxu0 %v3505
    %4574 = vmatprep.subr.bf16.mxu0 0
    %4575 = vmatpush2.bf16.msra.mxu0 0
    %4576 = vmatprep.subr.bf16.mxu0 0
    %4577 = vmatpush2.bf16.msra.mxu0 0
    %4578 = vmatprep.subr.bf16.mxu0 0
    %4579 = vmatpush2.bf16.msra.mxu0 0
    %4580 = vmatprep.subr.bf16.mxu0 0
    %4581 = vmatpush2.bf16.msra.mxu0 0
    %4582 = vmatprep.subr.bf16.mxu0 0
    %4583 = vmatpush2.bf16.msra.mxu0 0
    %4584 = vmatprep.subr.bf16.mxu0 0
    %4585 = vmatpush2.bf16.msra.mxu0 0
    %4586 = vmatprep.subr.bf16.mxu0 0
    %4587 = vmatpush2.bf16.msra.mxu0 0
    %4588 = vmatprep.subr.bf16.mxu0 0
    %4589 = vmatpush2.bf16.msra.mxu0 0
    %4590 = vmatprep.mubr.bf16.mxu0 0
    %4591 = vmatmul.mubr.bf16.gmra.mxu0 %v903
    %v4592 = vpop.f32.mrf.mxu0
    %v4593 = vadd.f32 %v4552, %v4592
    %v4594 = vpop.f32.mrf.mxu0
    %v4595 = vadd.f32 %v4554, %v4594
    %v4596 = vpop.f32.mrf.mxu0
    %v4597 = vpop.f32.mrf.mxu0
    %4598 = vdwg.mxu0
    %4599 = vmatprep.subr.bf16.mxu0 %v3016
    %4600 = vmatpush1.bf16.msra.mxu0 %v3015
    %4601 = vmatprep.subr.bf16.mxu0 %v3004
    %4602 = vmatpush1.bf16.msra.mxu0 %v3003
    %4603 = vmatprep.subr.bf16.mxu0 %v2992
    %4604 = vmatpush1.bf16.msra.mxu0 %v2991
    %4605 = vmatprep.subr.bf16.mxu0 %v2980
    %4606 = vmatpush1.bf16.msra.mxu0 %v2979
    %4607 = vmatprep.subr.bf16.mxu0 %v2968
    %4608 = vmatpush1.bf16.msra.mxu0 %v2967
    %4609 = vmatprep.subr.bf16.mxu0 %v2956
    %4610 = vmatpush1.bf16.msra.mxu0 %v2955
    %4611 = vmatprep.subr.bf16.mxu0 %v2944
    %4612 = vmatpush1.bf16.msra.mxu0 %v2943
    %4613 = vmatprep.subr.bf16.mxu0 %v2932
    %4614 = vmatpush1.bf16.msra.mxu0 %v2931
    %4615 = vmatprep.subr.bf16.mxu0 %v3112
    %4616 = vmatpush2.bf16.msra.mxu0 %v3111
    %4617 = vmatprep.subr.bf16.mxu0 %v3100
    %4618 = vmatpush2.bf16.msra.mxu0 %v3099
    %4619 = vmatprep.subr.bf16.mxu0 %v3088
    %4620 = vmatpush2.bf16.msra.mxu0 %v3087
    %4621 = vmatprep.subr.bf16.mxu0 %v3076
    %4622 = vmatpush2.bf16.msra.mxu0 %v3075
    %4623 = vmatprep.subr.bf16.mxu0 %v3064
    %4624 = vmatpush2.bf16.msra.mxu0 %v3063
    %4625 = vmatprep.subr.bf16.mxu0 %v3052
    %4626 = vmatpush2.bf16.msra.mxu0 %v3051
    %4627 = vmatprep.subr.bf16.mxu0 %v3040
    %4628 = vmatpush2.bf16.msra.mxu0 %v3039
    %4629 = vmatprep.subr.bf16.mxu0 %v3028
    %4630 = vmatpush2.bf16.msra.mxu0 %v3027
    %4631 = vmatprep.mubr.bf16.mxu0 %v898
    %4632 = vmatmul.mubr.bf16.gmra.mxu0 %v897
    %v4633 = vpop.f32.mrf.mxu0
    %v4634 = vadd.f32 %v845, %v4633
    %v4635 = vpop.f32.mrf.mxu0
    %v4636 = vadd.f32 %v849, %v4635
    %v4637 = vpop.f32.mrf.mxu0
    %v4638 = vpop.f32.mrf.mxu0
    %4639 = vdwg.mxu0
    %4640 = vmatprep.subr.bf16.mxu0 %v3208
    %4641 = vmatpush1.bf16.msra.mxu0 %v3207
    %4642 = vmatprep.subr.bf16.mxu0 %v3196
    %4643 = vmatpush1.bf16.msra.mxu0 %v3195
    %4644 = vmatprep.subr.bf16.mxu0 %v3184
    %4645 = vmatpush1.bf16.msra.mxu0 %v3183
    %4646 = vmatprep.subr.bf16.mxu0 %v3172
    %4647 = vmatpush1.bf16.msra.mxu0 %v3171
    %4648 = vmatprep.subr.bf16.mxu0 %v3160
    %4649 = vmatpush1.bf16.msra.mxu0 %v3159
    %4650 = vmatprep.subr.bf16.mxu0 %v3148
    %4651 = vmatpush1.bf16.msra.mxu0 %v3147
    %4652 = vmatprep.subr.bf16.mxu0 %v3136
    %4653 = vmatpush1.bf16.msra.mxu0 %v3135
    %4654 = vmatprep.subr.bf16.mxu0 %v3124
    %4655 = vmatpush1.bf16.msra.mxu0 %v3123
    %4656 = vmatprep.subr.bf16.mxu0 %v3304
    %4657 = vmatpush2.bf16.msra.mxu0 %v3303
    %4658 = vmatprep.subr.bf16.mxu0 %v3292
    %4659 = vmatpush2.bf16.msra.mxu0 %v3291
    %4660 = vmatprep.subr.bf16.mxu0 %v3280
    %4661 = vmatpush2.bf16.msra.mxu0 %v3279
    %4662 = vmatprep.subr.bf16.mxu0 %v3268
    %4663 = vmatpush2.bf16.msra.mxu0 %v3267
    %4664 = vmatprep.subr.bf16.mxu0 %v3256
    %4665 = vmatpush2.bf16.msra.mxu0 %v3255
    %4666 = vmatprep.subr.bf16.mxu0 %v3244
    %4667 = vmatpush2.bf16.msra.mxu0 %v3243
    %4668 = vmatprep.subr.bf16.mxu0 %v3232
    %4669 = vmatpush2.bf16.msra.mxu0 %v3231
    %4670 = vmatprep.subr.bf16.mxu0 %v3220
    %4671 = vmatpush2.bf16.msra.mxu0 %v3219
    %4672 = vmatprep.mubr.bf16.mxu0 %v900
    %4673 = vmatmul.mubr.bf16.gmra.mxu0 %v899
    %v4674 = vpop.f32.mrf.mxu0
    %v4675 = vadd.f32 %v4634, %v4674
    %v4676 = vpop.f32.mrf.mxu0
    %v4677 = vadd.f32 %v4636, %v4676
    %v4678 = vpop.f32.mrf.mxu0
    %v4679 = vpop.f32.mrf.mxu0
    %4680 = vdwg.mxu0
    %4681 = vmatprep.subr.bf16.mxu0 %v3400
    %4682 = vmatpush1.bf16.msra.mxu0 %v3399
    %4683 = vmatprep.subr.bf16.mxu0 %v3388
    %4684 = vmatpush1.bf16.msra.mxu0 %v3387
    %4685 = vmatprep.subr.bf16.mxu0 %v3376
    %4686 = vmatpush1.bf16.msra.mxu0 %v3375
    %4687 = vmatprep.subr.bf16.mxu0 %v3364
    %4688 = vmatpush1.bf16.msra.mxu0 %v3363
    %4689 = vmatprep.subr.bf16.mxu0 %v3352
    %4690 = vmatpush1.bf16.msra.mxu0 %v3351
    %4691 = vmatprep.subr.bf16.mxu0 %v3340
    %4692 = vmatpush1.bf16.msra.mxu0 %v3339
    %4693 = vmatprep.subr.bf16.mxu0 %v3328
    %4694 = vmatpush1.bf16.msra.mxu0 %v3327
    %4695 = vmatprep.subr.bf16.mxu0 %v3316
    %4696 = vmatpush1.bf16.msra.mxu0 %v3315
    %4697 = vmatprep.subr.bf16.mxu0 %v3496
    %4698 = vmatpush2.bf16.msra.mxu0 %v3495
    %4699 = vmatprep.subr.bf16.mxu0 %v3484
    %4700 = vmatpush2.bf16.msra.mxu0 %v3483
    %4701 = vmatprep.subr.bf16.mxu0 %v3472
    %4702 = vmatpush2.bf16.msra.mxu0 %v3471
    %4703 = vmatprep.subr.bf16.mxu0 %v3460
    %4704 = vmatpush2.bf16.msra.mxu0 %v3459
    %4705 = vmatprep.subr.bf16.mxu0 %v3448
    %4706 = vmatpush2.bf16.msra.mxu0 %v3447
    %4707 = vmatprep.subr.bf16.mxu0 %v3436
    %4708 = vmatpush2.bf16.msra.mxu0 %v3435
    %4709 = vmatprep.subr.bf16.mxu0 %v3424
    %4710 = vmatpush2.bf16.msra.mxu0 %v3423
    %4711 = vmatprep.subr.bf16.mxu0 %v3412
    %4712 = vmatpush2.bf16.msra.mxu0 %v3411
    %4713 = vmatprep.mubr.bf16.mxu0 %v902
    %4714 = vmatmul.mubr.bf16.gmra.mxu0 %v901
    %v4715 = vpop.f32.mrf.mxu0
    %v4716 = vadd.f32 %v4675, %v4715
    %v4717 = vpop.f32.mrf.mxu0
    %v4718 = vadd.f32 %v4677, %v4717
    %v4719 = vpop.f32.mrf.mxu0
    %v4720 = vpop.f32.mrf.mxu0
    %4721 = vdwg.mxu0
    %4722 = vmatprep.subr.bf16.mxu0 %v3592
    %4723 = vmatpush1.bf16.msra.mxu0 %v3591
    %4724 = vmatprep.subr.bf16.mxu0 %v3580
    %4725 = vmatpush1.bf16.msra.mxu0 %v3579
    %4726 = vmatprep.subr.bf16.mxu0 %v3568
    %4727 = vmatpush1.bf16.msra.mxu0 %v3567
    %4728 = vmatprep.subr.bf16.mxu0 %v3556
    %4729 = vmatpush1.bf16.msra.mxu0 %v3555
    %4730 = vmatprep.subr.bf16.mxu0 %v3544
    %4731 = vmatpush1.bf16.msra.mxu0 %v3543
    %4732 = vmatprep.subr.bf16.mxu0 %v3532
    %4733 = vmatpush1.bf16.msra.mxu0 %v3531
    %4734 = vmatprep.subr.bf16.mxu0 %v3520
    %4735 = vmatpush1.bf16.msra.mxu0 %v3519
    %4736 = vmatprep.subr.bf16.mxu0 %v3508
    %4737 = vmatpush1.bf16.msra.mxu0 %v3507
    %4738 = vmatprep.subr.bf16.mxu0 0
    %4739 = vmatpush2.bf16.msra.mxu0 0
    %4740 = vmatprep.subr.bf16.mxu0 0
    %4741 = vmatpush2.bf16.msra.mxu0 0
    %4742 = vmatprep.subr.bf16.mxu0 0
    %4743 = vmatpush2.bf16.msra.mxu0 0
    %4744 = vmatprep.subr.bf16.mxu0 0
    %4745 = vmatpush2.bf16.msra.mxu0 0
    %4746 = vmatprep.subr.bf16.mxu0 0
    %4747 = vmatpush2.bf16.msra.mxu0 0
    %4748 = vmatprep.subr.bf16.mxu0 0
    %4749 = vmatpush2.bf16.msra.mxu0 0
    %4750 = vmatprep.subr.bf16.mxu0 0
    %4751 = vmatpush2.bf16.msra.mxu0 0
    %4752 = vmatprep.subr.bf16.mxu0 0
    %4753 = vmatpush2.bf16.msra.mxu0 0
    %4754 = vmatprep.mubr.bf16.mxu0 0
    %4755 = vmatmul.mubr.bf16.gmra.mxu0 %v903
    %v4756 = vpop.f32.mrf.mxu0
    %v4757 = vadd.f32 %v4716, %v4756
    %v4758 = vpop.f32.mrf.mxu0
    %v4759 = vadd.f32 %v4718, %v4758
    %v4760 = vpop.f32.mrf.mxu0
    %v4761 = vpop.f32.mrf.mxu0
    %4762 = vdwg.mxu0
    %4763 = vmatprep.subr.bf16.mxu0 %v3018
    %4764 = vmatpush1.bf16.msra.mxu0 %v3017
    %4765 = vmatprep.subr.bf16.mxu0 %v3006
    %4766 = vmatpush1.bf16.msra.mxu0 %v3005
    %4767 = vmatprep.subr.bf16.mxu0 %v2994
    %4768 = vmatpush1.bf16.msra.mxu0 %v2993
    %4769 = vmatprep.subr.bf16.mxu0 %v2982
    %4770 = vmatpush1.bf16.msra.mxu0 %v2981
    %4771 = vmatprep.subr.bf16.mxu0 %v2970
    %4772 = vmatpush1.bf16.msra.mxu0 %v2969
    %4773 = vmatprep.subr.bf16.mxu0 %v2958
    %4774 = vmatpush1.bf16.msra.mxu0 %v2957
    %4775 = vmatprep.subr.bf16.mxu0 %v2946
    %4776 = vmatpush1.bf16.msra.mxu0 %v2945
    %4777 = vmatprep.subr.bf16.mxu0 %v2934
    %4778 = vmatpush1.bf16.msra.mxu0 %v2933
    %4779 = vmatprep.subr.bf16.mxu0 %v3114
    %4780 = vmatpush2.bf16.msra.mxu0 %v3113
    %4781 = vmatprep.subr.bf16.mxu0 %v3102
    %4782 = vmatpush2.bf16.msra.mxu0 %v3101
    %4783 = vmatprep.subr.bf16.mxu0 %v3090
    %4784 = vmatpush2.bf16.msra.mxu0 %v3089
    %4785 = vmatprep.subr.bf16.mxu0 %v3078
    %4786 = vmatpush2.bf16.msra.mxu0 %v3077
    %4787 = vmatprep.subr.bf16.mxu0 %v3066
    %4788 = vmatpush2.bf16.msra.mxu0 %v3065
    %4789 = vmatprep.subr.bf16.mxu0 %v3054
    %4790 = vmatpush2.bf16.msra.mxu0 %v3053
    %4791 = vmatprep.subr.bf16.mxu0 %v3042
    %4792 = vmatpush2.bf16.msra.mxu0 %v3041
    %4793 = vmatprep.subr.bf16.mxu0 %v3030
    %4794 = vmatpush2.bf16.msra.mxu0 %v3029
    %4795 = vmatprep.mubr.bf16.mxu0 %v898
    %4796 = vmatmul.mubr.bf16.gmra.mxu0 %v897
    %v4797 = vpop.f32.mrf.mxu0
    %v4798 = vadd.f32 %v853, %v4797
    %v4799 = vpop.f32.mrf.mxu0
    %v4800 = vadd.f32 %v857, %v4799
    %v4801 = vpop.f32.mrf.mxu0
    %v4802 = vpop.f32.mrf.mxu0
    %4803 = vdwg.mxu0
    %4804 = vmatprep.subr.bf16.mxu0 %v3210
    %4805 = vmatpush1.bf16.msra.mxu0 %v3209
    %4806 = vmatprep.subr.bf16.mxu0 %v3198
    %4807 = vmatpush1.bf16.msra.mxu0 %v3197
    %4808 = vmatprep.subr.bf16.mxu0 %v3186
    %4809 = vmatpush1.bf16.msra.mxu0 %v3185
    %4810 = vmatprep.subr.bf16.mxu0 %v3174
    %4811 = vmatpush1.bf16.msra.mxu0 %v3173
    %4812 = vmatprep.subr.bf16.mxu0 %v3162
    %4813 = vmatpush1.bf16.msra.mxu0 %v3161
    %4814 = vmatprep.subr.bf16.mxu0 %v3150
    %4815 = vmatpush1.bf16.msra.mxu0 %v3149
    %4816 = vmatprep.subr.bf16.mxu0 %v3138
    %4817 = vmatpush1.bf16.msra.mxu0 %v3137
    %4818 = vmatprep.subr.bf16.mxu0 %v3126
    %4819 = vmatpush1.bf16.msra.mxu0 %v3125
    %4820 = vmatprep.subr.bf16.mxu0 %v3306
    %4821 = vmatpush2.bf16.msra.mxu0 %v3305
    %4822 = vmatprep.subr.bf16.mxu0 %v3294
    %4823 = vmatpush2.bf16.msra.mxu0 %v3293
    %4824 = vmatprep.subr.bf16.mxu0 %v3282
    %4825 = vmatpush2.bf16.msra.mxu0 %v3281
    %4826 = vmatprep.subr.bf16.mxu0 %v3270
    %4827 = vmatpush2.bf16.msra.mxu0 %v3269
    %4828 = vmatprep.subr.bf16.mxu0 %v3258
    %4829 = vmatpush2.bf16.msra.mxu0 %v3257
    %4830 = vmatprep.subr.bf16.mxu0 %v3246
    %4831 = vmatpush2.bf16.msra.mxu0 %v3245
    %4832 = vmatprep.subr.bf16.mxu0 %v3234
    %4833 = vmatpush2.bf16.msra.mxu0 %v3233
    %4834 = vmatprep.subr.bf16.mxu0 %v3222
    %4835 = vmatpush2.bf16.msra.mxu0 %v3221
    %4836 = vmatprep.mubr.bf16.mxu0 %v900
    %4837 = vmatmul.mubr.bf16.gmra.mxu0 %v899
    %v4838 = vpop.f32.mrf.mxu0
    %v4839 = vadd.f32 %v4798, %v4838
    %v4840 = vpop.f32.mrf.mxu0
    %v4841 = vadd.f32 %v4800, %v4840
    %v4842 = vpop.f32.mrf.mxu0
    %v4843 = vpop.f32.mrf.mxu0
    %4844 = vdwg.mxu0
    %4845 = vmatprep.subr.bf16.mxu0 %v3402
    %4846 = vmatpush1.bf16.msra.mxu0 %v3401
    %4847 = vmatprep.subr.bf16.mxu0 %v3390
    %4848 = vmatpush1.bf16.msra.mxu0 %v3389
    %4849 = vmatprep.subr.bf16.mxu0 %v3378
    %4850 = vmatpush1.bf16.msra.mxu0 %v3377
    %4851 = vmatprep.subr.bf16.mxu0 %v3366
    %4852 = vmatpush1.bf16.msra.mxu0 %v3365
    %4853 = vmatprep.subr.bf16.mxu0 %v3354
    %4854 = vmatpush1.bf16.msra.mxu0 %v3353
    %4855 = vmatprep.subr.bf16.mxu0 %v3342
    %4856 = vmatpush1.bf16.msra.mxu0 %v3341
    %4857 = vmatprep.subr.bf16.mxu0 %v3330
    %4858 = vmatpush1.bf16.msra.mxu0 %v3329
    %4859 = vmatprep.subr.bf16.mxu0 %v3318
    %4860 = vmatpush1.bf16.msra.mxu0 %v3317
    %4861 = vmatprep.subr.bf16.mxu0 %v3498
    %4862 = vmatpush2.bf16.msra.mxu0 %v3497
    %4863 = vmatprep.subr.bf16.mxu0 %v3486
    %4864 = vmatpush2.bf16.msra.mxu0 %v3485
    %4865 = vmatprep.subr.bf16.mxu0 %v3474
    %4866 = vmatpush2.bf16.msra.mxu0 %v3473
    %4867 = vmatprep.subr.bf16.mxu0 %v3462
    %4868 = vmatpush2.bf16.msra.mxu0 %v3461
    %4869 = vmatprep.subr.bf16.mxu0 %v3450
    %4870 = vmatpush2.bf16.msra.mxu0 %v3449
    %4871 = vmatprep.subr.bf16.mxu0 %v3438
    %4872 = vmatpush2.bf16.msra.mxu0 %v3437
    %4873 = vmatprep.subr.bf16.mxu0 %v3426
    %4874 = vmatpush2.bf16.msra.mxu0 %v3425
    %4875 = vmatprep.subr.bf16.mxu0 %v3414
    %4876 = vmatpush2.bf16.msra.mxu0 %v3413
    %4877 = vmatprep.mubr.bf16.mxu0 %v902
    %4878 = vmatmul.mubr.bf16.gmra.mxu0 %v901
    %v4879 = vpop.f32.mrf.mxu0
    %v4880 = vadd.f32 %v4839, %v4879
    %v4881 = vpop.f32.mrf.mxu0
    %v4882 = vadd.f32 %v4841, %v4881
    %v4883 = vpop.f32.mrf.mxu0
    %v4884 = vpop.f32.mrf.mxu0
    %4885 = vdwg.mxu0
    %4886 = vmatprep.subr.bf16.mxu0 %v3594
    %4887 = vmatpush1.bf16.msra.mxu0 %v3593
    %4888 = vmatprep.subr.bf16.mxu0 %v3582
    %4889 = vmatpush1.bf16.msra.mxu0 %v3581
    %4890 = vmatprep.subr.bf16.mxu0 %v3570
    %4891 = vmatpush1.bf16.msra.mxu0 %v3569
    %4892 = vmatprep.subr.bf16.mxu0 %v3558
    %4893 = vmatpush1.bf16.msra.mxu0 %v3557
    %4894 = vmatprep.subr.bf16.mxu0 %v3546
    %4895 = vmatpush1.bf16.msra.mxu0 %v3545
    %4896 = vmatprep.subr.bf16.mxu0 %v3534
    %4897 = vmatpush1.bf16.msra.mxu0 %v3533
    %4898 = vmatprep.subr.bf16.mxu0 %v3522
    %4899 = vmatpush1.bf16.msra.mxu0 %v3521
    %4900 = vmatprep.subr.bf16.mxu0 %v3510
    %4901 = vmatpush1.bf16.msra.mxu0 %v3509
    %4902 = vmatprep.subr.bf16.mxu0 0
    %4903 = vmatpush2.bf16.msra.mxu0 0
    %4904 = vmatprep.subr.bf16.mxu0 0
    %4905 = vmatpush2.bf16.msra.mxu0 0
    %4906 = vmatprep.subr.bf16.mxu0 0
    %4907 = vmatpush2.bf16.msra.mxu0 0
    %4908 = vmatprep.subr.bf16.mxu0 0
    %4909 = vmatpush2.bf16.msra.mxu0 0
    %4910 = vmatprep.subr.bf16.mxu0 0
    %4911 = vmatpush2.bf16.msra.mxu0 0
    %4912 = vmatprep.subr.bf16.mxu0 0
    %4913 = vmatpush2.bf16.msra.mxu0 0
    %4914 = vmatprep.subr.bf16.mxu0 0
    %4915 = vmatpush2.bf16.msra.mxu0 0
    %4916 = vmatprep.subr.bf16.mxu0 0
    %4917 = vmatpush2.bf16.msra.mxu0 0
    %4918 = vmatprep.mubr.bf16.mxu0 0
    %4919 = vmatmul.mubr.bf16.gmra.mxu0 %v903
    %v4920 = vpop.f32.mrf.mxu0
    %v4921 = vadd.f32 %v4880, %v4920
    %v4922 = vpop.f32.mrf.mxu0
    %v4923 = vadd.f32 %v4882, %v4922
    %v4924 = vpop.f32.mrf.mxu0
    %v4925 = vpop.f32.mrf.mxu0
    %4926 = vdwg.mxu0
    %4927 = vmatprep.subr.bf16.mxu0 %v3020
    %4928 = vmatpush1.bf16.msra.mxu0 %v3019
    %4929 = vmatprep.subr.bf16.mxu0 %v3008
    %4930 = vmatpush1.bf16.msra.mxu0 %v3007
    %4931 = vmatprep.subr.bf16.mxu0 %v2996
    %4932 = vmatpush1.bf16.msra.mxu0 %v2995
    %4933 = vmatprep.subr.bf16.mxu0 %v2984
    %4934 = vmatpush1.bf16.msra.mxu0 %v2983
    %4935 = vmatprep.subr.bf16.mxu0 %v2972
    %4936 = vmatpush1.bf16.msra.mxu0 %v2971
    %4937 = vmatprep.subr.bf16.mxu0 %v2960
    %4938 = vmatpush1.bf16.msra.mxu0 %v2959
    %4939 = vmatprep.subr.bf16.mxu0 %v2948
    %4940 = vmatpush1.bf16.msra.mxu0 %v2947
    %4941 = vmatprep.subr.bf16.mxu0 %v2936
    %4942 = vmatpush1.bf16.msra.mxu0 %v2935
    %4943 = vmatprep.subr.bf16.mxu0 %v3116
    %4944 = vmatpush2.bf16.msra.mxu0 %v3115
    %4945 = vmatprep.subr.bf16.mxu0 %v3104
    %4946 = vmatpush2.bf16.msra.mxu0 %v3103
    %4947 = vmatprep.subr.bf16.mxu0 %v3092
    %4948 = vmatpush2.bf16.msra.mxu0 %v3091
    %4949 = vmatprep.subr.bf16.mxu0 %v3080
    %4950 = vmatpush2.bf16.msra.mxu0 %v3079
    %4951 = vmatprep.subr.bf16.mxu0 %v3068
    %4952 = vmatpush2.bf16.msra.mxu0 %v3067
    %4953 = vmatprep.subr.bf16.mxu0 %v3056
    %4954 = vmatpush2.bf16.msra.mxu0 %v3055
    %4955 = vmatprep.subr.bf16.mxu0 %v3044
    %4956 = vmatpush2.bf16.msra.mxu0 %v3043
    %4957 = vmatprep.subr.bf16.mxu0 %v3032
    %4958 = vmatpush2.bf16.msra.mxu0 %v3031
    %4959 = vmatprep.mubr.bf16.mxu0 %v898
    %4960 = vmatmul.mubr.bf16.gmra.mxu0 %v897
    %v4961 = vpop.f32.mrf.mxu0
    %v4962 = vadd.f32 %v861, %v4961
    %v4963 = vpop.f32.mrf.mxu0
    %v4964 = vadd.f32 %v865, %v4963
    %v4965 = vpop.f32.mrf.mxu0
    %v4966 = vpop.f32.mrf.mxu0
    %4967 = vdwg.mxu0
    %4968 = vmatprep.subr.bf16.mxu0 %v3212
    %4969 = vmatpush1.bf16.msra.mxu0 %v3211
    %4970 = vmatprep.subr.bf16.mxu0 %v3200
    %4971 = vmatpush1.bf16.msra.mxu0 %v3199
    %4972 = vmatprep.subr.bf16.mxu0 %v3188
    %4973 = vmatpush1.bf16.msra.mxu0 %v3187
    %4974 = vmatprep.subr.bf16.mxu0 %v3176
    %4975 = vmatpush1.bf16.msra.mxu0 %v3175
    %4976 = vmatprep.subr.bf16.mxu0 %v3164
    %4977 = vmatpush1.bf16.msra.mxu0 %v3163
    %4978 = vmatprep.subr.bf16.mxu0 %v3152
    %4979 = vmatpush1.bf16.msra.mxu0 %v3151
    %4980 = vmatprep.subr.bf16.mxu0 %v3140
    %4981 = vmatpush1.bf16.msra.mxu0 %v3139
    %4982 = vmatprep.subr.bf16.mxu0 %v3128
    %4983 = vmatpush1.bf16.msra.mxu0 %v3127
    %4984 = vmatprep.subr.bf16.mxu0 %v3308
    %4985 = vmatpush2.bf16.msra.mxu0 %v3307
    %4986 = vmatprep.subr.bf16.mxu0 %v3296
    %4987 = vmatpush2.bf16.msra.mxu0 %v3295
    %4988 = vmatprep.subr.bf16.mxu0 %v3284
    %4989 = vmatpush2.bf16.msra.mxu0 %v3283
    %4990 = vmatprep.subr.bf16.mxu0 %v3272
    %4991 = vmatpush2.bf16.msra.mxu0 %v3271
    %4992 = vmatprep.subr.bf16.mxu0 %v3260
    %4993 = vmatpush2.bf16.msra.mxu0 %v3259
    %4994 = vmatprep.subr.bf16.mxu0 %v3248
    %4995 = vmatpush2.bf16.msra.mxu0 %v3247
    %4996 = vmatprep.subr.bf16.mxu0 %v3236
    %4997 = vmatpush2.bf16.msra.mxu0 %v3235
    %4998 = vmatprep.subr.bf16.mxu0 %v3224
    %4999 = vmatpush2.bf16.msra.mxu0 %v3223
    %5000 = vmatprep.mubr.bf16.mxu0 %v900
    %5001 = vmatmul.mubr.bf16.gmra.mxu0 %v899
    %v5002 = vpop.f32.mrf.mxu0
    %v5003 = vadd.f32 %v4962, %v5002
    %v5004 = vpop.f32.mrf.mxu0
    %v5005 = vadd.f32 %v4964, %v5004
    %v5006 = vpop.f32.mrf.mxu0
    %v5007 = vpop.f32.mrf.mxu0
    %5008 = vdwg.mxu0
    %5009 = vmatprep.subr.bf16.mxu0 %v3404
    %5010 = vmatpush1.bf16.msra.mxu0 %v3403
    %5011 = vmatprep.subr.bf16.mxu0 %v3392
    %5012 = vmatpush1.bf16.msra.mxu0 %v3391
    %5013 = vmatprep.subr.bf16.mxu0 %v3380
    %5014 = vmatpush1.bf16.msra.mxu0 %v3379
    %5015 = vmatprep.subr.bf16.mxu0 %v3368
    %5016 = vmatpush1.bf16.msra.mxu0 %v3367
    %5017 = vmatprep.subr.bf16.mxu0 %v3356
    %5018 = vmatpush1.bf16.msra.mxu0 %v3355
    %5019 = vmatprep.subr.bf16.mxu0 %v3344
    %5020 = vmatpush1.bf16.msra.mxu0 %v3343
    %5021 = vmatprep.subr.bf16.mxu0 %v3332
    %5022 = vmatpush1.bf16.msra.mxu0 %v3331
    %5023 = vmatprep.subr.bf16.mxu0 %v3320
    %5024 = vmatpush1.bf16.msra.mxu0 %v3319
    %5025 = vmatprep.subr.bf16.mxu0 %v3500
    %5026 = vmatpush2.bf16.msra.mxu0 %v3499
    %5027 = vmatprep.subr.bf16.mxu0 %v3488
    %5028 = vmatpush2.bf16.msra.mxu0 %v3487
    %5029 = vmatprep.subr.bf16.mxu0 %v3476
    %5030 = vmatpush2.bf16.msra.mxu0 %v3475
    %5031 = vmatprep.subr.bf16.mxu0 %v3464
    %5032 = vmatpush2.bf16.msra.mxu0 %v3463
    %5033 = vmatprep.subr.bf16.mxu0 %v3452
    %5034 = vmatpush2.bf16.msra.mxu0 %v3451
    %5035 = vmatprep.subr.bf16.mxu0 %v3440
    %5036 = vmatpush2.bf16.msra.mxu0 %v3439
    %5037 = vmatprep.subr.bf16.mxu0 %v3428
    %5038 = vmatpush2.bf16.msra.mxu0 %v3427
    %5039 = vmatprep.subr.bf16.mxu0 %v3416
    %5040 = vmatpush2.bf16.msra.mxu0 %v3415
    %5041 = vmatprep.mubr.bf16.mxu0 %v902
    %5042 = vmatmul.mubr.bf16.gmra.mxu0 %v901
    %v5043 = vpop.f32.mrf.mxu0
    %v5044 = vadd.f32 %v5003, %v5043
    %v5045 = vpop.f32.mrf.mxu0
    %v5046 = vadd.f32 %v5005, %v5045
    %v5047 = vpop.f32.mrf.mxu0
    %v5048 = vpop.f32.mrf.mxu0
    %5049 = vdwg.mxu0
    %5050 = vmatprep.subr.bf16.mxu0 %v3596
    %5051 = vmatpush1.bf16.msra.mxu0 %v3595
    %5052 = vmatprep.subr.bf16.mxu0 %v3584
    %5053 = vmatpush1.bf16.msra.mxu0 %v3583
    %5054 = vmatprep.subr.bf16.mxu0 %v3572
    %5055 = vmatpush1.bf16.msra.mxu0 %v3571
    %5056 = vmatprep.subr.bf16.mxu0 %v3560
    %5057 = vmatpush1.bf16.msra.mxu0 %v3559
    %5058 = vmatprep.subr.bf16.mxu0 %v3548
    %5059 = vmatpush1.bf16.msra.mxu0 %v3547
    %5060 = vmatprep.subr.bf16.mxu0 %v3536
    %5061 = vmatpush1.bf16.msra.mxu0 %v3535
    %5062 = vmatprep.subr.bf16.mxu0 %v3524
    %5063 = vmatpush1.bf16.msra.mxu0 %v3523
    %5064 = vmatprep.subr.bf16.mxu0 %v3512
    %5065 = vmatpush1.bf16.msra.mxu0 %v3511
    %5066 = vmatprep.subr.bf16.mxu0 0
    %5067 = vmatpush2.bf16.msra.mxu0 0
    %5068 = vmatprep.subr.bf16.mxu0 0
    %5069 = vmatpush2.bf16.msra.mxu0 0
    %5070 = vmatprep.subr.bf16.mxu0 0
    %5071 = vmatpush2.bf16.msra.mxu0 0
    %5072 = vmatprep.subr.bf16.mxu0 0
    %5073 = vmatpush2.bf16.msra.mxu0 0
    %5074 = vmatprep.subr.bf16.mxu0 0
    %5075 = vmatpush2.bf16.msra.mxu0 0
    %5076 = vmatprep.subr.bf16.mxu0 0
    %5077 = vmatpush2.bf16.msra.mxu0 0
    %5078 = vmatprep.subr.bf16.mxu0 0
    %5079 = vmatpush2.bf16.msra.mxu0 0
    %5080 = vmatprep.subr.bf16.mxu0 0
    %5081 = vmatpush2.bf16.msra.mxu0 0
    %5082 = vmatprep.mubr.bf16.mxu0 0
    %5083 = vmatmul.mubr.bf16.gmra.mxu0 %v903
    %v5084 = vpop.f32.mrf.mxu0
    %v5085 = vadd.f32 %v5044, %v5084
    %v5086 = vpop.f32.mrf.mxu0
    %v5087 = vadd.f32 %v5046, %v5086
    %v5088 = vpop.f32.mrf.mxu0
    %v5089 = vpop.f32.mrf.mxu0
    %5090 = vdwg.mxu0
    %5091 = vmatprep.subr.bf16.mxu0 %v3022
    %5092 = vmatpush1.bf16.msra.mxu0 %v3021
    %5093 = vmatprep.subr.bf16.mxu0 %v3010
    %5094 = vmatpush1.bf16.msra.mxu0 %v3009
    %5095 = vmatprep.subr.bf16.mxu0 %v2998
    %5096 = vmatpush1.bf16.msra.mxu0 %v2997
    %5097 = vmatprep.subr.bf16.mxu0 %v2986
    %5098 = vmatpush1.bf16.msra.mxu0 %v2985
    %5099 = vmatprep.subr.bf16.mxu0 %v2974
    %5100 = vmatpush1.bf16.msra.mxu0 %v2973
    %5101 = vmatprep.subr.bf16.mxu0 %v2962
    %5102 = vmatpush1.bf16.msra.mxu0 %v2961
    %5103 = vmatprep.subr.bf16.mxu0 %v2950
    %5104 = vmatpush1.bf16.msra.mxu0 %v2949
    %5105 = vmatprep.subr.bf16.mxu0 %v2938
    %5106 = vmatpush1.bf16.msra.mxu0 %v2937
    %5107 = vmatprep.subr.bf16.mxu0 %v3118
    %5108 = vmatpush2.bf16.msra.mxu0 %v3117
    %5109 = vmatprep.subr.bf16.mxu0 %v3106
    %5110 = vmatpush2.bf16.msra.mxu0 %v3105
    %5111 = vmatprep.subr.bf16.mxu0 %v3094
    %5112 = vmatpush2.bf16.msra.mxu0 %v3093
    %5113 = vmatprep.subr.bf16.mxu0 %v3082
    %5114 = vmatpush2.bf16.msra.mxu0 %v3081
    %5115 = vmatprep.subr.bf16.mxu0 %v3070
    %5116 = vmatpush2.bf16.msra.mxu0 %v3069
    %5117 = vmatprep.subr.bf16.mxu0 %v3058
    %5118 = vmatpush2.bf16.msra.mxu0 %v3057
    %5119 = vmatprep.subr.bf16.mxu0 %v3046
    %5120 = vmatpush2.bf16.msra.mxu0 %v3045
    %5121 = vmatprep.subr.bf16.mxu0 %v3034
    %5122 = vmatpush2.bf16.msra.mxu0 %v3033
    %5123 = vmatprep.mubr.bf16.mxu0 %v898
    %5124 = vmatmul.mubr.bf16.gmra.mxu0 %v897
    %v5125 = vpop.f32.mrf.mxu0
    %v5126 = vadd.f32 %v869, %v5125
    %v5127 = vpop.f32.mrf.mxu0
    %v5128 = vadd.f32 %v873, %v5127
    %v5129 = vpop.f32.mrf.mxu0
    %v5130 = vpop.f32.mrf.mxu0
    %5131 = vdwg.mxu0
    %5132 = vmatprep.subr.bf16.mxu0 %v3214
    %5133 = vmatpush1.bf16.msra.mxu0 %v3213
    %5134 = vmatprep.subr.bf16.mxu0 %v3202
    %5135 = vmatpush1.bf16.msra.mxu0 %v3201
    %5136 = vmatprep.subr.bf16.mxu0 %v3190
    %5137 = vmatpush1.bf16.msra.mxu0 %v3189
    %5138 = vmatprep.subr.bf16.mxu0 %v3178
    %5139 = vmatpush1.bf16.msra.mxu0 %v3177
    %5140 = vmatprep.subr.bf16.mxu0 %v3166
    %5141 = vmatpush1.bf16.msra.mxu0 %v3165
    %5142 = vmatprep.subr.bf16.mxu0 %v3154
    %5143 = vmatpush1.bf16.msra.mxu0 %v3153
    %5144 = vmatprep.subr.bf16.mxu0 %v3142
    %5145 = vmatpush1.bf16.msra.mxu0 %v3141
    %5146 = vmatprep.subr.bf16.mxu0 %v3130
    %5147 = vmatpush1.bf16.msra.mxu0 %v3129
    %5148 = vmatprep.subr.bf16.mxu0 %v3310
    %5149 = vmatpush2.bf16.msra.mxu0 %v3309
    %5150 = vmatprep.subr.bf16.mxu0 %v3298
    %5151 = vmatpush2.bf16.msra.mxu0 %v3297
    %5152 = vmatprep.subr.bf16.mxu0 %v3286
    %5153 = vmatpush2.bf16.msra.mxu0 %v3285
    %5154 = vmatprep.subr.bf16.mxu0 %v3274
    %5155 = vmatpush2.bf16.msra.mxu0 %v3273
    %5156 = vmatprep.subr.bf16.mxu0 %v3262
    %5157 = vmatpush2.bf16.msra.mxu0 %v3261
    %5158 = vmatprep.subr.bf16.mxu0 %v3250
    %5159 = vmatpush2.bf16.msra.mxu0 %v3249
    %5160 = vmatprep.subr.bf16.mxu0 %v3238
    %5161 = vmatpush2.bf16.msra.mxu0 %v3237
    %5162 = vmatprep.subr.bf16.mxu0 %v3226
    %5163 = vmatpush2.bf16.msra.mxu0 %v3225
    %5164 = vmatprep.mubr.bf16.mxu0 %v900
    %5165 = vmatmul.mubr.bf16.gmra.mxu0 %v899
    %v5166 = vpop.f32.mrf.mxu0
    %v5167 = vadd.f32 %v5126, %v5166
    %v5168 = vpop.f32.mrf.mxu0
    %v5169 = vadd.f32 %v5128, %v5168
    %v5170 = vpop.f32.mrf.mxu0
    %v5171 = vpop.f32.mrf.mxu0
    %5172 = vdwg.mxu0
    %5173 = vmatprep.subr.bf16.mxu0 %v3406
    %5174 = vmatpush1.bf16.msra.mxu0 %v3405
    %5175 = vmatprep.subr.bf16.mxu0 %v3394
    %5176 = vmatpush1.bf16.msra.mxu0 %v3393
    %5177 = vmatprep.subr.bf16.mxu0 %v3382
    %5178 = vmatpush1.bf16.msra.mxu0 %v3381
    %5179 = vmatprep.subr.bf16.mxu0 %v3370
    %5180 = vmatpush1.bf16.msra.mxu0 %v3369
    %5181 = vmatprep.subr.bf16.mxu0 %v3358
    %5182 = vmatpush1.bf16.msra.mxu0 %v3357
    %5183 = vmatprep.subr.bf16.mxu0 %v3346
    %5184 = vmatpush1.bf16.msra.mxu0 %v3345
    %5185 = vmatprep.subr.bf16.mxu0 %v3334
    %5186 = vmatpush1.bf16.msra.mxu0 %v3333
    %5187 = vmatprep.subr.bf16.mxu0 %v3322
    %5188 = vmatpush1.bf16.msra.mxu0 %v3321
    %5189 = vmatprep.subr.bf16.mxu0 %v3502
    %5190 = vmatpush2.bf16.msra.mxu0 %v3501
    %5191 = vmatprep.subr.bf16.mxu0 %v3490
    %5192 = vmatpush2.bf16.msra.mxu0 %v3489
    %5193 = vmatprep.subr.bf16.mxu0 %v3478
    %5194 = vmatpush2.bf16.msra.mxu0 %v3477
    %5195 = vmatprep.subr.bf16.mxu0 %v3466
    %5196 = vmatpush2.bf16.msra.mxu0 %v3465
    %5197 = vmatprep.subr.bf16.mxu0 %v3454
    %5198 = vmatpush2.bf16.msra.mxu0 %v3453
    %5199 = vmatprep.subr.bf16.mxu0 %v3442
    %5200 = vmatpush2.bf16.msra.mxu0 %v3441
    %5201 = vmatprep.subr.bf16.mxu0 %v3430
    %5202 = vmatpush2.bf16.msra.mxu0 %v3429
    %5203 = vmatprep.subr.bf16.mxu0 %v3418
    %5204 = vmatpush2.bf16.msra.mxu0 %v3417
    %5205 = vmatprep.mubr.bf16.mxu0 %v902
    %5206 = vmatmul.mubr.bf16.gmra.mxu0 %v901
    %v5207 = vpop.f32.mrf.mxu0
    %v5208 = vadd.f32 %v5167, %v5207
    %v5209 = vpop.f32.mrf.mxu0
    %v5210 = vadd.f32 %v5169, %v5209
    %v5211 = vpop.f32.mrf.mxu0
    %v5212 = vpop.f32.mrf.mxu0
    %5213 = vdwg.mxu0
    %5214 = vmatprep.subr.bf16.mxu0 %v3598
    %5215 = vmatpush1.bf16.msra.mxu0 %v3597
    %5216 = vmatprep.subr.bf16.mxu0 %v3586
    %5217 = vmatpush1.bf16.msra.mxu0 %v3585
    %5218 = vmatprep.subr.bf16.mxu0 %v3574
    %5219 = vmatpush1.bf16.msra.mxu0 %v3573
    %5220 = vmatprep.subr.bf16.mxu0 %v3562
    %5221 = vmatpush1.bf16.msra.mxu0 %v3561
    %5222 = vmatprep.subr.bf16.mxu0 %v3550
    %5223 = vmatpush1.bf16.msra.mxu0 %v3549
    %5224 = vmatprep.subr.bf16.mxu0 %v3538
    %5225 = vmatpush1.bf16.msra.mxu0 %v3537
    %5226 = vmatprep.subr.bf16.mxu0 %v3526
    %5227 = vmatpush1.bf16.msra.mxu0 %v3525
    %5228 = vmatprep.subr.bf16.mxu0 %v3514
    %5229 = vmatpush1.bf16.msra.mxu0 %v3513
    %5230 = vmatprep.subr.bf16.mxu0 0
    %5231 = vmatpush2.bf16.msra.mxu0 0
    %5232 = vmatprep.subr.bf16.mxu0 0
    %5233 = vmatpush2.bf16.msra.mxu0 0
    %5234 = vmatprep.subr.bf16.mxu0 0
    %5235 = vmatpush2.bf16.msra.mxu0 0
    %5236 = vmatprep.subr.bf16.mxu0 0
    %5237 = vmatpush2.bf16.msra.mxu0 0
    %5238 = vmatprep.subr.bf16.mxu0 0
    %5239 = vmatpush2.bf16.msra.mxu0 0
    %5240 = vmatprep.subr.bf16.mxu0 0
    %5241 = vmatpush2.bf16.msra.mxu0 0
    %5242 = vmatprep.subr.bf16.mxu0 0
    %5243 = vmatpush2.bf16.msra.mxu0 0
    %5244 = vmatprep.subr.bf16.mxu0 0
    %5245 = vmatpush2.bf16.msra.mxu0 0
    %5246 = vmatprep.mubr.bf16.mxu0 0
    %5247 = vmatmul.mubr.bf16.gmra.mxu0 %v903
    %v5248 = vpop.f32.mrf.mxu0
    %v5249 = vadd.f32 %v5208, %v5248
    %v5250 = vpop.f32.mrf.mxu0
    %v5251 = vadd.f32 %v5210, %v5250
    %v5252 = vpop.f32.mrf.mxu0
    %v5253 = vpop.f32.mrf.mxu0
    %5254 = vdwg.mxu0
    %vm5255 = vcmp.gt.f32.partialorder %v4429, 0.0
    %vm5256 = vcmp.gt.f32.partialorder %v4431, 0.0
    %vm5257 = vcmp.gt.f32.partialorder %v4593, 0.0
    %vm5258 = vcmp.gt.f32.partialorder %v4595, 0.0
    %vm5259 = vcmp.gt.f32.partialorder %v4757, 0.0
    %vm5260 = vcmp.gt.f32.partialorder %v4759, 0.0
    %vm5261 = vcmp.gt.f32.partialorder %v4921, 0.0
    %vm5262 = vcmp.gt.f32.partialorder %v4923, 0.0
    %vm5263 = vcmp.gt.f32.partialorder %v5085, 0.0
    %vm5264 = vcmp.gt.f32.partialorder %v5087, 0.0
    %vm5265 = vcmp.gt.f32.partialorder %v5249, 0.0
    %vm5266 = vcmp.gt.f32.partialorder %v5251, 0.0
    %v5267 = vmul.f32 %v4429, 0.01
    %v5268 = vmul.f32 %v4431, 0.01
    %v5269 = vmul.f32 %v4593, 0.01
    %v5270 = vmul.f32 %v4595, 0.01
    %v5271 = vmul.f32 %v4757, 0.01
    %v5272 = vmul.f32 %v4759, 0.01
    %v5273 = vmul.f32 %v4921, 0.01
    %v5274 = vmul.f32 %v4923, 0.01
    %v5275 = vmul.f32 %v5085, 0.01
    %v5276 = vmul.f32 %v5087, 0.01
    %v5277 = vmul.f32 %v5249, 0.01
    %v5278 = vmul.f32 %v5251, 0.01
    %v5279 = vsel %vm5255, %v4429, %v5267
    %v5280 = vsel %vm5256, %v4431, %v5268
    %v5281 = vsel %vm5257, %v4593, %v5269
    %v5282 = vsel %vm5258, %v4595, %v5270
    %v5283 = vsel %vm5259, %v4757, %v5271
    %v5284 = vsel %vm5260, %v4759, %v5272
    %v5285 = vsel %vm5261, %v4921, %v5273
    %v5286 = vsel %vm5262, %v4923, %v5274
    %v5287 = vsel %vm5263, %v5085, %v5275
    %v5288 = vsel %vm5264, %v5087, %v5276
    %v5289 = vsel %vm5265, %v5249, %v5277
    %v5290 = vsel %vm5266, %v5251, %v5278
    %v5291 = vpack.c.bf16 %v5279, %v5279
    %v5292 = vpack.c.bf16 %v5280, %v5280
    %v5293 = vpack.c.bf16 %v5281, %v5281
    %v5294 = vpack.c.bf16 %v5282, %v5282
    %v5295 = vpack.c.bf16 %v5283, %v5283
    %v5296 = vpack.c.bf16 %v5284, %v5284
    %v5297 = vpack.c.bf16 %v5285, %v5285
    %v5298 = vpack.c.bf16 %v5286, %v5286
    %v5299 = vpack.c.bf16 %v5287, %v5287
    %v5300 = vpack.c.bf16 %v5288, %v5288
    %v5301 = vpack.c.bf16 %v5289, %v5289
    %v5302 = vpack.c.bf16 %v5290, %v5290
    %v5303 = vld [vmem:[#allocation8] sm:$0xff]
    %v5304 = vld [vmem:[#allocation8 + $0x8] sm:$0xff]
    %v5305 = vld [vmem:[#allocation8 + $0x10] sm:$0xff]
    %v5306 = vld [vmem:[#allocation8 + $0x18] sm:$0xff]
    %v5307 = vld [vmem:[#allocation8 + $0x20] sm:$0xff]
    %v5308 = vld [vmem:[#allocation8 + $0x28] sm:$0xff]
    %v5309 = vld [vmem:[#allocation8 + $0x30] sm:$0xff]
    %v5310 = vld [vmem:[#allocation8 + $0x38] sm:$0xff]
    %v5311 = vld [vmem:[#allocation8 + $0x40] sm:$0xff]
    %v5312 = vld [vmem:[#allocation8 + $0x48] sm:$0xff]
    %v5313 = vld [vmem:[#allocation8 + $0x50] sm:$0xff]
    %v5314 = vld [vmem:[#allocation8 + $0x58] sm:$0xff]
    %v5315 = vld [vmem:[#allocation8 + $0x60] sm:$0xff]
    %v5316 = vld [vmem:[#allocation8 + $0x68] sm:$0xff]
    %v5317 = vld [vmem:[#allocation8 + $0x70] sm:$0xff]
    %v5318 = vld [vmem:[#allocation8 + $0x78] sm:$0xff]
    %v5319 = vld [vmem:[#allocation8 + $0x80] sm:$0xff]
    %v5320 = vld [vmem:[#allocation8 + $0x88] sm:$0xff]
    %v5321 = vld [vmem:[#allocation8 + $0x90] sm:$0xff]
    %v5322 = vld [vmem:[#allocation8 + $0x98] sm:$0xff]
    %v5323 = vld [vmem:[#allocation8 + $0xa0] sm:$0xff]
    %v5324 = vld [vmem:[#allocation8 + $0xa8] sm:$0xff]
    %v5325 = vld [vmem:[#allocation8 + $0xb0] sm:$0xff]
    %v5326 = vld [vmem:[#allocation8 + $0xb8] sm:$0xff]
    %v5327 = vld [vmem:[#allocation8 + $0xc0] sm:$0xff]
    %v5328 = vld [vmem:[#allocation8 + $0xc8] sm:$0xff]
    %v5329 = vld [vmem:[#allocation8 + $0xd0] sm:$0xff]
    %v5330 = vld [vmem:[#allocation8 + $0xd8] sm:$0xff]
    %v5331 = vld [vmem:[#allocation8 + $0xe0] sm:$0xff]
    %v5332 = vld [vmem:[#allocation8 + $0xe8] sm:$0xff]
    %v5333 = vld [vmem:[#allocation8 + $0xf0] sm:$0xff]
    %v5334 = vld [vmem:[#allocation8 + $0xf8] sm:$0xff]
    %v5335 = vld [vmem:[#allocation8 + $0x100] sm:$0xff]
    %v5336 = vld [vmem:[#allocation8 + $0x108] sm:$0xff]
    %v5337 = vld [vmem:[#allocation8 + $0x110] sm:$0xff]
    %v5338 = vld [vmem:[#allocation8 + $0x118] sm:$0xff]
    %v5339 = vld [vmem:[#allocation8 + $0x120] sm:$0xff]
    %v5340 = vld [vmem:[#allocation8 + $0x128] sm:$0xff]
    %v5341 = vld [vmem:[#allocation8 + $0x130] sm:$0xff]
    %v5342 = vld [vmem:[#allocation8 + $0x138] sm:$0xff]
    %v5343 = vld [vmem:[#allocation8 + $0x140] sm:$0xff]
    %v5344 = vld [vmem:[#allocation8 + $0x148] sm:$0xff]
    %v5345 = vld [vmem:[#allocation8 + $0x150] sm:$0xff]
    %v5346 = vld [vmem:[#allocation8 + $0x158] sm:$0xff]
    %v5347 = vld [vmem:[#allocation8 + $0x160] sm:$0xff]
    %v5348 = vld [vmem:[#allocation8 + $0x168] sm:$0xff]
    %v5349 = vld [vmem:[#allocation8 + $0x170] sm:$0xff]
    %v5350 = vld [vmem:[#allocation8 + $0x178] sm:$0xff]
    %v5351 = vld [vmem:[#allocation8 + $0x180] sm:$0xff]
    %v5352 = vld [vmem:[#allocation8 + $0x188] sm:$0xff]
    %v5353 = vld [vmem:[#allocation8 + $0x190] sm:$0xff]
    %v5354 = vld [vmem:[#allocation8 + $0x198] sm:$0xff]
    %v5355 = vld [vmem:[#allocation8 + $0x1a0] sm:$0xff]
    %v5356 = vld [vmem:[#allocation8 + $0x1a8] sm:$0xff]
    %v5357 = vld [vmem:[#allocation8 + $0x1b0] sm:$0xff]
    %v5358 = vld [vmem:[#allocation8 + $0x1b8] sm:$0xff]
    %v5359 = vld [vmem:[#allocation8 + $0x1c0] sm:$0xff]
    %v5360 = vld [vmem:[#allocation8 + $0x1c8] sm:$0xff]
    %v5361 = vld [vmem:[#allocation8 + $0x1d0] sm:$0xff]
    %v5362 = vld [vmem:[#allocation8 + $0x1d8] sm:$0xff]
    %v5363 = vld [vmem:[#allocation8 + $0x1e0] sm:$0xff]
    %v5364 = vld [vmem:[#allocation8 + $0x1e8] sm:$0xff]
    %v5365 = vld [vmem:[#allocation8 + $0x1f0] sm:$0xff]
    %v5366 = vld [vmem:[#allocation8 + $0x1f8] sm:$0xff]
    %v5367 = vld [vmem:[#allocation8 + $0x200] sm:$0xff]
    %v5368 = vld [vmem:[#allocation8 + $0x208] sm:$0xff]
    %v5369 = vld [vmem:[#allocation8 + $0x210] sm:$0xff]
    %v5370 = vld [vmem:[#allocation8 + $0x218] sm:$0xff]
    %v5371 = vld [vmem:[#allocation8 + $0x220] sm:$0xff]
    %v5372 = vld [vmem:[#allocation8 + $0x228] sm:$0xff]
    %v5373 = vld [vmem:[#allocation8 + $0x230] sm:$0xff]
    %v5374 = vld [vmem:[#allocation8 + $0x238] sm:$0xff]
    %v5375 = vld [vmem:[#allocation8 + $0x240] sm:$0xff]
    %v5376 = vld [vmem:[#allocation8 + $0x248] sm:$0xff]
    %v5377 = vld [vmem:[#allocation8 + $0x250] sm:$0xff]
    %v5378 = vld [vmem:[#allocation8 + $0x258] sm:$0xff]
    %v5379 = vld [vmem:[#allocation8 + $0x260] sm:$0xff]
    %v5380 = vld [vmem:[#allocation8 + $0x268] sm:$0xff]
    %v5381 = vld [vmem:[#allocation8 + $0x270] sm:$0xff]
    %v5382 = vld [vmem:[#allocation8 + $0x278] sm:$0xff]
    %v5383 = vld [vmem:[#allocation8 + $0x280] sm:$0xff]
    %v5384 = vld [vmem:[#allocation8 + $0x288] sm:$0xff]
    %v5385 = vld [vmem:[#allocation8 + $0x290] sm:$0xff]
    %v5386 = vld [vmem:[#allocation8 + $0x298] sm:$0xff]
    %v5387 = vld [vmem:[#allocation8 + $0x2a0] sm:$0xff]
    %v5388 = vld [vmem:[#allocation8 + $0x2a8] sm:$0xff]
    %v5389 = vld [vmem:[#allocation8 + $0x2b0] sm:$0xff]
    %v5390 = vld [vmem:[#allocation8 + $0x2b8] sm:$0xff]
    %v5391 = vld [vmem:[#allocation8 + $0x2c0] sm:$0xff]
    %v5392 = vld [vmem:[#allocation8 + $0x2c8] sm:$0xff]
    %v5393 = vld [vmem:[#allocation8 + $0x2d0] sm:$0xff]
    %v5394 = vld [vmem:[#allocation8 + $0x2d8] sm:$0xff]
    %v5395 = vld [vmem:[#allocation8 + $0x2e0] sm:$0xff]
    %v5396 = vld [vmem:[#allocation8 + $0x2e8] sm:$0xff]
    %v5397 = vld [vmem:[#allocation8 + $0x2f0] sm:$0xff]
    %v5398 = vld [vmem:[#allocation8 + $0x2f8] sm:$0xff]
    %v5399 = vld [vmem:[#allocation8 + $0x300] sm:$0xff]
    %v5400 = vld [vmem:[#allocation8 + $0x308] sm:$0xff]
    %v5401 = vld [vmem:[#allocation8 + $0x310] sm:$0xff]
    %v5402 = vld [vmem:[#allocation8 + $0x318] sm:$0xff]
    %v5403 = vld [vmem:[#allocation8 + $0x320] sm:$0xff]
    %v5404 = vld [vmem:[#allocation8 + $0x328] sm:$0xff]
    %v5405 = vld [vmem:[#allocation8 + $0x330] sm:$0xff]
    %v5406 = vld [vmem:[#allocation8 + $0x338] sm:$0xff]
    %v5407 = vld [vmem:[#allocation8 + $0x340] sm:$0xff]
    %v5408 = vld [vmem:[#allocation8 + $0x348] sm:$0xff]
    %v5409 = vld [vmem:[#allocation8 + $0x350] sm:$0xff]
    %v5410 = vld [vmem:[#allocation8 + $0x358] sm:$0xff]
    %v5411 = vld [vmem:[#allocation8 + $0x360] sm:$0xff]
    %v5412 = vld [vmem:[#allocation8 + $0x368] sm:$0xff]
    %v5413 = vld [vmem:[#allocation8 + $0x370] sm:$0xff]
    %v5414 = vld [vmem:[#allocation8 + $0x378] sm:$0xff]
    %v5415 = vld [vmem:[#allocation8 + $0x380] sm:$0xff]
    %v5416 = vld [vmem:[#allocation8 + $0x388] sm:$0xff]
    %v5417 = vld [vmem:[#allocation8 + $0x390] sm:$0xff]
    %v5418 = vld [vmem:[#allocation8 + $0x398] sm:$0xff]
    %v5419 = vld [vmem:[#allocation8 + $0x3a0] sm:$0xff]
    %v5420 = vld [vmem:[#allocation8 + $0x3a8] sm:$0xff]
    %v5421 = vld [vmem:[#allocation8 + $0x3b0] sm:$0xff]
    %v5422 = vld [vmem:[#allocation8 + $0x3b8] sm:$0xff]
    %v5423 = vld [vmem:[#allocation8 + $0x3c0] sm:$0xff]
    %v5424 = vld [vmem:[#allocation8 + $0x3c8] sm:$0xff]
    %v5425 = vld [vmem:[#allocation8 + $0x3d0] sm:$0xff]
    %v5426 = vld [vmem:[#allocation8 + $0x3d8] sm:$0xff]
    %v5427 = vld [vmem:[#allocation8 + $0x3e0] sm:$0xff]
    %v5428 = vld [vmem:[#allocation8 + $0x3e8] sm:$0xff]
    %v5429 = vld [vmem:[#allocation8 + $0x3f0] sm:$0xff]
    %v5430 = vld [vmem:[#allocation8 + $0x3f8] sm:$0xff]
    %v5431 = vld [vmem:[#allocation8 + $0x400] sm:$0xff]
    %v5432 = vld [vmem:[#allocation8 + $0x408] sm:$0xff]
    %v5433 = vld [vmem:[#allocation8 + $0x410] sm:$0xff]
    %v5434 = vld [vmem:[#allocation8 + $0x418] sm:$0xff]
    %v5435 = vld [vmem:[#allocation8 + $0x420] sm:$0xff]
    %v5436 = vld [vmem:[#allocation8 + $0x428] sm:$0xff]
    %v5437 = vld [vmem:[#allocation8 + $0x430] sm:$0xff]
    %v5438 = vld [vmem:[#allocation8 + $0x438] sm:$0xff]
    %v5439 = vld [vmem:[#allocation8 + $0x440] sm:$0xff]
    %v5440 = vld [vmem:[#allocation8 + $0x448] sm:$0xff]
    %v5441 = vld [vmem:[#allocation8 + $0x450] sm:$0xff]
    %v5442 = vld [vmem:[#allocation8 + $0x458] sm:$0xff]
    %v5443 = vld [vmem:[#allocation8 + $0x460] sm:$0xff]
    %v5444 = vld [vmem:[#allocation8 + $0x468] sm:$0xff]
    %v5445 = vld [vmem:[#allocation8 + $0x470] sm:$0xff]
    %v5446 = vld [vmem:[#allocation8 + $0x478] sm:$0xff]
    %v5447 = vld [vmem:[#allocation8 + $0x480] sm:$0xff]
    %v5448 = vld [vmem:[#allocation8 + $0x488] sm:$0xff]
    %v5449 = vld [vmem:[#allocation8 + $0x490] sm:$0xff]
    %v5450 = vld [vmem:[#allocation8 + $0x498] sm:$0xff]
    %v5451 = vld [vmem:[#allocation8 + $0x4a0] sm:$0xff]
    %v5452 = vld [vmem:[#allocation8 + $0x4a8] sm:$0xff]
    %v5453 = vld [vmem:[#allocation8 + $0x4b0] sm:$0xff]
    %v5454 = vld [vmem:[#allocation8 + $0x4b8] sm:$0xff]
    %v5455 = vld [vmem:[#allocation8 + $0x4c0] sm:$0xff]
    %v5456 = vld [vmem:[#allocation8 + $0x4c8] sm:$0xff]
    %v5457 = vld [vmem:[#allocation8 + $0x4d0] sm:$0xff]
    %v5458 = vld [vmem:[#allocation8 + $0x4d8] sm:$0xff]
    %v5459 = vld [vmem:[#allocation8 + $0x4e0] sm:$0xff]
    %v5460 = vld [vmem:[#allocation8 + $0x4e8] sm:$0xff]
    %v5461 = vld [vmem:[#allocation8 + $0x4f0] sm:$0xff]
    %v5462 = vld [vmem:[#allocation8 + $0x4f8] sm:$0xff]
    %v5463 = vld [vmem:[#allocation8 + $0x500] sm:$0xff]
    %v5464 = vld [vmem:[#allocation8 + $0x508] sm:$0xff]
    %v5465 = vld [vmem:[#allocation8 + $0x510] sm:$0xff]
    %v5466 = vld [vmem:[#allocation8 + $0x518] sm:$0xff]
    %v5467 = vld [vmem:[#allocation8 + $0x520] sm:$0xff]
    %v5468 = vld [vmem:[#allocation8 + $0x528] sm:$0xff]
    %v5469 = vld [vmem:[#allocation8 + $0x530] sm:$0xff]
    %v5470 = vld [vmem:[#allocation8 + $0x538] sm:$0xff]
    %v5471 = vld [vmem:[#allocation8 + $0x540] sm:$0xff]
    %v5472 = vld [vmem:[#allocation8 + $0x548] sm:$0xff]
    %v5473 = vld [vmem:[#allocation8 + $0x550] sm:$0xff]
    %v5474 = vld [vmem:[#allocation8 + $0x558] sm:$0xff]
    %v5475 = vld [vmem:[#allocation8 + $0x560] sm:$0xff]
    %v5476 = vld [vmem:[#allocation8 + $0x568] sm:$0xff]
    %v5477 = vld [vmem:[#allocation8 + $0x570] sm:$0xff]
    %v5478 = vld [vmem:[#allocation8 + $0x578] sm:$0xff]
    %v5479 = vld [vmem:[#allocation8 + $0x580] sm:$0xff]
    %v5480 = vld [vmem:[#allocation8 + $0x588] sm:$0xff]
    %v5481 = vld [vmem:[#allocation8 + $0x590] sm:$0xff]
    %v5482 = vld [vmem:[#allocation8 + $0x598] sm:$0xff]
    %v5483 = vld [vmem:[#allocation8 + $0x5a0] sm:$0xff]
    %v5484 = vld [vmem:[#allocation8 + $0x5a8] sm:$0xff]
    %v5485 = vld [vmem:[#allocation8 + $0x5b0] sm:$0xff]
    %v5486 = vld [vmem:[#allocation8 + $0x5b8] sm:$0xff]
    %v5487 = vld [vmem:[#allocation8 + $0x5c0] sm:$0xff]
    %v5488 = vld [vmem:[#allocation8 + $0x5c8] sm:$0xff]
    %v5489 = vld [vmem:[#allocation8 + $0x5d0] sm:$0xff]
    %v5490 = vld [vmem:[#allocation8 + $0x5d8] sm:$0xff]
    %v5491 = vld [vmem:[#allocation8 + $0x5e0] sm:$0xff]
    %v5492 = vld [vmem:[#allocation8 + $0x5e8] sm:$0xff]
    %v5493 = vld [vmem:[#allocation8 + $0x5f0] sm:$0xff]
    %v5494 = vld [vmem:[#allocation8 + $0x5f8] sm:$0xff]
    %v5495 = vld [vmem:[#allocation8 + $0x600] sm:$0xff]
    %v5496 = vld [vmem:[#allocation8 + $0x608] sm:$0xff]
    %v5497 = vld [vmem:[#allocation8 + $0x610] sm:$0xff]
    %v5498 = vld [vmem:[#allocation8 + $0x618] sm:$0xff]
    %v5499 = vld [vmem:[#allocation8 + $0x620] sm:$0xff]
    %v5500 = vld [vmem:[#allocation8 + $0x628] sm:$0xff]
    %v5501 = vld [vmem:[#allocation8 + $0x630] sm:$0xff]
    %v5502 = vld [vmem:[#allocation8 + $0x638] sm:$0xff]
    %v5503 = vld [vmem:[#allocation8 + $0x640] sm:$0xff]
    %v5504 = vld [vmem:[#allocation8 + $0x648] sm:$0xff]
    %v5505 = vld [vmem:[#allocation8 + $0x650] sm:$0xff]
    %v5506 = vld [vmem:[#allocation8 + $0x658] sm:$0xff]
    %v5507 = vld [vmem:[#allocation8 + $0x660] sm:$0xff]
    %v5508 = vld [vmem:[#allocation8 + $0x668] sm:$0xff]
    %v5509 = vld [vmem:[#allocation8 + $0x670] sm:$0xff]
    %v5510 = vld [vmem:[#allocation8 + $0x678] sm:$0xff]
    %v5511 = vld [vmem:[#allocation8 + $0x680] sm:$0xff]
    %v5512 = vld [vmem:[#allocation8 + $0x688] sm:$0xff]
    %v5513 = vld [vmem:[#allocation8 + $0x690] sm:$0xff]
    %v5514 = vld [vmem:[#allocation8 + $0x698] sm:$0xff]
    %v5515 = vld [vmem:[#allocation8 + $0x6a0] sm:$0xff]
    %v5516 = vld [vmem:[#allocation8 + $0x6a8] sm:$0xff]
    %v5517 = vld [vmem:[#allocation8 + $0x6b0] sm:$0xff]
    %v5518 = vld [vmem:[#allocation8 + $0x6b8] sm:$0xff]
    %v5519 = vld [vmem:[#allocation8 + $0x6c0] sm:$0xff]
    %v5520 = vld [vmem:[#allocation8 + $0x6c8] sm:$0xff]
    %v5521 = vld [vmem:[#allocation8 + $0x6d0] sm:$0xff]
    %v5522 = vld [vmem:[#allocation8 + $0x6d8] sm:$0xff]
    %v5523 = vld [vmem:[#allocation8 + $0x6e0] sm:$0xff]
    %v5524 = vld [vmem:[#allocation8 + $0x6e8] sm:$0xff]
    %v5525 = vld [vmem:[#allocation8 + $0x6f0] sm:$0xff]
    %v5526 = vld [vmem:[#allocation8 + $0x6f8] sm:$0xff]
    %v5527 = vld [vmem:[#allocation8 + $0x700] sm:$0xff]
    %v5528 = vld [vmem:[#allocation8 + $0x708] sm:$0xff]
    %v5529 = vld [vmem:[#allocation8 + $0x710] sm:$0xff]
    %v5530 = vld [vmem:[#allocation8 + $0x718] sm:$0xff]
    %v5531 = vld [vmem:[#allocation8 + $0x720] sm:$0xff]
    %v5532 = vld [vmem:[#allocation8 + $0x728] sm:$0xff]
    %v5533 = vld [vmem:[#allocation8 + $0x730] sm:$0xff]
    %v5534 = vld [vmem:[#allocation8 + $0x738] sm:$0xff]
    %v5535 = vld [vmem:[#allocation8 + $0x740] sm:$0xff]
    %v5536 = vld [vmem:[#allocation8 + $0x748] sm:$0xff]
    %v5537 = vld [vmem:[#allocation8 + $0x750] sm:$0xff]
    %v5538 = vld [vmem:[#allocation8 + $0x758] sm:$0xff]
    %v5539 = vld [vmem:[#allocation8 + $0x760] sm:$0xff]
    %v5540 = vld [vmem:[#allocation8 + $0x768] sm:$0xff]
    %v5541 = vld [vmem:[#allocation8 + $0x770] sm:$0xff]
    %v5542 = vld [vmem:[#allocation8 + $0x778] sm:$0xff]
    %v5543 = vld [vmem:[#allocation8 + $0x780] sm:$0xff]
    %v5544 = vld [vmem:[#allocation8 + $0x788] sm:$0xff]
    %v5545 = vld [vmem:[#allocation8 + $0x790] sm:$0xff]
    %v5546 = vld [vmem:[#allocation8 + $0x798] sm:$0xff]
    %v5547 = vld [vmem:[#allocation8 + $0x7a0] sm:$0xff]
    %v5548 = vld [vmem:[#allocation8 + $0x7a8] sm:$0xff]
    %v5549 = vld [vmem:[#allocation8 + $0x7b0] sm:$0xff]
    %v5550 = vld [vmem:[#allocation8 + $0x7b8] sm:$0xff]
    %v5551 = vld [vmem:[#allocation8 + $0x7c0] sm:$0xff]
    %v5552 = vld [vmem:[#allocation8 + $0x7c8] sm:$0xff]
    %v5553 = vld [vmem:[#allocation8 + $0x7d0] sm:$0xff]
    %v5554 = vld [vmem:[#allocation8 + $0x7d8] sm:$0xff]
    %v5555 = vld [vmem:[#allocation8 + $0x7e0] sm:$0xff]
    %v5556 = vld [vmem:[#allocation8 + $0x7e8] sm:$0xff]
    %v5557 = vld [vmem:[#allocation8 + $0x7f0] sm:$0xff]
    %v5558 = vld [vmem:[#allocation8 + $0x7f8] sm:$0xff]
    %v5559 = vld [vmem:[#allocation8 + $0x800] sm:$0xff]
    %v5560 = vld [vmem:[#allocation8 + $0x808] sm:$0xff]
    %v5561 = vld [vmem:[#allocation8 + $0x810] sm:$0xff]
    %v5562 = vld [vmem:[#allocation8 + $0x818] sm:$0xff]
    %v5563 = vld [vmem:[#allocation8 + $0x820] sm:$0xff]
    %v5564 = vld [vmem:[#allocation8 + $0x828] sm:$0xff]
    %v5565 = vld [vmem:[#allocation8 + $0x830] sm:$0xff]
    %v5566 = vld [vmem:[#allocation8 + $0x838] sm:$0xff]
    %v5567 = vld [vmem:[#allocation8 + $0x840] sm:$0xff]
    %v5568 = vld [vmem:[#allocation8 + $0x848] sm:$0xff]
    %v5569 = vld [vmem:[#allocation8 + $0x850] sm:$0xff]
    %v5570 = vld [vmem:[#allocation8 + $0x858] sm:$0xff]
    %v5571 = vld [vmem:[#allocation8 + $0x860] sm:$0xff]
    %v5572 = vld [vmem:[#allocation8 + $0x868] sm:$0xff]
    %v5573 = vld [vmem:[#allocation8 + $0x870] sm:$0xff]
    %v5574 = vld [vmem:[#allocation8 + $0x878] sm:$0xff]
    %v5575 = vld [vmem:[#allocation8 + $0x880] sm:$0xff]
    %v5576 = vld [vmem:[#allocation8 + $0x888] sm:$0xff]
    %v5577 = vld [vmem:[#allocation8 + $0x890] sm:$0xff]
    %v5578 = vld [vmem:[#allocation8 + $0x898] sm:$0xff]
    %v5579 = vld [vmem:[#allocation8 + $0x8a0] sm:$0xff]
    %v5580 = vld [vmem:[#allocation8 + $0x8a8] sm:$0xff]
    %v5581 = vld [vmem:[#allocation8 + $0x8b0] sm:$0xff]
    %v5582 = vld [vmem:[#allocation8 + $0x8b8] sm:$0xff]
    %v5583 = vld [vmem:[#allocation8 + $0x8c0] sm:$0xff]
    %v5584 = vld [vmem:[#allocation8 + $0x8c8] sm:$0xff]
    %v5585 = vld [vmem:[#allocation8 + $0x8d0] sm:$0xff]
    %v5586 = vld [vmem:[#allocation8 + $0x8d8] sm:$0xff]
    %v5587 = vld [vmem:[#allocation8 + $0x8e0] sm:$0xff]
    %v5588 = vld [vmem:[#allocation8 + $0x8e8] sm:$0xff]
    %v5589 = vld [vmem:[#allocation8 + $0x8f0] sm:$0xff]
    %v5590 = vld [vmem:[#allocation8 + $0x8f8] sm:$0xff]
    %v5591 = vld [vmem:[#allocation8 + $0x900] sm:$0xff]
    %v5592 = vld [vmem:[#allocation8 + $0x908] sm:$0xff]
    %v5593 = vld [vmem:[#allocation8 + $0x910] sm:$0xff]
    %v5594 = vld [vmem:[#allocation8 + $0x918] sm:$0xff]
    %v5595 = vld [vmem:[#allocation8 + $0x920] sm:$0xff]
    %v5596 = vld [vmem:[#allocation8 + $0x928] sm:$0xff]
    %v5597 = vld [vmem:[#allocation8 + $0x930] sm:$0xff]
    %v5598 = vld [vmem:[#allocation8 + $0x938] sm:$0xff]
    %v5599 = vld [vmem:[#allocation8 + $0x940] sm:$0xff]
    %v5600 = vld [vmem:[#allocation8 + $0x948] sm:$0xff]
    %v5601 = vld [vmem:[#allocation8 + $0x950] sm:$0xff]
    %v5602 = vld [vmem:[#allocation8 + $0x958] sm:$0xff]
    %v5603 = vld [vmem:[#allocation8 + $0x960] sm:$0xff]
    %v5604 = vld [vmem:[#allocation8 + $0x968] sm:$0xff]
    %v5605 = vld [vmem:[#allocation8 + $0x970] sm:$0xff]
    %v5606 = vld [vmem:[#allocation8 + $0x978] sm:$0xff]
    %v5607 = vld [vmem:[#allocation8 + $0x980] sm:$0xff]
    %v5608 = vld [vmem:[#allocation8 + $0x988] sm:$0xff]
    %v5609 = vld [vmem:[#allocation8 + $0x990] sm:$0xff]
    %v5610 = vld [vmem:[#allocation8 + $0x998] sm:$0xff]
    %v5611 = vld [vmem:[#allocation8 + $0x9a0] sm:$0xff]
    %v5612 = vld [vmem:[#allocation8 + $0x9a8] sm:$0xff]
    %v5613 = vld [vmem:[#allocation8 + $0x9b0] sm:$0xff]
    %v5614 = vld [vmem:[#allocation8 + $0x9b8] sm:$0xff]
    %v5615 = vld [vmem:[#allocation8 + $0x9c0] sm:$0xff]
    %v5616 = vld [vmem:[#allocation8 + $0x9c8] sm:$0xff]
    %v5617 = vld [vmem:[#allocation8 + $0x9d0] sm:$0xff]
    %v5618 = vld [vmem:[#allocation8 + $0x9d8] sm:$0xff]
    %v5619 = vld [vmem:[#allocation8 + $0x9e0] sm:$0xff]
    %v5620 = vld [vmem:[#allocation8 + $0x9e8] sm:$0xff]
    %v5621 = vld [vmem:[#allocation8 + $0x9f0] sm:$0xff]
    %v5622 = vld [vmem:[#allocation8 + $0x9f8] sm:$0xff]
    %v5623 = vld [vmem:[#allocation8 + $0xa00] sm:$0xff]
    %v5624 = vld [vmem:[#allocation8 + $0xa08] sm:$0xff]
    %v5625 = vld [vmem:[#allocation8 + $0xa10] sm:$0xff]
    %v5626 = vld [vmem:[#allocation8 + $0xa18] sm:$0xff]
    %v5627 = vld [vmem:[#allocation8 + $0xa20] sm:$0xff]
    %v5628 = vld [vmem:[#allocation8 + $0xa28] sm:$0xff]
    %v5629 = vld [vmem:[#allocation8 + $0xa30] sm:$0xff]
    %v5630 = vld [vmem:[#allocation8 + $0xa38] sm:$0xff]
    %v5631 = vld [vmem:[#allocation8 + $0xa40] sm:$0xff]
    %v5632 = vld [vmem:[#allocation8 + $0xa48] sm:$0xff]
    %v5633 = vld [vmem:[#allocation8 + $0xa50] sm:$0xff]
    %v5634 = vld [vmem:[#allocation8 + $0xa58] sm:$0xff]
    %v5635 = vld [vmem:[#allocation8 + $0xa60] sm:$0xff]
    %v5636 = vld [vmem:[#allocation8 + $0xa68] sm:$0xff]
    %v5637 = vld [vmem:[#allocation8 + $0xa70] sm:$0xff]
    %v5638 = vld [vmem:[#allocation8 + $0xa78] sm:$0xff]
    %v5639 = vld [vmem:[#allocation8 + $0xa80] sm:$0xff]
    %v5640 = vld [vmem:[#allocation8 + $0xa88] sm:$0xff]
    %v5641 = vld [vmem:[#allocation8 + $0xa90] sm:$0xff]
    %v5642 = vld [vmem:[#allocation8 + $0xa98] sm:$0xff]
    %v5643 = vld [vmem:[#allocation8 + $0xaa0] sm:$0xff]
    %v5644 = vld [vmem:[#allocation8 + $0xaa8] sm:$0xff]
    %v5645 = vld [vmem:[#allocation8 + $0xab0] sm:$0xff]
    %v5646 = vld [vmem:[#allocation8 + $0xab8] sm:$0xff]
    %v5647 = vld [vmem:[#allocation8 + $0xac0] sm:$0xff]
    %v5648 = vld [vmem:[#allocation8 + $0xac8] sm:$0xff]
    %v5649 = vld [vmem:[#allocation8 + $0xad0] sm:$0xff]
    %v5650 = vld [vmem:[#allocation8 + $0xad8] sm:$0xff]
    %v5651 = vld [vmem:[#allocation8 + $0xae0] sm:$0xff]
    %v5652 = vld [vmem:[#allocation8 + $0xae8] sm:$0xff]
    %v5653 = vld [vmem:[#allocation8 + $0xaf0] sm:$0xff]
    %v5654 = vld [vmem:[#allocation8 + $0xaf8] sm:$0xff]
    %v5655 = vld [vmem:[#allocation8 + $0xb00] sm:$0xff]
    %v5656 = vld [vmem:[#allocation8 + $0xb08] sm:$0xff]
    %v5657 = vld [vmem:[#allocation8 + $0xb10] sm:$0xff]
    %v5658 = vld [vmem:[#allocation8 + $0xb18] sm:$0xff]
    %v5659 = vld [vmem:[#allocation8 + $0xb20] sm:$0xff]
    %v5660 = vld [vmem:[#allocation8 + $0xb28] sm:$0xff]
    %v5661 = vld [vmem:[#allocation8 + $0xb30] sm:$0xff]
    %v5662 = vld [vmem:[#allocation8 + $0xb38] sm:$0xff]
    %v5663 = vld [vmem:[#allocation8 + $0xb40] sm:$0xff]
    %v5664 = vld [vmem:[#allocation8 + $0xb48] sm:$0xff]
    %v5665 = vld [vmem:[#allocation8 + $0xb50] sm:$0xff]
    %v5666 = vld [vmem:[#allocation8 + $0xb58] sm:$0xff]
    %v5667 = vld [vmem:[#allocation8 + $0xb60] sm:$0xff]
    %v5668 = vld [vmem:[#allocation8 + $0xb68] sm:$0xff]
    %v5669 = vld [vmem:[#allocation8 + $0xb70] sm:$0xff]
    %v5670 = vld [vmem:[#allocation8 + $0xb78] sm:$0xff]
    %v5671 = vld [vmem:[#allocation8 + $0xb80] sm:$0xff]
    %v5672 = vld [vmem:[#allocation8 + $0xb88] sm:$0xff]
    %v5673 = vld [vmem:[#allocation8 + $0xb90] sm:$0xff]
    %v5674 = vld [vmem:[#allocation8 + $0xb98] sm:$0xff]
    %v5675 = vld [vmem:[#allocation8 + $0xba0] sm:$0xff]
    %v5676 = vld [vmem:[#allocation8 + $0xba8] sm:$0xff]
    %v5677 = vld [vmem:[#allocation8 + $0xbb0] sm:$0xff]
    %v5678 = vld [vmem:[#allocation8 + $0xbb8] sm:$0xff]
    %v5679 = vld [vmem:[#allocation8 + $0xbc0] sm:$0xff]
    %v5680 = vld [vmem:[#allocation8 + $0xbc8] sm:$0xff]
    %v5681 = vld [vmem:[#allocation8 + $0xbd0] sm:$0xff]
    %v5682 = vld [vmem:[#allocation8 + $0xbd8] sm:$0xff]
    %v5683 = vld [vmem:[#allocation8 + $0xbe0] sm:$0xff]
    %v5684 = vld [vmem:[#allocation8 + $0xbe8] sm:$0xff]
    %v5685 = vld [vmem:[#allocation8 + $0xbf0] sm:$0xff]
    %v5686 = vld [vmem:[#allocation8 + $0xbf8] sm:$0xff]
    %v5687 = vld [vmem:[#allocation8 + $0xc00] sm:$0xff]
    %v5688 = vld [vmem:[#allocation8 + $0xc08] sm:$0xff]
    %v5689 = vld [vmem:[#allocation8 + $0xc10] sm:$0xff]
    %v5690 = vld [vmem:[#allocation8 + $0xc18] sm:$0xff]
    %v5691 = vld [vmem:[#allocation8 + $0xc20] sm:$0xff]
    %v5692 = vld [vmem:[#allocation8 + $0xc28] sm:$0xff]
    %v5693 = vld [vmem:[#allocation8 + $0xc30] sm:$0xff]
    %v5694 = vld [vmem:[#allocation8 + $0xc38] sm:$0xff]
    %v5695 = vld [vmem:[#allocation8 + $0xc40] sm:$0xff]
    %v5696 = vld [vmem:[#allocation8 + $0xc48] sm:$0xff]
    %v5697 = vld [vmem:[#allocation8 + $0xc50] sm:$0xff]
    %v5698 = vld [vmem:[#allocation8 + $0xc58] sm:$0xff]
    %v5699 = vld [vmem:[#allocation8 + $0xc60] sm:$0xff]
    %v5700 = vld [vmem:[#allocation8 + $0xc68] sm:$0xff]
    %v5701 = vld [vmem:[#allocation8 + $0xc70] sm:$0xff]
    %v5702 = vld [vmem:[#allocation8 + $0xc78] sm:$0xff]
    %v5703 = vld [vmem:[#allocation8 + $0xc80] sm:$0xff]
    %v5704 = vld [vmem:[#allocation8 + $0xc88] sm:$0xff]
    %v5705 = vld [vmem:[#allocation8 + $0xc90] sm:$0xff]
    %v5706 = vld [vmem:[#allocation8 + $0xc98] sm:$0xff]
    %v5707 = vld [vmem:[#allocation8 + $0xca0] sm:$0xff]
    %v5708 = vld [vmem:[#allocation8 + $0xca8] sm:$0xff]
    %v5709 = vld [vmem:[#allocation8 + $0xcb0] sm:$0xff]
    %v5710 = vld [vmem:[#allocation8 + $0xcb8] sm:$0xff]
    %v5711 = vld [vmem:[#allocation8 + $0xcc0] sm:$0xff]
    %v5712 = vld [vmem:[#allocation8 + $0xcc8] sm:$0xff]
    %v5713 = vld [vmem:[#allocation8 + $0xcd0] sm:$0xff]
    %v5714 = vld [vmem:[#allocation8 + $0xcd8] sm:$0xff]
    %v5715 = vld [vmem:[#allocation8 + $0xce0] sm:$0xff]
    %v5716 = vld [vmem:[#allocation8 + $0xce8] sm:$0xff]
    %v5717 = vld [vmem:[#allocation8 + $0xcf0] sm:$0xff]
    %v5718 = vld [vmem:[#allocation8 + $0xcf8] sm:$0xff]
    %v5719 = vld [vmem:[#allocation8 + $0xd00] sm:$0xff]
    %v5720 = vld [vmem:[#allocation8 + $0xd08] sm:$0xff]
    %v5721 = vld [vmem:[#allocation8 + $0xd10] sm:$0xff]
    %v5722 = vld [vmem:[#allocation8 + $0xd18] sm:$0xff]
    %v5723 = vld [vmem:[#allocation8 + $0xd20] sm:$0xff]
    %v5724 = vld [vmem:[#allocation8 + $0xd28] sm:$0xff]
    %v5725 = vld [vmem:[#allocation8 + $0xd30] sm:$0xff]
    %v5726 = vld [vmem:[#allocation8 + $0xd38] sm:$0xff]
    %v5727 = vld [vmem:[#allocation8 + $0xd40] sm:$0xff]
    %v5728 = vld [vmem:[#allocation8 + $0xd48] sm:$0xff]
    %v5729 = vld [vmem:[#allocation8 + $0xd50] sm:$0xff]
    %v5730 = vld [vmem:[#allocation8 + $0xd58] sm:$0xff]
    %v5731 = vld [vmem:[#allocation8 + $0xd60] sm:$0xff]
    %v5732 = vld [vmem:[#allocation8 + $0xd68] sm:$0xff]
    %v5733 = vld [vmem:[#allocation8 + $0xd70] sm:$0xff]
    %v5734 = vld [vmem:[#allocation8 + $0xd78] sm:$0xff]
    %v5735 = vld [vmem:[#allocation8 + $0xd80] sm:$0xff]
    %v5736 = vld [vmem:[#allocation8 + $0xd88] sm:$0xff]
    %v5737 = vld [vmem:[#allocation8 + $0xd90] sm:$0xff]
    %v5738 = vld [vmem:[#allocation8 + $0xd98] sm:$0xff]
    %v5739 = vld [vmem:[#allocation8 + $0xda0] sm:$0xff]
    %v5740 = vld [vmem:[#allocation8 + $0xda8] sm:$0xff]
    %v5741 = vld [vmem:[#allocation8 + $0xdb0] sm:$0xff]
    %v5742 = vld [vmem:[#allocation8 + $0xdb8] sm:$0xff]
    %v5743 = vld [vmem:[#allocation8 + $0xdc0] sm:$0xff]
    %v5744 = vld [vmem:[#allocation8 + $0xdc8] sm:$0xff]
    %v5745 = vld [vmem:[#allocation8 + $0xdd0] sm:$0xff]
    %v5746 = vld [vmem:[#allocation8 + $0xdd8] sm:$0xff]
    %v5747 = vld [vmem:[#allocation8 + $0xde0] sm:$0xff]
    %v5748 = vld [vmem:[#allocation8 + $0xde8] sm:$0xff]
    %v5749 = vld [vmem:[#allocation8 + $0xdf0] sm:$0xff]
    %v5750 = vld [vmem:[#allocation8 + $0xdf8] sm:$0xff]
    %v5751 = vld [vmem:[#allocation8 + $0xe00] sm:$0xff]
    %v5752 = vld [vmem:[#allocation8 + $0xe08] sm:$0xff]
    %v5753 = vld [vmem:[#allocation8 + $0xe10] sm:$0xff]
    %v5754 = vld [vmem:[#allocation8 + $0xe18] sm:$0xff]
    %v5755 = vld [vmem:[#allocation8 + $0xe20] sm:$0xff]
    %v5756 = vld [vmem:[#allocation8 + $0xe28] sm:$0xff]
    %v5757 = vld [vmem:[#allocation8 + $0xe30] sm:$0xff]
    %v5758 = vld [vmem:[#allocation8 + $0xe38] sm:$0xff]
    %v5759 = vld [vmem:[#allocation8 + $0xe40] sm:$0xff]
    %v5760 = vld [vmem:[#allocation8 + $0xe48] sm:$0xff]
    %v5761 = vld [vmem:[#allocation8 + $0xe50] sm:$0xff]
    %v5762 = vld [vmem:[#allocation8 + $0xe58] sm:$0xff]
    %v5763 = vld [vmem:[#allocation8 + $0xe60] sm:$0xff]
    %v5764 = vld [vmem:[#allocation8 + $0xe68] sm:$0xff]
    %v5765 = vld [vmem:[#allocation8 + $0xe70] sm:$0xff]
    %v5766 = vld [vmem:[#allocation8 + $0xe78] sm:$0xff]
    %v5767 = vld [vmem:[#allocation8 + $0xe80] sm:$0xff]
    %v5768 = vld [vmem:[#allocation8 + $0xe88] sm:$0xff]
    %v5769 = vld [vmem:[#allocation8 + $0xe90] sm:$0xff]
    %v5770 = vld [vmem:[#allocation8 + $0xe98] sm:$0xff]
    %v5771 = vld [vmem:[#allocation8 + $0xea0] sm:$0xff]
    %v5772 = vld [vmem:[#allocation8 + $0xea8] sm:$0xff]
    %v5773 = vld [vmem:[#allocation8 + $0xeb0] sm:$0xff]
    %v5774 = vld [vmem:[#allocation8 + $0xeb8] sm:$0xff]
    %v5775 = vld [vmem:[#allocation8 + $0xec0] sm:$0xff]
    %v5776 = vld [vmem:[#allocation8 + $0xec8] sm:$0xff]
    %v5777 = vld [vmem:[#allocation8 + $0xed0] sm:$0xff]
    %v5778 = vld [vmem:[#allocation8 + $0xed8] sm:$0xff]
    %v5779 = vld [vmem:[#allocation8 + $0xee0] sm:$0xff]
    %v5780 = vld [vmem:[#allocation8 + $0xee8] sm:$0xff]
    %v5781 = vld [vmem:[#allocation8 + $0xef0] sm:$0xff]
    %v5782 = vld [vmem:[#allocation8 + $0xef8] sm:$0xff]
    %v5783 = vld [vmem:[#allocation8 + $0xf00] sm:$0xff]
    %v5784 = vld [vmem:[#allocation8 + $0xf08] sm:$0xff]
    %v5785 = vld [vmem:[#allocation8 + $0xf10] sm:$0xff]
    %v5786 = vld [vmem:[#allocation8 + $0xf18] sm:$0xff]
    %v5787 = vld [vmem:[#allocation8 + $0xf20] sm:$0xff]
    %v5788 = vld [vmem:[#allocation8 + $0xf28] sm:$0xff]
    %v5789 = vld [vmem:[#allocation8 + $0xf30] sm:$0xff]
    %v5790 = vld [vmem:[#allocation8 + $0xf38] sm:$0xff]
    %v5791 = vld [vmem:[#allocation8 + $0xf40] sm:$0xff]
    %v5792 = vld [vmem:[#allocation8 + $0xf48] sm:$0xff]
    %v5793 = vld [vmem:[#allocation8 + $0xf50] sm:$0xff]
    %v5794 = vld [vmem:[#allocation8 + $0xf58] sm:$0xff]
    %v5795 = vld [vmem:[#allocation8 + $0xf60] sm:$0xff]
    %v5796 = vld [vmem:[#allocation8 + $0xf68] sm:$0xff]
    %v5797 = vld [vmem:[#allocation8 + $0xf70] sm:$0xff]
    %v5798 = vld [vmem:[#allocation8 + $0xf78] sm:$0xff]
    %v5799 = vld [vmem:[#allocation8 + $0xf80] sm:$0xff]
    %v5800 = vld [vmem:[#allocation8 + $0xf88] sm:$0xff]
    %v5801 = vld [vmem:[#allocation8 + $0xf90] sm:$0xff]
    %v5802 = vld [vmem:[#allocation8 + $0xf98] sm:$0xff]
    %v5803 = vld [vmem:[#allocation8 + $0xfa0] sm:$0xff]
    %v5804 = vld [vmem:[#allocation8 + $0xfa8] sm:$0xff]
    %v5805 = vld [vmem:[#allocation8 + $0xfb0] sm:$0xff]
    %v5806 = vld [vmem:[#allocation8 + $0xfb8] sm:$0xff]
    %v5807 = vld [vmem:[#allocation8 + $0xfc0] sm:$0xff]
    %v5808 = vld [vmem:[#allocation8 + $0xfc8] sm:$0xff]
    %v5809 = vld [vmem:[#allocation8 + $0xfd0] sm:$0xff]
    %v5810 = vld [vmem:[#allocation8 + $0xfd8] sm:$0xff]
    %v5811 = vld [vmem:[#allocation8 + $0xfe0] sm:$0xff]
    %v5812 = vld [vmem:[#allocation8 + $0xfe8] sm:$0xff]
    %v5813 = vld [vmem:[#allocation8 + $0xff0] sm:$0xff]
    %v5814 = vld [vmem:[#allocation8 + $0xff8] sm:$0xff]
    %v5815 = vld [vmem:[#allocation8 + $0x1000] sm:$0xff]
    %v5816 = vld [vmem:[#allocation8 + $0x1008] sm:$0xff]
    %v5817 = vld [vmem:[#allocation8 + $0x1010] sm:$0xff]
    %v5818 = vld [vmem:[#allocation8 + $0x1018] sm:$0xff]
    %v5819 = vld [vmem:[#allocation8 + $0x1020] sm:$0xff]
    %v5820 = vld [vmem:[#allocation8 + $0x1028] sm:$0xff]
    %v5821 = vld [vmem:[#allocation8 + $0x1030] sm:$0xff]
    %v5822 = vld [vmem:[#allocation8 + $0x1038] sm:$0xff]
    %v5823 = vld [vmem:[#allocation8 + $0x1040] sm:$0xff]
    %v5824 = vld [vmem:[#allocation8 + $0x1048] sm:$0xff]
    %v5825 = vld [vmem:[#allocation8 + $0x1050] sm:$0xff]
    %v5826 = vld [vmem:[#allocation8 + $0x1058] sm:$0xff]
    %v5827 = vld [vmem:[#allocation8 + $0x1060] sm:$0xff]
    %v5828 = vld [vmem:[#allocation8 + $0x1068] sm:$0xff]
    %v5829 = vld [vmem:[#allocation8 + $0x1070] sm:$0xff]
    %v5830 = vld [vmem:[#allocation8 + $0x1078] sm:$0xff]
    %v5831 = vld [vmem:[#allocation8 + $0x1080] sm:$0xff]
    %v5832 = vld [vmem:[#allocation8 + $0x1088] sm:$0xff]
    %v5833 = vld [vmem:[#allocation8 + $0x1090] sm:$0xff]
    %v5834 = vld [vmem:[#allocation8 + $0x1098] sm:$0xff]
    %v5835 = vld [vmem:[#allocation8 + $0x10a0] sm:$0xff]
    %v5836 = vld [vmem:[#allocation8 + $0x10a8] sm:$0xff]
    %v5837 = vld [vmem:[#allocation8 + $0x10b0] sm:$0xff]
    %v5838 = vld [vmem:[#allocation8 + $0x10b8] sm:$0xff]
    %v5839 = vld [vmem:[#allocation8 + $0x10c0] sm:$0xff]
    %v5840 = vld [vmem:[#allocation8 + $0x10c8] sm:$0xff]
    %v5841 = vld [vmem:[#allocation8 + $0x10d0] sm:$0xff]
    %v5842 = vld [vmem:[#allocation8 + $0x10d8] sm:$0xff]
    %v5843 = vld [vmem:[#allocation8 + $0x10e0] sm:$0xff]
    %v5844 = vld [vmem:[#allocation8 + $0x10e8] sm:$0xff]
    %v5845 = vld [vmem:[#allocation8 + $0x10f0] sm:$0xff]
    %v5846 = vld [vmem:[#allocation8 + $0x10f8] sm:$0xff]
    %v5847 = vld [vmem:[#allocation8 + $0x1100] sm:$0xff]
    %v5848 = vld [vmem:[#allocation8 + $0x1108] sm:$0xff]
    %v5849 = vld [vmem:[#allocation8 + $0x1110] sm:$0xff]
    %v5850 = vld [vmem:[#allocation8 + $0x1118] sm:$0xff]
    %v5851 = vld [vmem:[#allocation8 + $0x1120] sm:$0xff]
    %v5852 = vld [vmem:[#allocation8 + $0x1128] sm:$0xff]
    %v5853 = vld [vmem:[#allocation8 + $0x1130] sm:$0xff]
    %v5854 = vld [vmem:[#allocation8 + $0x1138] sm:$0xff]
    %v5855 = vld [vmem:[#allocation8 + $0x1140] sm:$0xff]
    %v5856 = vld [vmem:[#allocation8 + $0x1148] sm:$0xff]
    %v5857 = vld [vmem:[#allocation8 + $0x1150] sm:$0xff]
    %v5858 = vld [vmem:[#allocation8 + $0x1158] sm:$0xff]
    %v5859 = vld [vmem:[#allocation8 + $0x1160] sm:$0xff]
    %v5860 = vld [vmem:[#allocation8 + $0x1168] sm:$0xff]
    %v5861 = vld [vmem:[#allocation8 + $0x1170] sm:$0xff]
    %v5862 = vld [vmem:[#allocation8 + $0x1178] sm:$0xff]
    %v5863 = vld [vmem:[#allocation8 + $0x1180] sm:$0xff]
    %v5864 = vld [vmem:[#allocation8 + $0x1188] sm:$0xff]
    %v5865 = vld [vmem:[#allocation8 + $0x1190] sm:$0xff]
    %v5866 = vld [vmem:[#allocation8 + $0x1198] sm:$0xff]
    %v5867 = vld [vmem:[#allocation8 + $0x11a0] sm:$0xff]
    %v5868 = vld [vmem:[#allocation8 + $0x11a8] sm:$0xff]
    %v5869 = vld [vmem:[#allocation8 + $0x11b0] sm:$0xff]
    %v5870 = vld [vmem:[#allocation8 + $0x11b8] sm:$0xff]
    %v5871 = vld [vmem:[#allocation8 + $0x11c0] sm:$0xff]
    %v5872 = vld [vmem:[#allocation8 + $0x11c8] sm:$0xff]
    %v5873 = vld [vmem:[#allocation8 + $0x11d0] sm:$0xff]
    %v5874 = vld [vmem:[#allocation8 + $0x11d8] sm:$0xff]
    %v5875 = vld [vmem:[#allocation8 + $0x11e0] sm:$0xff]
    %v5876 = vld [vmem:[#allocation8 + $0x11e8] sm:$0xff]
    %v5877 = vld [vmem:[#allocation8 + $0x11f0] sm:$0xff]
    %v5878 = vld [vmem:[#allocation8 + $0x11f8] sm:$0xff]
    %v5879 = vld [vmem:[#allocation10] sm:$0x3f]
    %v5881 = vlaneseq
    %v5882 = vshrl.u32 %v5881, 7
    %v5883 = vsub.s32 0, %v5882
    %v5884 = vrot.slane %v5879, %v5883
    %v5885 = vlaneseq
    %v5886 = vshrl.u32 %v5885, 7
    %v5887 = vsub.s32 1, %v5886
    %v5888 = vrot.slane %v5879, %v5887
    %v5889 = vlaneseq
    %v5890 = vshrl.u32 %v5889, 7
    %v5891 = vsub.s32 2, %v5890
    %v5892 = vrot.slane %v5879, %v5891
    %v5893 = vlaneseq
    %v5894 = vshrl.u32 %v5893, 7
    %v5895 = vsub.s32 3, %v5894
    %v5896 = vrot.slane %v5879, %v5895
    %v5897 = vlaneseq
    %v5898 = vshrl.u32 %v5897, 7
    %v5899 = vsub.s32 4, %v5898
    %v5900 = vrot.slane %v5879, %v5899
    %v5901 = vlaneseq
    %v5902 = vshrl.u32 %v5901, 7
    %v5903 = vsub.s32 5, %v5902
    %v5904 = vrot.slane %v5879, %v5903
    %v6487 = vunpack.c.l.b16 %v5303
    %v6488 = vunpack.c.h.b16 %v5303
    %v6489 = vunpack.c.l.b16 %v5304
    %v6490 = vunpack.c.h.b16 %v5304
    %v6491 = vunpack.c.l.b16 %v5305
    %v6492 = vunpack.c.h.b16 %v5305
    %v6493 = vunpack.c.l.b16 %v5306
    %v6494 = vunpack.c.h.b16 %v5306
    %v6495 = vunpack.c.l.b16 %v5307
    %v6496 = vunpack.c.h.b16 %v5307
    %v6497 = vunpack.c.l.b16 %v5308
    %v6498 = vunpack.c.h.b16 %v5308
    %v6499 = vunpack.c.l.b16 %v5309
    %v6500 = vunpack.c.h.b16 %v5309
    %v6501 = vunpack.c.l.b16 %v5310
    %v6502 = vunpack.c.h.b16 %v5310
    %v6503 = vunpack.c.l.b16 %v5311
    %v6504 = vunpack.c.h.b16 %v5311
    %v6505 = vunpack.c.l.b16 %v5312
    %v6506 = vunpack.c.h.b16 %v5312
    %v6507 = vunpack.c.l.b16 %v5313
    %v6508 = vunpack.c.h.b16 %v5313
    %v6509 = vunpack.c.l.b16 %v5314
    %v6510 = vunpack.c.h.b16 %v5314
    %v6511 = vunpack.c.l.b16 %v5315
    %v6512 = vunpack.c.h.b16 %v5315
    %v6513 = vunpack.c.l.b16 %v5316
    %v6514 = vunpack.c.h.b16 %v5316
    %v6515 = vunpack.c.l.b16 %v5317
    %v6516 = vunpack.c.h.b16 %v5317
    %v6517 = vunpack.c.l.b16 %v5318
    %v6518 = vunpack.c.h.b16 %v5318
    %v6519 = vunpack.c.l.b16 %v5319
    %v6520 = vunpack.c.h.b16 %v5319
    %v6521 = vunpack.c.l.b16 %v5320
    %v6522 = vunpack.c.h.b16 %v5320
    %v6523 = vunpack.c.l.b16 %v5321
    %v6524 = vunpack.c.h.b16 %v5321
    %v6525 = vunpack.c.l.b16 %v5322
    %v6526 = vunpack.c.h.b16 %v5322
    %v6527 = vunpack.c.l.b16 %v5323
    %v6528 = vunpack.c.h.b16 %v5323
    %v6529 = vunpack.c.l.b16 %v5324
    %v6530 = vunpack.c.h.b16 %v5324
    %v6531 = vunpack.c.l.b16 %v5325
    %v6532 = vunpack.c.h.b16 %v5325
    %v6533 = vunpack.c.l.b16 %v5326
    %v6534 = vunpack.c.h.b16 %v5326
    %v6535 = vunpack.c.l.b16 %v5327
    %v6536 = vunpack.c.h.b16 %v5327
    %v6537 = vunpack.c.l.b16 %v5328
    %v6538 = vunpack.c.h.b16 %v5328
    %v6539 = vunpack.c.l.b16 %v5329
    %v6540 = vunpack.c.h.b16 %v5329
    %v6541 = vunpack.c.l.b16 %v5330
    %v6542 = vunpack.c.h.b16 %v5330
    %v6543 = vunpack.c.l.b16 %v5331
    %v6544 = vunpack.c.h.b16 %v5331
    %v6545 = vunpack.c.l.b16 %v5332
    %v6546 = vunpack.c.h.b16 %v5332
    %v6547 = vunpack.c.l.b16 %v5333
    %v6548 = vunpack.c.h.b16 %v5333
    %v6549 = vunpack.c.l.b16 %v5334
    %v6550 = vunpack.c.h.b16 %v5334
    %v6551 = vunpack.c.l.b16 %v5335
    %v6552 = vunpack.c.h.b16 %v5335
    %v6553 = vunpack.c.l.b16 %v5336
    %v6554 = vunpack.c.h.b16 %v5336
    %v6555 = vunpack.c.l.b16 %v5337
    %v6556 = vunpack.c.h.b16 %v5337
    %v6557 = vunpack.c.l.b16 %v5338
    %v6558 = vunpack.c.h.b16 %v5338
    %v6559 = vunpack.c.l.b16 %v5339
    %v6560 = vunpack.c.h.b16 %v5339
    %v6561 = vunpack.c.l.b16 %v5340
    %v6562 = vunpack.c.h.b16 %v5340
    %v6563 = vunpack.c.l.b16 %v5341
    %v6564 = vunpack.c.h.b16 %v5341
    %v6565 = vunpack.c.l.b16 %v5342
    %v6566 = vunpack.c.h.b16 %v5342
    %v6567 = vunpack.c.l.b16 %v5343
    %v6568 = vunpack.c.h.b16 %v5343
    %v6569 = vunpack.c.l.b16 %v5344
    %v6570 = vunpack.c.h.b16 %v5344
    %v6571 = vunpack.c.l.b16 %v5345
    %v6572 = vunpack.c.h.b16 %v5345
    %v6573 = vunpack.c.l.b16 %v5346
    %v6574 = vunpack.c.h.b16 %v5346
    %v6575 = vunpack.c.l.b16 %v5347
    %v6576 = vunpack.c.h.b16 %v5347
    %v6577 = vunpack.c.l.b16 %v5348
    %v6578 = vunpack.c.h.b16 %v5348
    %v6579 = vunpack.c.l.b16 %v5349
    %v6580 = vunpack.c.h.b16 %v5349
    %v6581 = vunpack.c.l.b16 %v5350
    %v6582 = vunpack.c.h.b16 %v5350
    %v6583 = vunpack.c.l.b16 %v5351
    %v6584 = vunpack.c.h.b16 %v5351
    %v6585 = vunpack.c.l.b16 %v5352
    %v6586 = vunpack.c.h.b16 %v5352
    %v6587 = vunpack.c.l.b16 %v5353
    %v6588 = vunpack.c.h.b16 %v5353
    %v6589 = vunpack.c.l.b16 %v5354
    %v6590 = vunpack.c.h.b16 %v5354
    %v6591 = vunpack.c.l.b16 %v5355
    %v6592 = vunpack.c.h.b16 %v5355
    %v6593 = vunpack.c.l.b16 %v5356
    %v6594 = vunpack.c.h.b16 %v5356
    %v6595 = vunpack.c.l.b16 %v5357
    %v6596 = vunpack.c.h.b16 %v5357
    %v6597 = vunpack.c.l.b16 %v5358
    %v6598 = vunpack.c.h.b16 %v5358
    %v6599 = vunpack.c.l.b16 %v5359
    %v6600 = vunpack.c.h.b16 %v5359
    %v6601 = vunpack.c.l.b16 %v5360
    %v6602 = vunpack.c.h.b16 %v5360
    %v6603 = vunpack.c.l.b16 %v5361
    %v6604 = vunpack.c.h.b16 %v5361
    %v6605 = vunpack.c.l.b16 %v5362
    %v6606 = vunpack.c.h.b16 %v5362
    %v6607 = vunpack.c.l.b16 %v5363
    %v6608 = vunpack.c.h.b16 %v5363
    %v6609 = vunpack.c.l.b16 %v5364
    %v6610 = vunpack.c.h.b16 %v5364
    %v6611 = vunpack.c.l.b16 %v5365
    %v6612 = vunpack.c.h.b16 %v5365
    %v6613 = vunpack.c.l.b16 %v5366
    %v6614 = vunpack.c.h.b16 %v5366
    %v6615 = vunpack.c.l.b16 %v5367
    %v6616 = vunpack.c.h.b16 %v5367
    %v6617 = vunpack.c.l.b16 %v5368
    %v6618 = vunpack.c.h.b16 %v5368
    %v6619 = vunpack.c.l.b16 %v5369
    %v6620 = vunpack.c.h.b16 %v5369
    %v6621 = vunpack.c.l.b16 %v5370
    %v6622 = vunpack.c.h.b16 %v5370
    %v6623 = vunpack.c.l.b16 %v5371
    %v6624 = vunpack.c.h.b16 %v5371
    %v6625 = vunpack.c.l.b16 %v5372
    %v6626 = vunpack.c.h.b16 %v5372
    %v6627 = vunpack.c.l.b16 %v5373
    %v6628 = vunpack.c.h.b16 %v5373
    %v6629 = vunpack.c.l.b16 %v5374
    %v6630 = vunpack.c.h.b16 %v5374
    %v6631 = vunpack.c.l.b16 %v5375
    %v6632 = vunpack.c.h.b16 %v5375
    %v6633 = vunpack.c.l.b16 %v5376
    %v6634 = vunpack.c.h.b16 %v5376
    %v6635 = vunpack.c.l.b16 %v5377
    %v6636 = vunpack.c.h.b16 %v5377
    %v6637 = vunpack.c.l.b16 %v5378
    %v6638 = vunpack.c.h.b16 %v5378
    %v6639 = vunpack.c.l.b16 %v5379
    %v6640 = vunpack.c.h.b16 %v5379
    %v6641 = vunpack.c.l.b16 %v5380
    %v6642 = vunpack.c.h.b16 %v5380
    %v6643 = vunpack.c.l.b16 %v5381
    %v6644 = vunpack.c.h.b16 %v5381
    %v6645 = vunpack.c.l.b16 %v5382
    %v6646 = vunpack.c.h.b16 %v5382
    %v6647 = vunpack.c.l.b16 %v5383
    %v6648 = vunpack.c.h.b16 %v5383
    %v6649 = vunpack.c.l.b16 %v5384
    %v6650 = vunpack.c.h.b16 %v5384
    %v6651 = vunpack.c.l.b16 %v5385
    %v6652 = vunpack.c.h.b16 %v5385
    %v6653 = vunpack.c.l.b16 %v5386
    %v6654 = vunpack.c.h.b16 %v5386
    %v6655 = vunpack.c.l.b16 %v5387
    %v6656 = vunpack.c.h.b16 %v5387
    %v6657 = vunpack.c.l.b16 %v5388
    %v6658 = vunpack.c.h.b16 %v5388
    %v6659 = vunpack.c.l.b16 %v5389
    %v6660 = vunpack.c.h.b16 %v5389
    %v6661 = vunpack.c.l.b16 %v5390
    %v6662 = vunpack.c.h.b16 %v5390
    %v6663 = vunpack.c.l.b16 %v5391
    %v6664 = vunpack.c.h.b16 %v5391
    %v6665 = vunpack.c.l.b16 %v5392
    %v6666 = vunpack.c.h.b16 %v5392
    %v6667 = vunpack.c.l.b16 %v5393
    %v6668 = vunpack.c.h.b16 %v5393
    %v6669 = vunpack.c.l.b16 %v5394
    %v6670 = vunpack.c.h.b16 %v5394
    %v6671 = vunpack.c.l.b16 %v5395
    %v6672 = vunpack.c.h.b16 %v5395
    %v6673 = vunpack.c.l.b16 %v5396
    %v6674 = vunpack.c.h.b16 %v5396
    %v6675 = vunpack.c.l.b16 %v5397
    %v6676 = vunpack.c.h.b16 %v5397
    %v6677 = vunpack.c.l.b16 %v5398
    %v6678 = vunpack.c.h.b16 %v5398
    %v6679 = vunpack.c.l.b16 %v5399
    %v6680 = vunpack.c.h.b16 %v5399
    %v6681 = vunpack.c.l.b16 %v5400
    %v6682 = vunpack.c.h.b16 %v5400
    %v6683 = vunpack.c.l.b16 %v5401
    %v6684 = vunpack.c.h.b16 %v5401
    %v6685 = vunpack.c.l.b16 %v5402
    %v6686 = vunpack.c.h.b16 %v5402
    %v6687 = vunpack.c.l.b16 %v5403
    %v6688 = vunpack.c.h.b16 %v5403
    %v6689 = vunpack.c.l.b16 %v5404
    %v6690 = vunpack.c.h.b16 %v5404
    %v6691 = vunpack.c.l.b16 %v5405
    %v6692 = vunpack.c.h.b16 %v5405
    %v6693 = vunpack.c.l.b16 %v5406
    %v6694 = vunpack.c.h.b16 %v5406
    %v6695 = vunpack.c.l.b16 %v5407
    %v6696 = vunpack.c.h.b16 %v5407
    %v6697 = vunpack.c.l.b16 %v5408
    %v6698 = vunpack.c.h.b16 %v5408
    %v6699 = vunpack.c.l.b16 %v5409
    %v6700 = vunpack.c.h.b16 %v5409
    %v6701 = vunpack.c.l.b16 %v5410
    %v6702 = vunpack.c.h.b16 %v5410
    %v6703 = vunpack.c.l.b16 %v5411
    %v6704 = vunpack.c.h.b16 %v5411
    %v6705 = vunpack.c.l.b16 %v5412
    %v6706 = vunpack.c.h.b16 %v5412
    %v6707 = vunpack.c.l.b16 %v5413
    %v6708 = vunpack.c.h.b16 %v5413
    %v6709 = vunpack.c.l.b16 %v5414
    %v6710 = vunpack.c.h.b16 %v5414
    %v6711 = vunpack.c.l.b16 %v5415
    %v6712 = vunpack.c.h.b16 %v5415
    %v6713 = vunpack.c.l.b16 %v5416
    %v6714 = vunpack.c.h.b16 %v5416
    %v6715 = vunpack.c.l.b16 %v5417
    %v6716 = vunpack.c.h.b16 %v5417
    %v6717 = vunpack.c.l.b16 %v5418
    %v6718 = vunpack.c.h.b16 %v5418
    %v6719 = vunpack.c.l.b16 %v5419
    %v6720 = vunpack.c.h.b16 %v5419
    %v6721 = vunpack.c.l.b16 %v5420
    %v6722 = vunpack.c.h.b16 %v5420
    %v6723 = vunpack.c.l.b16 %v5421
    %v6724 = vunpack.c.h.b16 %v5421
    %v6725 = vunpack.c.l.b16 %v5422
    %v6726 = vunpack.c.h.b16 %v5422
    %v6727 = vunpack.c.l.b16 %v5423
    %v6728 = vunpack.c.h.b16 %v5423
    %v6729 = vunpack.c.l.b16 %v5424
    %v6730 = vunpack.c.h.b16 %v5424
    %v6731 = vunpack.c.l.b16 %v5425
    %v6732 = vunpack.c.h.b16 %v5425
    %v6733 = vunpack.c.l.b16 %v5426
    %v6734 = vunpack.c.h.b16 %v5426
    %v6735 = vunpack.c.l.b16 %v5427
    %v6736 = vunpack.c.h.b16 %v5427
    %v6737 = vunpack.c.l.b16 %v5428
    %v6738 = vunpack.c.h.b16 %v5428
    %v6739 = vunpack.c.l.b16 %v5429
    %v6740 = vunpack.c.h.b16 %v5429
    %v6741 = vunpack.c.l.b16 %v5430
    %v6742 = vunpack.c.h.b16 %v5430
    %v6743 = vunpack.c.l.b16 %v5431
    %v6744 = vunpack.c.h.b16 %v5431
    %v6745 = vunpack.c.l.b16 %v5432
    %v6746 = vunpack.c.h.b16 %v5432
    %v6747 = vunpack.c.l.b16 %v5433
    %v6748 = vunpack.c.h.b16 %v5433
    %v6749 = vunpack.c.l.b16 %v5434
    %v6750 = vunpack.c.h.b16 %v5434
    %v6751 = vunpack.c.l.b16 %v5435
    %v6752 = vunpack.c.h.b16 %v5435
    %v6753 = vunpack.c.l.b16 %v5436
    %v6754 = vunpack.c.h.b16 %v5436
    %v6755 = vunpack.c.l.b16 %v5437
    %v6756 = vunpack.c.h.b16 %v5437
    %v6757 = vunpack.c.l.b16 %v5438
    %v6758 = vunpack.c.h.b16 %v5438
    %v6759 = vunpack.c.l.b16 %v5439
    %v6760 = vunpack.c.h.b16 %v5439
    %v6761 = vunpack.c.l.b16 %v5440
    %v6762 = vunpack.c.h.b16 %v5440
    %v6763 = vunpack.c.l.b16 %v5441
    %v6764 = vunpack.c.h.b16 %v5441
    %v6765 = vunpack.c.l.b16 %v5442
    %v6766 = vunpack.c.h.b16 %v5442
    %v6767 = vunpack.c.l.b16 %v5443
    %v6768 = vunpack.c.h.b16 %v5443
    %v6769 = vunpack.c.l.b16 %v5444
    %v6770 = vunpack.c.h.b16 %v5444
    %v6771 = vunpack.c.l.b16 %v5445
    %v6772 = vunpack.c.h.b16 %v5445
    %v6773 = vunpack.c.l.b16 %v5446
    %v6774 = vunpack.c.h.b16 %v5446
    %v6775 = vunpack.c.l.b16 %v5447
    %v6776 = vunpack.c.h.b16 %v5447
    %v6777 = vunpack.c.l.b16 %v5448
    %v6778 = vunpack.c.h.b16 %v5448
    %v6779 = vunpack.c.l.b16 %v5449
    %v6780 = vunpack.c.h.b16 %v5449
    %v6781 = vunpack.c.l.b16 %v5450
    %v6782 = vunpack.c.h.b16 %v5450
    %v6783 = vunpack.c.l.b16 %v5451
    %v6784 = vunpack.c.h.b16 %v5451
    %v6785 = vunpack.c.l.b16 %v5452
    %v6786 = vunpack.c.h.b16 %v5452
    %v6787 = vunpack.c.l.b16 %v5453
    %v6788 = vunpack.c.h.b16 %v5453
    %v6789 = vunpack.c.l.b16 %v5454
    %v6790 = vunpack.c.h.b16 %v5454
    %v6791 = vunpack.c.l.b16 %v5455
    %v6792 = vunpack.c.h.b16 %v5455
    %v6793 = vunpack.c.l.b16 %v5456
    %v6794 = vunpack.c.h.b16 %v5456
    %v6795 = vunpack.c.l.b16 %v5457
    %v6796 = vunpack.c.h.b16 %v5457
    %v6797 = vunpack.c.l.b16 %v5458
    %v6798 = vunpack.c.h.b16 %v5458
    %v6799 = vunpack.c.l.b16 %v5459
    %v6800 = vunpack.c.h.b16 %v5459
    %v6801 = vunpack.c.l.b16 %v5460
    %v6802 = vunpack.c.h.b16 %v5460
    %v6803 = vunpack.c.l.b16 %v5461
    %v6804 = vunpack.c.h.b16 %v5461
    %v6805 = vunpack.c.l.b16 %v5462
    %v6806 = vunpack.c.h.b16 %v5462
    %v6807 = vunpack.c.l.b16 %v5463
    %v6808 = vunpack.c.h.b16 %v5463
    %v6809 = vunpack.c.l.b16 %v5464
    %v6810 = vunpack.c.h.b16 %v5464
    %v6811 = vunpack.c.l.b16 %v5465
    %v6812 = vunpack.c.h.b16 %v5465
    %v6813 = vunpack.c.l.b16 %v5466
    %v6814 = vunpack.c.h.b16 %v5466
    %v6815 = vunpack.c.l.b16 %v5467
    %v6816 = vunpack.c.h.b16 %v5467
    %v6817 = vunpack.c.l.b16 %v5468
    %v6818 = vunpack.c.h.b16 %v5468
    %v6819 = vunpack.c.l.b16 %v5469
    %v6820 = vunpack.c.h.b16 %v5469
    %v6821 = vunpack.c.l.b16 %v5470
    %v6822 = vunpack.c.h.b16 %v5470
    %v6823 = vunpack.c.l.b16 %v5471
    %v6824 = vunpack.c.h.b16 %v5471
    %v6825 = vunpack.c.l.b16 %v5472
    %v6826 = vunpack.c.h.b16 %v5472
    %v6827 = vunpack.c.l.b16 %v5473
    %v6828 = vunpack.c.h.b16 %v5473
    %v6829 = vunpack.c.l.b16 %v5474
    %v6830 = vunpack.c.h.b16 %v5474
    %v6831 = vunpack.c.l.b16 %v5475
    %v6832 = vunpack.c.h.b16 %v5475
    %v6833 = vunpack.c.l.b16 %v5476
    %v6834 = vunpack.c.h.b16 %v5476
    %v6835 = vunpack.c.l.b16 %v5477
    %v6836 = vunpack.c.h.b16 %v5477
    %v6837 = vunpack.c.l.b16 %v5478
    %v6838 = vunpack.c.h.b16 %v5478
    %v6839 = vunpack.c.l.b16 %v5479
    %v6840 = vunpack.c.h.b16 %v5479
    %v6841 = vunpack.c.l.b16 %v5480
    %v6842 = vunpack.c.h.b16 %v5480
    %v6843 = vunpack.c.l.b16 %v5481
    %v6844 = vunpack.c.h.b16 %v5481
    %v6845 = vunpack.c.l.b16 %v5482
    %v6846 = vunpack.c.h.b16 %v5482
    %v6847 = vunpack.c.l.b16 %v5483
    %v6848 = vunpack.c.h.b16 %v5483
    %v6849 = vunpack.c.l.b16 %v5484
    %v6850 = vunpack.c.h.b16 %v5484
    %v6851 = vunpack.c.l.b16 %v5485
    %v6852 = vunpack.c.h.b16 %v5485
    %v6853 = vunpack.c.l.b16 %v5486
    %v6854 = vunpack.c.h.b16 %v5486
    %v6855 = vunpack.c.l.b16 %v5487
    %v6856 = vunpack.c.h.b16 %v5487
    %v6857 = vunpack.c.l.b16 %v5488
    %v6858 = vunpack.c.h.b16 %v5488
    %v6859 = vunpack.c.l.b16 %v5489
    %v6860 = vunpack.c.h.b16 %v5489
    %v6861 = vunpack.c.l.b16 %v5490
    %v6862 = vunpack.c.h.b16 %v5490
    %v6863 = vunpack.c.l.b16 %v5491
    %v6864 = vunpack.c.h.b16 %v5491
    %v6865 = vunpack.c.l.b16 %v5492
    %v6866 = vunpack.c.h.b16 %v5492
    %v6867 = vunpack.c.l.b16 %v5493
    %v6868 = vunpack.c.h.b16 %v5493
    %v6869 = vunpack.c.l.b16 %v5494
    %v6870 = vunpack.c.h.b16 %v5494
    %v6871 = vunpack.c.l.b16 %v5495
    %v6872 = vunpack.c.h.b16 %v5495
    %v6873 = vunpack.c.l.b16 %v5496
    %v6874 = vunpack.c.h.b16 %v5496
    %v6875 = vunpack.c.l.b16 %v5497
    %v6876 = vunpack.c.h.b16 %v5497
    %v6877 = vunpack.c.l.b16 %v5498
    %v6878 = vunpack.c.h.b16 %v5498
    %v6879 = vunpack.c.l.b16 %v5499
    %v6880 = vunpack.c.h.b16 %v5499
    %v6881 = vunpack.c.l.b16 %v5500
    %v6882 = vunpack.c.h.b16 %v5500
    %v6883 = vunpack.c.l.b16 %v5501
    %v6884 = vunpack.c.h.b16 %v5501
    %v6885 = vunpack.c.l.b16 %v5502
    %v6886 = vunpack.c.h.b16 %v5502
    %v6887 = vunpack.c.l.b16 %v5503
    %v6888 = vunpack.c.h.b16 %v5503
    %v6889 = vunpack.c.l.b16 %v5504
    %v6890 = vunpack.c.h.b16 %v5504
    %v6891 = vunpack.c.l.b16 %v5505
    %v6892 = vunpack.c.h.b16 %v5505
    %v6893 = vunpack.c.l.b16 %v5506
    %v6894 = vunpack.c.h.b16 %v5506
    %v6895 = vunpack.c.l.b16 %v5507
    %v6896 = vunpack.c.h.b16 %v5507
    %v6897 = vunpack.c.l.b16 %v5508
    %v6898 = vunpack.c.h.b16 %v5508
    %v6899 = vunpack.c.l.b16 %v5509
    %v6900 = vunpack.c.h.b16 %v5509
    %v6901 = vunpack.c.l.b16 %v5510
    %v6902 = vunpack.c.h.b16 %v5510
    %v6903 = vunpack.c.l.b16 %v5511
    %v6904 = vunpack.c.h.b16 %v5511
    %v6905 = vunpack.c.l.b16 %v5512
    %v6906 = vunpack.c.h.b16 %v5512
    %v6907 = vunpack.c.l.b16 %v5513
    %v6908 = vunpack.c.h.b16 %v5513
    %v6909 = vunpack.c.l.b16 %v5514
    %v6910 = vunpack.c.h.b16 %v5514
    %v6911 = vunpack.c.l.b16 %v5515
    %v6912 = vunpack.c.h.b16 %v5515
    %v6913 = vunpack.c.l.b16 %v5516
    %v6914 = vunpack.c.h.b16 %v5516
    %v6915 = vunpack.c.l.b16 %v5517
    %v6916 = vunpack.c.h.b16 %v5517
    %v6917 = vunpack.c.l.b16 %v5518
    %v6918 = vunpack.c.h.b16 %v5518
    %v6919 = vunpack.c.l.b16 %v5519
    %v6920 = vunpack.c.h.b16 %v5519
    %v6921 = vunpack.c.l.b16 %v5520
    %v6922 = vunpack.c.h.b16 %v5520
    %v6923 = vunpack.c.l.b16 %v5521
    %v6924 = vunpack.c.h.b16 %v5521
    %v6925 = vunpack.c.l.b16 %v5522
    %v6926 = vunpack.c.h.b16 %v5522
    %v6927 = vunpack.c.l.b16 %v5523
    %v6928 = vunpack.c.h.b16 %v5523
    %v6929 = vunpack.c.l.b16 %v5524
    %v6930 = vunpack.c.h.b16 %v5524
    %v6931 = vunpack.c.l.b16 %v5525
    %v6932 = vunpack.c.h.b16 %v5525
    %v6933 = vunpack.c.l.b16 %v5526
    %v6934 = vunpack.c.h.b16 %v5526
    %v6935 = vunpack.c.l.b16 %v5527
    %v6936 = vunpack.c.h.b16 %v5527
    %v6937 = vunpack.c.l.b16 %v5528
    %v6938 = vunpack.c.h.b16 %v5528
    %v6939 = vunpack.c.l.b16 %v5529
    %v6940 = vunpack.c.h.b16 %v5529
    %v6941 = vunpack.c.l.b16 %v5530
    %v6942 = vunpack.c.h.b16 %v5530
    %v6943 = vunpack.c.l.b16 %v5531
    %v6944 = vunpack.c.h.b16 %v5531
    %v6945 = vunpack.c.l.b16 %v5532
    %v6946 = vunpack.c.h.b16 %v5532
    %v6947 = vunpack.c.l.b16 %v5533
    %v6948 = vunpack.c.h.b16 %v5533
    %v6949 = vunpack.c.l.b16 %v5534
    %v6950 = vunpack.c.h.b16 %v5534
    %v6951 = vunpack.c.l.b16 %v5535
    %v6952 = vunpack.c.h.b16 %v5535
    %v6953 = vunpack.c.l.b16 %v5536
    %v6954 = vunpack.c.h.b16 %v5536
    %v6955 = vunpack.c.l.b16 %v5537
    %v6956 = vunpack.c.h.b16 %v5537
    %v6957 = vunpack.c.l.b16 %v5538
    %v6958 = vunpack.c.h.b16 %v5538
    %v6959 = vunpack.c.l.b16 %v5539
    %v6960 = vunpack.c.h.b16 %v5539
    %v6961 = vunpack.c.l.b16 %v5540
    %v6962 = vunpack.c.h.b16 %v5540
    %v6963 = vunpack.c.l.b16 %v5541
    %v6964 = vunpack.c.h.b16 %v5541
    %v6965 = vunpack.c.l.b16 %v5542
    %v6966 = vunpack.c.h.b16 %v5542
    %v6967 = vunpack.c.l.b16 %v5543
    %v6968 = vunpack.c.h.b16 %v5543
    %v6969 = vunpack.c.l.b16 %v5544
    %v6970 = vunpack.c.h.b16 %v5544
    %v6971 = vunpack.c.l.b16 %v5545
    %v6972 = vunpack.c.h.b16 %v5545
    %v6973 = vunpack.c.l.b16 %v5546
    %v6974 = vunpack.c.h.b16 %v5546
    %v6975 = vunpack.c.l.b16 %v5547
    %v6976 = vunpack.c.h.b16 %v5547
    %v6977 = vunpack.c.l.b16 %v5548
    %v6978 = vunpack.c.h.b16 %v5548
    %v6979 = vunpack.c.l.b16 %v5549
    %v6980 = vunpack.c.h.b16 %v5549
    %v6981 = vunpack.c.l.b16 %v5550
    %v6982 = vunpack.c.h.b16 %v5550
    %v6983 = vunpack.c.l.b16 %v5551
    %v6984 = vunpack.c.h.b16 %v5551
    %v6985 = vunpack.c.l.b16 %v5552
    %v6986 = vunpack.c.h.b16 %v5552
    %v6987 = vunpack.c.l.b16 %v5553
    %v6988 = vunpack.c.h.b16 %v5553
    %v6989 = vunpack.c.l.b16 %v5554
    %v6990 = vunpack.c.h.b16 %v5554
    %v6991 = vunpack.c.l.b16 %v5555
    %v6992 = vunpack.c.h.b16 %v5555
    %v6993 = vunpack.c.l.b16 %v5556
    %v6994 = vunpack.c.h.b16 %v5556
    %v6995 = vunpack.c.l.b16 %v5557
    %v6996 = vunpack.c.h.b16 %v5557
    %v6997 = vunpack.c.l.b16 %v5558
    %v6998 = vunpack.c.h.b16 %v5558
    %v6999 = vunpack.c.l.b16 %v5559
    %v7000 = vunpack.c.h.b16 %v5559
    %v7001 = vunpack.c.l.b16 %v5560
    %v7002 = vunpack.c.h.b16 %v5560
    %v7003 = vunpack.c.l.b16 %v5561
    %v7004 = vunpack.c.h.b16 %v5561
    %v7005 = vunpack.c.l.b16 %v5562
    %v7006 = vunpack.c.h.b16 %v5562
    %v7007 = vunpack.c.l.b16 %v5563
    %v7008 = vunpack.c.h.b16 %v5563
    %v7009 = vunpack.c.l.b16 %v5564
    %v7010 = vunpack.c.h.b16 %v5564
    %v7011 = vunpack.c.l.b16 %v5565
    %v7012 = vunpack.c.h.b16 %v5565
    %v7013 = vunpack.c.l.b16 %v5566
    %v7014 = vunpack.c.h.b16 %v5566
    %v7015 = vunpack.c.l.b16 %v5567
    %v7016 = vunpack.c.h.b16 %v5567
    %v7017 = vunpack.c.l.b16 %v5568
    %v7018 = vunpack.c.h.b16 %v5568
    %v7019 = vunpack.c.l.b16 %v5569
    %v7020 = vunpack.c.h.b16 %v5569
    %v7021 = vunpack.c.l.b16 %v5570
    %v7022 = vunpack.c.h.b16 %v5570
    %v7023 = vunpack.c.l.b16 %v5571
    %v7024 = vunpack.c.h.b16 %v5571
    %v7025 = vunpack.c.l.b16 %v5572
    %v7026 = vunpack.c.h.b16 %v5572
    %v7027 = vunpack.c.l.b16 %v5573
    %v7028 = vunpack.c.h.b16 %v5573
    %v7029 = vunpack.c.l.b16 %v5574
    %v7030 = vunpack.c.h.b16 %v5574
    %v7031 = vunpack.c.l.b16 %v5575
    %v7032 = vunpack.c.h.b16 %v5575
    %v7033 = vunpack.c.l.b16 %v5576
    %v7034 = vunpack.c.h.b16 %v5576
    %v7035 = vunpack.c.l.b16 %v5577
    %v7036 = vunpack.c.h.b16 %v5577
    %v7037 = vunpack.c.l.b16 %v5578
    %v7038 = vunpack.c.h.b16 %v5578
    %v7039 = vunpack.c.l.b16 %v5579
    %v7040 = vunpack.c.h.b16 %v5579
    %v7041 = vunpack.c.l.b16 %v5580
    %v7042 = vunpack.c.h.b16 %v5580
    %v7043 = vunpack.c.l.b16 %v5581
    %v7044 = vunpack.c.h.b16 %v5581
    %v7045 = vunpack.c.l.b16 %v5582
    %v7046 = vunpack.c.h.b16 %v5582
    %v7047 = vunpack.c.l.b16 %v5583
    %v7048 = vunpack.c.h.b16 %v5583
    %v7049 = vunpack.c.l.b16 %v5584
    %v7050 = vunpack.c.h.b16 %v5584
    %v7051 = vunpack.c.l.b16 %v5585
    %v7052 = vunpack.c.h.b16 %v5585
    %v7053 = vunpack.c.l.b16 %v5586
    %v7054 = vunpack.c.h.b16 %v5586
    %v7055 = vunpack.c.l.b16 %v5587
    %v7056 = vunpack.c.h.b16 %v5587
    %v7057 = vunpack.c.l.b16 %v5588
    %v7058 = vunpack.c.h.b16 %v5588
    %v7059 = vunpack.c.l.b16 %v5589
    %v7060 = vunpack.c.h.b16 %v5589
    %v7061 = vunpack.c.l.b16 %v5590
    %v7062 = vunpack.c.h.b16 %v5590
    %v7063 = vunpack.c.l.b16 %v5591
    %v7064 = vunpack.c.h.b16 %v5591
    %v7065 = vunpack.c.l.b16 %v5592
    %v7066 = vunpack.c.h.b16 %v5592
    %v7067 = vunpack.c.l.b16 %v5593
    %v7068 = vunpack.c.h.b16 %v5593
    %v7069 = vunpack.c.l.b16 %v5594
    %v7070 = vunpack.c.h.b16 %v5594
    %v7071 = vunpack.c.l.b16 %v5595
    %v7072 = vunpack.c.h.b16 %v5595
    %v7073 = vunpack.c.l.b16 %v5596
    %v7074 = vunpack.c.h.b16 %v5596
    %v7075 = vunpack.c.l.b16 %v5597
    %v7076 = vunpack.c.h.b16 %v5597
    %v7077 = vunpack.c.l.b16 %v5598
    %v7078 = vunpack.c.h.b16 %v5598
    %v7079 = vunpack.c.l.b16 %v5599
    %v7080 = vunpack.c.h.b16 %v5599
    %v7081 = vunpack.c.l.b16 %v5600
    %v7082 = vunpack.c.h.b16 %v5600
    %v7083 = vunpack.c.l.b16 %v5601
    %v7084 = vunpack.c.h.b16 %v5601
    %v7085 = vunpack.c.l.b16 %v5602
    %v7086 = vunpack.c.h.b16 %v5602
    %v7087 = vunpack.c.l.b16 %v5603
    %v7088 = vunpack.c.h.b16 %v5603
    %v7089 = vunpack.c.l.b16 %v5604
    %v7090 = vunpack.c.h.b16 %v5604
    %v7091 = vunpack.c.l.b16 %v5605
    %v7092 = vunpack.c.h.b16 %v5605
    %v7093 = vunpack.c.l.b16 %v5606
    %v7094 = vunpack.c.h.b16 %v5606
    %v7095 = vunpack.c.l.b16 %v5607
    %v7096 = vunpack.c.h.b16 %v5607
    %v7097 = vunpack.c.l.b16 %v5608
    %v7098 = vunpack.c.h.b16 %v5608
    %v7099 = vunpack.c.l.b16 %v5609
    %v7100 = vunpack.c.h.b16 %v5609
    %v7101 = vunpack.c.l.b16 %v5610
    %v7102 = vunpack.c.h.b16 %v5610
    %v7103 = vunpack.c.l.b16 %v5611
    %v7104 = vunpack.c.h.b16 %v5611
    %v7105 = vunpack.c.l.b16 %v5612
    %v7106 = vunpack.c.h.b16 %v5612
    %v7107 = vunpack.c.l.b16 %v5613
    %v7108 = vunpack.c.h.b16 %v5613
    %v7109 = vunpack.c.l.b16 %v5614
    %v7110 = vunpack.c.h.b16 %v5614
    %v7111 = vunpack.c.l.b16 %v5615
    %v7112 = vunpack.c.h.b16 %v5615
    %v7113 = vunpack.c.l.b16 %v5616
    %v7114 = vunpack.c.h.b16 %v5616
    %v7115 = vunpack.c.l.b16 %v5617
    %v7116 = vunpack.c.h.b16 %v5617
    %v7117 = vunpack.c.l.b16 %v5618
    %v7118 = vunpack.c.h.b16 %v5618
    %v7119 = vunpack.c.l.b16 %v5619
    %v7120 = vunpack.c.h.b16 %v5619
    %v7121 = vunpack.c.l.b16 %v5620
    %v7122 = vunpack.c.h.b16 %v5620
    %v7123 = vunpack.c.l.b16 %v5621
    %v7124 = vunpack.c.h.b16 %v5621
    %v7125 = vunpack.c.l.b16 %v5622
    %v7126 = vunpack.c.h.b16 %v5622
    %v7127 = vunpack.c.l.b16 %v5623
    %v7128 = vunpack.c.h.b16 %v5623
    %v7129 = vunpack.c.l.b16 %v5624
    %v7130 = vunpack.c.h.b16 %v5624
    %v7131 = vunpack.c.l.b16 %v5625
    %v7132 = vunpack.c.h.b16 %v5625
    %v7133 = vunpack.c.l.b16 %v5626
    %v7134 = vunpack.c.h.b16 %v5626
    %v7135 = vunpack.c.l.b16 %v5627
    %v7136 = vunpack.c.h.b16 %v5627
    %v7137 = vunpack.c.l.b16 %v5628
    %v7138 = vunpack.c.h.b16 %v5628
    %v7139 = vunpack.c.l.b16 %v5629
    %v7140 = vunpack.c.h.b16 %v5629
    %v7141 = vunpack.c.l.b16 %v5630
    %v7142 = vunpack.c.h.b16 %v5630
    %v7143 = vunpack.c.l.b16 %v5631
    %v7144 = vunpack.c.h.b16 %v5631
    %v7145 = vunpack.c.l.b16 %v5632
    %v7146 = vunpack.c.h.b16 %v5632
    %v7147 = vunpack.c.l.b16 %v5633
    %v7148 = vunpack.c.h.b16 %v5633
    %v7149 = vunpack.c.l.b16 %v5634
    %v7150 = vunpack.c.h.b16 %v5634
    %v7151 = vunpack.c.l.b16 %v5635
    %v7152 = vunpack.c.h.b16 %v5635
    %v7153 = vunpack.c.l.b16 %v5636
    %v7154 = vunpack.c.h.b16 %v5636
    %v7155 = vunpack.c.l.b16 %v5637
    %v7156 = vunpack.c.h.b16 %v5637
    %v7157 = vunpack.c.l.b16 %v5638
    %v7158 = vunpack.c.h.b16 %v5638
    %v7159 = vunpack.c.l.b16 %v5639
    %v7160 = vunpack.c.h.b16 %v5639
    %v7161 = vunpack.c.l.b16 %v5640
    %v7162 = vunpack.c.h.b16 %v5640
    %v7163 = vunpack.c.l.b16 %v5641
    %v7164 = vunpack.c.h.b16 %v5641
    %v7165 = vunpack.c.l.b16 %v5642
    %v7166 = vunpack.c.h.b16 %v5642
    %v7167 = vunpack.c.l.b16 %v5643
    %v7168 = vunpack.c.h.b16 %v5643
    %v7169 = vunpack.c.l.b16 %v5644
    %v7170 = vunpack.c.h.b16 %v5644
    %v7171 = vunpack.c.l.b16 %v5645
    %v7172 = vunpack.c.h.b16 %v5645
    %v7173 = vunpack.c.l.b16 %v5646
    %v7174 = vunpack.c.h.b16 %v5646
    %v7175 = vunpack.c.l.b16 %v5647
    %v7176 = vunpack.c.h.b16 %v5647
    %v7177 = vunpack.c.l.b16 %v5648
    %v7178 = vunpack.c.h.b16 %v5648
    %v7179 = vunpack.c.l.b16 %v5649
    %v7180 = vunpack.c.h.b16 %v5649
    %v7181 = vunpack.c.l.b16 %v5650
    %v7182 = vunpack.c.h.b16 %v5650
    %v7183 = vunpack.c.l.b16 %v5651
    %v7184 = vunpack.c.h.b16 %v5651
    %v7185 = vunpack.c.l.b16 %v5652
    %v7186 = vunpack.c.h.b16 %v5652
    %v7187 = vunpack.c.l.b16 %v5653
    %v7188 = vunpack.c.h.b16 %v5653
    %v7189 = vunpack.c.l.b16 %v5654
    %v7190 = vunpack.c.h.b16 %v5654
    %v7191 = vunpack.c.l.b16 %v5655
    %v7192 = vunpack.c.h.b16 %v5655
    %v7193 = vunpack.c.l.b16 %v5656
    %v7194 = vunpack.c.h.b16 %v5656
    %v7195 = vunpack.c.l.b16 %v5657
    %v7196 = vunpack.c.h.b16 %v5657
    %v7197 = vunpack.c.l.b16 %v5658
    %v7198 = vunpack.c.h.b16 %v5658
    %v7199 = vunpack.c.l.b16 %v5659
    %v7200 = vunpack.c.h.b16 %v5659
    %v7201 = vunpack.c.l.b16 %v5660
    %v7202 = vunpack.c.h.b16 %v5660
    %v7203 = vunpack.c.l.b16 %v5661
    %v7204 = vunpack.c.h.b16 %v5661
    %v7205 = vunpack.c.l.b16 %v5662
    %v7206 = vunpack.c.h.b16 %v5662
    %v7207 = vunpack.c.l.b16 %v5663
    %v7208 = vunpack.c.h.b16 %v5663
    %v7209 = vunpack.c.l.b16 %v5664
    %v7210 = vunpack.c.h.b16 %v5664
    %v7211 = vunpack.c.l.b16 %v5665
    %v7212 = vunpack.c.h.b16 %v5665
    %v7213 = vunpack.c.l.b16 %v5666
    %v7214 = vunpack.c.h.b16 %v5666
    %v7215 = vunpack.c.l.b16 %v5667
    %v7216 = vunpack.c.h.b16 %v5667
    %v7217 = vunpack.c.l.b16 %v5668
    %v7218 = vunpack.c.h.b16 %v5668
    %v7219 = vunpack.c.l.b16 %v5669
    %v7220 = vunpack.c.h.b16 %v5669
    %v7221 = vunpack.c.l.b16 %v5670
    %v7222 = vunpack.c.h.b16 %v5670
    %v7223 = vunpack.c.l.b16 %v5671
    %v7224 = vunpack.c.h.b16 %v5671
    %v7225 = vunpack.c.l.b16 %v5672
    %v7226 = vunpack.c.h.b16 %v5672
    %v7227 = vunpack.c.l.b16 %v5673
    %v7228 = vunpack.c.h.b16 %v5673
    %v7229 = vunpack.c.l.b16 %v5674
    %v7230 = vunpack.c.h.b16 %v5674
    %v7231 = vunpack.c.l.b16 %v5675
    %v7232 = vunpack.c.h.b16 %v5675
    %v7233 = vunpack.c.l.b16 %v5676
    %v7234 = vunpack.c.h.b16 %v5676
    %v7235 = vunpack.c.l.b16 %v5677
    %v7236 = vunpack.c.h.b16 %v5677
    %v7237 = vunpack.c.l.b16 %v5678
    %v7238 = vunpack.c.h.b16 %v5678
    %v7239 = vunpack.c.l.b16 %v5679
    %v7240 = vunpack.c.h.b16 %v5679
    %v7241 = vunpack.c.l.b16 %v5680
    %v7242 = vunpack.c.h.b16 %v5680
    %v7243 = vunpack.c.l.b16 %v5681
    %v7244 = vunpack.c.h.b16 %v5681
    %v7245 = vunpack.c.l.b16 %v5682
    %v7246 = vunpack.c.h.b16 %v5682
    %v7247 = vunpack.c.l.b16 %v5683
    %v7248 = vunpack.c.h.b16 %v5683
    %v7249 = vunpack.c.l.b16 %v5684
    %v7250 = vunpack.c.h.b16 %v5684
    %v7251 = vunpack.c.l.b16 %v5685
    %v7252 = vunpack.c.h.b16 %v5685
    %v7253 = vunpack.c.l.b16 %v5686
    %v7254 = vunpack.c.h.b16 %v5686
    %v7255 = vunpack.c.l.b16 %v5687
    %v7256 = vunpack.c.h.b16 %v5687
    %v7257 = vunpack.c.l.b16 %v5688
    %v7258 = vunpack.c.h.b16 %v5688
    %v7259 = vunpack.c.l.b16 %v5689
    %v7260 = vunpack.c.h.b16 %v5689
    %v7261 = vunpack.c.l.b16 %v5690
    %v7262 = vunpack.c.h.b16 %v5690
    %v7263 = vunpack.c.l.b16 %v5691
    %v7264 = vunpack.c.h.b16 %v5691
    %v7265 = vunpack.c.l.b16 %v5692
    %v7266 = vunpack.c.h.b16 %v5692
    %v7267 = vunpack.c.l.b16 %v5693
    %v7268 = vunpack.c.h.b16 %v5693
    %v7269 = vunpack.c.l.b16 %v5694
    %v7270 = vunpack.c.h.b16 %v5694
    %v7271 = vunpack.c.l.b16 %v5695
    %v7272 = vunpack.c.h.b16 %v5695
    %v7273 = vunpack.c.l.b16 %v5696
    %v7274 = vunpack.c.h.b16 %v5696
    %v7275 = vunpack.c.l.b16 %v5697
    %v7276 = vunpack.c.h.b16 %v5697
    %v7277 = vunpack.c.l.b16 %v5698
    %v7278 = vunpack.c.h.b16 %v5698
    %v7279 = vunpack.c.l.b16 %v5699
    %v7280 = vunpack.c.h.b16 %v5699
    %v7281 = vunpack.c.l.b16 %v5700
    %v7282 = vunpack.c.h.b16 %v5700
    %v7283 = vunpack.c.l.b16 %v5701
    %v7284 = vunpack.c.h.b16 %v5701
    %v7285 = vunpack.c.l.b16 %v5702
    %v7286 = vunpack.c.h.b16 %v5702
    %v7287 = vunpack.c.l.b16 %v5703
    %v7288 = vunpack.c.h.b16 %v5703
    %v7289 = vunpack.c.l.b16 %v5704
    %v7290 = vunpack.c.h.b16 %v5704
    %v7291 = vunpack.c.l.b16 %v5705
    %v7292 = vunpack.c.h.b16 %v5705
    %v7293 = vunpack.c.l.b16 %v5706
    %v7294 = vunpack.c.h.b16 %v5706
    %v7295 = vunpack.c.l.b16 %v5707
    %v7296 = vunpack.c.h.b16 %v5707
    %v7297 = vunpack.c.l.b16 %v5708
    %v7298 = vunpack.c.h.b16 %v5708
    %v7299 = vunpack.c.l.b16 %v5709
    %v7300 = vunpack.c.h.b16 %v5709
    %v7301 = vunpack.c.l.b16 %v5710
    %v7302 = vunpack.c.h.b16 %v5710
    %v7303 = vunpack.c.l.b16 %v5711
    %v7304 = vunpack.c.h.b16 %v5711
    %v7305 = vunpack.c.l.b16 %v5712
    %v7306 = vunpack.c.h.b16 %v5712
    %v7307 = vunpack.c.l.b16 %v5713
    %v7308 = vunpack.c.h.b16 %v5713
    %v7309 = vunpack.c.l.b16 %v5714
    %v7310 = vunpack.c.h.b16 %v5714
    %v7311 = vunpack.c.l.b16 %v5715
    %v7312 = vunpack.c.h.b16 %v5715
    %v7313 = vunpack.c.l.b16 %v5716
    %v7314 = vunpack.c.h.b16 %v5716
    %v7315 = vunpack.c.l.b16 %v5717
    %v7316 = vunpack.c.h.b16 %v5717
    %v7317 = vunpack.c.l.b16 %v5718
    %v7318 = vunpack.c.h.b16 %v5718
    %v7319 = vunpack.c.l.b16 %v5719
    %v7320 = vunpack.c.h.b16 %v5719
    %v7321 = vunpack.c.l.b16 %v5720
    %v7322 = vunpack.c.h.b16 %v5720
    %v7323 = vunpack.c.l.b16 %v5721
    %v7324 = vunpack.c.h.b16 %v5721
    %v7325 = vunpack.c.l.b16 %v5722
    %v7326 = vunpack.c.h.b16 %v5722
    %v7327 = vunpack.c.l.b16 %v5723
    %v7328 = vunpack.c.h.b16 %v5723
    %v7329 = vunpack.c.l.b16 %v5724
    %v7330 = vunpack.c.h.b16 %v5724
    %v7331 = vunpack.c.l.b16 %v5725
    %v7332 = vunpack.c.h.b16 %v5725
    %v7333 = vunpack.c.l.b16 %v5726
    %v7334 = vunpack.c.h.b16 %v5726
    %v7335 = vunpack.c.l.b16 %v5727
    %v7336 = vunpack.c.h.b16 %v5727
    %v7337 = vunpack.c.l.b16 %v5728
    %v7338 = vunpack.c.h.b16 %v5728
    %v7339 = vunpack.c.l.b16 %v5729
    %v7340 = vunpack.c.h.b16 %v5729
    %v7341 = vunpack.c.l.b16 %v5730
    %v7342 = vunpack.c.h.b16 %v5730
    %v7343 = vunpack.c.l.b16 %v5731
    %v7344 = vunpack.c.h.b16 %v5731
    %v7345 = vunpack.c.l.b16 %v5732
    %v7346 = vunpack.c.h.b16 %v5732
    %v7347 = vunpack.c.l.b16 %v5733
    %v7348 = vunpack.c.h.b16 %v5733
    %v7349 = vunpack.c.l.b16 %v5734
    %v7350 = vunpack.c.h.b16 %v5734
    %v7351 = vunpack.c.l.b16 %v5735
    %v7352 = vunpack.c.h.b16 %v5735
    %v7353 = vunpack.c.l.b16 %v5736
    %v7354 = vunpack.c.h.b16 %v5736
    %v7355 = vunpack.c.l.b16 %v5737
    %v7356 = vunpack.c.h.b16 %v5737
    %v7357 = vunpack.c.l.b16 %v5738
    %v7358 = vunpack.c.h.b16 %v5738
    %v7359 = vunpack.c.l.b16 %v5739
    %v7360 = vunpack.c.h.b16 %v5739
    %v7361 = vunpack.c.l.b16 %v5740
    %v7362 = vunpack.c.h.b16 %v5740
    %v7363 = vunpack.c.l.b16 %v5741
    %v7364 = vunpack.c.h.b16 %v5741
    %v7365 = vunpack.c.l.b16 %v5742
    %v7366 = vunpack.c.h.b16 %v5742
    %v7367 = vunpack.c.l.b16 %v5743
    %v7368 = vunpack.c.h.b16 %v5743
    %v7369 = vunpack.c.l.b16 %v5744
    %v7370 = vunpack.c.h.b16 %v5744
    %v7371 = vunpack.c.l.b16 %v5745
    %v7372 = vunpack.c.h.b16 %v5745
    %v7373 = vunpack.c.l.b16 %v5746
    %v7374 = vunpack.c.h.b16 %v5746
    %v7375 = vunpack.c.l.b16 %v5747
    %v7376 = vunpack.c.h.b16 %v5747
    %v7377 = vunpack.c.l.b16 %v5748
    %v7378 = vunpack.c.h.b16 %v5748
    %v7379 = vunpack.c.l.b16 %v5749
    %v7380 = vunpack.c.h.b16 %v5749
    %v7381 = vunpack.c.l.b16 %v5750
    %v7382 = vunpack.c.h.b16 %v5750
    %v7383 = vunpack.c.l.b16 %v5751
    %v7384 = vunpack.c.h.b16 %v5751
    %v7385 = vunpack.c.l.b16 %v5752
    %v7386 = vunpack.c.h.b16 %v5752
    %v7387 = vunpack.c.l.b16 %v5753
    %v7388 = vunpack.c.h.b16 %v5753
    %v7389 = vunpack.c.l.b16 %v5754
    %v7390 = vunpack.c.h.b16 %v5754
    %v7391 = vunpack.c.l.b16 %v5755
    %v7392 = vunpack.c.h.b16 %v5755
    %v7393 = vunpack.c.l.b16 %v5756
    %v7394 = vunpack.c.h.b16 %v5756
    %v7395 = vunpack.c.l.b16 %v5757
    %v7396 = vunpack.c.h.b16 %v5757
    %v7397 = vunpack.c.l.b16 %v5758
    %v7398 = vunpack.c.h.b16 %v5758
    %v7399 = vunpack.c.l.b16 %v5759
    %v7400 = vunpack.c.h.b16 %v5759
    %v7401 = vunpack.c.l.b16 %v5760
    %v7402 = vunpack.c.h.b16 %v5760
    %v7403 = vunpack.c.l.b16 %v5761
    %v7404 = vunpack.c.h.b16 %v5761
    %v7405 = vunpack.c.l.b16 %v5762
    %v7406 = vunpack.c.h.b16 %v5762
    %v7407 = vunpack.c.l.b16 %v5763
    %v7408 = vunpack.c.h.b16 %v5763
    %v7409 = vunpack.c.l.b16 %v5764
    %v7410 = vunpack.c.h.b16 %v5764
    %v7411 = vunpack.c.l.b16 %v5765
    %v7412 = vunpack.c.h.b16 %v5765
    %v7413 = vunpack.c.l.b16 %v5766
    %v7414 = vunpack.c.h.b16 %v5766
    %v7415 = vunpack.c.l.b16 %v5767
    %v7416 = vunpack.c.h.b16 %v5767
    %v7417 = vunpack.c.l.b16 %v5768
    %v7418 = vunpack.c.h.b16 %v5768
    %v7419 = vunpack.c.l.b16 %v5769
    %v7420 = vunpack.c.h.b16 %v5769
    %v7421 = vunpack.c.l.b16 %v5770
    %v7422 = vunpack.c.h.b16 %v5770
    %v7423 = vunpack.c.l.b16 %v5771
    %v7424 = vunpack.c.h.b16 %v5771
    %v7425 = vunpack.c.l.b16 %v5772
    %v7426 = vunpack.c.h.b16 %v5772
    %v7427 = vunpack.c.l.b16 %v5773
    %v7428 = vunpack.c.h.b16 %v5773
    %v7429 = vunpack.c.l.b16 %v5774
    %v7430 = vunpack.c.h.b16 %v5774
    %v7431 = vunpack.c.l.b16 %v5775
    %v7432 = vunpack.c.h.b16 %v5775
    %v7433 = vunpack.c.l.b16 %v5776
    %v7434 = vunpack.c.h.b16 %v5776
    %v7435 = vunpack.c.l.b16 %v5777
    %v7436 = vunpack.c.h.b16 %v5777
    %v7437 = vunpack.c.l.b16 %v5778
    %v7438 = vunpack.c.h.b16 %v5778
    %v7439 = vunpack.c.l.b16 %v5779
    %v7440 = vunpack.c.h.b16 %v5779
    %v7441 = vunpack.c.l.b16 %v5780
    %v7442 = vunpack.c.h.b16 %v5780
    %v7443 = vunpack.c.l.b16 %v5781
    %v7444 = vunpack.c.h.b16 %v5781
    %v7445 = vunpack.c.l.b16 %v5782
    %v7446 = vunpack.c.h.b16 %v5782
    %v7447 = vunpack.c.l.b16 %v5783
    %v7448 = vunpack.c.h.b16 %v5783
    %v7449 = vunpack.c.l.b16 %v5784
    %v7450 = vunpack.c.h.b16 %v5784
    %v7451 = vunpack.c.l.b16 %v5785
    %v7452 = vunpack.c.h.b16 %v5785
    %v7453 = vunpack.c.l.b16 %v5786
    %v7454 = vunpack.c.h.b16 %v5786
    %v7455 = vunpack.c.l.b16 %v5787
    %v7456 = vunpack.c.h.b16 %v5787
    %v7457 = vunpack.c.l.b16 %v5788
    %v7458 = vunpack.c.h.b16 %v5788
    %v7459 = vunpack.c.l.b16 %v5789
    %v7460 = vunpack.c.h.b16 %v5789
    %v7461 = vunpack.c.l.b16 %v5790
    %v7462 = vunpack.c.h.b16 %v5790
    %v7463 = vunpack.c.l.b16 %v5791
    %v7464 = vunpack.c.h.b16 %v5791
    %v7465 = vunpack.c.l.b16 %v5792
    %v7466 = vunpack.c.h.b16 %v5792
    %v7467 = vunpack.c.l.b16 %v5793
    %v7468 = vunpack.c.h.b16 %v5793
    %v7469 = vunpack.c.l.b16 %v5794
    %v7470 = vunpack.c.h.b16 %v5794
    %v7471 = vunpack.c.l.b16 %v5795
    %v7472 = vunpack.c.h.b16 %v5795
    %v7473 = vunpack.c.l.b16 %v5796
    %v7474 = vunpack.c.h.b16 %v5796
    %v7475 = vunpack.c.l.b16 %v5797
    %v7476 = vunpack.c.h.b16 %v5797
    %v7477 = vunpack.c.l.b16 %v5798
    %v7478 = vunpack.c.h.b16 %v5798
    %v7479 = vunpack.c.l.b16 %v5799
    %v7480 = vunpack.c.h.b16 %v5799
    %v7481 = vunpack.c.l.b16 %v5800
    %v7482 = vunpack.c.h.b16 %v5800
    %v7483 = vunpack.c.l.b16 %v5801
    %v7484 = vunpack.c.h.b16 %v5801
    %v7485 = vunpack.c.l.b16 %v5802
    %v7486 = vunpack.c.h.b16 %v5802
    %v7487 = vunpack.c.l.b16 %v5803
    %v7488 = vunpack.c.h.b16 %v5803
    %v7489 = vunpack.c.l.b16 %v5804
    %v7490 = vunpack.c.h.b16 %v5804
    %v7491 = vunpack.c.l.b16 %v5805
    %v7492 = vunpack.c.h.b16 %v5805
    %v7493 = vunpack.c.l.b16 %v5806
    %v7494 = vunpack.c.h.b16 %v5806
    %v7495 = vunpack.c.l.b16 %v5807
    %v7496 = vunpack.c.h.b16 %v5807
    %v7497 = vunpack.c.l.b16 %v5808
    %v7498 = vunpack.c.h.b16 %v5808
    %v7499 = vunpack.c.l.b16 %v5809
    %v7500 = vunpack.c.h.b16 %v5809
    %v7501 = vunpack.c.l.b16 %v5810
    %v7502 = vunpack.c.h.b16 %v5810
    %v7503 = vunpack.c.l.b16 %v5811
    %v7504 = vunpack.c.h.b16 %v5811
    %v7505 = vunpack.c.l.b16 %v5812
    %v7506 = vunpack.c.h.b16 %v5812
    %v7507 = vunpack.c.l.b16 %v5813
    %v7508 = vunpack.c.h.b16 %v5813
    %v7509 = vunpack.c.l.b16 %v5814
    %v7510 = vunpack.c.h.b16 %v5814
    %v7511 = vunpack.c.l.b16 %v5815
    %v7512 = vunpack.c.h.b16 %v5815
    %v7513 = vunpack.c.l.b16 %v5816
    %v7514 = vunpack.c.h.b16 %v5816
    %v7515 = vunpack.c.l.b16 %v5817
    %v7516 = vunpack.c.h.b16 %v5817
    %v7517 = vunpack.c.l.b16 %v5818
    %v7518 = vunpack.c.h.b16 %v5818
    %v7519 = vunpack.c.l.b16 %v5819
    %v7520 = vunpack.c.h.b16 %v5819
    %v7521 = vunpack.c.l.b16 %v5820
    %v7522 = vunpack.c.h.b16 %v5820
    %v7523 = vunpack.c.l.b16 %v5821
    %v7524 = vunpack.c.h.b16 %v5821
    %v7525 = vunpack.c.l.b16 %v5822
    %v7526 = vunpack.c.h.b16 %v5822
    %v7527 = vunpack.c.l.b16 %v5823
    %v7528 = vunpack.c.h.b16 %v5823
    %v7529 = vunpack.c.l.b16 %v5824
    %v7530 = vunpack.c.h.b16 %v5824
    %v7531 = vunpack.c.l.b16 %v5825
    %v7532 = vunpack.c.h.b16 %v5825
    %v7533 = vunpack.c.l.b16 %v5826
    %v7534 = vunpack.c.h.b16 %v5826
    %v7535 = vunpack.c.l.b16 %v5827
    %v7536 = vunpack.c.h.b16 %v5827
    %v7537 = vunpack.c.l.b16 %v5828
    %v7538 = vunpack.c.h.b16 %v5828
    %v7539 = vunpack.c.l.b16 %v5829
    %v7540 = vunpack.c.h.b16 %v5829
    %v7541 = vunpack.c.l.b16 %v5830
    %v7542 = vunpack.c.h.b16 %v5830
    %v7543 = vunpack.c.l.b16 %v5831
    %v7544 = vunpack.c.h.b16 %v5831
    %v7545 = vunpack.c.l.b16 %v5832
    %v7546 = vunpack.c.h.b16 %v5832
    %v7547 = vunpack.c.l.b16 %v5833
    %v7548 = vunpack.c.h.b16 %v5833
    %v7549 = vunpack.c.l.b16 %v5834
    %v7550 = vunpack.c.h.b16 %v5834
    %v7551 = vunpack.c.l.b16 %v5835
    %v7552 = vunpack.c.h.b16 %v5835
    %v7553 = vunpack.c.l.b16 %v5836
    %v7554 = vunpack.c.h.b16 %v5836
    %v7555 = vunpack.c.l.b16 %v5837
    %v7556 = vunpack.c.h.b16 %v5837
    %v7557 = vunpack.c.l.b16 %v5838
    %v7558 = vunpack.c.h.b16 %v5838
    %v7559 = vunpack.c.l.b16 %v5839
    %v7560 = vunpack.c.h.b16 %v5839
    %v7561 = vunpack.c.l.b16 %v5840
    %v7562 = vunpack.c.h.b16 %v5840
    %v7563 = vunpack.c.l.b16 %v5841
    %v7564 = vunpack.c.h.b16 %v5841
    %v7565 = vunpack.c.l.b16 %v5842
    %v7566 = vunpack.c.h.b16 %v5842
    %v7567 = vunpack.c.l.b16 %v5843
    %v7568 = vunpack.c.h.b16 %v5843
    %v7569 = vunpack.c.l.b16 %v5844
    %v7570 = vunpack.c.h.b16 %v5844
    %v7571 = vunpack.c.l.b16 %v5845
    %v7572 = vunpack.c.h.b16 %v5845
    %v7573 = vunpack.c.l.b16 %v5846
    %v7574 = vunpack.c.h.b16 %v5846
    %v7575 = vunpack.c.l.b16 %v5847
    %v7576 = vunpack.c.h.b16 %v5847
    %v7577 = vunpack.c.l.b16 %v5848
    %v7578 = vunpack.c.h.b16 %v5848
    %v7579 = vunpack.c.l.b16 %v5849
    %v7580 = vunpack.c.h.b16 %v5849
    %v7581 = vunpack.c.l.b16 %v5850
    %v7582 = vunpack.c.h.b16 %v5850
    %v7583 = vunpack.c.l.b16 %v5851
    %v7584 = vunpack.c.h.b16 %v5851
    %v7585 = vunpack.c.l.b16 %v5852
    %v7586 = vunpack.c.h.b16 %v5852
    %v7587 = vunpack.c.l.b16 %v5853
    %v7588 = vunpack.c.h.b16 %v5853
    %v7589 = vunpack.c.l.b16 %v5854
    %v7590 = vunpack.c.h.b16 %v5854
    %v7591 = vunpack.c.l.b16 %v5855
    %v7592 = vunpack.c.h.b16 %v5855
    %v7593 = vunpack.c.l.b16 %v5856
    %v7594 = vunpack.c.h.b16 %v5856
    %v7595 = vunpack.c.l.b16 %v5857
    %v7596 = vunpack.c.h.b16 %v5857
    %v7597 = vunpack.c.l.b16 %v5858
    %v7598 = vunpack.c.h.b16 %v5858
    %v7599 = vunpack.c.l.b16 %v5859
    %v7600 = vunpack.c.h.b16 %v5859
    %v7601 = vunpack.c.l.b16 %v5860
    %v7602 = vunpack.c.h.b16 %v5860
    %v7603 = vunpack.c.l.b16 %v5861
    %v7604 = vunpack.c.h.b16 %v5861
    %v7605 = vunpack.c.l.b16 %v5862
    %v7606 = vunpack.c.h.b16 %v5862
    %v7607 = vunpack.c.l.b16 %v5863
    %v7608 = vunpack.c.h.b16 %v5863
    %v7609 = vunpack.c.l.b16 %v5864
    %v7610 = vunpack.c.h.b16 %v5864
    %v7611 = vunpack.c.l.b16 %v5865
    %v7612 = vunpack.c.h.b16 %v5865
    %v7613 = vunpack.c.l.b16 %v5866
    %v7614 = vunpack.c.h.b16 %v5866
    %v7615 = vunpack.c.l.b16 %v5867
    %v7616 = vunpack.c.h.b16 %v5867
    %v7617 = vunpack.c.l.b16 %v5868
    %v7618 = vunpack.c.h.b16 %v5868
    %v7619 = vunpack.c.l.b16 %v5869
    %v7620 = vunpack.c.h.b16 %v5869
    %v7621 = vunpack.c.l.b16 %v5870
    %v7622 = vunpack.c.h.b16 %v5870
    %v7623 = vunpack.c.l.b16 %v5871
    %v7624 = vunpack.c.h.b16 %v5871
    %v7625 = vunpack.c.l.b16 %v5872
    %v7626 = vunpack.c.h.b16 %v5872
    %v7627 = vunpack.c.l.b16 %v5873
    %v7628 = vunpack.c.h.b16 %v5873
    %v7629 = vunpack.c.l.b16 %v5874
    %v7630 = vunpack.c.h.b16 %v5874
    %v7631 = vunpack.c.l.b16 %v5875
    %v7632 = vunpack.c.h.b16 %v5875
    %v7633 = vunpack.c.l.b16 %v5876
    %v7634 = vunpack.c.h.b16 %v5876
    %v7635 = vunpack.c.l.b16 %v5877
    %v7636 = vunpack.c.h.b16 %v5877
    %v7637 = vunpack.c.l.b16 %v5878
    %v7638 = vunpack.c.h.b16 %v5878
    %v7639 = vpack.c.b16 %v6493, %v6487
    %v7640 = vpack.c.b16 %v6494, %v6488
    %v7641 = vpack.c.b16 %v6495, %v6489
    %v7642 = vpack.c.b16 %v6496, %v6490
    %v7643 = vpack.c.b16 %v6497, %v6491
    %v7644 = vpack.c.b16 %v6498, %v6492
    %v7645 = vpack.c.b16 %v6505, %v6499
    %v7646 = vpack.c.b16 %v6506, %v6500
    %v7647 = vpack.c.b16 %v6507, %v6501
    %v7648 = vpack.c.b16 %v6508, %v6502
    %v7649 = vpack.c.b16 %v6509, %v6503
    %v7650 = vpack.c.b16 %v6510, %v6504
    %v7651 = vpack.c.b16 %v6517, %v6511
    %v7652 = vpack.c.b16 %v6518, %v6512
    %v7653 = vpack.c.b16 %v6519, %v6513
    %v7654 = vpack.c.b16 %v6520, %v6514
    %v7655 = vpack.c.b16 %v6521, %v6515
    %v7656 = vpack.c.b16 %v6522, %v6516
    %v7657 = vpack.c.b16 %v6529, %v6523
    %v7658 = vpack.c.b16 %v6530, %v6524
    %v7659 = vpack.c.b16 %v6531, %v6525
    %v7660 = vpack.c.b16 %v6532, %v6526
    %v7661 = vpack.c.b16 %v6533, %v6527
    %v7662 = vpack.c.b16 %v6534, %v6528
    %v7663 = vpack.c.b16 %v6541, %v6535
    %v7664 = vpack.c.b16 %v6542, %v6536
    %v7665 = vpack.c.b16 %v6543, %v6537
    %v7666 = vpack.c.b16 %v6544, %v6538
    %v7667 = vpack.c.b16 %v6545, %v6539
    %v7668 = vpack.c.b16 %v6546, %v6540
    %v7669 = vpack.c.b16 %v6553, %v6547
    %v7670 = vpack.c.b16 %v6554, %v6548
    %v7671 = vpack.c.b16 %v6555, %v6549
    %v7672 = vpack.c.b16 %v6556, %v6550
    %v7673 = vpack.c.b16 %v6557, %v6551
    %v7674 = vpack.c.b16 %v6558, %v6552
    %v7675 = vpack.c.b16 %v6565, %v6559
    %v7676 = vpack.c.b16 %v6566, %v6560
    %v7677 = vpack.c.b16 %v6567, %v6561
    %v7678 = vpack.c.b16 %v6568, %v6562
    %v7679 = vpack.c.b16 %v6569, %v6563
    %v7680 = vpack.c.b16 %v6570, %v6564
    %v7681 = vpack.c.b16 %v6577, %v6571
    %v7682 = vpack.c.b16 %v6578, %v6572
    %v7683 = vpack.c.b16 %v6579, %v6573
    %v7684 = vpack.c.b16 %v6580, %v6574
    %v7685 = vpack.c.b16 %v6581, %v6575
    %v7686 = vpack.c.b16 %v6582, %v6576
    %v7687 = vpack.c.b16 %v6589, %v6583
    %v7688 = vpack.c.b16 %v6590, %v6584
    %v7689 = vpack.c.b16 %v6591, %v6585
    %v7690 = vpack.c.b16 %v6592, %v6586
    %v7691 = vpack.c.b16 %v6593, %v6587
    %v7692 = vpack.c.b16 %v6594, %v6588
    %v7693 = vpack.c.b16 %v6601, %v6595
    %v7694 = vpack.c.b16 %v6602, %v6596
    %v7695 = vpack.c.b16 %v6603, %v6597
    %v7696 = vpack.c.b16 %v6604, %v6598
    %v7697 = vpack.c.b16 %v6605, %v6599
    %v7698 = vpack.c.b16 %v6606, %v6600
    %v7699 = vpack.c.b16 %v6613, %v6607
    %v7700 = vpack.c.b16 %v6614, %v6608
    %v7701 = vpack.c.b16 %v6615, %v6609
    %v7702 = vpack.c.b16 %v6616, %v6610
    %v7703 = vpack.c.b16 %v6617, %v6611
    %v7704 = vpack.c.b16 %v6618, %v6612
    %v7705 = vpack.c.b16 %v6625, %v6619
    %v7706 = vpack.c.b16 %v6626, %v6620
    %v7707 = vpack.c.b16 %v6627, %v6621
    %v7708 = vpack.c.b16 %v6628, %v6622
    %v7709 = vpack.c.b16 %v6629, %v6623
    %v7710 = vpack.c.b16 %v6630, %v6624
    %v7711 = vpack.c.b16 %v6637, %v6631
    %v7712 = vpack.c.b16 %v6638, %v6632
    %v7713 = vpack.c.b16 %v6639, %v6633
    %v7714 = vpack.c.b16 %v6640, %v6634
    %v7715 = vpack.c.b16 %v6641, %v6635
    %v7716 = vpack.c.b16 %v6642, %v6636
    %v7717 = vpack.c.b16 %v6649, %v6643
    %v7718 = vpack.c.b16 %v6650, %v6644
    %v7719 = vpack.c.b16 %v6651, %v6645
    %v7720 = vpack.c.b16 %v6652, %v6646
    %v7721 = vpack.c.b16 %v6653, %v6647
    %v7722 = vpack.c.b16 %v6654, %v6648
    %v7723 = vpack.c.b16 %v6661, %v6655
    %v7724 = vpack.c.b16 %v6662, %v6656
    %v7725 = vpack.c.b16 %v6663, %v6657
    %v7726 = vpack.c.b16 %v6664, %v6658
    %v7727 = vpack.c.b16 %v6665, %v6659
    %v7728 = vpack.c.b16 %v6666, %v6660
    %v7729 = vpack.c.b16 %v6673, %v6667
    %v7730 = vpack.c.b16 %v6674, %v6668
    %v7731 = vpack.c.b16 %v6675, %v6669
    %v7732 = vpack.c.b16 %v6676, %v6670
    %v7733 = vpack.c.b16 %v6677, %v6671
    %v7734 = vpack.c.b16 %v6678, %v6672
    %v7735 = vpack.c.b16 %v6685, %v6679
    %v7736 = vpack.c.b16 %v6686, %v6680
    %v7737 = vpack.c.b16 %v6687, %v6681
    %v7738 = vpack.c.b16 %v6688, %v6682
    %v7739 = vpack.c.b16 %v6689, %v6683
    %v7740 = vpack.c.b16 %v6690, %v6684
    %v7741 = vpack.c.b16 %v6697, %v6691
    %v7742 = vpack.c.b16 %v6698, %v6692
    %v7743 = vpack.c.b16 %v6699, %v6693
    %v7744 = vpack.c.b16 %v6700, %v6694
    %v7745 = vpack.c.b16 %v6701, %v6695
    %v7746 = vpack.c.b16 %v6702, %v6696
    %v7747 = vpack.c.b16 %v6709, %v6703
    %v7748 = vpack.c.b16 %v6710, %v6704
    %v7749 = vpack.c.b16 %v6711, %v6705
    %v7750 = vpack.c.b16 %v6712, %v6706
    %v7751 = vpack.c.b16 %v6713, %v6707
    %v7752 = vpack.c.b16 %v6714, %v6708
    %v7753 = vpack.c.b16 %v6721, %v6715
    %v7754 = vpack.c.b16 %v6722, %v6716
    %v7755 = vpack.c.b16 %v6723, %v6717
    %v7756 = vpack.c.b16 %v6724, %v6718
    %v7757 = vpack.c.b16 %v6725, %v6719
    %v7758 = vpack.c.b16 %v6726, %v6720
    %v7759 = vpack.c.b16 %v6733, %v6727
    %v7760 = vpack.c.b16 %v6734, %v6728
    %v7761 = vpack.c.b16 %v6735, %v6729
    %v7762 = vpack.c.b16 %v6736, %v6730
    %v7763 = vpack.c.b16 %v6737, %v6731
    %v7764 = vpack.c.b16 %v6738, %v6732
    %v7765 = vpack.c.b16 %v6745, %v6739
    %v7766 = vpack.c.b16 %v6746, %v6740
    %v7767 = vpack.c.b16 %v6747, %v6741
    %v7768 = vpack.c.b16 %v6748, %v6742
    %v7769 = vpack.c.b16 %v6749, %v6743
    %v7770 = vpack.c.b16 %v6750, %v6744
    %v7771 = vpack.c.b16 %v6757, %v6751
    %v7772 = vpack.c.b16 %v6758, %v6752
    %v7773 = vpack.c.b16 %v6759, %v6753
    %v7774 = vpack.c.b16 %v6760, %v6754
    %v7775 = vpack.c.b16 %v6761, %v6755
    %v7776 = vpack.c.b16 %v6762, %v6756
    %v7777 = vpack.c.b16 %v6769, %v6763
    %v7778 = vpack.c.b16 %v6770, %v6764
    %v7779 = vpack.c.b16 %v6771, %v6765
    %v7780 = vpack.c.b16 %v6772, %v6766
    %v7781 = vpack.c.b16 %v6773, %v6767
    %v7782 = vpack.c.b16 %v6774, %v6768
    %v7783 = vpack.c.b16 %v6781, %v6775
    %v7784 = vpack.c.b16 %v6782, %v6776
    %v7785 = vpack.c.b16 %v6783, %v6777
    %v7786 = vpack.c.b16 %v6784, %v6778
    %v7787 = vpack.c.b16 %v6785, %v6779
    %v7788 = vpack.c.b16 %v6786, %v6780
    %v7789 = vpack.c.b16 %v6793, %v6787
    %v7790 = vpack.c.b16 %v6794, %v6788
    %v7791 = vpack.c.b16 %v6795, %v6789
    %v7792 = vpack.c.b16 %v6796, %v6790
    %v7793 = vpack.c.b16 %v6797, %v6791
    %v7794 = vpack.c.b16 %v6798, %v6792
    %v7795 = vpack.c.b16 %v6805, %v6799
    %v7796 = vpack.c.b16 %v6806, %v6800
    %v7797 = vpack.c.b16 %v6807, %v6801
    %v7798 = vpack.c.b16 %v6808, %v6802
    %v7799 = vpack.c.b16 %v6809, %v6803
    %v7800 = vpack.c.b16 %v6810, %v6804
    %v7801 = vpack.c.b16 %v6817, %v6811
    %v7802 = vpack.c.b16 %v6818, %v6812
    %v7803 = vpack.c.b16 %v6819, %v6813
    %v7804 = vpack.c.b16 %v6820, %v6814
    %v7805 = vpack.c.b16 %v6821, %v6815
    %v7806 = vpack.c.b16 %v6822, %v6816
    %v7807 = vpack.c.b16 %v6829, %v6823
    %v7808 = vpack.c.b16 %v6830, %v6824
    %v7809 = vpack.c.b16 %v6831, %v6825
    %v7810 = vpack.c.b16 %v6832, %v6826
    %v7811 = vpack.c.b16 %v6833, %v6827
    %v7812 = vpack.c.b16 %v6834, %v6828
    %v7813 = vpack.c.b16 %v6841, %v6835
    %v7814 = vpack.c.b16 %v6842, %v6836
    %v7815 = vpack.c.b16 %v6843, %v6837
    %v7816 = vpack.c.b16 %v6844, %v6838
    %v7817 = vpack.c.b16 %v6845, %v6839
    %v7818 = vpack.c.b16 %v6846, %v6840
    %v7819 = vpack.c.b16 %v6853, %v6847
    %v7820 = vpack.c.b16 %v6854, %v6848
    %v7821 = vpack.c.b16 %v6855, %v6849
    %v7822 = vpack.c.b16 %v6856, %v6850
    %v7823 = vpack.c.b16 %v6857, %v6851
    %v7824 = vpack.c.b16 %v6858, %v6852
    %v7825 = vpack.c.b16 %v6865, %v6859
    %v7826 = vpack.c.b16 %v6866, %v6860
    %v7827 = vpack.c.b16 %v6867, %v6861
    %v7828 = vpack.c.b16 %v6868, %v6862
    %v7829 = vpack.c.b16 %v6869, %v6863
    %v7830 = vpack.c.b16 %v6870, %v6864
    %v7831 = vpack.c.b16 %v6877, %v6871
    %v7832 = vpack.c.b16 %v6878, %v6872
    %v7833 = vpack.c.b16 %v6879, %v6873
    %v7834 = vpack.c.b16 %v6880, %v6874
    %v7835 = vpack.c.b16 %v6881, %v6875
    %v7836 = vpack.c.b16 %v6882, %v6876
    %v7837 = vpack.c.b16 %v6889, %v6883
    %v7838 = vpack.c.b16 %v6890, %v6884
    %v7839 = vpack.c.b16 %v6891, %v6885
    %v7840 = vpack.c.b16 %v6892, %v6886
    %v7841 = vpack.c.b16 %v6893, %v6887
    %v7842 = vpack.c.b16 %v6894, %v6888
    %v7843 = vpack.c.b16 %v6901, %v6895
    %v7844 = vpack.c.b16 %v6902, %v6896
    %v7845 = vpack.c.b16 %v6903, %v6897
    %v7846 = vpack.c.b16 %v6904, %v6898
    %v7847 = vpack.c.b16 %v6905, %v6899
    %v7848 = vpack.c.b16 %v6906, %v6900
    %v7849 = vpack.c.b16 %v6913, %v6907
    %v7850 = vpack.c.b16 %v6914, %v6908
    %v7851 = vpack.c.b16 %v6915, %v6909
    %v7852 = vpack.c.b16 %v6916, %v6910
    %v7853 = vpack.c.b16 %v6917, %v6911
    %v7854 = vpack.c.b16 %v6918, %v6912
    %v7855 = vpack.c.b16 %v6925, %v6919
    %v7856 = vpack.c.b16 %v6926, %v6920
    %v7857 = vpack.c.b16 %v6927, %v6921
    %v7858 = vpack.c.b16 %v6928, %v6922
    %v7859 = vpack.c.b16 %v6929, %v6923
    %v7860 = vpack.c.b16 %v6930, %v6924
    %v7861 = vpack.c.b16 %v6937, %v6931
    %v7862 = vpack.c.b16 %v6938, %v6932
    %v7863 = vpack.c.b16 %v6939, %v6933
    %v7864 = vpack.c.b16 %v6940, %v6934
    %v7865 = vpack.c.b16 %v6941, %v6935
    %v7866 = vpack.c.b16 %v6942, %v6936
    %v7867 = vpack.c.b16 %v6949, %v6943
    %v7868 = vpack.c.b16 %v6950, %v6944
    %v7869 = vpack.c.b16 %v6951, %v6945
    %v7870 = vpack.c.b16 %v6952, %v6946
    %v7871 = vpack.c.b16 %v6953, %v6947
    %v7872 = vpack.c.b16 %v6954, %v6948
    %v7873 = vpack.c.b16 %v6961, %v6955
    %v7874 = vpack.c.b16 %v6962, %v6956
    %v7875 = vpack.c.b16 %v6963, %v6957
    %v7876 = vpack.c.b16 %v6964, %v6958
    %v7877 = vpack.c.b16 %v6965, %v6959
    %v7878 = vpack.c.b16 %v6966, %v6960
    %v7879 = vpack.c.b16 %v6973, %v6967
    %v7880 = vpack.c.b16 %v6974, %v6968
    %v7881 = vpack.c.b16 %v6975, %v6969
    %v7882 = vpack.c.b16 %v6976, %v6970
    %v7883 = vpack.c.b16 %v6977, %v6971
    %v7884 = vpack.c.b16 %v6978, %v6972
    %v7885 = vpack.c.b16 %v6985, %v6979
    %v7886 = vpack.c.b16 %v6986, %v6980
    %v7887 = vpack.c.b16 %v6987, %v6981
    %v7888 = vpack.c.b16 %v6988, %v6982
    %v7889 = vpack.c.b16 %v6989, %v6983
    %v7890 = vpack.c.b16 %v6990, %v6984
    %v7891 = vpack.c.b16 %v6997, %v6991
    %v7892 = vpack.c.b16 %v6998, %v6992
    %v7893 = vpack.c.b16 %v6999, %v6993
    %v7894 = vpack.c.b16 %v7000, %v6994
    %v7895 = vpack.c.b16 %v7001, %v6995
    %v7896 = vpack.c.b16 %v7002, %v6996
    %v7897 = vpack.c.b16 %v7009, %v7003
    %v7898 = vpack.c.b16 %v7010, %v7004
    %v7899 = vpack.c.b16 %v7011, %v7005
    %v7900 = vpack.c.b16 %v7012, %v7006
    %v7901 = vpack.c.b16 %v7013, %v7007
    %v7902 = vpack.c.b16 %v7014, %v7008
    %v7903 = vpack.c.b16 %v7021, %v7015
    %v7904 = vpack.c.b16 %v7022, %v7016
    %v7905 = vpack.c.b16 %v7023, %v7017
    %v7906 = vpack.c.b16 %v7024, %v7018
    %v7907 = vpack.c.b16 %v7025, %v7019
    %v7908 = vpack.c.b16 %v7026, %v7020
    %v7909 = vpack.c.b16 %v7033, %v7027
    %v7910 = vpack.c.b16 %v7034, %v7028
    %v7911 = vpack.c.b16 %v7035, %v7029
    %v7912 = vpack.c.b16 %v7036, %v7030
    %v7913 = vpack.c.b16 %v7037, %v7031
    %v7914 = vpack.c.b16 %v7038, %v7032
    %v7915 = vpack.c.b16 %v7045, %v7039
    %v7916 = vpack.c.b16 %v7046, %v7040
    %v7917 = vpack.c.b16 %v7047, %v7041
    %v7918 = vpack.c.b16 %v7048, %v7042
    %v7919 = vpack.c.b16 %v7049, %v7043
    %v7920 = vpack.c.b16 %v7050, %v7044
    %v7921 = vpack.c.b16 %v7057, %v7051
    %v7922 = vpack.c.b16 %v7058, %v7052
    %v7923 = vpack.c.b16 %v7059, %v7053
    %v7924 = vpack.c.b16 %v7060, %v7054
    %v7925 = vpack.c.b16 %v7061, %v7055
    %v7926 = vpack.c.b16 %v7062, %v7056
    %v7927 = vpack.c.b16 %v7069, %v7063
    %v7928 = vpack.c.b16 %v7070, %v7064
    %v7929 = vpack.c.b16 %v7071, %v7065
    %v7930 = vpack.c.b16 %v7072, %v7066
    %v7931 = vpack.c.b16 %v7073, %v7067
    %v7932 = vpack.c.b16 %v7074, %v7068
    %v7933 = vpack.c.b16 %v7081, %v7075
    %v7934 = vpack.c.b16 %v7082, %v7076
    %v7935 = vpack.c.b16 %v7083, %v7077
    %v7936 = vpack.c.b16 %v7084, %v7078
    %v7937 = vpack.c.b16 %v7085, %v7079
    %v7938 = vpack.c.b16 %v7086, %v7080
    %v7939 = vpack.c.b16 %v7093, %v7087
    %v7940 = vpack.c.b16 %v7094, %v7088
    %v7941 = vpack.c.b16 %v7095, %v7089
    %v7942 = vpack.c.b16 %v7096, %v7090
    %v7943 = vpack.c.b16 %v7097, %v7091
    %v7944 = vpack.c.b16 %v7098, %v7092
    %v7945 = vpack.c.b16 %v7105, %v7099
    %v7946 = vpack.c.b16 %v7106, %v7100
    %v7947 = vpack.c.b16 %v7107, %v7101
    %v7948 = vpack.c.b16 %v7108, %v7102
    %v7949 = vpack.c.b16 %v7109, %v7103
    %v7950 = vpack.c.b16 %v7110, %v7104
    %v7951 = vpack.c.b16 %v7117, %v7111
    %v7952 = vpack.c.b16 %v7118, %v7112
    %v7953 = vpack.c.b16 %v7119, %v7113
    %v7954 = vpack.c.b16 %v7120, %v7114
    %v7955 = vpack.c.b16 %v7121, %v7115
    %v7956 = vpack.c.b16 %v7122, %v7116
    %v7957 = vpack.c.b16 %v7129, %v7123
    %v7958 = vpack.c.b16 %v7130, %v7124
    %v7959 = vpack.c.b16 %v7131, %v7125
    %v7960 = vpack.c.b16 %v7132, %v7126
    %v7961 = vpack.c.b16 %v7133, %v7127
    %v7962 = vpack.c.b16 %v7134, %v7128
    %v7963 = vpack.c.b16 %v7141, %v7135
    %v7964 = vpack.c.b16 %v7142, %v7136
    %v7965 = vpack.c.b16 %v7143, %v7137
    %v7966 = vpack.c.b16 %v7144, %v7138
    %v7967 = vpack.c.b16 %v7145, %v7139
    %v7968 = vpack.c.b16 %v7146, %v7140
    %v7969 = vpack.c.b16 %v7153, %v7147
    %v7970 = vpack.c.b16 %v7154, %v7148
    %v7971 = vpack.c.b16 %v7155, %v7149
    %v7972 = vpack.c.b16 %v7156, %v7150
    %v7973 = vpack.c.b16 %v7157, %v7151
    %v7974 = vpack.c.b16 %v7158, %v7152
    %v7975 = vpack.c.b16 %v7165, %v7159
    %v7976 = vpack.c.b16 %v7166, %v7160
    %v7977 = vpack.c.b16 %v7167, %v7161
    %v7978 = vpack.c.b16 %v7168, %v7162
    %v7979 = vpack.c.b16 %v7169, %v7163
    %v7980 = vpack.c.b16 %v7170, %v7164
    %v7981 = vpack.c.b16 %v7177, %v7171
    %v7982 = vpack.c.b16 %v7178, %v7172
    %v7983 = vpack.c.b16 %v7179, %v7173
    %v7984 = vpack.c.b16 %v7180, %v7174
    %v7985 = vpack.c.b16 %v7181, %v7175
    %v7986 = vpack.c.b16 %v7182, %v7176
    %v7987 = vpack.c.b16 %v7189, %v7183
    %v7988 = vpack.c.b16 %v7190, %v7184
    %v7989 = vpack.c.b16 %v7191, %v7185
    %v7990 = vpack.c.b16 %v7192, %v7186
    %v7991 = vpack.c.b16 %v7193, %v7187
    %v7992 = vpack.c.b16 %v7194, %v7188
    %v7993 = vpack.c.b16 %v7201, %v7195
    %v7994 = vpack.c.b16 %v7202, %v7196
    %v7995 = vpack.c.b16 %v7203, %v7197
    %v7996 = vpack.c.b16 %v7204, %v7198
    %v7997 = vpack.c.b16 %v7205, %v7199
    %v7998 = vpack.c.b16 %v7206, %v7200
    %v7999 = vpack.c.b16 %v7213, %v7207
    %v8000 = vpack.c.b16 %v7214, %v7208
    %v8001 = vpack.c.b16 %v7215, %v7209
    %v8002 = vpack.c.b16 %v7216, %v7210
    %v8003 = vpack.c.b16 %v7217, %v7211
    %v8004 = vpack.c.b16 %v7218, %v7212
    %v8005 = vpack.c.b16 %v7225, %v7219
    %v8006 = vpack.c.b16 %v7226, %v7220
    %v8007 = vpack.c.b16 %v7227, %v7221
    %v8008 = vpack.c.b16 %v7228, %v7222
    %v8009 = vpack.c.b16 %v7229, %v7223
    %v8010 = vpack.c.b16 %v7230, %v7224
    %v8011 = vpack.c.b16 %v7237, %v7231
    %v8012 = vpack.c.b16 %v7238, %v7232
    %v8013 = vpack.c.b16 %v7239, %v7233
    %v8014 = vpack.c.b16 %v7240, %v7234
    %v8015 = vpack.c.b16 %v7241, %v7235
    %v8016 = vpack.c.b16 %v7242, %v7236
    %v8017 = vpack.c.b16 %v7249, %v7243
    %v8018 = vpack.c.b16 %v7250, %v7244
    %v8019 = vpack.c.b16 %v7251, %v7245
    %v8020 = vpack.c.b16 %v7252, %v7246
    %v8021 = vpack.c.b16 %v7253, %v7247
    %v8022 = vpack.c.b16 %v7254, %v7248
    %v8023 = vpack.c.b16 %v7261, %v7255
    %v8024 = vpack.c.b16 %v7262, %v7256
    %v8025 = vpack.c.b16 %v7263, %v7257
    %v8026 = vpack.c.b16 %v7264, %v7258
    %v8027 = vpack.c.b16 %v7265, %v7259
    %v8028 = vpack.c.b16 %v7266, %v7260
    %v8029 = vpack.c.b16 %v7273, %v7267
    %v8030 = vpack.c.b16 %v7274, %v7268
    %v8031 = vpack.c.b16 %v7275, %v7269
    %v8032 = vpack.c.b16 %v7276, %v7270
    %v8033 = vpack.c.b16 %v7277, %v7271
    %v8034 = vpack.c.b16 %v7278, %v7272
    %v8035 = vpack.c.b16 %v7285, %v7279
    %v8036 = vpack.c.b16 %v7286, %v7280
    %v8037 = vpack.c.b16 %v7287, %v7281
    %v8038 = vpack.c.b16 %v7288, %v7282
    %v8039 = vpack.c.b16 %v7289, %v7283
    %v8040 = vpack.c.b16 %v7290, %v7284
    %v8041 = vpack.c.b16 %v7297, %v7291
    %v8042 = vpack.c.b16 %v7298, %v7292
    %v8043 = vpack.c.b16 %v7299, %v7293
    %v8044 = vpack.c.b16 %v7300, %v7294
    %v8045 = vpack.c.b16 %v7301, %v7295
    %v8046 = vpack.c.b16 %v7302, %v7296
    %v8047 = vpack.c.b16 %v7309, %v7303
    %v8048 = vpack.c.b16 %v7310, %v7304
    %v8049 = vpack.c.b16 %v7311, %v7305
    %v8050 = vpack.c.b16 %v7312, %v7306
    %v8051 = vpack.c.b16 %v7313, %v7307
    %v8052 = vpack.c.b16 %v7314, %v7308
    %v8053 = vpack.c.b16 %v7321, %v7315
    %v8054 = vpack.c.b16 %v7322, %v7316
    %v8055 = vpack.c.b16 %v7323, %v7317
    %v8056 = vpack.c.b16 %v7324, %v7318
    %v8057 = vpack.c.b16 %v7325, %v7319
    %v8058 = vpack.c.b16 %v7326, %v7320
    %v8059 = vpack.c.b16 %v7333, %v7327
    %v8060 = vpack.c.b16 %v7334, %v7328
    %v8061 = vpack.c.b16 %v7335, %v7329
    %v8062 = vpack.c.b16 %v7336, %v7330
    %v8063 = vpack.c.b16 %v7337, %v7331
    %v8064 = vpack.c.b16 %v7338, %v7332
    %v8065 = vpack.c.b16 %v7345, %v7339
    %v8066 = vpack.c.b16 %v7346, %v7340
    %v8067 = vpack.c.b16 %v7347, %v7341
    %v8068 = vpack.c.b16 %v7348, %v7342
    %v8069 = vpack.c.b16 %v7349, %v7343
    %v8070 = vpack.c.b16 %v7350, %v7344
    %v8071 = vpack.c.b16 %v7357, %v7351
    %v8072 = vpack.c.b16 %v7358, %v7352
    %v8073 = vpack.c.b16 %v7359, %v7353
    %v8074 = vpack.c.b16 %v7360, %v7354
    %v8075 = vpack.c.b16 %v7361, %v7355
    %v8076 = vpack.c.b16 %v7362, %v7356
    %v8077 = vpack.c.b16 %v7369, %v7363
    %v8078 = vpack.c.b16 %v7370, %v7364
    %v8079 = vpack.c.b16 %v7371, %v7365
    %v8080 = vpack.c.b16 %v7372, %v7366
    %v8081 = vpack.c.b16 %v7373, %v7367
    %v8082 = vpack.c.b16 %v7374, %v7368
    %v8083 = vpack.c.b16 %v7381, %v7375
    %v8084 = vpack.c.b16 %v7382, %v7376
    %v8085 = vpack.c.b16 %v7383, %v7377
    %v8086 = vpack.c.b16 %v7384, %v7378
    %v8087 = vpack.c.b16 %v7385, %v7379
    %v8088 = vpack.c.b16 %v7386, %v7380
    %v8089 = vpack.c.b16 %v7393, %v7387
    %v8090 = vpack.c.b16 %v7394, %v7388
    %v8091 = vpack.c.b16 %v7395, %v7389
    %v8092 = vpack.c.b16 %v7396, %v7390
    %v8093 = vpack.c.b16 %v7397, %v7391
    %v8094 = vpack.c.b16 %v7398, %v7392
    %v8095 = vpack.c.b16 %v7405, %v7399
    %v8096 = vpack.c.b16 %v7406, %v7400
    %v8097 = vpack.c.b16 %v7407, %v7401
    %v8098 = vpack.c.b16 %v7408, %v7402
    %v8099 = vpack.c.b16 %v7409, %v7403
    %v8100 = vpack.c.b16 %v7410, %v7404
    %v8101 = vpack.c.b16 %v7417, %v7411
    %v8102 = vpack.c.b16 %v7418, %v7412
    %v8103 = vpack.c.b16 %v7419, %v7413
    %v8104 = vpack.c.b16 %v7420, %v7414
    %v8105 = vpack.c.b16 %v7421, %v7415
    %v8106 = vpack.c.b16 %v7422, %v7416
    %v8107 = vpack.c.b16 %v7429, %v7423
    %v8108 = vpack.c.b16 %v7430, %v7424
    %v8109 = vpack.c.b16 %v7431, %v7425
    %v8110 = vpack.c.b16 %v7432, %v7426
    %v8111 = vpack.c.b16 %v7433, %v7427
    %v8112 = vpack.c.b16 %v7434, %v7428
    %v8113 = vpack.c.b16 %v7441, %v7435
    %v8114 = vpack.c.b16 %v7442, %v7436
    %v8115 = vpack.c.b16 %v7443, %v7437
    %v8116 = vpack.c.b16 %v7444, %v7438
    %v8117 = vpack.c.b16 %v7445, %v7439
    %v8118 = vpack.c.b16 %v7446, %v7440
    %v8119 = vpack.c.b16 %v7453, %v7447
    %v8120 = vpack.c.b16 %v7454, %v7448
    %v8121 = vpack.c.b16 %v7455, %v7449
    %v8122 = vpack.c.b16 %v7456, %v7450
    %v8123 = vpack.c.b16 %v7457, %v7451
    %v8124 = vpack.c.b16 %v7458, %v7452
    %v8125 = vpack.c.b16 %v7465, %v7459
    %v8126 = vpack.c.b16 %v7466, %v7460
    %v8127 = vpack.c.b16 %v7467, %v7461
    %v8128 = vpack.c.b16 %v7468, %v7462
    %v8129 = vpack.c.b16 %v7469, %v7463
    %v8130 = vpack.c.b16 %v7470, %v7464
    %v8131 = vpack.c.b16 %v7477, %v7471
    %v8132 = vpack.c.b16 %v7478, %v7472
    %v8133 = vpack.c.b16 %v7479, %v7473
    %v8134 = vpack.c.b16 %v7480, %v7474
    %v8135 = vpack.c.b16 %v7481, %v7475
    %v8136 = vpack.c.b16 %v7482, %v7476
    %v8137 = vpack.c.b16 %v7489, %v7483
    %v8138 = vpack.c.b16 %v7490, %v7484
    %v8139 = vpack.c.b16 %v7491, %v7485
    %v8140 = vpack.c.b16 %v7492, %v7486
    %v8141 = vpack.c.b16 %v7493, %v7487
    %v8142 = vpack.c.b16 %v7494, %v7488
    %v8143 = vpack.c.b16 %v7501, %v7495
    %v8144 = vpack.c.b16 %v7502, %v7496
    %v8145 = vpack.c.b16 %v7503, %v7497
    %v8146 = vpack.c.b16 %v7504, %v7498
    %v8147 = vpack.c.b16 %v7505, %v7499
    %v8148 = vpack.c.b16 %v7506, %v7500
    %v8149 = vpack.c.b16 %v7513, %v7507
    %v8150 = vpack.c.b16 %v7514, %v7508
    %v8151 = vpack.c.b16 %v7515, %v7509
    %v8152 = vpack.c.b16 %v7516, %v7510
    %v8153 = vpack.c.b16 %v7517, %v7511
    %v8154 = vpack.c.b16 %v7518, %v7512
    %v8155 = vpack.c.b16 %v7525, %v7519
    %v8156 = vpack.c.b16 %v7526, %v7520
    %v8157 = vpack.c.b16 %v7527, %v7521
    %v8158 = vpack.c.b16 %v7528, %v7522
    %v8159 = vpack.c.b16 %v7529, %v7523
    %v8160 = vpack.c.b16 %v7530, %v7524
    %v8161 = vpack.c.b16 %v7537, %v7531
    %v8162 = vpack.c.b16 %v7538, %v7532
    %v8163 = vpack.c.b16 %v7539, %v7533
    %v8164 = vpack.c.b16 %v7540, %v7534
    %v8165 = vpack.c.b16 %v7541, %v7535
    %v8166 = vpack.c.b16 %v7542, %v7536
    %v8167 = vpack.c.b16 %v7549, %v7543
    %v8168 = vpack.c.b16 %v7550, %v7544
    %v8169 = vpack.c.b16 %v7551, %v7545
    %v8170 = vpack.c.b16 %v7552, %v7546
    %v8171 = vpack.c.b16 %v7553, %v7547
    %v8172 = vpack.c.b16 %v7554, %v7548
    %v8173 = vpack.c.b16 %v7561, %v7555
    %v8174 = vpack.c.b16 %v7562, %v7556
    %v8175 = vpack.c.b16 %v7563, %v7557
    %v8176 = vpack.c.b16 %v7564, %v7558
    %v8177 = vpack.c.b16 %v7565, %v7559
    %v8178 = vpack.c.b16 %v7566, %v7560
    %v8179 = vpack.c.b16 %v7573, %v7567
    %v8180 = vpack.c.b16 %v7574, %v7568
    %v8181 = vpack.c.b16 %v7575, %v7569
    %v8182 = vpack.c.b16 %v7576, %v7570
    %v8183 = vpack.c.b16 %v7577, %v7571
    %v8184 = vpack.c.b16 %v7578, %v7572
    %v8185 = vpack.c.b16 %v7585, %v7579
    %v8186 = vpack.c.b16 %v7586, %v7580
    %v8187 = vpack.c.b16 %v7587, %v7581
    %v8188 = vpack.c.b16 %v7588, %v7582
    %v8189 = vpack.c.b16 %v7589, %v7583
    %v8190 = vpack.c.b16 %v7590, %v7584
    %v8191 = vpack.c.b16 %v7597, %v7591
    %v8192 = vpack.c.b16 %v7598, %v7592
    %v8193 = vpack.c.b16 %v7599, %v7593
    %v8194 = vpack.c.b16 %v7600, %v7594
    %v8195 = vpack.c.b16 %v7601, %v7595
    %v8196 = vpack.c.b16 %v7602, %v7596
    %v8197 = vpack.c.b16 %v7609, %v7603
    %v8198 = vpack.c.b16 %v7610, %v7604
    %v8199 = vpack.c.b16 %v7611, %v7605
    %v8200 = vpack.c.b16 %v7612, %v7606
    %v8201 = vpack.c.b16 %v7613, %v7607
    %v8202 = vpack.c.b16 %v7614, %v7608
    %v8203 = vpack.c.b16 %v7621, %v7615
    %v8204 = vpack.c.b16 %v7622, %v7616
    %v8205 = vpack.c.b16 %v7623, %v7617
    %v8206 = vpack.c.b16 %v7624, %v7618
    %v8207 = vpack.c.b16 %v7625, %v7619
    %v8208 = vpack.c.b16 %v7626, %v7620
    %v8209 = vpack.c.b16 %v7633, %v7627
    %v8210 = vpack.c.b16 %v7634, %v7628
    %v8211 = vpack.c.b16 %v7635, %v7629
    %v8212 = vpack.c.b16 %v7636, %v7630
    %v8213 = vpack.c.b16 %v7637, %v7631
    %v8214 = vpack.c.b16 %v7638, %v7632
    %8791 = vmatprep.subr.bf16.mxu0 %v7682
    %8792 = vmatpush1.bf16.msra.mxu0 %v7681
    %8793 = vmatprep.subr.bf16.mxu0 %v7676
    %8794 = vmatpush1.bf16.msra.mxu0 %v7675
    %8795 = vmatprep.subr.bf16.mxu0 %v7670
    %8796 = vmatpush1.bf16.msra.mxu0 %v7669
    %8797 = vmatprep.subr.bf16.mxu0 %v7664
    %8798 = vmatpush1.bf16.msra.mxu0 %v7663
    %8799 = vmatprep.subr.bf16.mxu0 %v7658
    %8800 = vmatpush1.bf16.msra.mxu0 %v7657
    %8801 = vmatprep.subr.bf16.mxu0 %v7652
    %8802 = vmatpush1.bf16.msra.mxu0 %v7651
    %8803 = vmatprep.subr.bf16.mxu0 %v7646
    %8804 = vmatpush1.bf16.msra.mxu0 %v7645
    %8805 = vmatprep.subr.bf16.mxu0 %v7640
    %8806 = vmatpush1.bf16.msra.mxu0 %v7639
    %8807 = vmatprep.subr.bf16.mxu0 %v7730
    %8808 = vmatpush2.bf16.msra.mxu0 %v7729
    %8809 = vmatprep.subr.bf16.mxu0 %v7724
    %8810 = vmatpush2.bf16.msra.mxu0 %v7723
    %8811 = vmatprep.subr.bf16.mxu0 %v7718
    %8812 = vmatpush2.bf16.msra.mxu0 %v7717
    %8813 = vmatprep.subr.bf16.mxu0 %v7712
    %8814 = vmatpush2.bf16.msra.mxu0 %v7711
    %8815 = vmatprep.subr.bf16.mxu0 %v7706
    %8816 = vmatpush2.bf16.msra.mxu0 %v7705
    %8817 = vmatprep.subr.bf16.mxu0 %v7700
    %8818 = vmatpush2.bf16.msra.mxu0 %v7699
    %8819 = vmatprep.subr.bf16.mxu0 %v7694
    %8820 = vmatpush2.bf16.msra.mxu0 %v7693
    %8821 = vmatprep.subr.bf16.mxu0 %v7688
    %8822 = vmatpush2.bf16.msra.mxu0 %v7687
    %8823 = vmatprep.mubr.bf16.mxu0 %v5292
    %8824 = vmatmul.mubr.bf16.gmra.mxu0 %v5291
    %v8825 = vpop.f32.mrf.mxu0
    %v8826 = vadd.f32 %v5884, %v8825
    %v8827 = vpop.f32.mrf.mxu0
    %v8828 = vadd.f32 %v5888, %v8827
    %v8829 = vpop.f32.mrf.mxu0
    %v8830 = vpop.f32.mrf.mxu0
    %8831 = vdwg.mxu0
    %8832 = vmatprep.subr.bf16.mxu0 %v7778
    %8833 = vmatpush1.bf16.msra.mxu0 %v7777
    %8834 = vmatprep.subr.bf16.mxu0 %v7772
    %8835 = vmatpush1.bf16.msra.mxu0 %v7771
    %8836 = vmatprep.subr.bf16.mxu0 %v7766
    %8837 = vmatpush1.bf16.msra.mxu0 %v7765
    %8838 = vmatprep.subr.bf16.mxu0 %v7760
    %8839 = vmatpush1.bf16.msra.mxu0 %v7759
    %8840 = vmatprep.subr.bf16.mxu0 %v7754
    %8841 = vmatpush1.bf16.msra.mxu0 %v7753
    %8842 = vmatprep.subr.bf16.mxu0 %v7748
    %8843 = vmatpush1.bf16.msra.mxu0 %v7747
    %8844 = vmatprep.subr.bf16.mxu0 %v7742
    %8845 = vmatpush1.bf16.msra.mxu0 %v7741
    %8846 = vmatprep.subr.bf16.mxu0 %v7736
    %8847 = vmatpush1.bf16.msra.mxu0 %v7735
    %8848 = vmatprep.subr.bf16.mxu0 %v7826
    %8849 = vmatpush2.bf16.msra.mxu0 %v7825
    %8850 = vmatprep.subr.bf16.mxu0 %v7820
    %8851 = vmatpush2.bf16.msra.mxu0 %v7819
    %8852 = vmatprep.subr.bf16.mxu0 %v7814
    %8853 = vmatpush2.bf16.msra.mxu0 %v7813
    %8854 = vmatprep.subr.bf16.mxu0 %v7808
    %8855 = vmatpush2.bf16.msra.mxu0 %v7807
    %8856 = vmatprep.subr.bf16.mxu0 %v7802
    %8857 = vmatpush2.bf16.msra.mxu0 %v7801
    %8858 = vmatprep.subr.bf16.mxu0 %v7796
    %8859 = vmatpush2.bf16.msra.mxu0 %v7795
    %8860 = vmatprep.subr.bf16.mxu0 %v7790
    %8861 = vmatpush2.bf16.msra.mxu0 %v7789
    %8862 = vmatprep.subr.bf16.mxu0 %v7784
    %8863 = vmatpush2.bf16.msra.mxu0 %v7783
    %8864 = vmatprep.mubr.bf16.mxu0 %v5294
    %8865 = vmatmul.mubr.bf16.gmra.mxu0 %v5293
    %v8866 = vpop.f32.mrf.mxu0
    %v8867 = vadd.f32 %v8826, %v8866
    %v8868 = vpop.f32.mrf.mxu0
    %v8869 = vadd.f32 %v8828, %v8868
    %v8870 = vpop.f32.mrf.mxu0
    %v8871 = vpop.f32.mrf.mxu0
    %8872 = vdwg.mxu0
    %8873 = vmatprep.subr.bf16.mxu0 %v7874
    %8874 = vmatpush1.bf16.msra.mxu0 %v7873
    %8875 = vmatprep.subr.bf16.mxu0 %v7868
    %8876 = vmatpush1.bf16.msra.mxu0 %v7867
    %8877 = vmatprep.subr.bf16.mxu0 %v7862
    %8878 = vmatpush1.bf16.msra.mxu0 %v7861
    %8879 = vmatprep.subr.bf16.mxu0 %v7856
    %8880 = vmatpush1.bf16.msra.mxu0 %v7855
    %8881 = vmatprep.subr.bf16.mxu0 %v7850
    %8882 = vmatpush1.bf16.msra.mxu0 %v7849
    %8883 = vmatprep.subr.bf16.mxu0 %v7844
    %8884 = vmatpush1.bf16.msra.mxu0 %v7843
    %8885 = vmatprep.subr.bf16.mxu0 %v7838
    %8886 = vmatpush1.bf16.msra.mxu0 %v7837
    %8887 = vmatprep.subr.bf16.mxu0 %v7832
    %8888 = vmatpush1.bf16.msra.mxu0 %v7831
    %8889 = vmatprep.subr.bf16.mxu0 %v7922
    %8890 = vmatpush2.bf16.msra.mxu0 %v7921
    %8891 = vmatprep.subr.bf16.mxu0 %v7916
    %8892 = vmatpush2.bf16.msra.mxu0 %v7915
    %8893 = vmatprep.subr.bf16.mxu0 %v7910
    %8894 = vmatpush2.bf16.msra.mxu0 %v7909
    %8895 = vmatprep.subr.bf16.mxu0 %v7904
    %8896 = vmatpush2.bf16.msra.mxu0 %v7903
    %8897 = vmatprep.subr.bf16.mxu0 %v7898
    %8898 = vmatpush2.bf16.msra.mxu0 %v7897
    %8899 = vmatprep.subr.bf16.mxu0 %v7892
    %8900 = vmatpush2.bf16.msra.mxu0 %v7891
    %8901 = vmatprep.subr.bf16.mxu0 %v7886
    %8902 = vmatpush2.bf16.msra.mxu0 %v7885
    %8903 = vmatprep.subr.bf16.mxu0 %v7880
    %8904 = vmatpush2.bf16.msra.mxu0 %v7879
    %8905 = vmatprep.mubr.bf16.mxu0 %v5296
    %8906 = vmatmul.mubr.bf16.gmra.mxu0 %v5295
    %v8907 = vpop.f32.mrf.mxu0
    %v8908 = vadd.f32 %v8867, %v8907
    %v8909 = vpop.f32.mrf.mxu0
    %v8910 = vadd.f32 %v8869, %v8909
    %v8911 = vpop.f32.mrf.mxu0
    %v8912 = vpop.f32.mrf.mxu0
    %8913 = vdwg.mxu0
    %8914 = vmatprep.subr.bf16.mxu0 %v7970
    %8915 = vmatpush1.bf16.msra.mxu0 %v7969
    %8916 = vmatprep.subr.bf16.mxu0 %v7964
    %8917 = vmatpush1.bf16.msra.mxu0 %v7963
    %8918 = vmatprep.subr.bf16.mxu0 %v7958
    %8919 = vmatpush1.bf16.msra.mxu0 %v7957
    %8920 = vmatprep.subr.bf16.mxu0 %v7952
    %8921 = vmatpush1.bf16.msra.mxu0 %v7951
    %8922 = vmatprep.subr.bf16.mxu0 %v7946
    %8923 = vmatpush1.bf16.msra.mxu0 %v7945
    %8924 = vmatprep.subr.bf16.mxu0 %v7940
    %8925 = vmatpush1.bf16.msra.mxu0 %v7939
    %8926 = vmatprep.subr.bf16.mxu0 %v7934
    %8927 = vmatpush1.bf16.msra.mxu0 %v7933
    %8928 = vmatprep.subr.bf16.mxu0 %v7928
    %8929 = vmatpush1.bf16.msra.mxu0 %v7927
    %8930 = vmatprep.subr.bf16.mxu0 %v8018
    %8931 = vmatpush2.bf16.msra.mxu0 %v8017
    %8932 = vmatprep.subr.bf16.mxu0 %v8012
    %8933 = vmatpush2.bf16.msra.mxu0 %v8011
    %8934 = vmatprep.subr.bf16.mxu0 %v8006
    %8935 = vmatpush2.bf16.msra.mxu0 %v8005
    %8936 = vmatprep.subr.bf16.mxu0 %v8000
    %8937 = vmatpush2.bf16.msra.mxu0 %v7999
    %8938 = vmatprep.subr.bf16.mxu0 %v7994
    %8939 = vmatpush2.bf16.msra.mxu0 %v7993
    %8940 = vmatprep.subr.bf16.mxu0 %v7988
    %8941 = vmatpush2.bf16.msra.mxu0 %v7987
    %8942 = vmatprep.subr.bf16.mxu0 %v7982
    %8943 = vmatpush2.bf16.msra.mxu0 %v7981
    %8944 = vmatprep.subr.bf16.mxu0 %v7976
    %8945 = vmatpush2.bf16.msra.mxu0 %v7975
    %8946 = vmatprep.mubr.bf16.mxu0 %v5298
    %8947 = vmatmul.mubr.bf16.gmra.mxu0 %v5297
    %v8948 = vpop.f32.mrf.mxu0
    %v8949 = vadd.f32 %v8908, %v8948
    %v8950 = vpop.f32.mrf.mxu0
    %v8951 = vadd.f32 %v8910, %v8950
    %v8952 = vpop.f32.mrf.mxu0
    %v8953 = vpop.f32.mrf.mxu0
    %8954 = vdwg.mxu0
    %8955 = vmatprep.subr.bf16.mxu0 %v8066
    %8956 = vmatpush1.bf16.msra.mxu0 %v8065
    %8957 = vmatprep.subr.bf16.mxu0 %v8060
    %8958 = vmatpush1.bf16.msra.mxu0 %v8059
    %8959 = vmatprep.subr.bf16.mxu0 %v8054
    %8960 = vmatpush1.bf16.msra.mxu0 %v8053
    %8961 = vmatprep.subr.bf16.mxu0 %v8048
    %8962 = vmatpush1.bf16.msra.mxu0 %v8047
    %8963 = vmatprep.subr.bf16.mxu0 %v8042
    %8964 = vmatpush1.bf16.msra.mxu0 %v8041
    %8965 = vmatprep.subr.bf16.mxu0 %v8036
    %8966 = vmatpush1.bf16.msra.mxu0 %v8035
    %8967 = vmatprep.subr.bf16.mxu0 %v8030
    %8968 = vmatpush1.bf16.msra.mxu0 %v8029
    %8969 = vmatprep.subr.bf16.mxu0 %v8024
    %8970 = vmatpush1.bf16.msra.mxu0 %v8023
    %8971 = vmatprep.subr.bf16.mxu0 %v8114
    %8972 = vmatpush2.bf16.msra.mxu0 %v8113
    %8973 = vmatprep.subr.bf16.mxu0 %v8108
    %8974 = vmatpush2.bf16.msra.mxu0 %v8107
    %8975 = vmatprep.subr.bf16.mxu0 %v8102
    %8976 = vmatpush2.bf16.msra.mxu0 %v8101
    %8977 = vmatprep.subr.bf16.mxu0 %v8096
    %8978 = vmatpush2.bf16.msra.mxu0 %v8095
    %8979 = vmatprep.subr.bf16.mxu0 %v8090
    %8980 = vmatpush2.bf16.msra.mxu0 %v8089
    %8981 = vmatprep.subr.bf16.mxu0 %v8084
    %8982 = vmatpush2.bf16.msra.mxu0 %v8083
    %8983 = vmatprep.subr.bf16.mxu0 %v8078
    %8984 = vmatpush2.bf16.msra.mxu0 %v8077
    %8985 = vmatprep.subr.bf16.mxu0 %v8072
    %8986 = vmatpush2.bf16.msra.mxu0 %v8071
    %8987 = vmatprep.mubr.bf16.mxu0 %v5300
    %8988 = vmatmul.mubr.bf16.gmra.mxu0 %v5299
    %v8989 = vpop.f32.mrf.mxu0
    %v8990 = vadd.f32 %v8949, %v8989
    %v8991 = vpop.f32.mrf.mxu0
    %v8992 = vadd.f32 %v8951, %v8991
    %v8993 = vpop.f32.mrf.mxu0
    %v8994 = vpop.f32.mrf.mxu0
    %8995 = vdwg.mxu0
    %8996 = vmatprep.subr.bf16.mxu0 %v8162
    %8997 = vmatpush1.bf16.msra.mxu0 %v8161
    %8998 = vmatprep.subr.bf16.mxu0 %v8156
    %8999 = vmatpush1.bf16.msra.mxu0 %v8155
    %9000 = vmatprep.subr.bf16.mxu0 %v8150
    %9001 = vmatpush1.bf16.msra.mxu0 %v8149
    %9002 = vmatprep.subr.bf16.mxu0 %v8144
    %9003 = vmatpush1.bf16.msra.mxu0 %v8143
    %9004 = vmatprep.subr.bf16.mxu0 %v8138
    %9005 = vmatpush1.bf16.msra.mxu0 %v8137
    %9006 = vmatprep.subr.bf16.mxu0 %v8132
    %9007 = vmatpush1.bf16.msra.mxu0 %v8131
    %9008 = vmatprep.subr.bf16.mxu0 %v8126
    %9009 = vmatpush1.bf16.msra.mxu0 %v8125
    %9010 = vmatprep.subr.bf16.mxu0 %v8120
    %9011 = vmatpush1.bf16.msra.mxu0 %v8119
    %9012 = vmatprep.subr.bf16.mxu0 %v8210
    %9013 = vmatpush2.bf16.msra.mxu0 %v8209
    %9014 = vmatprep.subr.bf16.mxu0 %v8204
    %9015 = vmatpush2.bf16.msra.mxu0 %v8203
    %9016 = vmatprep.subr.bf16.mxu0 %v8198
    %9017 = vmatpush2.bf16.msra.mxu0 %v8197
    %9018 = vmatprep.subr.bf16.mxu0 %v8192
    %9019 = vmatpush2.bf16.msra.mxu0 %v8191
    %9020 = vmatprep.subr.bf16.mxu0 %v8186
    %9021 = vmatpush2.bf16.msra.mxu0 %v8185
    %9022 = vmatprep.subr.bf16.mxu0 %v8180
    %9023 = vmatpush2.bf16.msra.mxu0 %v8179
    %9024 = vmatprep.subr.bf16.mxu0 %v8174
    %9025 = vmatpush2.bf16.msra.mxu0 %v8173
    %9026 = vmatprep.subr.bf16.mxu0 %v8168
    %9027 = vmatpush2.bf16.msra.mxu0 %v8167
    %9028 = vmatprep.mubr.bf16.mxu0 %v5302
    %9029 = vmatmul.mubr.bf16.gmra.mxu0 %v5301
    %v9030 = vpop.f32.mrf.mxu0
    %v9031 = vadd.f32 %v8990, %v9030
    %v9032 = vpop.f32.mrf.mxu0
    %v9033 = vadd.f32 %v8992, %v9032
    %v9034 = vpop.f32.mrf.mxu0
    %v9035 = vpop.f32.mrf.mxu0
    %9036 = vdwg.mxu0
    %9037 = vmatprep.subr.bf16.mxu0 %v7684
    %9038 = vmatpush1.bf16.msra.mxu0 %v7683
    %9039 = vmatprep.subr.bf16.mxu0 %v7678
    %9040 = vmatpush1.bf16.msra.mxu0 %v7677
    %9041 = vmatprep.subr.bf16.mxu0 %v7672
    %9042 = vmatpush1.bf16.msra.mxu0 %v7671
    %9043 = vmatprep.subr.bf16.mxu0 %v7666
    %9044 = vmatpush1.bf16.msra.mxu0 %v7665
    %9045 = vmatprep.subr.bf16.mxu0 %v7660
    %9046 = vmatpush1.bf16.msra.mxu0 %v7659
    %9047 = vmatprep.subr.bf16.mxu0 %v7654
    %9048 = vmatpush1.bf16.msra.mxu0 %v7653
    %9049 = vmatprep.subr.bf16.mxu0 %v7648
    %9050 = vmatpush1.bf16.msra.mxu0 %v7647
    %9051 = vmatprep.subr.bf16.mxu0 %v7642
    %9052 = vmatpush1.bf16.msra.mxu0 %v7641
    %9053 = vmatprep.subr.bf16.mxu0 %v7732
    %9054 = vmatpush2.bf16.msra.mxu0 %v7731
    %9055 = vmatprep.subr.bf16.mxu0 %v7726
    %9056 = vmatpush2.bf16.msra.mxu0 %v7725
    %9057 = vmatprep.subr.bf16.mxu0 %v7720
    %9058 = vmatpush2.bf16.msra.mxu0 %v7719
    %9059 = vmatprep.subr.bf16.mxu0 %v7714
    %9060 = vmatpush2.bf16.msra.mxu0 %v7713
    %9061 = vmatprep.subr.bf16.mxu0 %v7708
    %9062 = vmatpush2.bf16.msra.mxu0 %v7707
    %9063 = vmatprep.subr.bf16.mxu0 %v7702
    %9064 = vmatpush2.bf16.msra.mxu0 %v7701
    %9065 = vmatprep.subr.bf16.mxu0 %v7696
    %9066 = vmatpush2.bf16.msra.mxu0 %v7695
    %9067 = vmatprep.subr.bf16.mxu0 %v7690
    %9068 = vmatpush2.bf16.msra.mxu0 %v7689
    %9069 = vmatprep.mubr.bf16.mxu0 %v5292
    %9070 = vmatmul.mubr.bf16.gmra.mxu0 %v5291
    %v9071 = vpop.f32.mrf.mxu0
    %v9072 = vadd.f32 %v5892, %v9071
    %v9073 = vpop.f32.mrf.mxu0
    %v9074 = vadd.f32 %v5896, %v9073
    %v9075 = vpop.f32.mrf.mxu0
    %v9076 = vpop.f32.mrf.mxu0
    %9077 = vdwg.mxu0
    %9078 = vmatprep.subr.bf16.mxu0 %v7780
    %9079 = vmatpush1.bf16.msra.mxu0 %v7779
    %9080 = vmatprep.subr.bf16.mxu0 %v7774
    %9081 = vmatpush1.bf16.msra.mxu0 %v7773
    %9082 = vmatprep.subr.bf16.mxu0 %v7768
    %9083 = vmatpush1.bf16.msra.mxu0 %v7767
    %9084 = vmatprep.subr.bf16.mxu0 %v7762
    %9085 = vmatpush1.bf16.msra.mxu0 %v7761
    %9086 = vmatprep.subr.bf16.mxu0 %v7756
    %9087 = vmatpush1.bf16.msra.mxu0 %v7755
    %9088 = vmatprep.subr.bf16.mxu0 %v7750
    %9089 = vmatpush1.bf16.msra.mxu0 %v7749
    %9090 = vmatprep.subr.bf16.mxu0 %v7744
    %9091 = vmatpush1.bf16.msra.mxu0 %v7743
    %9092 = vmatprep.subr.bf16.mxu0 %v7738
    %9093 = vmatpush1.bf16.msra.mxu0 %v7737
    %9094 = vmatprep.subr.bf16.mxu0 %v7828
    %9095 = vmatpush2.bf16.msra.mxu0 %v7827
    %9096 = vmatprep.subr.bf16.mxu0 %v7822
    %9097 = vmatpush2.bf16.msra.mxu0 %v7821
    %9098 = vmatprep.subr.bf16.mxu0 %v7816
    %9099 = vmatpush2.bf16.msra.mxu0 %v7815
    %9100 = vmatprep.subr.bf16.mxu0 %v7810
    %9101 = vmatpush2.bf16.msra.mxu0 %v7809
    %9102 = vmatprep.subr.bf16.mxu0 %v7804
    %9103 = vmatpush2.bf16.msra.mxu0 %v7803
    %9104 = vmatprep.subr.bf16.mxu0 %v7798
    %9105 = vmatpush2.bf16.msra.mxu0 %v7797
    %9106 = vmatprep.subr.bf16.mxu0 %v7792
    %9107 = vmatpush2.bf16.msra.mxu0 %v7791
    %9108 = vmatprep.subr.bf16.mxu0 %v7786
    %9109 = vmatpush2.bf16.msra.mxu0 %v7785
    %9110 = vmatprep.mubr.bf16.mxu0 %v5294
    %9111 = vmatmul.mubr.bf16.gmra.mxu0 %v5293
    %v9112 = vpop.f32.mrf.mxu0
    %v9113 = vadd.f32 %v9072, %v9112
    %v9114 = vpop.f32.mrf.mxu0
    %v9115 = vadd.f32 %v9074, %v9114
    %v9116 = vpop.f32.mrf.mxu0
    %v9117 = vpop.f32.mrf.mxu0
    %9118 = vdwg.mxu0
    %9119 = vmatprep.subr.bf16.mxu0 %v7876
    %9120 = vmatpush1.bf16.msra.mxu0 %v7875
    %9121 = vmatprep.subr.bf16.mxu0 %v7870
    %9122 = vmatpush1.bf16.msra.mxu0 %v7869
    %9123 = vmatprep.subr.bf16.mxu0 %v7864
    %9124 = vmatpush1.bf16.msra.mxu0 %v7863
    %9125 = vmatprep.subr.bf16.mxu0 %v7858
    %9126 = vmatpush1.bf16.msra.mxu0 %v7857
    %9127 = vmatprep.subr.bf16.mxu0 %v7852
    %9128 = vmatpush1.bf16.msra.mxu0 %v7851
    %9129 = vmatprep.subr.bf16.mxu0 %v7846
    %9130 = vmatpush1.bf16.msra.mxu0 %v7845
    %9131 = vmatprep.subr.bf16.mxu0 %v7840
    %9132 = vmatpush1.bf16.msra.mxu0 %v7839
    %9133 = vmatprep.subr.bf16.mxu0 %v7834
    %9134 = vmatpush1.bf16.msra.mxu0 %v7833
    %9135 = vmatprep.subr.bf16.mxu0 %v7924
    %9136 = vmatpush2.bf16.msra.mxu0 %v7923
    %9137 = vmatprep.subr.bf16.mxu0 %v7918
    %9138 = vmatpush2.bf16.msra.mxu0 %v7917
    %9139 = vmatprep.subr.bf16.mxu0 %v7912
    %9140 = vmatpush2.bf16.msra.mxu0 %v7911
    %9141 = vmatprep.subr.bf16.mxu0 %v7906
    %9142 = vmatpush2.bf16.msra.mxu0 %v7905
    %9143 = vmatprep.subr.bf16.mxu0 %v7900
    %9144 = vmatpush2.bf16.msra.mxu0 %v7899
    %9145 = vmatprep.subr.bf16.mxu0 %v7894
    %9146 = vmatpush2.bf16.msra.mxu0 %v7893
    %9147 = vmatprep.subr.bf16.mxu0 %v7888
    %9148 = vmatpush2.bf16.msra.mxu0 %v7887
    %9149 = vmatprep.subr.bf16.mxu0 %v7882
    %9150 = vmatpush2.bf16.msra.mxu0 %v7881
    %9151 = vmatprep.mubr.bf16.mxu0 %v5296
    %9152 = vmatmul.mubr.bf16.gmra.mxu0 %v5295
    %v9153 = vpop.f32.mrf.mxu0
    %v9154 = vadd.f32 %v9113, %v9153
    %v9155 = vpop.f32.mrf.mxu0
    %v9156 = vadd.f32 %v9115, %v9155
    %v9157 = vpop.f32.mrf.mxu0
    %v9158 = vpop.f32.mrf.mxu0
    %9159 = vdwg.mxu0
    %9160 = vmatprep.subr.bf16.mxu0 %v7972
    %9161 = vmatpush1.bf16.msra.mxu0 %v7971
    %9162 = vmatprep.subr.bf16.mxu0 %v7966
    %9163 = vmatpush1.bf16.msra.mxu0 %v7965
    %9164 = vmatprep.subr.bf16.mxu0 %v7960
    %9165 = vmatpush1.bf16.msra.mxu0 %v7959
    %9166 = vmatprep.subr.bf16.mxu0 %v7954
    %9167 = vmatpush1.bf16.msra.mxu0 %v7953
    %9168 = vmatprep.subr.bf16.mxu0 %v7948
    %9169 = vmatpush1.bf16.msra.mxu0 %v7947
    %9170 = vmatprep.subr.bf16.mxu0 %v7942
    %9171 = vmatpush1.bf16.msra.mxu0 %v7941
    %9172 = vmatprep.subr.bf16.mxu0 %v7936
    %9173 = vmatpush1.bf16.msra.mxu0 %v7935
    %9174 = vmatprep.subr.bf16.mxu0 %v7930
    %9175 = vmatpush1.bf16.msra.mxu0 %v7929
    %9176 = vmatprep.subr.bf16.mxu0 %v8020
    %9177 = vmatpush2.bf16.msra.mxu0 %v8019
    %9178 = vmatprep.subr.bf16.mxu0 %v8014
    %9179 = vmatpush2.bf16.msra.mxu0 %v8013
    %9180 = vmatprep.subr.bf16.mxu0 %v8008
    %9181 = vmatpush2.bf16.msra.mxu0 %v8007
    %9182 = vmatprep.subr.bf16.mxu0 %v8002
    %9183 = vmatpush2.bf16.msra.mxu0 %v8001
    %9184 = vmatprep.subr.bf16.mxu0 %v7996
    %9185 = vmatpush2.bf16.msra.mxu0 %v7995
    %9186 = vmatprep.subr.bf16.mxu0 %v7990
    %9187 = vmatpush2.bf16.msra.mxu0 %v7989
    %9188 = vmatprep.subr.bf16.mxu0 %v7984
    %9189 = vmatpush2.bf16.msra.mxu0 %v7983
    %9190 = vmatprep.subr.bf16.mxu0 %v7978
    %9191 = vmatpush2.bf16.msra.mxu0 %v7977
    %9192 = vmatprep.mubr.bf16.mxu0 %v5298
    %9193 = vmatmul.mubr.bf16.gmra.mxu0 %v5297
    %v9194 = vpop.f32.mrf.mxu0
    %v9195 = vadd.f32 %v9154, %v9194
    %v9196 = vpop.f32.mrf.mxu0
    %v9197 = vadd.f32 %v9156, %v9196
    %v9198 = vpop.f32.mrf.mxu0
    %v9199 = vpop.f32.mrf.mxu0
    %9200 = vdwg.mxu0
    %9201 = vmatprep.subr.bf16.mxu0 %v8068
    %9202 = vmatpush1.bf16.msra.mxu0 %v8067
    %9203 = vmatprep.subr.bf16.mxu0 %v8062
    %9204 = vmatpush1.bf16.msra.mxu0 %v8061
    %9205 = vmatprep.subr.bf16.mxu0 %v8056
    %9206 = vmatpush1.bf16.msra.mxu0 %v8055
    %9207 = vmatprep.subr.bf16.mxu0 %v8050
    %9208 = vmatpush1.bf16.msra.mxu0 %v8049
    %9209 = vmatprep.subr.bf16.mxu0 %v8044
    %9210 = vmatpush1.bf16.msra.mxu0 %v8043
    %9211 = vmatprep.subr.bf16.mxu0 %v8038
    %9212 = vmatpush1.bf16.msra.mxu0 %v8037
    %9213 = vmatprep.subr.bf16.mxu0 %v8032
    %9214 = vmatpush1.bf16.msra.mxu0 %v8031
    %9215 = vmatprep.subr.bf16.mxu0 %v8026
    %9216 = vmatpush1.bf16.msra.mxu0 %v8025
    %9217 = vmatprep.subr.bf16.mxu0 %v8116
    %9218 = vmatpush2.bf16.msra.mxu0 %v8115
    %9219 = vmatprep.subr.bf16.mxu0 %v8110
    %9220 = vmatpush2.bf16.msra.mxu0 %v8109
    %9221 = vmatprep.subr.bf16.mxu0 %v8104
    %9222 = vmatpush2.bf16.msra.mxu0 %v8103
    %9223 = vmatprep.subr.bf16.mxu0 %v8098
    %9224 = vmatpush2.bf16.msra.mxu0 %v8097
    %9225 = vmatprep.subr.bf16.mxu0 %v8092
    %9226 = vmatpush2.bf16.msra.mxu0 %v8091
    %9227 = vmatprep.subr.bf16.mxu0 %v8086
    %9228 = vmatpush2.bf16.msra.mxu0 %v8085
    %9229 = vmatprep.subr.bf16.mxu0 %v8080
    %9230 = vmatpush2.bf16.msra.mxu0 %v8079
    %9231 = vmatprep.subr.bf16.mxu0 %v8074
    %9232 = vmatpush2.bf16.msra.mxu0 %v8073
    %9233 = vmatprep.mubr.bf16.mxu0 %v5300
    %9234 = vmatmul.mubr.bf16.gmra.mxu0 %v5299
    %v9235 = vpop.f32.mrf.mxu0
    %v9236 = vadd.f32 %v9195, %v9235
    %v9237 = vpop.f32.mrf.mxu0
    %v9238 = vadd.f32 %v9197, %v9237
    %v9239 = vpop.f32.mrf.mxu0
    %v9240 = vpop.f32.mrf.mxu0
    %9241 = vdwg.mxu0
    %9242 = vmatprep.subr.bf16.mxu0 %v8164
    %9243 = vmatpush1.bf16.msra.mxu0 %v8163
    %9244 = vmatprep.subr.bf16.mxu0 %v8158
    %9245 = vmatpush1.bf16.msra.mxu0 %v8157
    %9246 = vmatprep.subr.bf16.mxu0 %v8152
    %9247 = vmatpush1.bf16.msra.mxu0 %v8151
    %9248 = vmatprep.subr.bf16.mxu0 %v8146
    %9249 = vmatpush1.bf16.msra.mxu0 %v8145
    %9250 = vmatprep.subr.bf16.mxu0 %v8140
    %9251 = vmatpush1.bf16.msra.mxu0 %v8139
    %9252 = vmatprep.subr.bf16.mxu0 %v8134
    %9253 = vmatpush1.bf16.msra.mxu0 %v8133
    %9254 = vmatprep.subr.bf16.mxu0 %v8128
    %9255 = vmatpush1.bf16.msra.mxu0 %v8127
    %9256 = vmatprep.subr.bf16.mxu0 %v8122
    %9257 = vmatpush1.bf16.msra.mxu0 %v8121
    %9258 = vmatprep.subr.bf16.mxu0 %v8212
    %9259 = vmatpush2.bf16.msra.mxu0 %v8211
    %9260 = vmatprep.subr.bf16.mxu0 %v8206
    %9261 = vmatpush2.bf16.msra.mxu0 %v8205
    %9262 = vmatprep.subr.bf16.mxu0 %v8200
    %9263 = vmatpush2.bf16.msra.mxu0 %v8199
    %9264 = vmatprep.subr.bf16.mxu0 %v8194
    %9265 = vmatpush2.bf16.msra.mxu0 %v8193
    %9266 = vmatprep.subr.bf16.mxu0 %v8188
    %9267 = vmatpush2.bf16.msra.mxu0 %v8187
    %9268 = vmatprep.subr.bf16.mxu0 %v8182
    %9269 = vmatpush2.bf16.msra.mxu0 %v8181
    %9270 = vmatprep.subr.bf16.mxu0 %v8176
    %9271 = vmatpush2.bf16.msra.mxu0 %v8175
    %9272 = vmatprep.subr.bf16.mxu0 %v8170
    %9273 = vmatpush2.bf16.msra.mxu0 %v8169
    %9274 = vmatprep.mubr.bf16.mxu0 %v5302
    %9275 = vmatmul.mubr.bf16.gmra.mxu0 %v5301
    %v9276 = vpop.f32.mrf.mxu0
    %v9277 = vadd.f32 %v9236, %v9276
    %v9278 = vpop.f32.mrf.mxu0
    %v9279 = vadd.f32 %v9238, %v9278
    %v9280 = vpop.f32.mrf.mxu0
    %v9281 = vpop.f32.mrf.mxu0
    %9282 = vdwg.mxu0
    %9283 = vmatprep.subr.bf16.mxu0 %v7686
    %9284 = vmatpush1.bf16.msra.mxu0 %v7685
    %9285 = vmatprep.subr.bf16.mxu0 %v7680
    %9286 = vmatpush1.bf16.msra.mxu0 %v7679
    %9287 = vmatprep.subr.bf16.mxu0 %v7674
    %9288 = vmatpush1.bf16.msra.mxu0 %v7673
    %9289 = vmatprep.subr.bf16.mxu0 %v7668
    %9290 = vmatpush1.bf16.msra.mxu0 %v7667
    %9291 = vmatprep.subr.bf16.mxu0 %v7662
    %9292 = vmatpush1.bf16.msra.mxu0 %v7661
    %9293 = vmatprep.subr.bf16.mxu0 %v7656
    %9294 = vmatpush1.bf16.msra.mxu0 %v7655
    %9295 = vmatprep.subr.bf16.mxu0 %v7650
    %9296 = vmatpush1.bf16.msra.mxu0 %v7649
    %9297 = vmatprep.subr.bf16.mxu0 %v7644
    %9298 = vmatpush1.bf16.msra.mxu0 %v7643
    %9299 = vmatprep.subr.bf16.mxu0 %v7734
    %9300 = vmatpush2.bf16.msra.mxu0 %v7733
    %9301 = vmatprep.subr.bf16.mxu0 %v7728
    %9302 = vmatpush2.bf16.msra.mxu0 %v7727
    %9303 = vmatprep.subr.bf16.mxu0 %v7722
    %9304 = vmatpush2.bf16.msra.mxu0 %v7721
    %9305 = vmatprep.subr.bf16.mxu0 %v7716
    %9306 = vmatpush2.bf16.msra.mxu0 %v7715
    %9307 = vmatprep.subr.bf16.mxu0 %v7710
    %9308 = vmatpush2.bf16.msra.mxu0 %v7709
    %9309 = vmatprep.subr.bf16.mxu0 %v7704
    %9310 = vmatpush2.bf16.msra.mxu0 %v7703
    %9311 = vmatprep.subr.bf16.mxu0 %v7698
    %9312 = vmatpush2.bf16.msra.mxu0 %v7697
    %9313 = vmatprep.subr.bf16.mxu0 %v7692
    %9314 = vmatpush2.bf16.msra.mxu0 %v7691
    %9315 = vmatprep.mubr.bf16.mxu0 %v5292
    %9316 = vmatmul.mubr.bf16.gmra.mxu0 %v5291
    %v9317 = vpop.f32.mrf.mxu0
    %v9318 = vadd.f32 %v5900, %v9317
    %v9319 = vpop.f32.mrf.mxu0
    %v9320 = vadd.f32 %v5904, %v9319
    %v9321 = vpop.f32.mrf.mxu0
    %v9322 = vpop.f32.mrf.mxu0
    %9323 = vdwg.mxu0
    %9324 = vmatprep.subr.bf16.mxu0 %v7782
    %9325 = vmatpush1.bf16.msra.mxu0 %v7781
    %9326 = vmatprep.subr.bf16.mxu0 %v7776
    %9327 = vmatpush1.bf16.msra.mxu0 %v7775
    %9328 = vmatprep.subr.bf16.mxu0 %v7770
    %9329 = vmatpush1.bf16.msra.mxu0 %v7769
    %9330 = vmatprep.subr.bf16.mxu0 %v7764
    %9331 = vmatpush1.bf16.msra.mxu0 %v7763
    %9332 = vmatprep.subr.bf16.mxu0 %v7758
    %9333 = vmatpush1.bf16.msra.mxu0 %v7757
    %9334 = vmatprep.subr.bf16.mxu0 %v7752
    %9335 = vmatpush1.bf16.msra.mxu0 %v7751
    %9336 = vmatprep.subr.bf16.mxu0 %v7746
    %9337 = vmatpush1.bf16.msra.mxu0 %v7745
    %9338 = vmatprep.subr.bf16.mxu0 %v7740
    %9339 = vmatpush1.bf16.msra.mxu0 %v7739
    %9340 = vmatprep.subr.bf16.mxu0 %v7830
    %9341 = vmatpush2.bf16.msra.mxu0 %v7829
    %9342 = vmatprep.subr.bf16.mxu0 %v7824
    %9343 = vmatpush2.bf16.msra.mxu0 %v7823
    %9344 = vmatprep.subr.bf16.mxu0 %v7818
    %9345 = vmatpush2.bf16.msra.mxu0 %v7817
    %9346 = vmatprep.subr.bf16.mxu0 %v7812
    %9347 = vmatpush2.bf16.msra.mxu0 %v7811
    %9348 = vmatprep.subr.bf16.mxu0 %v7806
    %9349 = vmatpush2.bf16.msra.mxu0 %v7805
    %9350 = vmatprep.subr.bf16.mxu0 %v7800
    %9351 = vmatpush2.bf16.msra.mxu0 %v7799
    %9352 = vmatprep.subr.bf16.mxu0 %v7794
    %9353 = vmatpush2.bf16.msra.mxu0 %v7793
    %9354 = vmatprep.subr.bf16.mxu0 %v7788
    %9355 = vmatpush2.bf16.msra.mxu0 %v7787
    %9356 = vmatprep.mubr.bf16.mxu0 %v5294
    %9357 = vmatmul.mubr.bf16.gmra.mxu0 %v5293
    %v9358 = vpop.f32.mrf.mxu0
    %v9359 = vadd.f32 %v9318, %v9358
    %v9360 = vpop.f32.mrf.mxu0
    %v9361 = vadd.f32 %v9320, %v9360
    %v9362 = vpop.f32.mrf.mxu0
    %v9363 = vpop.f32.mrf.mxu0
    %9364 = vdwg.mxu0
    %9365 = vmatprep.subr.bf16.mxu0 %v7878
    %9366 = vmatpush1.bf16.msra.mxu0 %v7877
    %9367 = vmatprep.subr.bf16.mxu0 %v7872
    %9368 = vmatpush1.bf16.msra.mxu0 %v7871
    %9369 = vmatprep.subr.bf16.mxu0 %v7866
    %9370 = vmatpush1.bf16.msra.mxu0 %v7865
    %9371 = vmatprep.subr.bf16.mxu0 %v7860
    %9372 = vmatpush1.bf16.msra.mxu0 %v7859
    %9373 = vmatprep.subr.bf16.mxu0 %v7854
    %9374 = vmatpush1.bf16.msra.mxu0 %v7853
    %9375 = vmatprep.subr.bf16.mxu0 %v7848
    %9376 = vmatpush1.bf16.msra.mxu0 %v7847
    %9377 = vmatprep.subr.bf16.mxu0 %v7842
    %9378 = vmatpush1.bf16.msra.mxu0 %v7841
    %9379 = vmatprep.subr.bf16.mxu0 %v7836
    %9380 = vmatpush1.bf16.msra.mxu0 %v7835
    %9381 = vmatprep.subr.bf16.mxu0 %v7926
    %9382 = vmatpush2.bf16.msra.mxu0 %v7925
    %9383 = vmatprep.subr.bf16.mxu0 %v7920
    %9384 = vmatpush2.bf16.msra.mxu0 %v7919
    %9385 = vmatprep.subr.bf16.mxu0 %v7914
    %9386 = vmatpush2.bf16.msra.mxu0 %v7913
    %9387 = vmatprep.subr.bf16.mxu0 %v7908
    %9388 = vmatpush2.bf16.msra.mxu0 %v7907
    %9389 = vmatprep.subr.bf16.mxu0 %v7902
    %9390 = vmatpush2.bf16.msra.mxu0 %v7901
    %9391 = vmatprep.subr.bf16.mxu0 %v7896
    %9392 = vmatpush2.bf16.msra.mxu0 %v7895
    %9393 = vmatprep.subr.bf16.mxu0 %v7890
    %9394 = vmatpush2.bf16.msra.mxu0 %v7889
    %9395 = vmatprep.subr.bf16.mxu0 %v7884
    %9396 = vmatpush2.bf16.msra.mxu0 %v7883
    %9397 = vmatprep.mubr.bf16.mxu0 %v5296
    %9398 = vmatmul.mubr.bf16.gmra.mxu0 %v5295
    %v9399 = vpop.f32.mrf.mxu0
    %v9400 = vadd.f32 %v9359, %v9399
    %v9401 = vpop.f32.mrf.mxu0
    %v9402 = vadd.f32 %v9361, %v9401
    %v9403 = vpop.f32.mrf.mxu0
    %v9404 = vpop.f32.mrf.mxu0
    %9405 = vdwg.mxu0
    %9406 = vmatprep.subr.bf16.mxu0 %v7974
    %9407 = vmatpush1.bf16.msra.mxu0 %v7973
    %9408 = vmatprep.subr.bf16.mxu0 %v7968
    %9409 = vmatpush1.bf16.msra.mxu0 %v7967
    %9410 = vmatprep.subr.bf16.mxu0 %v7962
    %9411 = vmatpush1.bf16.msra.mxu0 %v7961
    %9412 = vmatprep.subr.bf16.mxu0 %v7956
    %9413 = vmatpush1.bf16.msra.mxu0 %v7955
    %9414 = vmatprep.subr.bf16.mxu0 %v7950
    %9415 = vmatpush1.bf16.msra.mxu0 %v7949
    %9416 = vmatprep.subr.bf16.mxu0 %v7944
    %9417 = vmatpush1.bf16.msra.mxu0 %v7943
    %9418 = vmatprep.subr.bf16.mxu0 %v7938
    %9419 = vmatpush1.bf16.msra.mxu0 %v7937
    %9420 = vmatprep.subr.bf16.mxu0 %v7932
    %9421 = vmatpush1.bf16.msra.mxu0 %v7931
    %9422 = vmatprep.subr.bf16.mxu0 %v8022
    %9423 = vmatpush2.bf16.msra.mxu0 %v8021
    %9424 = vmatprep.subr.bf16.mxu0 %v8016
    %9425 = vmatpush2.bf16.msra.mxu0 %v8015
    %9426 = vmatprep.subr.bf16.mxu0 %v8010
    %9427 = vmatpush2.bf16.msra.mxu0 %v8009
    %9428 = vmatprep.subr.bf16.mxu0 %v8004
    %9429 = vmatpush2.bf16.msra.mxu0 %v8003
    %9430 = vmatprep.subr.bf16.mxu0 %v7998
    %9431 = vmatpush2.bf16.msra.mxu0 %v7997
    %9432 = vmatprep.subr.bf16.mxu0 %v7992
    %9433 = vmatpush2.bf16.msra.mxu0 %v7991
    %9434 = vmatprep.subr.bf16.mxu0 %v7986
    %9435 = vmatpush2.bf16.msra.mxu0 %v7985
    %9436 = vmatprep.subr.bf16.mxu0 %v7980
    %9437 = vmatpush2.bf16.msra.mxu0 %v7979
    %9438 = vmatprep.mubr.bf16.mxu0 %v5298
    %9439 = vmatmul.mubr.bf16.gmra.mxu0 %v5297
    %v9440 = vpop.f32.mrf.mxu0
    %v9441 = vadd.f32 %v9400, %v9440
    %v9442 = vpop.f32.mrf.mxu0
    %v9443 = vadd.f32 %v9402, %v9442
    %v9444 = vpop.f32.mrf.mxu0
    %v9445 = vpop.f32.mrf.mxu0
    %9446 = vdwg.mxu0
    %9447 = vmatprep.subr.bf16.mxu0 %v8070
    %9448 = vmatpush1.bf16.msra.mxu0 %v8069
    %9449 = vmatprep.subr.bf16.mxu0 %v8064
    %9450 = vmatpush1.bf16.msra.mxu0 %v8063
    %9451 = vmatprep.subr.bf16.mxu0 %v8058
    %9452 = vmatpush1.bf16.msra.mxu0 %v8057
    %9453 = vmatprep.subr.bf16.mxu0 %v8052
    %9454 = vmatpush1.bf16.msra.mxu0 %v8051
    %9455 = vmatprep.subr.bf16.mxu0 %v8046
    %9456 = vmatpush1.bf16.msra.mxu0 %v8045
    %9457 = vmatprep.subr.bf16.mxu0 %v8040
    %9458 = vmatpush1.bf16.msra.mxu0 %v8039
    %9459 = vmatprep.subr.bf16.mxu0 %v8034
    %9460 = vmatpush1.bf16.msra.mxu0 %v8033
    %9461 = vmatprep.subr.bf16.mxu0 %v8028
    %9462 = vmatpush1.bf16.msra.mxu0 %v8027
    %9463 = vmatprep.subr.bf16.mxu0 %v8118
    %9464 = vmatpush2.bf16.msra.mxu0 %v8117
    %9465 = vmatprep.subr.bf16.mxu0 %v8112
    %9466 = vmatpush2.bf16.msra.mxu0 %v8111
    %9467 = vmatprep.subr.bf16.mxu0 %v8106
    %9468 = vmatpush2.bf16.msra.mxu0 %v8105
    %9469 = vmatprep.subr.bf16.mxu0 %v8100
    %9470 = vmatpush2.bf16.msra.mxu0 %v8099
    %9471 = vmatprep.subr.bf16.mxu0 %v8094
    %9472 = vmatpush2.bf16.msra.mxu0 %v8093
    %9473 = vmatprep.subr.bf16.mxu0 %v8088
    %9474 = vmatpush2.bf16.msra.mxu0 %v8087
    %9475 = vmatprep.subr.bf16.mxu0 %v8082
    %9476 = vmatpush2.bf16.msra.mxu0 %v8081
    %9477 = vmatprep.subr.bf16.mxu0 %v8076
    %9478 = vmatpush2.bf16.msra.mxu0 %v8075
    %9479 = vmatprep.mubr.bf16.mxu0 %v5300
    %9480 = vmatmul.mubr.bf16.gmra.mxu0 %v5299
    %v9481 = vpop.f32.mrf.mxu0
    %v9482 = vadd.f32 %v9441, %v9481
    %v9483 = vpop.f32.mrf.mxu0
    %v9484 = vadd.f32 %v9443, %v9483
    %v9485 = vpop.f32.mrf.mxu0
    %v9486 = vpop.f32.mrf.mxu0
    %9487 = vdwg.mxu0
    %9488 = vmatprep.subr.bf16.mxu0 %v8166
    %9489 = vmatpush1.bf16.msra.mxu0 %v8165
    %9490 = vmatprep.subr.bf16.mxu0 %v8160
    %9491 = vmatpush1.bf16.msra.mxu0 %v8159
    %9492 = vmatprep.subr.bf16.mxu0 %v8154
    %9493 = vmatpush1.bf16.msra.mxu0 %v8153
    %9494 = vmatprep.subr.bf16.mxu0 %v8148
    %9495 = vmatpush1.bf16.msra.mxu0 %v8147
    %9496 = vmatprep.subr.bf16.mxu0 %v8142
    %9497 = vmatpush1.bf16.msra.mxu0 %v8141
    %9498 = vmatprep.subr.bf16.mxu0 %v8136
    %9499 = vmatpush1.bf16.msra.mxu0 %v8135
    %9500 = vmatprep.subr.bf16.mxu0 %v8130
    %9501 = vmatpush1.bf16.msra.mxu0 %v8129
    %9502 = vmatprep.subr.bf16.mxu0 %v8124
    %9503 = vmatpush1.bf16.msra.mxu0 %v8123
    %9504 = vmatprep.subr.bf16.mxu0 %v8214
    %9505 = vmatpush2.bf16.msra.mxu0 %v8213
    %9506 = vmatprep.subr.bf16.mxu0 %v8208
    %9507 = vmatpush2.bf16.msra.mxu0 %v8207
    %9508 = vmatprep.subr.bf16.mxu0 %v8202
    %9509 = vmatpush2.bf16.msra.mxu0 %v8201
    %9510 = vmatprep.subr.bf16.mxu0 %v8196
    %9511 = vmatpush2.bf16.msra.mxu0 %v8195
    %9512 = vmatprep.subr.bf16.mxu0 %v8190
    %9513 = vmatpush2.bf16.msra.mxu0 %v8189
    %9514 = vmatprep.subr.bf16.mxu0 %v8184
    %9515 = vmatpush2.bf16.msra.mxu0 %v8183
    %9516 = vmatprep.subr.bf16.mxu0 %v8178
    %9517 = vmatpush2.bf16.msra.mxu0 %v8177
    %9518 = vmatprep.subr.bf16.mxu0 %v8172
    %9519 = vmatpush2.bf16.msra.mxu0 %v8171
    %9520 = vmatprep.mubr.bf16.mxu0 %v5302
    %9521 = vmatmul.mubr.bf16.gmra.mxu0 %v5301
    %v9522 = vpop.f32.mrf.mxu0
    %v9523 = vadd.f32 %v9482, %v9522
    %v9524 = vpop.f32.mrf.mxu0
    %v9525 = vadd.f32 %v9484, %v9524
    %v9526 = vpop.f32.mrf.mxu0
    %v9527 = vpop.f32.mrf.mxu0
    %9528 = vdwg.mxu0
    %vm9529 = vcmp.gt.f32.partialorder %v9031, 0.0
    %vm9530 = vcmp.gt.f32.partialorder %v9033, 0.0
    %vm9531 = vcmp.gt.f32.partialorder %v9277, 0.0
    %vm9532 = vcmp.gt.f32.partialorder %v9279, 0.0
    %vm9533 = vcmp.gt.f32.partialorder %v9523, 0.0
    %vm9534 = vcmp.gt.f32.partialorder %v9525, 0.0
    %v9535 = vmul.f32 %v9031, 0.01
    %v9536 = vmul.f32 %v9033, 0.01
    %v9537 = vmul.f32 %v9277, 0.01
    %v9538 = vmul.f32 %v9279, 0.01
    %v9539 = vmul.f32 %v9523, 0.01
    %v9540 = vmul.f32 %v9525, 0.01
    %v9541 = vsel %vm9529, %v9031, %v9535
    %v9542 = vsel %vm9530, %v9033, %v9536
    %v9543 = vsel %vm9531, %v9277, %v9537
    %v9544 = vsel %vm9532, %v9279, %v9538
    %v9545 = vsel %vm9533, %v9523, %v9539
    %v9546 = vsel %vm9534, %v9525, %v9540
    %v9547 = vpack.c.bf16 %v9541, %v9541
    %v9548 = vpack.c.bf16 %v9542, %v9542
    %v9549 = vpack.c.bf16 %v9543, %v9543
    %v9550 = vpack.c.bf16 %v9544, %v9544
    %v9551 = vpack.c.bf16 %v9545, %v9545
    %v9552 = vpack.c.bf16 %v9546, %v9546
    %v9553 = vld [vmem:[#allocation11] sm:$0xff]
    %v9554 = vld [vmem:[#allocation11 + $0x8] sm:$0xff]
    %v9555 = vld [vmem:[#allocation11 + $0x10] sm:$0xff]
    %v9556 = vld [vmem:[#allocation11 + $0x18] sm:$0xff]
    %v9557 = vld [vmem:[#allocation11 + $0x20] sm:$0xff]
    %v9558 = vld [vmem:[#allocation11 + $0x28] sm:$0xff]
    %v9559 = vld [vmem:[#allocation11 + $0x30] sm:$0xff]
    %v9560 = vld [vmem:[#allocation11 + $0x38] sm:$0xff]
    %v9561 = vld [vmem:[#allocation11 + $0x40] sm:$0xff]
    %v9562 = vld [vmem:[#allocation11 + $0x48] sm:$0xff]
    %v9563 = vld [vmem:[#allocation11 + $0x50] sm:$0xff]
    %v9564 = vld [vmem:[#allocation11 + $0x58] sm:$0xff]
    %v9565 = vld [vmem:[#allocation11 + $0x60] sm:$0xff]
    %v9566 = vld [vmem:[#allocation11 + $0x68] sm:$0xff]
    %v9567 = vld [vmem:[#allocation11 + $0x70] sm:$0xff]
    %v9568 = vld [vmem:[#allocation11 + $0x78] sm:$0xff]
    %v9569 = vld [vmem:[#allocation11 + $0x80] sm:$0xff]
    %v9570 = vld [vmem:[#allocation11 + $0x88] sm:$0xff]
    %v9571 = vld [vmem:[#allocation11 + $0x90] sm:$0xff]
    %v9572 = vld [vmem:[#allocation11 + $0x98] sm:$0xff]
    %v9573 = vld [vmem:[#allocation11 + $0xa0] sm:$0xff]
    %v9574 = vld [vmem:[#allocation11 + $0xa8] sm:$0xff]
    %v9575 = vld [vmem:[#allocation11 + $0xb0] sm:$0xff]
    %v9576 = vld [vmem:[#allocation11 + $0xb8] sm:$0xff]
    %v9577 = vld [vmem:[#allocation11 + $0xc0] sm:$0xff]
    %v9578 = vld [vmem:[#allocation11 + $0xc8] sm:$0xff]
    %v9579 = vld [vmem:[#allocation11 + $0xd0] sm:$0xff]
    %v9580 = vld [vmem:[#allocation11 + $0xd8] sm:$0xff]
    %v9581 = vld [vmem:[#allocation11 + $0xe0] sm:$0xff]
    %v9582 = vld [vmem:[#allocation11 + $0xe8] sm:$0xff]
    %v9583 = vld [vmem:[#allocation11 + $0xf0] sm:$0xff]
    %v9584 = vld [vmem:[#allocation11 + $0xf8] sm:$0xff]
    %v9585 = vld [vmem:[#allocation11 + $0x100] sm:$0xff]
    %v9586 = vld [vmem:[#allocation11 + $0x108] sm:$0xff]
    %v9587 = vld [vmem:[#allocation11 + $0x110] sm:$0xff]
    %v9588 = vld [vmem:[#allocation11 + $0x118] sm:$0xff]
    %v9589 = vld [vmem:[#allocation11 + $0x120] sm:$0xff]
    %v9590 = vld [vmem:[#allocation11 + $0x128] sm:$0xff]
    %v9591 = vld [vmem:[#allocation11 + $0x130] sm:$0xff]
    %v9592 = vld [vmem:[#allocation11 + $0x138] sm:$0xff]
    %v9593 = vld [vmem:[#allocation11 + $0x140] sm:$0xff]
    %v9594 = vld [vmem:[#allocation11 + $0x148] sm:$0xff]
    %v9595 = vld [vmem:[#allocation11 + $0x150] sm:$0xff]
    %v9596 = vld [vmem:[#allocation11 + $0x158] sm:$0xff]
    %v9597 = vld [vmem:[#allocation11 + $0x160] sm:$0xff]
    %v9598 = vld [vmem:[#allocation11 + $0x168] sm:$0xff]
    %v9599 = vld [vmem:[#allocation11 + $0x170] sm:$0xff]
    %v9600 = vld [vmem:[#allocation11 + $0x178] sm:$0xff]
    %v9601 = vld [vmem:[#allocation11 + $0x180] sm:$0xff]
    %v9602 = vld [vmem:[#allocation11 + $0x188] sm:$0xff]
    %v9603 = vld [vmem:[#allocation11 + $0x190] sm:$0xff]
    %v9604 = vld [vmem:[#allocation11 + $0x198] sm:$0xff]
    %v9605 = vld [vmem:[#allocation11 + $0x1a0] sm:$0xff]
    %v9606 = vld [vmem:[#allocation11 + $0x1a8] sm:$0xff]
    %v9607 = vld [vmem:[#allocation11 + $0x1b0] sm:$0xff]
    %v9608 = vld [vmem:[#allocation11 + $0x1b8] sm:$0xff]
    %v9609 = vld [vmem:[#allocation11 + $0x1c0] sm:$0xff]
    %v9610 = vld [vmem:[#allocation11 + $0x1c8] sm:$0xff]
    %v9611 = vld [vmem:[#allocation11 + $0x1d0] sm:$0xff]
    %v9612 = vld [vmem:[#allocation11 + $0x1d8] sm:$0xff]
    %v9613 = vld [vmem:[#allocation11 + $0x1e0] sm:$0xff]
    %v9614 = vld [vmem:[#allocation11 + $0x1e8] sm:$0xff]
    %v9615 = vld [vmem:[#allocation11 + $0x1f0] sm:$0xff]
    %v9616 = vld [vmem:[#allocation11 + $0x1f8] sm:$0xff]
    %v9617 = vld [vmem:[#allocation11 + $0x200] sm:$0xff]
    %v9618 = vld [vmem:[#allocation11 + $0x208] sm:$0xff]
    %v9619 = vld [vmem:[#allocation11 + $0x210] sm:$0xff]
    %v9620 = vld [vmem:[#allocation11 + $0x218] sm:$0xff]
    %v9621 = vld [vmem:[#allocation11 + $0x220] sm:$0xff]
    %v9622 = vld [vmem:[#allocation11 + $0x228] sm:$0xff]
    %v9623 = vld [vmem:[#allocation11 + $0x230] sm:$0xff]
    %v9624 = vld [vmem:[#allocation11 + $0x238] sm:$0xff]
    %v9625 = vld [vmem:[#allocation11 + $0x240] sm:$0xff]
    %v9626 = vld [vmem:[#allocation11 + $0x248] sm:$0xff]
    %v9627 = vld [vmem:[#allocation11 + $0x250] sm:$0xff]
    %v9628 = vld [vmem:[#allocation11 + $0x258] sm:$0xff]
    %v9629 = vld [vmem:[#allocation11 + $0x260] sm:$0xff]
    %v9630 = vld [vmem:[#allocation11 + $0x268] sm:$0xff]
    %v9631 = vld [vmem:[#allocation11 + $0x270] sm:$0xff]
    %v9632 = vld [vmem:[#allocation11 + $0x278] sm:$0xff]
    %v9633 = vld [vmem:[#allocation11 + $0x280] sm:$0xff]
    %v9634 = vld [vmem:[#allocation11 + $0x288] sm:$0xff]
    %v9635 = vld [vmem:[#allocation11 + $0x290] sm:$0xff]
    %v9636 = vld [vmem:[#allocation11 + $0x298] sm:$0xff]
    %v9637 = vld [vmem:[#allocation11 + $0x2a0] sm:$0xff]
    %v9638 = vld [vmem:[#allocation11 + $0x2a8] sm:$0xff]
    %v9639 = vld [vmem:[#allocation11 + $0x2b0] sm:$0xff]
    %v9640 = vld [vmem:[#allocation11 + $0x2b8] sm:$0xff]
    %v9641 = vld [vmem:[#allocation11 + $0x2c0] sm:$0xff]
    %v9642 = vld [vmem:[#allocation11 + $0x2c8] sm:$0xff]
    %v9643 = vld [vmem:[#allocation11 + $0x2d0] sm:$0xff]
    %v9644 = vld [vmem:[#allocation11 + $0x2d8] sm:$0xff]
    %v9645 = vld [vmem:[#allocation11 + $0x2e0] sm:$0xff]
    %v9646 = vld [vmem:[#allocation11 + $0x2e8] sm:$0xff]
    %v9647 = vld [vmem:[#allocation11 + $0x2f0] sm:$0xff]
    %v9648 = vld [vmem:[#allocation11 + $0x2f8] sm:$0xff]
    %v9649 = vld [vmem:[#allocation13] sm:$0x3]
    %v9651 = vlaneseq
    %v9652 = vshrl.u32 %v9651, 7
    %v9653 = vsub.s32 0, %v9652
    %v9654 = vrot.slane %v9649, %v9653
    %v9655 = vlaneseq
    %v9656 = vshrl.u32 %v9655, 7
    %v9657 = vsub.s32 1, %v9656
    %v9658 = vrot.slane %v9649, %v9657
    %v9757 = vunpack.c.l.b16 %v9553
    %v9758 = vunpack.c.h.b16 %v9553
    %v9759 = vunpack.c.l.b16 %v9554
    %v9760 = vunpack.c.h.b16 %v9554
    %v9761 = vunpack.c.l.b16 %v9555
    %v9762 = vunpack.c.h.b16 %v9555
    %v9763 = vunpack.c.l.b16 %v9556
    %v9764 = vunpack.c.h.b16 %v9556
    %v9765 = vunpack.c.l.b16 %v9557
    %v9766 = vunpack.c.h.b16 %v9557
    %v9767 = vunpack.c.l.b16 %v9558
    %v9768 = vunpack.c.h.b16 %v9558
    %v9769 = vunpack.c.l.b16 %v9559
    %v9770 = vunpack.c.h.b16 %v9559
    %v9771 = vunpack.c.l.b16 %v9560
    %v9772 = vunpack.c.h.b16 %v9560
    %v9773 = vunpack.c.l.b16 %v9561
    %v9774 = vunpack.c.h.b16 %v9561
    %v9775 = vunpack.c.l.b16 %v9562
    %v9776 = vunpack.c.h.b16 %v9562
    %v9777 = vunpack.c.l.b16 %v9563
    %v9778 = vunpack.c.h.b16 %v9563
    %v9779 = vunpack.c.l.b16 %v9564
    %v9780 = vunpack.c.h.b16 %v9564
    %v9781 = vunpack.c.l.b16 %v9565
    %v9782 = vunpack.c.h.b16 %v9565
    %v9783 = vunpack.c.l.b16 %v9566
    %v9784 = vunpack.c.h.b16 %v9566
    %v9785 = vunpack.c.l.b16 %v9567
    %v9786 = vunpack.c.h.b16 %v9567
    %v9787 = vunpack.c.l.b16 %v9568
    %v9788 = vunpack.c.h.b16 %v9568
    %v9789 = vunpack.c.l.b16 %v9569
    %v9790 = vunpack.c.h.b16 %v9569
    %v9791 = vunpack.c.l.b16 %v9570
    %v9792 = vunpack.c.h.b16 %v9570
    %v9793 = vunpack.c.l.b16 %v9571
    %v9794 = vunpack.c.h.b16 %v9571
    %v9795 = vunpack.c.l.b16 %v9572
    %v9796 = vunpack.c.h.b16 %v9572
    %v9797 = vunpack.c.l.b16 %v9573
    %v9798 = vunpack.c.h.b16 %v9573
    %v9799 = vunpack.c.l.b16 %v9574
    %v9800 = vunpack.c.h.b16 %v9574
    %v9801 = vunpack.c.l.b16 %v9575
    %v9802 = vunpack.c.h.b16 %v9575
    %v9803 = vunpack.c.l.b16 %v9576
    %v9804 = vunpack.c.h.b16 %v9576
    %v9805 = vunpack.c.l.b16 %v9577
    %v9806 = vunpack.c.h.b16 %v9577
    %v9807 = vunpack.c.l.b16 %v9578
    %v9808 = vunpack.c.h.b16 %v9578
    %v9809 = vunpack.c.l.b16 %v9579
    %v9810 = vunpack.c.h.b16 %v9579
    %v9811 = vunpack.c.l.b16 %v9580
    %v9812 = vunpack.c.h.b16 %v9580
    %v9813 = vunpack.c.l.b16 %v9581
    %v9814 = vunpack.c.h.b16 %v9581
    %v9815 = vunpack.c.l.b16 %v9582
    %v9816 = vunpack.c.h.b16 %v9582
    %v9817 = vunpack.c.l.b16 %v9583
    %v9818 = vunpack.c.h.b16 %v9583
    %v9819 = vunpack.c.l.b16 %v9584
    %v9820 = vunpack.c.h.b16 %v9584
    %v9821 = vunpack.c.l.b16 %v9585
    %v9822 = vunpack.c.h.b16 %v9585
    %v9823 = vunpack.c.l.b16 %v9586
    %v9824 = vunpack.c.h.b16 %v9586
    %v9825 = vunpack.c.l.b16 %v9587
    %v9826 = vunpack.c.h.b16 %v9587
    %v9827 = vunpack.c.l.b16 %v9588
    %v9828 = vunpack.c.h.b16 %v9588
    %v9829 = vunpack.c.l.b16 %v9589
    %v9830 = vunpack.c.h.b16 %v9589
    %v9831 = vunpack.c.l.b16 %v9590
    %v9832 = vunpack.c.h.b16 %v9590
    %v9833 = vunpack.c.l.b16 %v9591
    %v9834 = vunpack.c.h.b16 %v9591
    %v9835 = vunpack.c.l.b16 %v9592
    %v9836 = vunpack.c.h.b16 %v9592
    %v9837 = vunpack.c.l.b16 %v9593
    %v9838 = vunpack.c.h.b16 %v9593
    %v9839 = vunpack.c.l.b16 %v9594
    %v9840 = vunpack.c.h.b16 %v9594
    %v9841 = vunpack.c.l.b16 %v9595
    %v9842 = vunpack.c.h.b16 %v9595
    %v9843 = vunpack.c.l.b16 %v9596
    %v9844 = vunpack.c.h.b16 %v9596
    %v9845 = vunpack.c.l.b16 %v9597
    %v9846 = vunpack.c.h.b16 %v9597
    %v9847 = vunpack.c.l.b16 %v9598
    %v9848 = vunpack.c.h.b16 %v9598
    %v9849 = vunpack.c.l.b16 %v9599
    %v9850 = vunpack.c.h.b16 %v9599
    %v9851 = vunpack.c.l.b16 %v9600
    %v9852 = vunpack.c.h.b16 %v9600
    %v9853 = vunpack.c.l.b16 %v9601
    %v9854 = vunpack.c.h.b16 %v9601
    %v9855 = vunpack.c.l.b16 %v9602
    %v9856 = vunpack.c.h.b16 %v9602
    %v9857 = vunpack.c.l.b16 %v9603
    %v9858 = vunpack.c.h.b16 %v9603
    %v9859 = vunpack.c.l.b16 %v9604
    %v9860 = vunpack.c.h.b16 %v9604
    %v9861 = vunpack.c.l.b16 %v9605
    %v9862 = vunpack.c.h.b16 %v9605
    %v9863 = vunpack.c.l.b16 %v9606
    %v9864 = vunpack.c.h.b16 %v9606
    %v9865 = vunpack.c.l.b16 %v9607
    %v9866 = vunpack.c.h.b16 %v9607
    %v9867 = vunpack.c.l.b16 %v9608
    %v9868 = vunpack.c.h.b16 %v9608
    %v9869 = vunpack.c.l.b16 %v9609
    %v9870 = vunpack.c.h.b16 %v9609
    %v9871 = vunpack.c.l.b16 %v9610
    %v9872 = vunpack.c.h.b16 %v9610
    %v9873 = vunpack.c.l.b16 %v9611
    %v9874 = vunpack.c.h.b16 %v9611
    %v9875 = vunpack.c.l.b16 %v9612
    %v9876 = vunpack.c.h.b16 %v9612
    %v9877 = vunpack.c.l.b16 %v9613
    %v9878 = vunpack.c.h.b16 %v9613
    %v9879 = vunpack.c.l.b16 %v9614
    %v9880 = vunpack.c.h.b16 %v9614
    %v9881 = vunpack.c.l.b16 %v9615
    %v9882 = vunpack.c.h.b16 %v9615
    %v9883 = vunpack.c.l.b16 %v9616
    %v9884 = vunpack.c.h.b16 %v9616
    %v9885 = vunpack.c.l.b16 %v9617
    %v9886 = vunpack.c.h.b16 %v9617
    %v9887 = vunpack.c.l.b16 %v9618
    %v9888 = vunpack.c.h.b16 %v9618
    %v9889 = vunpack.c.l.b16 %v9619
    %v9890 = vunpack.c.h.b16 %v9619
    %v9891 = vunpack.c.l.b16 %v9620
    %v9892 = vunpack.c.h.b16 %v9620
    %v9893 = vunpack.c.l.b16 %v9621
    %v9894 = vunpack.c.h.b16 %v9621
    %v9895 = vunpack.c.l.b16 %v9622
    %v9896 = vunpack.c.h.b16 %v9622
    %v9897 = vunpack.c.l.b16 %v9623
    %v9898 = vunpack.c.h.b16 %v9623
    %v9899 = vunpack.c.l.b16 %v9624
    %v9900 = vunpack.c.h.b16 %v9624
    %v9901 = vunpack.c.l.b16 %v9625
    %v9902 = vunpack.c.h.b16 %v9625
    %v9903 = vunpack.c.l.b16 %v9626
    %v9904 = vunpack.c.h.b16 %v9626
    %v9905 = vunpack.c.l.b16 %v9627
    %v9906 = vunpack.c.h.b16 %v9627
    %v9907 = vunpack.c.l.b16 %v9628
    %v9908 = vunpack.c.h.b16 %v9628
    %v9909 = vunpack.c.l.b16 %v9629
    %v9910 = vunpack.c.h.b16 %v9629
    %v9911 = vunpack.c.l.b16 %v9630
    %v9912 = vunpack.c.h.b16 %v9630
    %v9913 = vunpack.c.l.b16 %v9631
    %v9914 = vunpack.c.h.b16 %v9631
    %v9915 = vunpack.c.l.b16 %v9632
    %v9916 = vunpack.c.h.b16 %v9632
    %v9917 = vunpack.c.l.b16 %v9633
    %v9918 = vunpack.c.h.b16 %v9633
    %v9919 = vunpack.c.l.b16 %v9634
    %v9920 = vunpack.c.h.b16 %v9634
    %v9921 = vunpack.c.l.b16 %v9635
    %v9922 = vunpack.c.h.b16 %v9635
    %v9923 = vunpack.c.l.b16 %v9636
    %v9924 = vunpack.c.h.b16 %v9636
    %v9925 = vunpack.c.l.b16 %v9637
    %v9926 = vunpack.c.h.b16 %v9637
    %v9927 = vunpack.c.l.b16 %v9638
    %v9928 = vunpack.c.h.b16 %v9638
    %v9929 = vunpack.c.l.b16 %v9639
    %v9930 = vunpack.c.h.b16 %v9639
    %v9931 = vunpack.c.l.b16 %v9640
    %v9932 = vunpack.c.h.b16 %v9640
    %v9933 = vunpack.c.l.b16 %v9641
    %v9934 = vunpack.c.h.b16 %v9641
    %v9935 = vunpack.c.l.b16 %v9642
    %v9936 = vunpack.c.h.b16 %v9642
    %v9937 = vunpack.c.l.b16 %v9643
    %v9938 = vunpack.c.h.b16 %v9643
    %v9939 = vunpack.c.l.b16 %v9644
    %v9940 = vunpack.c.h.b16 %v9644
    %v9941 = vunpack.c.l.b16 %v9645
    %v9942 = vunpack.c.h.b16 %v9645
    %v9943 = vunpack.c.l.b16 %v9646
    %v9944 = vunpack.c.h.b16 %v9646
    %v9945 = vunpack.c.l.b16 %v9647
    %v9946 = vunpack.c.h.b16 %v9647
    %v9947 = vunpack.c.l.b16 %v9648
    %v9948 = vunpack.c.h.b16 %v9648
    %v9949 = vpack.c.b16 %v9759, %v9757
    %v9950 = vpack.c.b16 %v9760, %v9758
    %v9951 = vpack.c.b16 %v9763, %v9761
    %v9952 = vpack.c.b16 %v9764, %v9762
    %v9953 = vpack.c.b16 %v9767, %v9765
    %v9954 = vpack.c.b16 %v9768, %v9766
    %v9955 = vpack.c.b16 %v9771, %v9769
    %v9956 = vpack.c.b16 %v9772, %v9770
    %v9957 = vpack.c.b16 %v9775, %v9773
    %v9958 = vpack.c.b16 %v9776, %v9774
    %v9959 = vpack.c.b16 %v9779, %v9777
    %v9960 = vpack.c.b16 %v9780, %v9778
    %v9961 = vpack.c.b16 %v9783, %v9781
    %v9962 = vpack.c.b16 %v9784, %v9782
    %v9963 = vpack.c.b16 %v9787, %v9785
    %v9964 = vpack.c.b16 %v9788, %v9786
    %v9965 = vpack.c.b16 %v9791, %v9789
    %v9966 = vpack.c.b16 %v9792, %v9790
    %v9967 = vpack.c.b16 %v9795, %v9793
    %v9968 = vpack.c.b16 %v9796, %v9794
    %v9969 = vpack.c.b16 %v9799, %v9797
    %v9970 = vpack.c.b16 %v9800, %v9798
    %v9971 = vpack.c.b16 %v9803, %v9801
    %v9972 = vpack.c.b16 %v9804, %v9802
    %v9973 = vpack.c.b16 %v9807, %v9805
    %v9974 = vpack.c.b16 %v9808, %v9806
    %v9975 = vpack.c.b16 %v9811, %v9809
    %v9976 = vpack.c.b16 %v9812, %v9810
    %v9977 = vpack.c.b16 %v9815, %v9813
    %v9978 = vpack.c.b16 %v9816, %v9814
    %v9979 = vpack.c.b16 %v9819, %v9817
    %v9980 = vpack.c.b16 %v9820, %v9818
    %v9981 = vpack.c.b16 %v9823, %v9821
    %v9982 = vpack.c.b16 %v9824, %v9822
    %v9983 = vpack.c.b16 %v9827, %v9825
    %v9984 = vpack.c.b16 %v9828, %v9826
    %v9985 = vpack.c.b16 %v9831, %v9829
    %v9986 = vpack.c.b16 %v9832, %v9830
    %v9987 = vpack.c.b16 %v9835, %v9833
    %v9988 = vpack.c.b16 %v9836, %v9834
    %v9989 = vpack.c.b16 %v9839, %v9837
    %v9990 = vpack.c.b16 %v9840, %v9838
    %v9991 = vpack.c.b16 %v9843, %v9841
    %v9992 = vpack.c.b16 %v9844, %v9842
    %v9993 = vpack.c.b16 %v9847, %v9845
    %v9994 = vpack.c.b16 %v9848, %v9846
    %v9995 = vpack.c.b16 %v9851, %v9849
    %v9996 = vpack.c.b16 %v9852, %v9850
    %v9997 = vpack.c.b16 %v9855, %v9853
    %v9998 = vpack.c.b16 %v9856, %v9854
    %v9999 = vpack.c.b16 %v9859, %v9857
    %v10000 = vpack.c.b16 %v9860, %v9858
    %v10001 = vpack.c.b16 %v9863, %v9861
    %v10002 = vpack.c.b16 %v9864, %v9862
    %v10003 = vpack.c.b16 %v9867, %v9865
    %v10004 = vpack.c.b16 %v9868, %v9866
    %v10005 = vpack.c.b16 %v9871, %v9869
    %v10006 = vpack.c.b16 %v9872, %v9870
    %v10007 = vpack.c.b16 %v9875, %v9873
    %v10008 = vpack.c.b16 %v9876, %v9874
    %v10009 = vpack.c.b16 %v9879, %v9877
    %v10010 = vpack.c.b16 %v9880, %v9878
    %v10011 = vpack.c.b16 %v9883, %v9881
    %v10012 = vpack.c.b16 %v9884, %v9882
    %v10013 = vpack.c.b16 %v9887, %v9885
    %v10014 = vpack.c.b16 %v9888, %v9886
    %v10015 = vpack.c.b16 %v9891, %v9889
    %v10016 = vpack.c.b16 %v9892, %v9890
    %v10017 = vpack.c.b16 %v9895, %v9893
    %v10018 = vpack.c.b16 %v9896, %v9894
    %v10019 = vpack.c.b16 %v9899, %v9897
    %v10020 = vpack.c.b16 %v9900, %v9898
    %v10021 = vpack.c.b16 %v9903, %v9901
    %v10022 = vpack.c.b16 %v9904, %v9902
    %v10023 = vpack.c.b16 %v9907, %v9905
    %v10024 = vpack.c.b16 %v9908, %v9906
    %v10025 = vpack.c.b16 %v9911, %v9909
    %v10026 = vpack.c.b16 %v9912, %v9910
    %v10027 = vpack.c.b16 %v9915, %v9913
    %v10028 = vpack.c.b16 %v9916, %v9914
    %v10029 = vpack.c.b16 %v9919, %v9917
    %v10030 = vpack.c.b16 %v9920, %v9918
    %v10031 = vpack.c.b16 %v9923, %v9921
    %v10032 = vpack.c.b16 %v9924, %v9922
    %v10033 = vpack.c.b16 %v9927, %v9925
    %v10034 = vpack.c.b16 %v9928, %v9926
    %v10035 = vpack.c.b16 %v9931, %v9929
    %v10036 = vpack.c.b16 %v9932, %v9930
    %v10037 = vpack.c.b16 %v9935, %v9933
    %v10038 = vpack.c.b16 %v9936, %v9934
    %v10039 = vpack.c.b16 %v9939, %v9937
    %v10040 = vpack.c.b16 %v9940, %v9938
    %v10041 = vpack.c.b16 %v9943, %v9941
    %v10042 = vpack.c.b16 %v9944, %v9942
    %v10043 = vpack.c.b16 %v9947, %v9945
    %v10044 = vpack.c.b16 %v9948, %v9946
    %10141 = vmatprep.subr.bf16.mxu0 %v9964
    %10142 = vmatpush1.bf16.msra.mxu0 %v9963
    %10143 = vmatprep.subr.bf16.mxu0 %v9962
    %10144 = vmatpush1.bf16.msra.mxu0 %v9961
    %10145 = vmatprep.subr.bf16.mxu0 %v9960
    %10146 = vmatpush1.bf16.msra.mxu0 %v9959
    %10147 = vmatprep.subr.bf16.mxu0 %v9958
    %10148 = vmatpush1.bf16.msra.mxu0 %v9957
    %10149 = vmatprep.subr.bf16.mxu0 %v9956
    %10150 = vmatpush1.bf16.msra.mxu0 %v9955
    %10151 = vmatprep.subr.bf16.mxu0 %v9954
    %10152 = vmatpush1.bf16.msra.mxu0 %v9953
    %10153 = vmatprep.subr.bf16.mxu0 %v9952
    %10154 = vmatpush1.bf16.msra.mxu0 %v9951
    %10155 = vmatprep.subr.bf16.mxu0 %v9950
    %10156 = vmatpush1.bf16.msra.mxu0 %v9949
    %10157 = vmatprep.subr.bf16.mxu0 %v9980
    %10158 = vmatpush2.bf16.msra.mxu0 %v9979
    %10159 = vmatprep.subr.bf16.mxu0 %v9978
    %10160 = vmatpush2.bf16.msra.mxu0 %v9977
    %10161 = vmatprep.subr.bf16.mxu0 %v9976
    %10162 = vmatpush2.bf16.msra.mxu0 %v9975
    %10163 = vmatprep.subr.bf16.mxu0 %v9974
    %10164 = vmatpush2.bf16.msra.mxu0 %v9973
    %10165 = vmatprep.subr.bf16.mxu0 %v9972
    %10166 = vmatpush2.bf16.msra.mxu0 %v9971
    %10167 = vmatprep.subr.bf16.mxu0 %v9970
    %10168 = vmatpush2.bf16.msra.mxu0 %v9969
    %10169 = vmatprep.subr.bf16.mxu0 %v9968
    %10170 = vmatpush2.bf16.msra.mxu0 %v9967
    %10171 = vmatprep.subr.bf16.mxu0 %v9966
    %10172 = vmatpush2.bf16.msra.mxu0 %v9965
    %10173 = vmatprep.mubr.bf16.mxu0 %v9548
    %10174 = vmatmul.mubr.bf16.gmra.mxu0 %v9547
    %v10175 = vpop.f32.mrf.mxu0
    %v10176 = vadd.f32 %v9654, %v10175
    %v10177 = vpop.f32.mrf.mxu0
    %v10178 = vadd.f32 %v9658, %v10177
    %v10179 = vpop.f32.mrf.mxu0
    %v10180 = vpop.f32.mrf.mxu0
    %10181 = vdwg.mxu0
    %10182 = vmatprep.subr.bf16.mxu0 %v9996
    %10183 = vmatpush1.bf16.msra.mxu0 %v9995
    %10184 = vmatprep.subr.bf16.mxu0 %v9994
    %10185 = vmatpush1.bf16.msra.mxu0 %v9993
    %10186 = vmatprep.subr.bf16.mxu0 %v9992
    %10187 = vmatpush1.bf16.msra.mxu0 %v9991
    %10188 = vmatprep.subr.bf16.mxu0 %v9990
    %10189 = vmatpush1.bf16.msra.mxu0 %v9989
    %10190 = vmatprep.subr.bf16.mxu0 %v9988
    %10191 = vmatpush1.bf16.msra.mxu0 %v9987
    %10192 = vmatprep.subr.bf16.mxu0 %v9986
    %10193 = vmatpush1.bf16.msra.mxu0 %v9985
    %10194 = vmatprep.subr.bf16.mxu0 %v9984
    %10195 = vmatpush1.bf16.msra.mxu0 %v9983
    %10196 = vmatprep.subr.bf16.mxu0 %v9982
    %10197 = vmatpush1.bf16.msra.mxu0 %v9981
    %10198 = vmatprep.subr.bf16.mxu0 %v10012
    %10199 = vmatpush2.bf16.msra.mxu0 %v10011
    %10200 = vmatprep.subr.bf16.mxu0 %v10010
    %10201 = vmatpush2.bf16.msra.mxu0 %v10009
    %10202 = vmatprep.subr.bf16.mxu0 %v10008
    %10203 = vmatpush2.bf16.msra.mxu0 %v10007
    %10204 = vmatprep.subr.bf16.mxu0 %v10006
    %10205 = vmatpush2.bf16.msra.mxu0 %v10005
    %10206 = vmatprep.subr.bf16.mxu0 %v10004
    %10207 = vmatpush2.bf16.msra.mxu0 %v10003
    %10208 = vmatprep.subr.bf16.mxu0 %v10002
    %10209 = vmatpush2.bf16.msra.mxu0 %v10001
    %10210 = vmatprep.subr.bf16.mxu0 %v10000
    %10211 = vmatpush2.bf16.msra.mxu0 %v9999
    %10212 = vmatprep.subr.bf16.mxu0 %v9998
    %10213 = vmatpush2.bf16.msra.mxu0 %v9997
    %10214 = vmatprep.mubr.bf16.mxu0 %v9550
    %10215 = vmatmul.mubr.bf16.gmra.mxu0 %v9549
    %v10216 = vpop.f32.mrf.mxu0
    %v10217 = vadd.f32 %v10176, %v10216
    %v10218 = vpop.f32.mrf.mxu0
    %v10219 = vadd.f32 %v10178, %v10218
    %v10220 = vpop.f32.mrf.mxu0
    %v10221 = vpop.f32.mrf.mxu0
    %10222 = vdwg.mxu0
    %10223 = vmatprep.subr.bf16.mxu0 %v10028
    %10224 = vmatpush1.bf16.msra.mxu0 %v10027
    %10225 = vmatprep.subr.bf16.mxu0 %v10026
    %10226 = vmatpush1.bf16.msra.mxu0 %v10025
    %10227 = vmatprep.subr.bf16.mxu0 %v10024
    %10228 = vmatpush1.bf16.msra.mxu0 %v10023
    %10229 = vmatprep.subr.bf16.mxu0 %v10022
    %10230 = vmatpush1.bf16.msra.mxu0 %v10021
    %10231 = vmatprep.subr.bf16.mxu0 %v10020
    %10232 = vmatpush1.bf16.msra.mxu0 %v10019
    %10233 = vmatprep.subr.bf16.mxu0 %v10018
    %10234 = vmatpush1.bf16.msra.mxu0 %v10017
    %10235 = vmatprep.subr.bf16.mxu0 %v10016
    %10236 = vmatpush1.bf16.msra.mxu0 %v10015
    %10237 = vmatprep.subr.bf16.mxu0 %v10014
    %10238 = vmatpush1.bf16.msra.mxu0 %v10013
    %10239 = vmatprep.subr.bf16.mxu0 %v10044
    %10240 = vmatpush2.bf16.msra.mxu0 %v10043
    %10241 = vmatprep.subr.bf16.mxu0 %v10042
    %10242 = vmatpush2.bf16.msra.mxu0 %v10041
    %10243 = vmatprep.subr.bf16.mxu0 %v10040
    %10244 = vmatpush2.bf16.msra.mxu0 %v10039
    %10245 = vmatprep.subr.bf16.mxu0 %v10038
    %10246 = vmatpush2.bf16.msra.mxu0 %v10037
    %10247 = vmatprep.subr.bf16.mxu0 %v10036
    %10248 = vmatpush2.bf16.msra.mxu0 %v10035
    %10249 = vmatprep.subr.bf16.mxu0 %v10034
    %10250 = vmatpush2.bf16.msra.mxu0 %v10033
    %10251 = vmatprep.subr.bf16.mxu0 %v10032
    %10252 = vmatpush2.bf16.msra.mxu0 %v10031
    %10253 = vmatprep.subr.bf16.mxu0 %v10030
    %10254 = vmatpush2.bf16.msra.mxu0 %v10029
    %10255 = vmatprep.mubr.bf16.mxu0 %v9552
    %10256 = vmatmul.mubr.bf16.gmra.mxu0 %v9551
    %v10257 = vpop.f32.mrf.mxu0
    %v10258 = vadd.f32 %v10217, %v10257
    %v10259 = vpop.f32.mrf.mxu0
    %v10260 = vadd.f32 %v10219, %v10259
    %v10261 = vpop.f32.mrf.mxu0
    %v10262 = vpop.f32.mrf.mxu0
    %10263 = vdwg.mxu0
    %vm10264 = vcmp.gt.f32.partialorder %v10258, 0.0
    %vm10265 = vcmp.gt.f32.partialorder %v10260, 0.0
    %v10266 = vmul.f32 %v10258, 0.01
    %v10267 = vmul.f32 %v10260, 0.01
    %v10268 = vsel %vm10264, %v10258, %v10266
    %v10269 = vsel %vm10265, %v10260, %v10267
    %v10270 = vpack.c.bf16 %v10268, %v10268
    %v10271 = vpack.c.bf16 %v10269, %v10269
    %v10272 = vld [vmem:[#allocation14] sm:$0xf]
    %v10273 = vld [vmem:[#allocation14 + $0x4] sm:$0xf]
    %v10274 = vld [vmem:[#allocation14 + $0x8] sm:$0xf]
    %v10275 = vld [vmem:[#allocation14 + $0xc] sm:$0xf]
    %v10276 = vld [vmem:[#allocation14 + $0x10] sm:$0xf]
    %v10277 = vld [vmem:[#allocation14 + $0x14] sm:$0xf]
    %v10278 = vld [vmem:[#allocation14 + $0x18] sm:$0xf]
    %v10279 = vld [vmem:[#allocation14 + $0x1c] sm:$0xf]
    %v10280 = vld [vmem:[#allocation14 + $0x20] sm:$0xf]
    %v10281 = vld [vmem:[#allocation14 + $0x24] sm:$0xf]
    %v10282 = vld [vmem:[#allocation14 + $0x28] sm:$0xf]
    %v10283 = vld [vmem:[#allocation14 + $0x2c] sm:$0xf]
    %v10284 = vld [vmem:[#allocation14 + $0x30] sm:$0xf]
    %v10285 = vld [vmem:[#allocation14 + $0x34] sm:$0xf]
    %v10286 = vld [vmem:[#allocation14 + $0x38] sm:$0xf]
    %v10287 = vld [vmem:[#allocation14 + $0x3c] sm:$0xf]
    %v10288 = vld [vmem:[#allocation14 + $0x40] sm:$0xf]
    %v10289 = vld [vmem:[#allocation14 + $0x44] sm:$0xf]
    %v10290 = vld [vmem:[#allocation14 + $0x48] sm:$0xf]
    %v10291 = vld [vmem:[#allocation14 + $0x4c] sm:$0xf]
    %v10292 = vld [vmem:[#allocation14 + $0x50] sm:$0xf]
    %v10293 = vld [vmem:[#allocation14 + $0x54] sm:$0xf]
    %v10294 = vld [vmem:[#allocation14 + $0x58] sm:$0xf]
    %v10295 = vld [vmem:[#allocation14 + $0x5c] sm:$0xf]
    %v10296 = vld [vmem:[#allocation14 + $0x60] sm:$0xf]
    %v10297 = vld [vmem:[#allocation14 + $0x64] sm:$0xf]
    %v10298 = vld [vmem:[#allocation14 + $0x68] sm:$0xf]
    %v10299 = vld [vmem:[#allocation14 + $0x6c] sm:$0xf]
    %v10300 = vld [vmem:[#allocation14 + $0x70] sm:$0xf]
    %v10301 = vld [vmem:[#allocation14 + $0x74] sm:$0xf]
    %v10302 = vld [vmem:[#allocation14 + $0x78] sm:$0xf]
    %v10303 = vld [vmem:[#allocation14 + $0x7c] sm:$0xf]
    %v10304 = vld [vmem:[#allocation16] sm:$0x1]
    %v10306 = vlaneseq
    %v10307 = vshrl.u32 %v10306, 7
    %v10308 = vsub.s32 0, %v10307
    %v10309 = vrot.slane %v10304, %v10308
    %v10343 = vunpack.c.l.b16 %v10272
    %v10344 = vunpack.c.l.b16 %v10273
    %v10345 = vunpack.c.l.b16 %v10274
    %v10346 = vunpack.c.l.b16 %v10275
    %v10347 = vunpack.c.l.b16 %v10276
    %v10348 = vunpack.c.l.b16 %v10277
    %v10349 = vunpack.c.l.b16 %v10278
    %v10350 = vunpack.c.l.b16 %v10279
    %v10351 = vunpack.c.l.b16 %v10280
    %v10352 = vunpack.c.l.b16 %v10281
    %v10353 = vunpack.c.l.b16 %v10282
    %v10354 = vunpack.c.l.b16 %v10283
    %v10355 = vunpack.c.l.b16 %v10284
    %v10356 = vunpack.c.l.b16 %v10285
    %v10357 = vunpack.c.l.b16 %v10286
    %v10358 = vunpack.c.l.b16 %v10287
    %v10359 = vunpack.c.l.b16 %v10288
    %v10360 = vunpack.c.l.b16 %v10289
    %v10361 = vunpack.c.l.b16 %v10290
    %v10362 = vunpack.c.l.b16 %v10291
    %v10363 = vunpack.c.l.b16 %v10292
    %v10364 = vunpack.c.l.b16 %v10293
    %v10365 = vunpack.c.l.b16 %v10294
    %v10366 = vunpack.c.l.b16 %v10295
    %v10367 = vunpack.c.l.b16 %v10296
    %v10368 = vunpack.c.l.b16 %v10297
    %v10369 = vunpack.c.l.b16 %v10298
    %v10370 = vunpack.c.l.b16 %v10299
    %v10371 = vunpack.c.l.b16 %v10300
    %v10372 = vunpack.c.l.b16 %v10301
    %v10373 = vunpack.c.l.b16 %v10302
    %v10374 = vunpack.c.l.b16 %v10303
    %v10375 = vpack.c.b16 %v10344, %v10343
    %v10376 = vpack.c.b16 %v10346, %v10345
    %v10377 = vpack.c.b16 %v10348, %v10347
    %v10378 = vpack.c.b16 %v10350, %v10349
    %v10379 = vpack.c.b16 %v10352, %v10351
    %v10380 = vpack.c.b16 %v10354, %v10353
    %v10381 = vpack.c.b16 %v10356, %v10355
    %v10382 = vpack.c.b16 %v10358, %v10357
    %v10383 = vpack.c.b16 %v10360, %v10359
    %v10384 = vpack.c.b16 %v10362, %v10361
    %v10385 = vpack.c.b16 %v10364, %v10363
    %v10386 = vpack.c.b16 %v10366, %v10365
    %v10387 = vpack.c.b16 %v10368, %v10367
    %v10388 = vpack.c.b16 %v10370, %v10369
    %v10389 = vpack.c.b16 %v10372, %v10371
    %v10390 = vpack.c.b16 %v10374, %v10373
    %10407 = vmatprep.subr.bf16.mxu0 0
    %10408 = vmatpush1.bf16.msra.mxu0 %v10382
    %10409 = vmatprep.subr.bf16.mxu0 0
    %10410 = vmatpush1.bf16.msra.mxu0 %v10381
    %10411 = vmatprep.subr.bf16.mxu0 0
    %10412 = vmatpush1.bf16.msra.mxu0 %v10380
    %10413 = vmatprep.subr.bf16.mxu0 0
    %10414 = vmatpush1.bf16.msra.mxu0 %v10379
    %10415 = vmatprep.subr.bf16.mxu0 0
    %10416 = vmatpush1.bf16.msra.mxu0 %v10378
    %10417 = vmatprep.subr.bf16.mxu0 0
    %10418 = vmatpush1.bf16.msra.mxu0 %v10377
    %10419 = vmatprep.subr.bf16.mxu0 0
    %10420 = vmatpush1.bf16.msra.mxu0 %v10376
    %10421 = vmatprep.subr.bf16.mxu0 0
    %10422 = vmatpush1.bf16.msra.mxu0 %v10375
    %10423 = vmatprep.subr.bf16.mxu0 0
    %10424 = vmatpush2.bf16.msra.mxu0 %v10390
    %10425 = vmatprep.subr.bf16.mxu0 0
    %10426 = vmatpush2.bf16.msra.mxu0 %v10389
    %10427 = vmatprep.subr.bf16.mxu0 0
    %10428 = vmatpush2.bf16.msra.mxu0 %v10388
    %10429 = vmatprep.subr.bf16.mxu0 0
    %10430 = vmatpush2.bf16.msra.mxu0 %v10387
    %10431 = vmatprep.subr.bf16.mxu0 0
    %10432 = vmatpush2.bf16.msra.mxu0 %v10386
    %10433 = vmatprep.subr.bf16.mxu0 0
    %10434 = vmatpush2.bf16.msra.mxu0 %v10385
    %10435 = vmatprep.subr.bf16.mxu0 0
    %10436 = vmatpush2.bf16.msra.mxu0 %v10384
    %10437 = vmatprep.subr.bf16.mxu0 0
    %10438 = vmatpush2.bf16.msra.mxu0 %v10383
    %10439 = vmatprep.mubr.bf16.mxu0 %v10271
    %10440 = vmatmul.mubr.bf16.gmra.mxu0 %v10270
    %v10441 = vpop.f32.mrf.mxu0
    %v10442 = vadd.f32 %v10309, %v10441
    %v10443 = vpop.f32.mrf.mxu0
    %v10444 = vpop.f32.mrf.mxu0
    %v10445 = vpop.f32.mrf.mxu0
    %10446 = vdwg.mxu0
    %10447 = vst [vmem:[#allocation17] sm:$0xff] %v10442
    // Predicated region
    $region74: #{tpu_custom_call.1} parent=1 // pred_check
      _
    $region75: #{tpu_custom_call.1} parent=1 // pred_check_branch
      %10449 = sbr.rel (0) target = $region77
    $region76: #{tpu_custom_call.1} parent=1 // pred_region
      %s10451 = ssub.s32 128, 128
      %10452 = vsyncadd [#allocation4], %s10451
      %s10454 = sshll.u32 [#allocation17], 4
      %s10455 = int_to_ptr.vmem [resolvable:$true] %s10454
      %10457 = dma.vmem_to_hbm [thread:$0]  %s10455, 128, %s9, [#allocation4]
    $region77: #{tpu_custom_call.1} parent=1 // pred_fallthru
      _
    // Predicated region
    $region78: #{tpu_custom_call.1} parent=1 // pred_check
      _
    $region79: #{tpu_custom_call.1} parent=1 // pred_check_branch
      %10459 = sbr.rel (0) target = $region81
    $region80: #{tpu_custom_call.1} parent=1 // pred_region
      %10460 = dma.done [#allocation4], 128
    $region81: #{tpu_custom_call.1} parent=1 // pred_fallthru
      _
    %10461 = vsyncpa [#allocation3], 1
    %10462 = vsyncpa [#allocation6], 1
    %10463 = vsyncpa [#allocation9], 1
    %10464 = vsyncpa [#allocation12], 1
    %10465 = vsyncpa [#allocation15], 1
    %10466 = vsyncpa [#allocation4], 1

</llo_original>
